<compile_context>
chip_gen: v5e
topology: v5e:2x2
jax: 0.10.0
libtpu: 0.0.40
codegen_flags: <defaults>
</compile_context>

<pallas_src>
import functools

import jax
import jax.numpy as jnp
from jax.experimental import pallas as pl
from jax.experimental.pallas import tpu as pltpu


# ----------------------------------------------------------------------------
# shared in-kernel helper: 3x3 "SAME" conv as a single im2col matmul
# ----------------------------------------------------------------------------
def _conv3x3_im2col(img, w_flat, bias, *, act):
    """img: (H, W, Cin) bf16 channels-last value; w_flat: (9*Cin, Cout) bf16 with
    rows ordered (kh*3+kw)*Cin + ci; bias: (1, Cout) f32.  Returns (H*W, Cout) f32."""
    h, w, cin = img.shape
    zr = jnp.zeros((1, w, cin), img.dtype)
    xp = jnp.concatenate([zr, img, zr], axis=0)              # (H+2, W, Cin)
    zc = jnp.zeros((h + 2, 1, cin), img.dtype)
    xp = jnp.concatenate([zc, xp, zc], axis=1)               # (H+2, W+2, Cin)
    slabs = []
    for kh in range(3):
        for kw in range(3):
            # major/sublane static slices + leading-dim merge (no lane relayout)
            slabs.append(xp[kh:kh + h, kw:kw + w, :].reshape(h * w, cin))
    patch = jnp.concatenate(slabs, axis=-1)                  # (H*W, 9*Cin)
    y = jnp.dot(patch, w_flat, preferred_element_type=jnp.float32) + bias
    if act:
        y = jnp.maximum(y, 0.0)
    return y


# ----------------------------------------------------------------------------
# kernel 1: g branch == lp 'g' half + self.conv stack (two 3x3 convs, ReLU)
# ----------------------------------------------------------------------------
def _gbranch_kernel(xg_ref, wg_ref, bg_ref, wc0_ref, bc0_ref, wc1_ref, bc1_ref,
                    o_ref, *, t, l, c):
    # xg_ref: (1, l, c_in, t) -- the NCHW input permuted so the lp projection
    # lands directly in the conv's channels-last layout (spatial (l, c), chan t).
    xg = xg_ref[0].astype(jnp.bfloat16)                          # (l, c_in, t)
    wg = jnp.broadcast_to(wg_ref[...][None, :, :], (l, c, c))    # (l, c_out, c_in)
    # g[li, co, ti] = sum_k wlp_g[k, co] * x[b, k, ti, li]   (batched over li)
    g = jnp.einsum("lok,lkt->lot", wg, xg,
                   preferred_element_type=jnp.float32)           # (l, c, t) f32
    g = g + bg_ref[...]                                          # bias (c, 1)

    h = _conv3x3_im2col(g.astype(jnp.bfloat16), wc0_ref[...], bc0_ref[...],
                        act=True)                                # (l*c, 4t)
    h = h.reshape(l, c, 4 * t)
    h = _conv3x3_im2col(h.astype(jnp.bfloat16), wc1_ref[...], bc1_ref[...],
                        act=True)                                # (l*c, t)
    o_ref[0] = h.astype(o_ref.dtype)


# ----------------------------------------------------------------------------
# kernel 2: everything else (lp x2-half + downsample, pconv + pred errors,
#           gelu gate, m/m1, conv1, conv2, fused residual)
# ----------------------------------------------------------------------------
def _main_kernel(x_ref, g_ref, wcat_ref, bcat_ref, wp_ref, bp_ref,
                 wm_ref, bm_ref, wm1_ref, bm1_ref,
                 w1_ref, b1_ref, w2_ref, b2_ref, o_ref, *, t, l, c):
    f32, bf16 = jnp.float32, jnp.bfloat16
    x = x_ref[0]                                                 # (t*l, c) f32

    # 1) fused lp (x2 half) + downsample: single matmul -> [x2 | identity]
    proj = jnp.dot(x.astype(bf16), wcat_ref[...],
                   preferred_element_type=f32) + bcat_ref[...]   # (t*l, 2c)
    x2 = proj[:, :c]
    identity = proj[:, c:]

    # 2) pconv over the (t-1) context rows + prediction errors + out_x assembly
    ctx = jnp.concatenate([x2[i * l:(i + 1) * l, :] for i in range(t - 1)],
                          axis=-1)                               # (l, (t-1)*c)
    preds = jnp.dot(ctx.astype(bf16), wp_ref[...],
                    preferred_element_type=f32) + bp_ref[...]
    preds = jnp.maximum(preds, 0.0)                              # (l, c)
    choices = x2[(t - 1) * l:, :]                                # (l, c)
    pred_err = jnp.maximum(choices, 0.0) - preds
    out_x = jnp.concatenate([x2[:(t - 1) * l, :], pred_err], axis=0)   # (t*l, c)

    # 3) m -> gelu gate -> elementwise mul -> m1
    gate = jnp.dot(g_ref[0].astype(bf16), wm_ref[...],
                   preferred_element_type=f32) + bm_ref[...]
    gate = jax.nn.gelu(gate, approximate=True)
    feat = out_x * gate
    y = jnp.dot(feat.astype(bf16), wm1_ref[...],
                preferred_element_type=f32) + bm1_ref[...]       # (t*l, c)

    # 4) conv1 (c -> 4c, relu), conv2 (4c -> c, relu) + fused residual add
    h = _conv3x3_im2col(y.astype(bf16).reshape(t, l, c),
                        w1_ref[...], b1_ref[...], act=True)      # (t*l, 4c)
    h = _conv3x3_im2col(h.astype(bf16).reshape(t, l, 4 * c),
                        w2_ref[...], b2_ref[...], act=True)      # (t*l, c)
    o_ref[0] = (h + identity).astype(o_ref.dtype)


# ----------------------------------------------------------------------------
# GPRB forward (Pallas)
# ----------------------------------------------------------------------------
def gprb_pallas(x_nchw, params, num_contexts):
    b, c, t, l = x_nchw.shape
    assert t == num_contexts + 1, "time dim must equal num_contexts + 1"
    f32, bf16 = jnp.float32, jnp.bfloat16
    md_t, md_c = 4 * t, 4 * c
    parallel = pltpu.CompilerParams(dimension_semantics=("parallel",))

    # --- tiny XLA-side layout views + weight prep (all <= 36 KB, one pass) ---
    x_rows = jnp.transpose(x_nchw, (0, 2, 3, 1)).reshape(b, t * l, c)   # (b, t*l, c)
    x_g = jnp.transpose(x_nchw, (0, 3, 1, 2))                            # (b, l, c, t)

    wg = params["wlp"][:, :c].T.astype(bf16)                             # (c_out, c_in)
    bg = params["blp"][:c].reshape(c, 1)
    wcat = jnp.concatenate([params["wlp"][:, c:], params["wd"]], axis=1).astype(bf16)
    bcat = jnp.concatenate([params["blp"][c:], params["bd"]]).reshape(1, 2 * c)

    def w2d(name):
        return params[name].astype(bf16)

    def brow(name):
        v = params[name]
        return v.reshape(1, v.shape[0])

    # --- kernel 1: g branch, one grid step per batch element ---
    g_conv = pl.pallas_call(
        functools.partial(_gbranch_kernel, t=t, l=l, c=c),
        out_shape=jax.ShapeDtypeStruct((b, l * c, t), f32),
        grid=(b,),
        in_specs=[
            pl.BlockSpec((1, l, c, t), lambda i: (i, 0, 0, 0)),
            pl.BlockSpec((c, c), lambda i: (0, 0)),
            pl.BlockSpec((c, 1), lambda i: (0, 0)),
            pl.BlockSpec((9 * t, md_t), lambda i: (0, 0)),
            pl.BlockSpec((1, md_t), lambda i: (0, 0)),
            pl.BlockSpec((9 * md_t, t), lambda i: (0, 0)),
            pl.BlockSpec((1, t), lambda i: (0, 0)),
        ],
        out_specs=pl.BlockSpec((1, l * c, t), lambda i: (i, 0, 0)),
        compiler_params=parallel,
    )(x_g, wg, bg, w2d("wc0"), brow("bc0"), w2d("wc1"), brow("bc1"))

    # channel<->spatial flip of the g branch is absorbed across the kernel
    # boundary here (36 KB transpose; the block DMAs re-tile it for free).
    g_rows = jnp.transpose(g_conv.reshape(b, l, c, t),
                           (0, 3, 1, 2)).reshape(b, t * l, c)

    # --- kernel 2: everything else, one grid step per batch element ---
    out_rows = pl.pallas_call(
        functools.partial(_main_kernel, t=t, l=l, c=c),
        out_shape=jax.ShapeDtypeStruct((b, t * l, c), x_nchw.dtype),
        grid=(b,),
        in_specs=[
            pl.BlockSpec((1, t * l, c), lambda i: (i, 0, 0)),
            pl.BlockSpec((1, t * l, c), lambda i: (i, 0, 0)),
            pl.BlockSpec((c, 2 * c), lambda i: (0, 0)),
            pl.BlockSpec((1, 2 * c), lambda i: (0, 0)),
            pl.BlockSpec(((t - 1) * c, c), lambda i: (0, 0)),
            pl.BlockSpec((1, c), lambda i: (0, 0)),
            pl.BlockSpec((c, c), lambda i: (0, 0)),
            pl.BlockSpec((1, c), lambda i: (0, 0)),
            pl.BlockSpec((c, c), lambda i: (0, 0)),
            pl.BlockSpec((1, c), lambda i: (0, 0)),
            pl.BlockSpec((9 * c, md_c), lambda i: (0, 0)),
            pl.BlockSpec((1, md_c), lambda i: (0, 0)),
            pl.BlockSpec((9 * md_c, c), lambda i: (0, 0)),
            pl.BlockSpec((1, c), lambda i: (0, 0)),
        ],
        out_specs=pl.BlockSpec((1, t * l, c), lambda i: (i, 0, 0)),
        compiler_params=parallel,
    )(x_rows, g_rows,
      wcat, bcat,
      w2d("wp"), brow("bp"),
      w2d("wm"), brow("bm"),
      w2d("wm1"), brow("bm1"),
      w2d("w1"), brow("b1"),
      w2d("w2"), brow("b2"))

    return jnp.transpose(out_rows.reshape(b, t, l, c), (0, 3, 1, 2))    # NCHW


# ----------------------------------------------------------------------------
# pure-JAX reference (same folded-BN / eval-mode semantics, f32)
# ----------------------------------------------------------------------------
def gprb_ref(x_nchw, params, num_contexts):
    b, c, t, l = x_nchw.shape
    x_cl = jnp.transpose(x_nchw, (0, 2, 3, 1)).astype(jnp.float32)

    def conv3x3(img, w_flat, bias, act=True):
        cin, cout = img.shape[-1], w_flat.shape[-1]
        w = w_flat.reshape(3, 3, cin, cout)
        y = jax.lax.conv_general_dilated(
            img, w, window_strides=(1, 1), padding="SAME",
            dimension_numbers=("NHWC", "HWIO", "NHWC")) + bias
        return jnp.maximum(y, 0.0) if act else y

    identity = x_cl @ params["wd"] + params["bd"]
    lp = x_cl @ params["wlp"] + params["blp"]
    g, x2 = lp[..., :c], lp[..., c:]

    g_img = jnp.transpose(g, (0, 2, 3, 1))                  # (b, l, c, t)
    h = conv3x3(g_img, params["wc0"], params["bc0"])
    h = conv3x3(h, params["wc1"], params["bc1"])
    g_conv = jnp.transpose(h, (0, 3, 1, 2))                 # (b, t, l, c)
    g_lin = g_conv @ params["wm"] + params["bm"]

    contexts, choices = x2[:, :t - 1], x2[:, t - 1]
    ctx_rows = jnp.transpose(contexts, (0, 2, 1, 3)).reshape(b, l, (t - 1) * c)
    preds = jnp.maximum(ctx_rows @ params["wp"] + params["bp"], 0.0)
    pred_err = jnp.maximum(choices, 0.0) - preds
    out_x = jnp.concatenate([contexts, pred_err[:, None]], axis=1)

    feat = (out_x * jax.nn.gelu(g_lin, approximate=True)) @ params["wm1"] + params["bm1"]
    h = conv3x3(feat, params["w1"], params["b1"])
    out = conv3x3(h, params["w2"], params["b2"]) + identity
    return jnp.transpose(out, (0, 3, 1, 2))


# ----------------------------------------------------------------------------
# parameter init: weights stored (in, out); 3x3 conv weights flat as
# (9*Cin, Cout) with rows ordered (kh*3+kw)*Cin + ci; BatchNorm folded in;
# ou_planes == in_planes so the residual works.
# ----------------------------------------------------------------------------
def init_params(key, c, num_contexts, scale=0.1):
    t = num_contexts + 1
    keys = iter(jax.random.split(key, 24))

    def w(shape):
        return scale * jax.random.normal(next(keys), shape, jnp.float32)

    return {
        "wd": w((c, c)), "bd": w((c,)),                    # downsample (1x1 conv + BN)
        "wlp": w((c, 2 * c)), "blp": w((2 * c,)),          # lp
        "wc0": w((9 * t, 4 * t)), "bc0": w((4 * t,)),      # self.conv[0]
        "wc1": w((9 * 4 * t, t)), "bc1": w((t,)),          # self.conv[1]
        "wm": w((c, c)), "bm": w((c,)),                    # m
        "wp": w((num_contexts * c, c)), "bp": w((c,)),     # pconv, flat (kt, ci) -> co
        "wm1": w((c, c)), "bm1": w((c,)),                  # m1
        "w1": w((9 * c, 4 * c)), "b1": w((4 * c,)),        # conv1
        "w2": w((9 * 4 * c, c)), "b2": w((c,)),            # conv2
    }


if __name__ == "__main__":
    B, C, L = 2, 32, 16
    NUM_CONTEXTS = 8
    T = NUM_CONTEXTS + 1

    key = jax.random.PRNGKey(0)
    k_x, k_p = jax.random.split(key)
    x = jax.random.normal(k_x, (B, C, T, L), jnp.float32)   # NCHW like the torch module
    params = init_params(k_p, C, NUM_CONTEXTS)

    fwd = jax.jit(gprb_pallas, static_argnums=2)
    ref_fn = jax.jit(gprb_ref, static_argnums=2)

    out = jax.block_until_ready(fwd(x, params, NUM_CONTEXTS))
    ref = jax.block_until_ready(ref_fn(x, params, NUM_CONTEXTS))

    assert out.shape == (B, C, T, L)
    max_err = float(jnp.max(jnp.abs(out - ref)))
    # bf16 MXU operands in the kernel (per perf review) vs. the f32 reference.
    assert jnp.allclose(out, ref, atol=2e-2, rtol=2e-2), max_err
    print("KERNEL_OK")
</pallas_src>

<mosaic_0001>
module attributes {stable_mosaic.version = 11 : i64} {
  func.func @_gbranch_kernel(%arg0: i32, %arg1: memref<1x16x32x9xf32, #tpu.memory_space<vmem>>, %arg2: memref<32x32xbf16, #tpu.memory_space<vmem>>, %arg3: memref<32x1xf32, #tpu.memory_space<vmem>>, %arg4: memref<81x36xbf16, #tpu.memory_space<vmem>>, %arg5: memref<1x36xf32, #tpu.memory_space<vmem>>, %arg6: memref<324x9xbf16, #tpu.memory_space<vmem>>, %arg7: memref<1x9xf32, #tpu.memory_space<vmem>>, %arg8: memref<1x512x9xf32, #tpu.memory_space<vmem>>) attributes {dimension_semantics = [#tpu.dimension_semantics<parallel>], iteration_bounds = array<i64: 2>, scalar_prefetch = 0 : i64, scratch_operands = 0 : i64, tpu.core_type = #tpu.core_type<tc>, window_params = [{transform_indices = @transform_0, window_bounds = array<i64: 1, 16, 32, 9>}, {pipeline_mode = #tpu.pipeline_mode<synchronous>, transform_indices = @transform_1, window_bounds = array<i64: 32, 32>}, {pipeline_mode = #tpu.pipeline_mode<synchronous>, transform_indices = @transform_2, window_bounds = array<i64: 32, 1>}, {pipeline_mode = #tpu.pipeline_mode<synchronous>, transform_indices = @transform_3, window_bounds = array<i64: 81, 36>}, {pipeline_mode = #tpu.pipeline_mode<synchronous>, transform_indices = @transform_4, window_bounds = array<i64: 1, 36>}, {pipeline_mode = #tpu.pipeline_mode<synchronous>, transform_indices = @transform_5, window_bounds = array<i64: 324, 9>}, {pipeline_mode = #tpu.pipeline_mode<synchronous>, transform_indices = @transform_6, window_bounds = array<i64: 1, 9>}, {transform_indices = @transform_7, window_bounds = array<i64: 1, 512, 9>}]} {
    %c0 = arith.constant 0 : index
    %c0_0 = arith.constant 0 : index
    %c0_1 = arith.constant 0 : index
    %c0_2 = arith.constant 0 : index
    %0 = vector.load %arg1[%c0, %c0_0, %c0_1, %c0_2] : memref<1x16x32x9xf32, #tpu.memory_space<vmem>>, vector<1x16x32x9xf32>
    %1 = vector.shape_cast %0 : vector<1x16x32x9xf32> to vector<16x32x9xf32>
    %2 = arith.truncf %1 : vector<16x32x9xf32> to vector<16x32x9xbf16>
    %c0_3 = arith.constant 0 : index
    %c0_4 = arith.constant 0 : index
    %3 = vector.load %arg2[%c0_3, %c0_4] : memref<32x32xbf16, #tpu.memory_space<vmem>>, vector<32x32xbf16>
    %4 = vector.shape_cast %3 : vector<32x32xbf16> to vector<1x32x32xbf16>
    %5 = vector.shape_cast %4 : vector<1x32x32xbf16> to vector<1x32x32xbf16>
    %6 = vector.broadcast %5 : vector<1x32x32xbf16> to vector<16x32x32xbf16>
    "tpu.trace_start"() <{level = 10 : i32, message = "lok,lkt->lot"}> : () -> ()
    %cst = arith.constant dense<0.000000e+00> : vector<16x32x9xf32>
    %7 = tpu.matmul %6, %2, %cst {dimension_numbers = #tpu.dot_dimension_numbers<[2], [1], [1], [2], [0, 0, 0, 1, 1, 2], [0], [0]>} : vector<16x32x32xbf16>, vector<16x32x9xbf16>, vector<16x32x9xf32> -> vector<16x32x9xf32>
    "tpu.trace_stop"() : () -> ()
    %c0_5 = arith.constant 0 : index
    %c0_6 = arith.constant 0 : index
    %8 = vector.load %arg3[%c0_5, %c0_6] : memref<32x1xf32, #tpu.memory_space<vmem>>, vector<32x1xf32>
    %9 = vector.shape_cast %8 : vector<32x1xf32> to vector<1x32x1xf32>
    %10 = vector.broadcast %9 : vector<1x32x1xf32> to vector<16x32x9xf32>
    %11 = arith.addf %7, %10 : vector<16x32x9xf32>
    %12 = arith.truncf %11 : vector<16x32x9xf32> to vector<16x32x9xbf16>
    %c0_7 = arith.constant 0 : index
    %c0_8 = arith.constant 0 : index
    %13 = vector.load %arg4[%c0_7, %c0_8] : memref<81x36xbf16, #tpu.memory_space<vmem>>, vector<81x36xbf16>
    %c0_9 = arith.constant 0 : index
    %c0_10 = arith.constant 0 : index
    %14 = vector.load %arg5[%c0_9, %c0_10] : memref<1x36xf32, #tpu.memory_space<vmem>>, vector<1x36xf32>
    %cst_11 = arith.constant 0.000000e+00 : bf16
    %15 = vector.broadcast %cst_11 : bf16 to vector<1x32x9xbf16>
    %16 = tpu.concatenate %15, %12, %15 in 0 : vector<1x32x9xbf16>, vector<16x32x9xbf16>, vector<1x32x9xbf16> -> vector<18x32x9xbf16>
    %cst_12 = arith.constant 0.000000e+00 : bf16
    %17 = vector.broadcast %cst_12 : bf16 to vector<18x1x9xbf16>
    %18 = tpu.concatenate %17, %16, %17 in 1 : vector<18x1x9xbf16>, vector<18x32x9xbf16>, vector<18x1x9xbf16> -> vector<18x34x9xbf16>
    %19 = vector.extract_strided_slice %18 {offsets = [0, 0, 0], sizes = [16, 32, 9], strides = [1, 1, 1]} : vector<18x34x9xbf16> to vector<16x32x9xbf16>
    %20 = vector.shape_cast %19 : vector<16x32x9xbf16> to vector<512x9xbf16>
    %21 = vector.extract_strided_slice %18 {offsets = [0, 1, 0], sizes = [16, 32, 9], strides = [1, 1, 1]} : vector<18x34x9xbf16> to vector<16x32x9xbf16>
    %22 = vector.shape_cast %21 : vector<16x32x9xbf16> to vector<512x9xbf16>
    %23 = vector.extract_strided_slice %18 {offsets = [0, 2, 0], sizes = [16, 32, 9], strides = [1, 1, 1]} : vector<18x34x9xbf16> to vector<16x32x9xbf16>
    %24 = vector.shape_cast %23 : vector<16x32x9xbf16> to vector<512x9xbf16>
    %25 = vector.extract_strided_slice %18 {offsets = [1, 0, 0], sizes = [16, 32, 9], strides = [1, 1, 1]} : vector<18x34x9xbf16> to vector<16x32x9xbf16>
    %26 = vector.shape_cast %25 : vector<16x32x9xbf16> to vector<512x9xbf16>
    %27 = vector.extract_strided_slice %18 {offsets = [1, 1, 0], sizes = [16, 32, 9], strides = [1, 1, 1]} : vector<18x34x9xbf16> to vector<16x32x9xbf16>
    %28 = vector.shape_cast %27 : vector<16x32x9xbf16> to vector<512x9xbf16>
    %29 = vector.extract_strided_slice %18 {offsets = [1, 2, 0], sizes = [16, 32, 9], strides = [1, 1, 1]} : vector<18x34x9xbf16> to vector<16x32x9xbf16>
    %30 = vector.shape_cast %29 : vector<16x32x9xbf16> to vector<512x9xbf16>
    %31 = vector.extract_strided_slice %18 {offsets = [2, 0, 0], sizes = [16, 32, 9], strides = [1, 1, 1]} : vector<18x34x9xbf16> to vector<16x32x9xbf16>
    %32 = vector.shape_cast %31 : vector<16x32x9xbf16> to vector<512x9xbf16>
    %33 = vector.extract_strided_slice %18 {offsets = [2, 1, 0], sizes = [16, 32, 9], strides = [1, 1, 1]} : vector<18x34x9xbf16> to vector<16x32x9xbf16>
    %34 = vector.shape_cast %33 : vector<16x32x9xbf16> to vector<512x9xbf16>
    %35 = vector.extract_strided_slice %18 {offsets = [2, 2, 0], sizes = [16, 32, 9], strides = [1, 1, 1]} : vector<18x34x9xbf16> to vector<16x32x9xbf16>
    %36 = vector.shape_cast %35 : vector<16x32x9xbf16> to vector<512x9xbf16>
    %37 = tpu.concatenate %20, %22, %24, %26, %28, %30, %32, %34, %36 in 1 : vector<512x9xbf16>, vector<512x9xbf16>, vector<512x9xbf16>, vector<512x9xbf16>, vector<512x9xbf16>, vector<512x9xbf16>, vector<512x9xbf16>, vector<512x9xbf16>, vector<512x9xbf16> -> vector<512x81xbf16>
    %cst_13 = arith.constant dense<0.000000e+00> : vector<512x36xf32>
    %38 = tpu.matmul %37, %13, %cst_13 {dimension_numbers = #tpu.dot_dimension_numbers<[1], [0], [0], [1], [0, 0, 1, 1], [], []>} : vector<512x81xbf16>, vector<81x36xbf16>, vector<512x36xf32> -> vector<512x36xf32>
    %39 = vector.broadcast %14 : vector<1x36xf32> to vector<512x36xf32>
    %40 = arith.addf %38, %39 : vector<512x36xf32>
    %cst_14 = arith.constant 0.000000e+00 : f32
    %41 = vector.broadcast %cst_14 : f32 to vector<512x36xf32>
    %42 = arith.maximumf %40, %41 : vector<512x36xf32>
    %43 = vector.shape_cast %42 : vector<512x36xf32> to vector<16x32x36xf32>
    %44 = arith.truncf %43 : vector<16x32x36xf32> to vector<16x32x36xbf16>
    %c0_15 = arith.constant 0 : index
    %c0_16 = arith.constant 0 : index
    %45 = vector.load %arg6[%c0_15, %c0_16] : memref<324x9xbf16, #tpu.memory_space<vmem>>, vector<324x9xbf16>
    %c0_17 = arith.constant 0 : index
    %c0_18 = arith.constant 0 : index
    %46 = vector.load %arg7[%c0_17, %c0_18] : memref<1x9xf32, #tpu.memory_space<vmem>>, vector<1x9xf32>
    %cst_19 = arith.constant 0.000000e+00 : bf16
    %47 = vector.broadcast %cst_19 : bf16 to vector<1x32x36xbf16>
    %48 = tpu.concatenate %47, %44, %47 in 0 : vector<1x32x36xbf16>, vector<16x32x36xbf16>, vector<1x32x36xbf16> -> vector<18x32x36xbf16>
    %cst_20 = arith.constant 0.000000e+00 : bf16
    %49 = vector.broadcast %cst_20 : bf16 to vector<18x1x36xbf16>
    %50 = tpu.concatenate %49, %48, %49 in 1 : vector<18x1x36xbf16>, vector<18x32x36xbf16>, vector<18x1x36xbf16> -> vector<18x34x36xbf16>
    %51 = vector.extract_strided_slice %50 {offsets = [0, 0, 0], sizes = [16, 32, 36], strides = [1, 1, 1]} : vector<18x34x36xbf16> to vector<16x32x36xbf16>
    %52 = vector.shape_cast %51 : vector<16x32x36xbf16> to vector<512x36xbf16>
    %53 = vector.extract_strided_slice %50 {offsets = [0, 1, 0], sizes = [16, 32, 36], strides = [1, 1, 1]} : vector<18x34x36xbf16> to vector<16x32x36xbf16>
    %54 = vector.shape_cast %53 : vector<16x32x36xbf16> to vector<512x36xbf16>
    %55 = vector.extract_strided_slice %50 {offsets = [0, 2, 0], sizes = [16, 32, 36], strides = [1, 1, 1]} : vector<18x34x36xbf16> to vector<16x32x36xbf16>
    %56 = vector.shape_cast %55 : vector<16x32x36xbf16> to vector<512x36xbf16>
    %57 = vector.extract_strided_slice %50 {offsets = [1, 0, 0], sizes = [16, 32, 36], strides = [1, 1, 1]} : vector<18x34x36xbf16> to vector<16x32x36xbf16>
    %58 = vector.shape_cast %57 : vector<16x32x36xbf16> to vector<512x36xbf16>
    %59 = vector.extract_strided_slice %50 {offsets = [1, 1, 0], sizes = [16, 32, 36], strides = [1, 1, 1]} : vector<18x34x36xbf16> to vector<16x32x36xbf16>
    %60 = vector.shape_cast %59 : vector<16x32x36xbf16> to vector<512x36xbf16>
    %61 = vector.extract_strided_slice %50 {offsets = [1, 2, 0], sizes = [16, 32, 36], strides = [1, 1, 1]} : vector<18x34x36xbf16> to vector<16x32x36xbf16>
    %62 = vector.shape_cast %61 : vector<16x32x36xbf16> to vector<512x36xbf16>
    %63 = vector.extract_strided_slice %50 {offsets = [2, 0, 0], sizes = [16, 32, 36], strides = [1, 1, 1]} : vector<18x34x36xbf16> to vector<16x32x36xbf16>
    %64 = vector.shape_cast %63 : vector<16x32x36xbf16> to vector<512x36xbf16>
    %65 = vector.extract_strided_slice %50 {offsets = [2, 1, 0], sizes = [16, 32, 36], strides = [1, 1, 1]} : vector<18x34x36xbf16> to vector<16x32x36xbf16>
    %66 = vector.shape_cast %65 : vector<16x32x36xbf16> to vector<512x36xbf16>
    %67 = vector.extract_strided_slice %50 {offsets = [2, 2, 0], sizes = [16, 32, 36], strides = [1, 1, 1]} : vector<18x34x36xbf16> to vector<16x32x36xbf16>
    %68 = vector.shape_cast %67 : vector<16x32x36xbf16> to vector<512x36xbf16>
    %69 = tpu.concatenate %52, %54, %56, %58, %60, %62, %64, %66, %68 in 1 : vector<512x36xbf16>, vector<512x36xbf16>, vector<512x36xbf16>, vector<512x36xbf16>, vector<512x36xbf16>, vector<512x36xbf16>, vector<512x36xbf16>, vector<512x36xbf16>, vector<512x36xbf16> -> vector<512x324xbf16>
    %cst_21 = arith.constant dense<0.000000e+00> : vector<512x9xf32>
    %70 = tpu.matmul %69, %45, %cst_21 {dimension_numbers = #tpu.dot_dimension_numbers<[1], [0], [0], [1], [0, 0, 1, 1], [], []>} : vector<512x324xbf16>, vector<324x9xbf16>, vector<512x9xf32> -> vector<512x9xf32>
    %71 = vector.broadcast %46 : vector<1x9xf32> to vector<512x9xf32>
    %72 = arith.addf %70, %71 : vector<512x9xf32>
    %cst_22 = arith.constant 0.000000e+00 : f32
    %73 = vector.broadcast %cst_22 : f32 to vector<512x9xf32>
    %74 = arith.maximumf %72, %73 : vector<512x9xf32>
    %c0_23 = arith.constant 0 : index
    %c0_24 = arith.constant 0 : index
    %c0_25 = arith.constant 0 : index
    %75 = vector.load %arg8[%c0_23, %c0_24, %c0_25] : memref<1x512x9xf32, #tpu.memory_space<vmem>>, vector<1x512x9xf32>
    %76 = vector.shape_cast %75 : vector<1x512x9xf32> to vector<512x9xf32>
    %77 = vector.shape_cast %74 : vector<512x9xf32> to vector<1x512x9xf32>
    tpu.vector_store %arg8[%c0_23, %c0_24, %c0_25], %77 {strides = array<i32>} : memref<1x512x9xf32, #tpu.memory_space<vmem>>, vector<1x512x9xf32>,
    return
  }
  func.func @transform_0(%arg0: i32) -> (i32, i32, i32, i32) {
    %c0_i32 = arith.constant 0 : i32
    %c0_i32_0 = arith.constant 0 : i32
    %c0_i32_1 = arith.constant 0 : i32
    %c0_i32_2 = arith.constant 0 : i32
    return %arg0, %c0_i32, %c0_i32_0, %c0_i32_1 : i32, i32, i32, i32
  }
  func.func @transform_1(%arg0: i32) -> (i32, i32) {
    %c0_i32 = arith.constant 0 : i32
    %c0_i32_0 = arith.constant 0 : i32
    %c0_i32_1 = arith.constant 0 : i32
    return %c0_i32, %c0_i32_0 : i32, i32
  }
  func.func @transform_2(%arg0: i32) -> (i32, i32) {
    %c0_i32 = arith.constant 0 : i32
    %c0_i32_0 = arith.constant 0 : i32
    %c0_i32_1 = arith.constant 0 : i32
    return %c0_i32, %c0_i32_0 : i32, i32
  }
  func.func @transform_3(%arg0: i32) -> (i32, i32) {
    %c0_i32 = arith.constant 0 : i32
    %c0_i32_0 = arith.constant 0 : i32
    %c0_i32_1 = arith.constant 0 : i32
    return %c0_i32, %c0_i32_0 : i32, i32
  }
  func.func @transform_4(%arg0: i32) -> (i32, i32) {
    %c0_i32 = arith.constant 0 : i32
    %c0_i32_0 = arith.constant 0 : i32
    %c0_i32_1 = arith.constant 0 : i32
    return %c0_i32, %c0_i32_0 : i32, i32
  }
  func.func @transform_5(%arg0: i32) -> (i32, i32) {
    %c0_i32 = arith.constant 0 : i32
    %c0_i32_0 = arith.constant 0 : i32
    %c0_i32_1 = arith.constant 0 : i32
    return %c0_i32, %c0_i32_0 : i32, i32
  }
  func.func @transform_6(%arg0: i32) -> (i32, i32) {
    %c0_i32 = arith.constant 0 : i32
    %c0_i32_0 = arith.constant 0 : i32
    %c0_i32_1 = arith.constant 0 : i32
    return %c0_i32, %c0_i32_0 : i32, i32
  }
  func.func @transform_7(%arg0: i32) -> (i32, i32, i32) {
    %c0_i32 = arith.constant 0 : i32
    %c0_i32_0 = arith.constant 0 : i32
    %c0_i32_1 = arith.constant 0 : i32
    return %arg0, %c0_i32, %c0_i32_0 : i32, i32, i32
  }
}

module attributes {stable_mosaic.version = 11 : i64} {
  func.func @_main_kernel(%arg0: i32, %arg1: memref<1x144x32xf32, #tpu.memory_space<vmem>>, %arg2: memref<1x144x32xf32, #tpu.memory_space<vmem>>, %arg3: memref<32x64xbf16, #tpu.memory_space<vmem>>, %arg4: memref<1x64xf32, #tpu.memory_space<vmem>>, %arg5: memref<256x32xbf16, #tpu.memory_space<vmem>>, %arg6: memref<1x32xf32, #tpu.memory_space<vmem>>, %arg7: memref<32x32xbf16, #tpu.memory_space<vmem>>, %arg8: memref<1x32xf32, #tpu.memory_space<vmem>>, %arg9: memref<32x32xbf16, #tpu.memory_space<vmem>>, %arg10: memref<1x32xf32, #tpu.memory_space<vmem>>, %arg11: memref<288x128xbf16, #tpu.memory_space<vmem>>, %arg12: memref<1x128xf32, #tpu.memory_space<vmem>>, %arg13: memref<1152x32xbf16, #tpu.memory_space<vmem>>, %arg14: memref<1x32xf32, #tpu.memory_space<vmem>>, %arg15: memref<1x144x32xf32, #tpu.memory_space<vmem>>) attributes {dimension_semantics = [#tpu.dimension_semantics<parallel>], iteration_bounds = array<i64: 2>, scalar_prefetch = 0 : i64, scratch_operands = 0 : i64, tpu.core_type = #tpu.core_type<tc>, window_params = [{transform_indices = @transform_0, window_bounds = array<i64: 1, 144, 32>}, {transform_indices = @transform_1, window_bounds = array<i64: 1, 144, 32>}, {pipeline_mode = #tpu.pipeline_mode<synchronous>, transform_indices = @transform_2, window_bounds = array<i64: 32, 64>}, {pipeline_mode = #tpu.pipeline_mode<synchronous>, transform_indices = @transform_3, window_bounds = array<i64: 1, 64>}, {pipeline_mode = #tpu.pipeline_mode<synchronous>, transform_indices = @transform_4, window_bounds = array<i64: 256, 32>}, {pipeline_mode = #tpu.pipeline_mode<synchronous>, transform_indices = @transform_5, window_bounds = array<i64: 1, 32>}, {pipeline_mode = #tpu.pipeline_mode<synchronous>, transform_indices = @transform_6, window_bounds = array<i64: 32, 32>}, {pipeline_mode = #tpu.pipeline_mode<synchronous>, transform_indices = @transform_7, window_bounds = array<i64: 1, 32>}, {pipeline_mode = #tpu.pipeline_mode<synchronous>, transform_indices = @transform_8, window_bounds = array<i64: 32, 32>}, {pipeline_mode = #tpu.pipeline_mode<synchronous>, transform_indices = @transform_9, window_bounds = array<i64: 1, 32>}, {pipeline_mode = #tpu.pipeline_mode<synchronous>, transform_indices = @transform_10, window_bounds = array<i64: 288, 128>}, {pipeline_mode = #tpu.pipeline_mode<synchronous>, transform_indices = @transform_11, window_bounds = array<i64: 1, 128>}, {pipeline_mode = #tpu.pipeline_mode<synchronous>, transform_indices = @transform_12, window_bounds = array<i64: 1152, 32>}, {pipeline_mode = #tpu.pipeline_mode<synchronous>, transform_indices = @transform_13, window_bounds = array<i64: 1, 32>}, {transform_indices = @transform_14, window_bounds = array<i64: 1, 144, 32>}]} {
    %c0 = arith.constant 0 : index
    %c0_0 = arith.constant 0 : index
    %c0_1 = arith.constant 0 : index
    %0 = vector.load %arg1[%c0, %c0_0, %c0_1] : memref<1x144x32xf32, #tpu.memory_space<vmem>>, vector<1x144x32xf32>
    %1 = vector.shape_cast %0 : vector<1x144x32xf32> to vector<144x32xf32>
    %2 = arith.truncf %1 : vector<144x32xf32> to vector<144x32xbf16>
    %c0_2 = arith.constant 0 : index
    %c0_3 = arith.constant 0 : index
    %3 = vector.load %arg3[%c0_2, %c0_3] : memref<32x64xbf16, #tpu.memory_space<vmem>>, vector<32x64xbf16>
    %cst = arith.constant dense<0.000000e+00> : vector<144x64xf32>
    %4 = tpu.matmul %2, %3, %cst {dimension_numbers = #tpu.dot_dimension_numbers<[1], [0], [0], [1], [0, 0, 1, 1], [], []>} : vector<144x32xbf16>, vector<32x64xbf16>, vector<144x64xf32> -> vector<144x64xf32>
    %c0_4 = arith.constant 0 : index
    %c0_5 = arith.constant 0 : index
    %5 = vector.load %arg4[%c0_4, %c0_5] : memref<1x64xf32, #tpu.memory_space<vmem>>, vector<1x64xf32>
    %6 = vector.broadcast %5 : vector<1x64xf32> to vector<144x64xf32>
    %7 = arith.addf %4, %6 : vector<144x64xf32>
    %8 = vector.extract_strided_slice %7 {offsets = [0, 0], sizes = [144, 32], strides = [1, 1]} : vector<144x64xf32> to vector<144x32xf32>
    %9 = vector.extract_strided_slice %7 {offsets = [0, 32], sizes = [144, 32], strides = [1, 1]} : vector<144x64xf32> to vector<144x32xf32>
    %10 = vector.extract_strided_slice %8 {offsets = [0, 0], sizes = [16, 32], strides = [1, 1]} : vector<144x32xf32> to vector<16x32xf32>
    %11 = vector.extract_strided_slice %8 {offsets = [16, 0], sizes = [16, 32], strides = [1, 1]} : vector<144x32xf32> to vector<16x32xf32>
    %12 = vector.extract_strided_slice %8 {offsets = [32, 0], sizes = [16, 32], strides = [1, 1]} : vector<144x32xf32> to vector<16x32xf32>
    %13 = vector.extract_strided_slice %8 {offsets = [48, 0], sizes = [16, 32], strides = [1, 1]} : vector<144x32xf32> to vector<16x32xf32>
    %14 = vector.extract_strided_slice %8 {offsets = [64, 0], sizes = [16, 32], strides = [1, 1]} : vector<144x32xf32> to vector<16x32xf32>
    %15 = vector.extract_strided_slice %8 {offsets = [80, 0], sizes = [16, 32], strides = [1, 1]} : vector<144x32xf32> to vector<16x32xf32>
    %16 = vector.extract_strided_slice %8 {offsets = [96, 0], sizes = [16, 32], strides = [1, 1]} : vector<144x32xf32> to vector<16x32xf32>
    %17 = vector.extract_strided_slice %8 {offsets = [112, 0], sizes = [16, 32], strides = [1, 1]} : vector<144x32xf32> to vector<16x32xf32>
    %18 = tpu.concatenate %10, %11, %12, %13, %14, %15, %16, %17 in 1 : vector<16x32xf32>, vector<16x32xf32>, vector<16x32xf32>, vector<16x32xf32>, vector<16x32xf32>, vector<16x32xf32>, vector<16x32xf32>, vector<16x32xf32> -> vector<16x256xf32>
    %19 = arith.truncf %18 : vector<16x256xf32> to vector<16x256xbf16>
    %c0_6 = arith.constant 0 : index
    %c0_7 = arith.constant 0 : index
    %20 = vector.load %arg5[%c0_6, %c0_7] : memref<256x32xbf16, #tpu.memory_space<vmem>>, vector<256x32xbf16>
    %cst_8 = arith.constant dense<0.000000e+00> : vector<16x32xf32>
    %21 = tpu.matmul %19, %20, %cst_8 {dimension_numbers = #tpu.dot_dimension_numbers<[1], [0], [0], [1], [0, 0, 1, 1], [], []>} : vector<16x256xbf16>, vector<256x32xbf16>, vector<16x32xf32> -> vector<16x32xf32>
    %c0_9 = arith.constant 0 : index
    %c0_10 = arith.constant 0 : index
    %22 = vector.load %arg6[%c0_9, %c0_10] : memref<1x32xf32, #tpu.memory_space<vmem>>, vector<1x32xf32>
    %23 = vector.broadcast %22 : vector<1x32xf32> to vector<16x32xf32>
    %24 = arith.addf %21, %23 : vector<16x32xf32>
    %cst_11 = arith.constant 0.000000e+00 : f32
    %25 = vector.broadcast %cst_11 : f32 to vector<16x32xf32>
    %26 = arith.maximumf %24, %25 : vector<16x32xf32>
    %27 = vector.extract_strided_slice %8 {offsets = [128, 0], sizes = [16, 32], strides = [1, 1]} : vector<144x32xf32> to vector<16x32xf32>
    %cst_12 = arith.constant 0.000000e+00 : f32
    %28 = vector.broadcast %cst_12 : f32 to vector<16x32xf32>
    %29 = arith.maximumf %27, %28 : vector<16x32xf32>
    %30 = arith.subf %29, %26 : vector<16x32xf32>
    %31 = vector.extract_strided_slice %8 {offsets = [0, 0], sizes = [128, 32], strides = [1, 1]} : vector<144x32xf32> to vector<128x32xf32>
    %32 = tpu.concatenate %31, %30 in 0 : vector<128x32xf32>, vector<16x32xf32> -> vector<144x32xf32>
    %c0_13 = arith.constant 0 : index
    %c0_14 = arith.constant 0 : index
    %c0_15 = arith.constant 0 : index
    %33 = vector.load %arg2[%c0_13, %c0_14, %c0_15] : memref<1x144x32xf32, #tpu.memory_space<vmem>>, vector<1x144x32xf32>
    %34 = vector.shape_cast %33 : vector<1x144x32xf32> to vector<144x32xf32>
    %35 = arith.truncf %34 : vector<144x32xf32> to vector<144x32xbf16>
    %c0_16 = arith.constant 0 : index
    %c0_17 = arith.constant 0 : index
    %36 = vector.load %arg7[%c0_16, %c0_17] : memref<32x32xbf16, #tpu.memory_space<vmem>>, vector<32x32xbf16>
    %cst_18 = arith.constant dense<0.000000e+00> : vector<144x32xf32>
    %37 = tpu.matmul %35, %36, %cst_18 {dimension_numbers = #tpu.dot_dimension_numbers<[1], [0], [0], [1], [0, 0, 1, 1], [], []>} : vector<144x32xbf16>, vector<32x32xbf16>, vector<144x32xf32> -> vector<144x32xf32>
    %c0_19 = arith.constant 0 : index
    %c0_20 = arith.constant 0 : index
    %38 = vector.load %arg8[%c0_19, %c0_20] : memref<1x32xf32, #tpu.memory_space<vmem>>, vector<1x32xf32>
    %39 = vector.broadcast %38 : vector<1x32xf32> to vector<144x32xf32>
    %40 = arith.addf %37, %39 : vector<144x32xf32>
    %41 = arith.mulf %40, %40 : vector<144x32xf32>
    %42 = arith.mulf %40, %41 : vector<144x32xf32>
    %cst_21 = arith.constant 4.471500e-02 : f32
    %43 = vector.broadcast %cst_21 : f32 to vector<144x32xf32>
    %44 = arith.mulf %43, %42 : vector<144x32xf32>
    %45 = arith.addf %40, %44 : vector<144x32xf32>
    %cst_22 = arith.constant 0.797884583 : f32
    %46 = vector.broadcast %cst_22 : f32 to vector<144x32xf32>
    %47 = arith.mulf %46, %45 : vector<144x32xf32>
    %48 = math.tanh %47 : vector<144x32xf32>
    %cst_23 = arith.constant 1.000000e+00 : f32
    %49 = vector.broadcast %cst_23 : f32 to vector<144x32xf32>
    %50 = arith.addf %49, %48 : vector<144x32xf32>
    %cst_24 = arith.constant 5.000000e-01 : f32
    %51 = vector.broadcast %cst_24 : f32 to vector<144x32xf32>
    %52 = arith.mulf %51, %50 : vector<144x32xf32>
    %53 = arith.mulf %40, %52 : vector<144x32xf32>
    %54 = arith.mulf %32, %53 : vector<144x32xf32>
    %55 = arith.truncf %54 : vector<144x32xf32> to vector<144x32xbf16>
    %c0_25 = arith.constant 0 : index
    %c0_26 = arith.constant 0 : index
    %56 = vector.load %arg9[%c0_25, %c0_26] : memref<32x32xbf16, #tpu.memory_space<vmem>>, vector<32x32xbf16>
    %cst_27 = arith.constant dense<0.000000e+00> : vector<144x32xf32>
    %57 = tpu.matmul %55, %56, %cst_27 {dimension_numbers = #tpu.dot_dimension_numbers<[1], [0], [0], [1], [0, 0, 1, 1], [], []>} : vector<144x32xbf16>, vector<32x32xbf16>, vector<144x32xf32> -> vector<144x32xf32>
    %c0_28 = arith.constant 0 : index
    %c0_29 = arith.constant 0 : index
    %58 = vector.load %arg10[%c0_28, %c0_29] : memref<1x32xf32, #tpu.memory_space<vmem>>, vector<1x32xf32>
    %59 = vector.broadcast %58 : vector<1x32xf32> to vector<144x32xf32>
    %60 = arith.addf %57, %59 : vector<144x32xf32>
    %61 = arith.truncf %60 : vector<144x32xf32> to vector<144x32xbf16>
    %62 = vector.shape_cast %61 : vector<144x32xbf16> to vector<9x16x32xbf16>
    %c0_30 = arith.constant 0 : index
    %c0_31 = arith.constant 0 : index
    %63 = vector.load %arg11[%c0_30, %c0_31] : memref<288x128xbf16, #tpu.memory_space<vmem>>, vector<288x128xbf16>
    %c0_32 = arith.constant 0 : index
    %c0_33 = arith.constant 0 : index
    %64 = vector.load %arg12[%c0_32, %c0_33] : memref<1x128xf32, #tpu.memory_space<vmem>>, vector<1x128xf32>
    %cst_34 = arith.constant 0.000000e+00 : bf16
    %65 = vector.broadcast %cst_34 : bf16 to vector<1x16x32xbf16>
    %66 = tpu.concatenate %65, %62, %65 in 0 : vector<1x16x32xbf16>, vector<9x16x32xbf16>, vector<1x16x32xbf16> -> vector<11x16x32xbf16>
    %cst_35 = arith.constant 0.000000e+00 : bf16
    %67 = vector.broadcast %cst_35 : bf16 to vector<11x1x32xbf16>
    %68 = tpu.concatenate %67, %66, %67 in 1 : vector<11x1x32xbf16>, vector<11x16x32xbf16>, vector<11x1x32xbf16> -> vector<11x18x32xbf16>
    %69 = vector.extract_strided_slice %68 {offsets = [0, 0, 0], sizes = [9, 16, 32], strides = [1, 1, 1]} : vector<11x18x32xbf16> to vector<9x16x32xbf16>
    %70 = vector.shape_cast %69 : vector<9x16x32xbf16> to vector<144x32xbf16>
    %71 = vector.extract_strided_slice %68 {offsets = [0, 1, 0], sizes = [9, 16, 32], strides = [1, 1, 1]} : vector<11x18x32xbf16> to vector<9x16x32xbf16>
    %72 = vector.shape_cast %71 : vector<9x16x32xbf16> to vector<144x32xbf16>
    %73 = vector.extract_strided_slice %68 {offsets = [0, 2, 0], sizes = [9, 16, 32], strides = [1, 1, 1]} : vector<11x18x32xbf16> to vector<9x16x32xbf16>
    %74 = vector.shape_cast %73 : vector<9x16x32xbf16> to vector<144x32xbf16>
    %75 = vector.extract_strided_slice %68 {offsets = [1, 0, 0], sizes = [9, 16, 32], strides = [1, 1, 1]} : vector<11x18x32xbf16> to vector<9x16x32xbf16>
    %76 = vector.shape_cast %75 : vector<9x16x32xbf16> to vector<144x32xbf16>
    %77 = vector.extract_strided_slice %68 {offsets = [1, 1, 0], sizes = [9, 16, 32], strides = [1, 1, 1]} : vector<11x18x32xbf16> to vector<9x16x32xbf16>
    %78 = vector.shape_cast %77 : vector<9x16x32xbf16> to vector<144x32xbf16>
    %79 = vector.extract_strided_slice %68 {offsets = [1, 2, 0], sizes = [9, 16, 32], strides = [1, 1, 1]} : vector<11x18x32xbf16> to vector<9x16x32xbf16>
    %80 = vector.shape_cast %79 : vector<9x16x32xbf16> to vector<144x32xbf16>
    %81 = vector.extract_strided_slice %68 {offsets = [2, 0, 0], sizes = [9, 16, 32], strides = [1, 1, 1]} : vector<11x18x32xbf16> to vector<9x16x32xbf16>
    %82 = vector.shape_cast %81 : vector<9x16x32xbf16> to vector<144x32xbf16>
    %83 = vector.extract_strided_slice %68 {offsets = [2, 1, 0], sizes = [9, 16, 32], strides = [1, 1, 1]} : vector<11x18x32xbf16> to vector<9x16x32xbf16>
    %84 = vector.shape_cast %83 : vector<9x16x32xbf16> to vector<144x32xbf16>
    %85 = vector.extract_strided_slice %68 {offsets = [2, 2, 0], sizes = [9, 16, 32], strides = [1, 1, 1]} : vector<11x18x32xbf16> to vector<9x16x32xbf16>
    %86 = vector.shape_cast %85 : vector<9x16x32xbf16> to vector<144x32xbf16>
    %87 = tpu.concatenate %70, %72, %74, %76, %78, %80, %82, %84, %86 in 1 : vector<144x32xbf16>, vector<144x32xbf16>, vector<144x32xbf16>, vector<144x32xbf16>, vector<144x32xbf16>, vector<144x32xbf16>, vector<144x32xbf16>, vector<144x32xbf16>, vector<144x32xbf16> -> vector<144x288xbf16>
    %cst_36 = arith.constant dense<0.000000e+00> : vector<144x128xf32>
    %88 = tpu.matmul %87, %63, %cst_36 {dimension_numbers = #tpu.dot_dimension_numbers<[1], [0], [0], [1], [0, 0, 1, 1], [], []>} : vector<144x288xbf16>, vector<288x128xbf16>, vector<144x128xf32> -> vector<144x128xf32>
    %89 = vector.broadcast %64 : vector<1x128xf32> to vector<144x128xf32>
    %90 = arith.addf %88, %89 : vector<144x128xf32>
    %cst_37 = arith.constant 0.000000e+00 : f32
    %91 = vector.broadcast %cst_37 : f32 to vector<144x128xf32>
    %92 = arith.maximumf %90, %91 : vector<144x128xf32>
    %93 = arith.truncf %92 : vector<144x128xf32> to vector<144x128xbf16>
    %94 = vector.shape_cast %93 : vector<144x128xbf16> to vector<9x16x128xbf16>
    %c0_38 = arith.constant 0 : index
    %c0_39 = arith.constant 0 : index
    %95 = vector.load %arg13[%c0_38, %c0_39] : memref<1152x32xbf16, #tpu.memory_space<vmem>>, vector<1152x32xbf16>
    %c0_40 = arith.constant 0 : index
    %c0_41 = arith.constant 0 : index
    %96 = vector.load %arg14[%c0_40, %c0_41] : memref<1x32xf32, #tpu.memory_space<vmem>>, vector<1x32xf32>
    %cst_42 = arith.constant 0.000000e+00 : bf16
    %97 = vector.broadcast %cst_42 : bf16 to vector<1x16x128xbf16>
    %98 = tpu.concatenate %97, %94, %97 in 0 : vector<1x16x128xbf16>, vector<9x16x128xbf16>, vector<1x16x128xbf16> -> vector<11x16x128xbf16>
    %cst_43 = arith.constant 0.000000e+00 : bf16
    %99 = vector.broadcast %cst_43 : bf16 to vector<11x1x128xbf16>
    %100 = tpu.concatenate %99, %98, %99 in 1 : vector<11x1x128xbf16>, vector<11x16x128xbf16>, vector<11x1x128xbf16> -> vector<11x18x128xbf16>
    %101 = vector.extract_strided_slice %100 {offsets = [0, 0, 0], sizes = [9, 16, 128], strides = [1, 1, 1]} : vector<11x18x128xbf16> to vector<9x16x128xbf16>
    %102 = vector.shape_cast %101 : vector<9x16x128xbf16> to vector<144x128xbf16>
    %103 = vector.extract_strided_slice %100 {offsets = [0, 1, 0], sizes = [9, 16, 128], strides = [1, 1, 1]} : vector<11x18x128xbf16> to vector<9x16x128xbf16>
    %104 = vector.shape_cast %103 : vector<9x16x128xbf16> to vector<144x128xbf16>
    %105 = vector.extract_strided_slice %100 {offsets = [0, 2, 0], sizes = [9, 16, 128], strides = [1, 1, 1]} : vector<11x18x128xbf16> to vector<9x16x128xbf16>
    %106 = vector.shape_cast %105 : vector<9x16x128xbf16> to vector<144x128xbf16>
    %107 = vector.extract_strided_slice %100 {offsets = [1, 0, 0], sizes = [9, 16, 128], strides = [1, 1, 1]} : vector<11x18x128xbf16> to vector<9x16x128xbf16>
    %108 = vector.shape_cast %107 : vector<9x16x128xbf16> to vector<144x128xbf16>
    %109 = vector.extract_strided_slice %100 {offsets = [1, 1, 0], sizes = [9, 16, 128], strides = [1, 1, 1]} : vector<11x18x128xbf16> to vector<9x16x128xbf16>
    %110 = vector.shape_cast %109 : vector<9x16x128xbf16> to vector<144x128xbf16>
    %111 = vector.extract_strided_slice %100 {offsets = [1, 2, 0], sizes = [9, 16, 128], strides = [1, 1, 1]} : vector<11x18x128xbf16> to vector<9x16x128xbf16>
    %112 = vector.shape_cast %111 : vector<9x16x128xbf16> to vector<144x128xbf16>
    %113 = vector.extract_strided_slice %100 {offsets = [2, 0, 0], sizes = [9, 16, 128], strides = [1, 1, 1]} : vector<11x18x128xbf16> to vector<9x16x128xbf16>
    %114 = vector.shape_cast %113 : vector<9x16x128xbf16> to vector<144x128xbf16>
    %115 = vector.extract_strided_slice %100 {offsets = [2, 1, 0], sizes = [9, 16, 128], strides = [1, 1, 1]} : vector<11x18x128xbf16> to vector<9x16x128xbf16>
    %116 = vector.shape_cast %115 : vector<9x16x128xbf16> to vector<144x128xbf16>
    %117 = vector.extract_strided_slice %100 {offsets = [2, 2, 0], sizes = [9, 16, 128], strides = [1, 1, 1]} : vector<11x18x128xbf16> to vector<9x16x128xbf16>
    %118 = vector.shape_cast %117 : vector<9x16x128xbf16> to vector<144x128xbf16>
    %119 = tpu.concatenate %102, %104, %106, %108, %110, %112, %114, %116, %118 in 1 : vector<144x128xbf16>, vector<144x128xbf16>, vector<144x128xbf16>, vector<144x128xbf16>, vector<144x128xbf16>, vector<144x128xbf16>, vector<144x128xbf16>, vector<144x128xbf16>, vector<144x128xbf16> -> vector<144x1152xbf16>
    %cst_44 = arith.constant dense<0.000000e+00> : vector<144x32xf32>
    %120 = tpu.matmul %119, %95, %cst_44 {dimension_numbers = #tpu.dot_dimension_numbers<[1], [0], [0], [1], [0, 0, 1, 1], [], []>} : vector<144x1152xbf16>, vector<1152x32xbf16>, vector<144x32xf32> -> vector<144x32xf32>
    %121 = vector.broadcast %96 : vector<1x32xf32> to vector<144x32xf32>
    %122 = arith.addf %120, %121 : vector<144x32xf32>
    %cst_45 = arith.constant 0.000000e+00 : f32
    %123 = vector.broadcast %cst_45 : f32 to vector<144x32xf32>
    %124 = arith.maximumf %122, %123 : vector<144x32xf32>
    %125 = arith.addf %124, %9 : vector<144x32xf32>
    %c0_46 = arith.constant 0 : index
    %c0_47 = arith.constant 0 : index
    %c0_48 = arith.constant 0 : index
    %126 = vector.load %arg15[%c0_46, %c0_47, %c0_48] : memref<1x144x32xf32, #tpu.memory_space<vmem>>, vector<1x144x32xf32>
    %127 = vector.shape_cast %126 : vector<1x144x32xf32> to vector<144x32xf32>
    %128 = vector.shape_cast %125 : vector<144x32xf32> to vector<1x144x32xf32>
    tpu.vector_store %arg15[%c0_46, %c0_47, %c0_48], %128 {strides = array<i32>} : memref<1x144x32xf32, #tpu.memory_space<vmem>>, vector<1x144x32xf32>,
    return
  }
  func.func @transform_0(%arg0: i32) -> (i32, i32, i32) {
    %c0_i32 = arith.constant 0 : i32
    %c0_i32_0 = arith.constant 0 : i32
    %c0_i32_1 = arith.constant 0 : i32
    return %arg0, %c0_i32, %c0_i32_0 : i32, i32, i32
  }
  func.func @transform_1(%arg0: i32) -> (i32, i32, i32) {
    %c0_i32 = arith.constant 0 : i32
    %c0_i32_0 = arith.constant 0 : i32
    %c0_i32_1 = arith.constant 0 : i32
    return %arg0, %c0_i32, %c0_i32_0 : i32, i32, i32
  }
  func.func @transform_2(%arg0: i32) -> (i32, i32) {
    %c0_i32 = arith.constant 0 : i32
    %c0_i32_0 = arith.constant 0 : i32
    %c0_i32_1 = arith.constant 0 : i32
    return %c0_i32, %c0_i32_0 : i32, i32
  }
  func.func @transform_3(%arg0: i32) -> (i32, i32) {
    %c0_i32 = arith.constant 0 : i32
    %c0_i32_0 = arith.constant 0 : i32
    %c0_i32_1 = arith.constant 0 : i32
    return %c0_i32, %c0_i32_0 : i32, i32
  }
  func.func @transform_4(%arg0: i32) -> (i32, i32) {
    %c0_i32 = arith.constant 0 : i32
    %c0_i32_0 = arith.constant 0 : i32
    %c0_i32_1 = arith.constant 0 : i32
    return %c0_i32, %c0_i32_0 : i32, i32
  }
  func.func @transform_5(%arg0: i32) -> (i32, i32) {
    %c0_i32 = arith.constant 0 : i32
    %c0_i32_0 = arith.constant 0 : i32
    %c0_i32_1 = arith.constant 0 : i32
    return %c0_i32, %c0_i32_0 : i32, i32
  }
  func.func @transform_6(%arg0: i32) -> (i32, i32) {
    %c0_i32 = arith.constant 0 : i32
    %c0_i32_0 = arith.constant 0 : i32
    %c0_i32_1 = arith.constant 0 : i32
    return %c0_i32, %c0_i32_0 : i32, i32
  }
  func.func @transform_7(%arg0: i32) -> (i32, i32) {
    %c0_i32 = arith.constant 0 : i32
    %c0_i32_0 = arith.constant 0 : i32
    %c0_i32_1 = arith.constant 0 : i32
    return %c0_i32, %c0_i32_0 : i32, i32
  }
  func.func @transform_8(%arg0: i32) -> (i32, i32) {
    %c0_i32 = arith.constant 0 : i32
    %c0_i32_0 = arith.constant 0 : i32
    %c0_i32_1 = arith.constant 0 : i32
    return %c0_i32, %c0_i32_0 : i32, i32
  }
  func.func @transform_9(%arg0: i32) -> (i32, i32) {
    %c0_i32 = arith.constant 0 : i32
    %c0_i32_0 = arith.constant 0 : i32
    %c0_i32_1 = arith.constant 0 : i32
    return %c0_i32, %c0_i32_0 : i32, i32
  }
  func.func @transform_10(%arg0: i32) -> (i32, i32) {
    %c0_i32 = arith.constant 0 : i32
    %c0_i32_0 = arith.constant 0 : i32
    %c0_i32_1 = arith.constant 0 : i32
    return %c0_i32, %c0_i32_0 : i32, i32
  }
  func.func @transform_11(%arg0: i32) -> (i32, i32) {
    %c0_i32 = arith.constant 0 : i32
    %c0_i32_0 = arith.constant 0 : i32
    %c0_i32_1 = arith.constant 0 : i32
    return %c0_i32, %c0_i32_0 : i32, i32
  }
  func.func @transform_12(%arg0: i32) -> (i32, i32) {
    %c0_i32 = arith.constant 0 : i32
    %c0_i32_0 = arith.constant 0 : i32
    %c0_i32_1 = arith.constant 0 : i32
    return %c0_i32, %c0_i32_0 : i32, i32
  }
  func.func @transform_13(%arg0: i32) -> (i32, i32) {
    %c0_i32 = arith.constant 0 : i32
    %c0_i32_0 = arith.constant 0 : i32
    %c0_i32_1 = arith.constant 0 : i32
    return %c0_i32, %c0_i32_0 : i32, i32
  }
  func.func @transform_14(%arg0: i32) -> (i32, i32, i32) {
    %c0_i32 = arith.constant 0 : i32
    %c0_i32_0 = arith.constant 0 : i32
    %c0_i32_1 = arith.constant 0 : i32
    return %arg0, %c0_i32, %c0_i32_0 : i32, i32, i32
  }
}

</mosaic_0001>

<llo_original>
// kernel: gprb_pallas.3
$region0: #{gprb_pallas.3}
  #allocation0 [shape = 'u32[]', space=smem, size = 0x4, offset = 0x4, fixed_abs, tag = 'smem constant byte address 0x4 - core index']
  #allocation1 [shape = 'u32[72,128]{1,0:T(1,128)}', space=vmem, size = 0x9000, scoped, tag = 'internal scratch']
  %s0 = inlined_call_operand.vmem [shape: f32[2,144,32], index: 0, kind: input, shape index: {}]
  %s1 = inlined_call_operand.vmem [shape: f32[2,144,32], index: 1, kind: input, shape index: {}]
  %s2 = inlined_call_operand.vmem [shape: bf16[32,64], index: 2, kind: input, shape index: {}]
  %s3 = inlined_call_operand.vmem [shape: f32[1,64], index: 3, kind: input, shape index: {}]
  %s4 = inlined_call_operand.vmem [shape: bf16[256,32], index: 4, kind: input, shape index: {}]
  %s5 = inlined_call_operand.vmem [shape: f32[1,32], index: 5, kind: input, shape index: {}]
  %s6 = inlined_call_operand.vmem [shape: bf16[32,32], index: 6, kind: input, shape index: {}]
  %s7 = inlined_call_operand.vmem [shape: f32[1,32], index: 7, kind: input, shape index: {}]
  %s8 = inlined_call_operand.vmem [shape: bf16[32,32], index: 8, kind: input, shape index: {}]
  %s9 = inlined_call_operand.vmem [shape: f32[1,32], index: 9, kind: input, shape index: {}]
  %s10 = inlined_call_operand.vmem [shape: bf16[288,128], index: 10, kind: input, shape index: {}]
  %s11 = inlined_call_operand.vmem [shape: f32[1,128], index: 11, kind: input, shape index: {}]
  %s12 = inlined_call_operand.vmem [shape: bf16[1152,32], index: 12, kind: input, shape index: {}]
  %s13 = inlined_call_operand.vmem [shape: f32[1,32], index: 13, kind: input, shape index: {}]
  %s14 = inlined_call_operand.hbm [shape: f32[2,144,32], index: 14, kind: output, shape index: {}]
  %s15 = sld [smem:[#allocation0]]
  $region89: #{gprb_pallas.3} parent=0
    _
  %s17 = ssub.s32 1, %s15
  %s18 = scalar_select 0, %s17, %s15
  $region1: #{gprb_pallas.3} parent=0
    #allocation2 [shape = 'u8[147456]{0}', space=vmem, size = 0x24000, scoped, tag = 'output window, operand 0']
    #allocation3 [shape = 's32[2]{0}', space=sflag, size = 0x8, scoped, tag = 'scoped memory for gprb_pallas.3']
    %19 = vsyncpa [#allocation3], 0
    %s20 = scalar_lea.sflag [#allocation3], 1
    %21 = vsyncpa %s20, 0
    loop: start=0, step=1, limit=4
    $region2: #{gprb_pallas.3} parent=1 // loop_pre_header
      _
    $region3: #{gprb_pallas.3} parent=1 // loop_header
      %s23 = sphi 0, %s27
      %p24 = scmp.ge.s32.totalorder %s23, 4
      %s33 = sphi 0, %s35
      %s36 = sphi 0, %s33
      %s37 = sphi 0, %s36
      %s53 = sphi 0, %s37
      %s59 = sphi 0, %s61
      %s62 = sphi 0, %s59
      %s63 = sphi 0, %s62
      %s79 = sphi 0, %s63
      %s83 = sphi 0, %s83
      %s85 = sphi 0, %s83
      %s86 = sphi 0, %s85
      %s100 = sphi 0, %s86
      %s104 = sphi 0, %s104
      %s106 = sphi 0, %s104
      %s107 = sphi 0, %s106
      %s121 = sphi 0, %s107
      %s125 = sphi 0, %s125
      %s127 = sphi 0, %s125
      %s128 = sphi 0, %s127
      %s142 = sphi 0, %s128
      %s146 = sphi 0, %s146
      %s148 = sphi 0, %s146
      %s149 = sphi 0, %s148
      %s163 = sphi 0, %s149
      %s167 = sphi 0, %s167
      %s169 = sphi 0, %s167
      %s170 = sphi 0, %s169
      %s184 = sphi 0, %s170
      %s188 = sphi 0, %s188
      %s190 = sphi 0, %s188
      %s191 = sphi 0, %s190
      %s205 = sphi 0, %s191
      %s209 = sphi 0, %s209
      %s211 = sphi 0, %s209
      %s212 = sphi 0, %s211
      %s226 = sphi 0, %s212
      %s230 = sphi 0, %s230
      %s232 = sphi 0, %s230
      %s233 = sphi 0, %s232
      %s247 = sphi 0, %s233
      %s251 = sphi 0, %s251
      %s253 = sphi 0, %s251
      %s254 = sphi 0, %s253
      %s268 = sphi 0, %s254
      %s272 = sphi 0, %s272
      %s274 = sphi 0, %s272
      %s275 = sphi 0, %s274
      %s289 = sphi 0, %s275
      %s293 = sphi 0, %s293
      %s295 = sphi 0, %s293
      %s296 = sphi 0, %s295
      %s310 = sphi 0, %s296
      %s314 = sphi 0, %s314
      %s316 = sphi 0, %s314
      %s317 = sphi 0, %s316
      %s331 = sphi 0, %s317
      %s337 = sphi 0, %s339
      %s340 = sphi 0, %s337
      %s341 = sphi 0, %s340
      %s357 = sphi 0, %s341
    $region4: #{gprb_pallas.3} parent=1 // loop_header_branch
      %26 = sbr.rel (%p24) target = $region8
    $region5: #{gprb_pallas.3} parent=1 // loop_body
      %s28 = ssub.s32 %s23, 1
      %s29 = ssub.s32 %s23, 2
      %s30 = sadd.s32 %s23, 1
      %s31 = ssub.s32 %s23, %s30
      %p32 = scmp.eq.s32.totalorder %s31, 0
      %s34 = sadd.s32 %s33, 1
      %s35 = scalar_select %p32, %s33, %s34
      %p38 = pneg %p32
      %p39 = scmp.eq.s32.totalorder %s23, 1
      %p40 = por %p38, %p39
      %p41 = scmp.ne.s32.totalorder %s33, %s36
      %p42 = scmp.eq.s32.totalorder %s23, 0
      %p43 = por %p41, %p42
      %p44 = scmp.ne.s32.totalorder %s33, %s36
      %p45 = scmp.eq.s32.totalorder %s28, 1
      %p46 = por %p44, %p45
      %p47 = scmp.ne.s32.totalorder %s36, %s37
      %p48 = scmp.eq.s32.totalorder %s28, 0
      %p49 = por %p47, %p48
      %p50 = scmp.ne.s32.totalorder %s36, %s37
      %p51 = scmp.eq.s32.totalorder %s29, 1
      %p52 = por %p50, %p51
      %p54 = scmp.ne.s32.totalorder %s37, %s53
      %p55 = scmp.eq.s32.totalorder %s29, 0
      %p56 = por %p54, %p55
      %s57 = ssub.s32 %s23, %s30
      %p58 = scmp.eq.s32.totalorder %s57, 0
      %s60 = sadd.s32 %s59, 1
      %s61 = scalar_select %p58, %s59, %s60
      %p64 = pneg %p58
      %p65 = scmp.eq.s32.totalorder %s23, 1
      %p66 = por %p64, %p65
      %p67 = scmp.ne.s32.totalorder %s59, %s62
      %p68 = scmp.eq.s32.totalorder %s23, 0
      %p69 = por %p67, %p68
      %p70 = scmp.ne.s32.totalorder %s59, %s62
      %p71 = scmp.eq.s32.totalorder %s28, 1
      %p72 = por %p70, %p71
      %p73 = scmp.ne.s32.totalorder %s62, %s63
      %p74 = scmp.eq.s32.totalorder %s28, 0
      %p75 = por %p73, %p74
      %p76 = scmp.ne.s32.totalorder %s62, %s63
      %p77 = scmp.eq.s32.totalorder %s29, 1
      %p78 = por %p76, %p77
      %p80 = scmp.ne.s32.totalorder %s63, %s79
      %p81 = scmp.eq.s32.totalorder %s29, 0
      %p82 = por %p80, %p81
      %s84 = sadd.s32 %s83, 1
      %p87 = scmp.eq.s32.totalorder %s23, 1
      %p88 = scmp.ne.s32.totalorder %s83, %s85
      %p89 = scmp.eq.s32.totalorder %s23, 0
      %p90 = por %p88, %p89
      %p91 = scmp.ne.s32.totalorder %s83, %s85
      %p92 = scmp.eq.s32.totalorder %s28, 1
      %p93 = por %p91, %p92
      %p94 = scmp.ne.s32.totalorder %s85, %s86
      %p95 = scmp.eq.s32.totalorder %s28, 0
      %p96 = por %p94, %p95
      %p97 = scmp.ne.s32.totalorder %s85, %s86
      %p98 = scmp.eq.s32.totalorder %s29, 1
      %p99 = por %p97, %p98
      %p101 = scmp.ne.s32.totalorder %s86, %s100
      %p102 = scmp.eq.s32.totalorder %s29, 0
      %p103 = por %p101, %p102
      %s105 = sadd.s32 %s104, 1
      %p108 = scmp.eq.s32.totalorder %s23, 1
      %p109 = scmp.ne.s32.totalorder %s104, %s106
      %p110 = scmp.eq.s32.totalorder %s23, 0
      %p111 = por %p109, %p110
      %p112 = scmp.ne.s32.totalorder %s104, %s106
      %p113 = scmp.eq.s32.totalorder %s28, 1
      %p114 = por %p112, %p113
      %p115 = scmp.ne.s32.totalorder %s106, %s107
      %p116 = scmp.eq.s32.totalorder %s28, 0
      %p117 = por %p115, %p116
      %p118 = scmp.ne.s32.totalorder %s106, %s107
      %p119 = scmp.eq.s32.totalorder %s29, 1
      %p120 = por %p118, %p119
      %p122 = scmp.ne.s32.totalorder %s107, %s121
      %p123 = scmp.eq.s32.totalorder %s29, 0
      %p124 = por %p122, %p123
      %s126 = sadd.s32 %s125, 1
      %p129 = scmp.eq.s32.totalorder %s23, 1
      %p130 = scmp.ne.s32.totalorder %s125, %s127
      %p131 = scmp.eq.s32.totalorder %s23, 0
      %p132 = por %p130, %p131
      %p133 = scmp.ne.s32.totalorder %s125, %s127
      %p134 = scmp.eq.s32.totalorder %s28, 1
      %p135 = por %p133, %p134
      %p136 = scmp.ne.s32.totalorder %s127, %s128
      %p137 = scmp.eq.s32.totalorder %s28, 0
      %p138 = por %p136, %p137
      %p139 = scmp.ne.s32.totalorder %s127, %s128
      %p140 = scmp.eq.s32.totalorder %s29, 1
      %p141 = por %p139, %p140
      %p143 = scmp.ne.s32.totalorder %s128, %s142
      %p144 = scmp.eq.s32.totalorder %s29, 0
      %p145 = por %p143, %p144
      %s147 = sadd.s32 %s146, 1
      %p150 = scmp.eq.s32.totalorder %s23, 1
      %p151 = scmp.ne.s32.totalorder %s146, %s148
      %p152 = scmp.eq.s32.totalorder %s23, 0
      %p153 = por %p151, %p152
      %p154 = scmp.ne.s32.totalorder %s146, %s148
      %p155 = scmp.eq.s32.totalorder %s28, 1
      %p156 = por %p154, %p155
      %p157 = scmp.ne.s32.totalorder %s148, %s149
      %p158 = scmp.eq.s32.totalorder %s28, 0
      %p159 = por %p157, %p158
      %p160 = scmp.ne.s32.totalorder %s148, %s149
      %p161 = scmp.eq.s32.totalorder %s29, 1
      %p162 = por %p160, %p161
      %p164 = scmp.ne.s32.totalorder %s149, %s163
      %p165 = scmp.eq.s32.totalorder %s29, 0
      %p166 = por %p164, %p165
      %s168 = sadd.s32 %s167, 1
      %p171 = scmp.eq.s32.totalorder %s23, 1
      %p172 = scmp.ne.s32.totalorder %s167, %s169
      %p173 = scmp.eq.s32.totalorder %s23, 0
      %p174 = por %p172, %p173
      %p175 = scmp.ne.s32.totalorder %s167, %s169
      %p176 = scmp.eq.s32.totalorder %s28, 1
      %p177 = por %p175, %p176
      %p178 = scmp.ne.s32.totalorder %s169, %s170
      %p179 = scmp.eq.s32.totalorder %s28, 0
      %p180 = por %p178, %p179
      %p181 = scmp.ne.s32.totalorder %s169, %s170
      %p182 = scmp.eq.s32.totalorder %s29, 1
      %p183 = por %p181, %p182
      %p185 = scmp.ne.s32.totalorder %s170, %s184
      %p186 = scmp.eq.s32.totalorder %s29, 0
      %p187 = por %p185, %p186
      %s189 = sadd.s32 %s188, 1
      %p192 = scmp.eq.s32.totalorder %s23, 1
      %p193 = scmp.ne.s32.totalorder %s188, %s190
      %p194 = scmp.eq.s32.totalorder %s23, 0
      %p195 = por %p193, %p194
      %p196 = scmp.ne.s32.totalorder %s188, %s190
      %p197 = scmp.eq.s32.totalorder %s28, 1
      %p198 = por %p196, %p197
      %p199 = scmp.ne.s32.totalorder %s190, %s191
      %p200 = scmp.eq.s32.totalorder %s28, 0
      %p201 = por %p199, %p200
      %p202 = scmp.ne.s32.totalorder %s190, %s191
      %p203 = scmp.eq.s32.totalorder %s29, 1
      %p204 = por %p202, %p203
      %p206 = scmp.ne.s32.totalorder %s191, %s205
      %p207 = scmp.eq.s32.totalorder %s29, 0
      %p208 = por %p206, %p207
      %s210 = sadd.s32 %s209, 1
      %p213 = scmp.eq.s32.totalorder %s23, 1
      %p214 = scmp.ne.s32.totalorder %s209, %s211
      %p215 = scmp.eq.s32.totalorder %s23, 0
      %p216 = por %p214, %p215
      %p217 = scmp.ne.s32.totalorder %s209, %s211
      %p218 = scmp.eq.s32.totalorder %s28, 1
      %p219 = por %p217, %p218
      %p220 = scmp.ne.s32.totalorder %s211, %s212
      %p221 = scmp.eq.s32.totalorder %s28, 0
      %p222 = por %p220, %p221
      %p223 = scmp.ne.s32.totalorder %s211, %s212
      %p224 = scmp.eq.s32.totalorder %s29, 1
      %p225 = por %p223, %p224
      %p227 = scmp.ne.s32.totalorder %s212, %s226
      %p228 = scmp.eq.s32.totalorder %s29, 0
      %p229 = por %p227, %p228
      %s231 = sadd.s32 %s230, 1
      %p234 = scmp.eq.s32.totalorder %s23, 1
      %p235 = scmp.ne.s32.totalorder %s230, %s232
      %p236 = scmp.eq.s32.totalorder %s23, 0
      %p237 = por %p235, %p236
      %p238 = scmp.ne.s32.totalorder %s230, %s232
      %p239 = scmp.eq.s32.totalorder %s28, 1
      %p240 = por %p238, %p239
      %p241 = scmp.ne.s32.totalorder %s232, %s233
      %p242 = scmp.eq.s32.totalorder %s28, 0
      %p243 = por %p241, %p242
      %p244 = scmp.ne.s32.totalorder %s232, %s233
      %p245 = scmp.eq.s32.totalorder %s29, 1
      %p246 = por %p244, %p245
      %p248 = scmp.ne.s32.totalorder %s233, %s247
      %p249 = scmp.eq.s32.totalorder %s29, 0
      %p250 = por %p248, %p249
      %s252 = sadd.s32 %s251, 1
      %p255 = scmp.eq.s32.totalorder %s23, 1
      %p256 = scmp.ne.s32.totalorder %s251, %s253
      %p257 = scmp.eq.s32.totalorder %s23, 0
      %p258 = por %p256, %p257
      %p259 = scmp.ne.s32.totalorder %s251, %s253
      %p260 = scmp.eq.s32.totalorder %s28, 1
      %p261 = por %p259, %p260
      %p262 = scmp.ne.s32.totalorder %s253, %s254
      %p263 = scmp.eq.s32.totalorder %s28, 0
      %p264 = por %p262, %p263
      %p265 = scmp.ne.s32.totalorder %s253, %s254
      %p266 = scmp.eq.s32.totalorder %s29, 1
      %p267 = por %p265, %p266
      %p269 = scmp.ne.s32.totalorder %s254, %s268
      %p270 = scmp.eq.s32.totalorder %s29, 0
      %p271 = por %p269, %p270
      %s273 = sadd.s32 %s272, 1
      %p276 = scmp.eq.s32.totalorder %s23, 1
      %p277 = scmp.ne.s32.totalorder %s272, %s274
      %p278 = scmp.eq.s32.totalorder %s23, 0
      %p279 = por %p277, %p278
      %p280 = scmp.ne.s32.totalorder %s272, %s274
      %p281 = scmp.eq.s32.totalorder %s28, 1
      %p282 = por %p280, %p281
      %p283 = scmp.ne.s32.totalorder %s274, %s275
      %p284 = scmp.eq.s32.totalorder %s28, 0
      %p285 = por %p283, %p284
      %p286 = scmp.ne.s32.totalorder %s274, %s275
      %p287 = scmp.eq.s32.totalorder %s29, 1
      %p288 = por %p286, %p287
      %p290 = scmp.ne.s32.totalorder %s275, %s289
      %p291 = scmp.eq.s32.totalorder %s29, 0
      %p292 = por %p290, %p291
      %s294 = sadd.s32 %s293, 1
      %p297 = scmp.eq.s32.totalorder %s23, 1
      %p298 = scmp.ne.s32.totalorder %s293, %s295
      %p299 = scmp.eq.s32.totalorder %s23, 0
      %p300 = por %p298, %p299
      %p301 = scmp.ne.s32.totalorder %s293, %s295
      %p302 = scmp.eq.s32.totalorder %s28, 1
      %p303 = por %p301, %p302
      %p304 = scmp.ne.s32.totalorder %s295, %s296
      %p305 = scmp.eq.s32.totalorder %s28, 0
      %p306 = por %p304, %p305
      %p307 = scmp.ne.s32.totalorder %s295, %s296
      %p308 = scmp.eq.s32.totalorder %s29, 1
      %p309 = por %p307, %p308
      %p311 = scmp.ne.s32.totalorder %s296, %s310
      %p312 = scmp.eq.s32.totalorder %s29, 0
      %p313 = por %p311, %p312
      %s315 = sadd.s32 %s314, 1
      %p318 = scmp.eq.s32.totalorder %s23, 1
      %p319 = scmp.ne.s32.totalorder %s314, %s316
      %p320 = scmp.eq.s32.totalorder %s23, 0
      %p321 = por %p319, %p320
      %p322 = scmp.ne.s32.totalorder %s314, %s316
      %p323 = scmp.eq.s32.totalorder %s28, 1
      %p324 = por %p322, %p323
      %p325 = scmp.ne.s32.totalorder %s316, %s317
      %p326 = scmp.eq.s32.totalorder %s28, 0
      %p327 = por %p325, %p326
      %p328 = scmp.ne.s32.totalorder %s316, %s317
      %p329 = scmp.eq.s32.totalorder %s29, 1
      %p330 = por %p328, %p329
      %p332 = scmp.ne.s32.totalorder %s317, %s331
      %p333 = scmp.eq.s32.totalorder %s29, 0
      %p334 = por %p332, %p333
      %s335 = ssub.s32 %s23, %s30
      %p336 = scmp.eq.s32.totalorder %s335, 0
      %s338 = sadd.s32 %s337, 1
      %s339 = scalar_select %p336, %s337, %s338
      %p342 = pneg %p336
      %p343 = scmp.eq.s32.totalorder %s23, 1
      %p344 = por %p342, %p343
      %p345 = scmp.ne.s32.totalorder %s337, %s340
      %p346 = scmp.eq.s32.totalorder %s23, 0
      %p347 = por %p345, %p346
      %p348 = scmp.ne.s32.totalorder %s337, %s340
      %p349 = scmp.eq.s32.totalorder %s28, 1
      %p350 = por %p348, %p349
      %p351 = scmp.ne.s32.totalorder %s340, %s341
      %p352 = scmp.eq.s32.totalorder %s28, 0
      %p353 = por %p351, %p352
      %p354 = scmp.ne.s32.totalorder %s340, %s341
      %p355 = scmp.eq.s32.totalorder %s29, 1
      %p356 = por %p354, %p355
      %p358 = scmp.ne.s32.totalorder %s341, %s357
      %p359 = scmp.eq.s32.totalorder %s29, 0
      %p360 = por %p358, %p359
      %p361 = scmp.le.s32.totalorder 1, %s23
      %p362 = scmp.lt.s32.totalorder %s23, 3
      %p363 = pnand %p361, %p362
      %p364 = pneg %p363
      // Predicated region
      $region9: #{gprb_pallas.3} parent=5 // pred_check
        _
      $region10: #{gprb_pallas.3} parent=5 // pred_check_branch
        %366 = sbr.rel (%p363) target = $region12
      $region11: #{gprb_pallas.3} parent=5 // pred_region
        %s367 = ssub.s32 %s23, 1
        // Predicated region
        $region13: #{gprb_pallas.3} parent=11 // pred_check
          %p368 = pneg %p96
        $region14: #{gprb_pallas.3} parent=11 // pred_check_branch
          %370 = sbr.rel (%p368) target = $region16
        $region15: #{gprb_pallas.3} parent=11 // pred_region
          _
        $region16: #{gprb_pallas.3} parent=11 // pred_fallthru
          _
        // Predicated region
        $region17: #{gprb_pallas.3} parent=11 // pred_check
          %p371 = pneg %p117
        $region18: #{gprb_pallas.3} parent=11 // pred_check_branch
          %373 = sbr.rel (%p371) target = $region20
        $region19: #{gprb_pallas.3} parent=11 // pred_region
          _
        $region20: #{gprb_pallas.3} parent=11 // pred_fallthru
          _
        // Predicated region
        $region21: #{gprb_pallas.3} parent=11 // pred_check
          %p374 = pneg %p138
        $region22: #{gprb_pallas.3} parent=11 // pred_check_branch
          %376 = sbr.rel (%p374) target = $region24
        $region23: #{gprb_pallas.3} parent=11 // pred_region
          _
        $region24: #{gprb_pallas.3} parent=11 // pred_fallthru
          _
        // Predicated region
        $region25: #{gprb_pallas.3} parent=11 // pred_check
          %p377 = pneg %p159
        $region26: #{gprb_pallas.3} parent=11 // pred_check_branch
          %379 = sbr.rel (%p377) target = $region28
        $region27: #{gprb_pallas.3} parent=11 // pred_region
          _
        $region28: #{gprb_pallas.3} parent=11 // pred_fallthru
          _
        // Predicated region
        $region29: #{gprb_pallas.3} parent=11 // pred_check
          %p380 = pneg %p180
        $region30: #{gprb_pallas.3} parent=11 // pred_check_branch
          %382 = sbr.rel (%p380) target = $region32
        $region31: #{gprb_pallas.3} parent=11 // pred_region
          _
        $region32: #{gprb_pallas.3} parent=11 // pred_fallthru
          _
        // Predicated region
        $region33: #{gprb_pallas.3} parent=11 // pred_check
          %p383 = pneg %p201
        $region34: #{gprb_pallas.3} parent=11 // pred_check_branch
          %385 = sbr.rel (%p383) target = $region36
        $region35: #{gprb_pallas.3} parent=11 // pred_region
          _
        $region36: #{gprb_pallas.3} parent=11 // pred_fallthru
          _
        // Predicated region
        $region37: #{gprb_pallas.3} parent=11 // pred_check
          %p386 = pneg %p222
        $region38: #{gprb_pallas.3} parent=11 // pred_check_branch
          %388 = sbr.rel (%p386) target = $region40
        $region39: #{gprb_pallas.3} parent=11 // pred_region
          _
        $region40: #{gprb_pallas.3} parent=11 // pred_fallthru
          _
        // Predicated region
        $region41: #{gprb_pallas.3} parent=11 // pred_check
          %p389 = pneg %p243
        $region42: #{gprb_pallas.3} parent=11 // pred_check_branch
          %391 = sbr.rel (%p389) target = $region44
        $region43: #{gprb_pallas.3} parent=11 // pred_region
          _
        $region44: #{gprb_pallas.3} parent=11 // pred_fallthru
          _
        // Predicated region
        $region45: #{gprb_pallas.3} parent=11 // pred_check
          %p392 = pneg %p264
        $region46: #{gprb_pallas.3} parent=11 // pred_check_branch
          %394 = sbr.rel (%p392) target = $region48
        $region47: #{gprb_pallas.3} parent=11 // pred_region
          _
        $region48: #{gprb_pallas.3} parent=11 // pred_fallthru
          _
        // Predicated region
        $region49: #{gprb_pallas.3} parent=11 // pred_check
          %p395 = pneg %p285
        $region50: #{gprb_pallas.3} parent=11 // pred_check_branch
          %397 = sbr.rel (%p395) target = $region52
        $region51: #{gprb_pallas.3} parent=11 // pred_region
          _
        $region52: #{gprb_pallas.3} parent=11 // pred_fallthru
          _
        // Predicated region
        $region53: #{gprb_pallas.3} parent=11 // pred_check
          %p398 = pneg %p306
        $region54: #{gprb_pallas.3} parent=11 // pred_check_branch
          %400 = sbr.rel (%p398) target = $region56
        $region55: #{gprb_pallas.3} parent=11 // pred_region
          _
        $region56: #{gprb_pallas.3} parent=11 // pred_fallthru
          _
        // Predicated region
        $region57: #{gprb_pallas.3} parent=11 // pred_check
          %p401 = pneg %p327
        $region58: #{gprb_pallas.3} parent=11 // pred_check_branch
          %403 = sbr.rel (%p401) target = $region60
        $region59: #{gprb_pallas.3} parent=11 // pred_region
          _
        $region60: #{gprb_pallas.3} parent=11 // pred_fallthru
          _
      $region12: #{gprb_pallas.3} parent=5 // pred_fallthru
        _
      %p404 = scmp.lt.s32.totalorder %s23, 2
      // Predicated region
      $region61: #{gprb_pallas.3} parent=5 // pred_check
        %p405 = pneg %p404
      $region62: #{gprb_pallas.3} parent=5 // pred_check_branch
        %407 = sbr.rel (%p405) target = $region64
      $region63: #{gprb_pallas.3} parent=5 // pred_region
        // Predicated region
        $region65: #{gprb_pallas.3} parent=63 // pred_check
          %p408 = pneg %p43
        $region66: #{gprb_pallas.3} parent=63 // pred_check_branch
          %410 = sbr.rel (%p408) target = $region68
        $region67: #{gprb_pallas.3} parent=63 // pred_region
          %p411 = scmp.lt.s32.totalorder %s23, 1
          %s412 = scalar_select %p411, %s23, 1
          %s413 = smul.addr %s412, 18
          %s414 = smul.addr %s413, 8
          %s415 = scalar_lea.vmem %s0, %s414
        $region68: #{gprb_pallas.3} parent=63 // pred_fallthru
          _
        // Predicated region
        $region69: #{gprb_pallas.3} parent=63 // pred_check
          %p416 = pneg %p69
        $region70: #{gprb_pallas.3} parent=63 // pred_check_branch
          %418 = sbr.rel (%p416) target = $region72
        $region71: #{gprb_pallas.3} parent=63 // pred_region
          %p419 = scmp.lt.s32.totalorder %s23, 1
          %s420 = scalar_select %p419, %s23, 1
          %s421 = smul.addr %s420, 18
          %s422 = smul.addr %s421, 8
          %s423 = scalar_lea.vmem %s1, %s422
        $region72: #{gprb_pallas.3} parent=63 // pred_fallthru
          _
      $region64: #{gprb_pallas.3} parent=5 // pred_fallthru
        _
      %p424 = scmp.le.s32.totalorder 1, %s23
      %p425 = scmp.lt.s32.totalorder %s23, 3
      %p426 = pnand %p424, %p425
      %p427 = pneg %p426
      // Predicated region
      $region73: #{gprb_pallas.3} parent=5 // pred_check
        _
      $region74: #{gprb_pallas.3} parent=5 // pred_check_branch
        %429 = sbr.rel (%p426) target = $region76
      $region75: #{gprb_pallas.3} parent=5 // pred_region
        %s430 = ssub.s32 %s23, 1
        %p431 = scmp.lt.s32.totalorder %s28, 1
        %s432 = scalar_select %p431, %s28, 1
        %s433 = smul.addr %s432, 18
        %s434 = smul.addr %s433, 8
        %s435 = scalar_lea.vmem %s0, %s434
        %p436 = pneg %p49
        %p437 = pneg %p46
        %p438 = scmp.lt.s32.totalorder %s28, 1
        %s439 = scalar_select %p438, %s28, 1
        %s440 = smul.addr %s439, 18
        %s441 = smul.addr %s440, 8
        %s442 = scalar_lea.vmem %s1, %s441
        %p443 = pneg %p75
        %p444 = pneg %p72
        %p445 = pneg %p96
        %p446 = pneg %p93
        %p447 = pneg %p117
        %p448 = pneg %p114
        %p449 = pneg %p138
        %p450 = pneg %p135
        %p451 = pneg %p159
        %p452 = pneg %p156
        %p453 = pneg %p180
        %p454 = pneg %p177
        %p455 = pneg %p201
        %p456 = pneg %p198
        %p457 = pneg %p222
        %p458 = pneg %p219
        %p459 = pneg %p243
        %p460 = pneg %p240
        %p461 = pneg %p264
        %p462 = pneg %p261
        %p463 = pneg %p285
        %p464 = pneg %p282
        %p465 = pneg %p306
        %p466 = pneg %p303
        %p467 = pneg %p327
        %p468 = pneg %p324
        %p469 = pneg %p353
        %p470 = pneg %p350
        %s471 = sand.u32 %s340, 1
        %s472 = scalar_lea.sflag [#allocation3], %s471
        %s473 = sand.u32 %s340, 1
        %s474 = smul.addr %s473, 144
        %s475 = scalar_lea.vmem [#allocation2], %s474
        %p476 = scmp.lt.s32.totalorder %s28, 1
        %s477 = scalar_select %p476, %s28, 1
        %s478 = smul.addr %s477, 18
        %s479 = smul.addr %s478, 8
        %s480 = scalar_lea.vmem %s0, %s479
        %p481 = scmp.lt.s32.totalorder %s28, 1
        %s482 = scalar_select %p481, %s28, 1
        %s483 = smul.addr %s482, 18
        %s484 = smul.addr %s483, 8
        %s485 = scalar_lea.vmem %s1, %s484
        %v487 = vld [vmem:[%s480] sm:$0xff]
        %v488 = vld [vmem:[%s480 + $0x8] sm:$0xff]
        %v489 = vld [vmem:[%s480 + $0x10] sm:$0xff]
        %v490 = vld [vmem:[%s480 + $0x18] sm:$0xff]
        %v491 = vld [vmem:[%s480 + $0x20] sm:$0xff]
        %v492 = vld [vmem:[%s480 + $0x28] sm:$0xff]
        %v493 = vld [vmem:[%s480 + $0x30] sm:$0xff]
        %v494 = vld [vmem:[%s480 + $0x38] sm:$0xff]
        %v495 = vld [vmem:[%s480 + $0x40] sm:$0xff]
        %v496 = vld [vmem:[%s480 + $0x48] sm:$0xff]
        %v497 = vld [vmem:[%s480 + $0x50] sm:$0xff]
        %v498 = vld [vmem:[%s480 + $0x58] sm:$0xff]
        %v499 = vld [vmem:[%s480 + $0x60] sm:$0xff]
        %v500 = vld [vmem:[%s480 + $0x68] sm:$0xff]
        %v501 = vld [vmem:[%s480 + $0x70] sm:$0xff]
        %v502 = vld [vmem:[%s480 + $0x78] sm:$0xff]
        %v503 = vld [vmem:[%s480 + $0x80] sm:$0xff]
        %v504 = vld [vmem:[%s480 + $0x88] sm:$0xff]
        %v505 = vpack.c.bf16 %v488, %v487
        %v506 = vpack.c.bf16 %v490, %v489
        %v507 = vpack.c.bf16 %v492, %v491
        %v508 = vpack.c.bf16 %v494, %v493
        %v509 = vpack.c.bf16 %v496, %v495
        %v510 = vpack.c.bf16 %v498, %v497
        %v511 = vpack.c.bf16 %v500, %v499
        %v512 = vpack.c.bf16 %v502, %v501
        %v513 = vpack.c.bf16 %v504, %v503
        %v514 = vld [vmem:[%s2] sm:$0xf]
        %v515 = vld [vmem:[%s2 + $0x4] sm:$0xf]
        %v516 = vld [vmem:[%s2 + $0x8] sm:$0xf]
        %v517 = vld [vmem:[%s2 + $0xc] sm:$0xf]
        %v518 = vld [vmem:[%s3] sm:$0x1]
        %v520 = vperm.slane %v518, 0
        %v526 = vunpack.c.l.b16 %v514
        %v527 = vunpack.c.l.b16 %v515
        %v528 = vunpack.c.l.b16 %v516
        %v529 = vunpack.c.l.b16 %v517
        %v530 = vpack.c.b16 %v527, %v526
        %v531 = vpack.c.b16 %v529, %v528
        %vm534 = vcmask 261120
        %v536 = vsel %vm534, %v505, 0
        %v539 = vsel %vm534, %v506, 0
        %v542 = vsel %vm534, %v507, 0
        %v545 = vsel %vm534, %v508, 0
        %v548 = vsel %vm534, %v509, 0
        %v551 = vsel %vm534, %v510, 0
        %v554 = vsel %vm534, %v511, 0
        %v557 = vsel %vm534, %v512, 0
        %v560 = vsel %vm534, %v513, 0
        %562 = vmatpush.bf16.msra.mxu0 0
        %563 = vmatpush.bf16.msra.mxu0 0
        %564 = vmatpush.bf16.msra.mxu0 0
        %565 = vmatpush.bf16.msra.mxu0 0
        %566 = vmatpush.bf16.msra.mxu0 0
        %567 = vmatpush.bf16.msra.mxu0 0
        %568 = vmatpush.bf16.msra.mxu0 %v531
        %569 = vmatpush.bf16.msra.mxu0 %v530
        %570 = vmatmul.bf16.gmra.mxu0 %v536
        %v571 = vpop.f32.mrf.mxu0
        %v572 = vadd.f32 %v520, %v571
        %v573 = vpop.f32.mrf.mxu0
        %v574 = vadd.f32 %v520, %v573
        %575 = vmatmul.bf16.gmra.mxu0 %v539
        %v576 = vpop.f32.mrf.mxu0
        %v577 = vadd.f32 %v520, %v576
        %v578 = vpop.f32.mrf.mxu0
        %v579 = vadd.f32 %v520, %v578
        %580 = vmatmul.bf16.gmra.mxu0 %v542
        %v581 = vpop.f32.mrf.mxu0
        %v582 = vadd.f32 %v520, %v581
        %v583 = vpop.f32.mrf.mxu0
        %v584 = vadd.f32 %v520, %v583
        %585 = vmatmul.bf16.gmra.mxu0 %v545
        %v586 = vpop.f32.mrf.mxu0
        %v587 = vadd.f32 %v520, %v586
        %v588 = vpop.f32.mrf.mxu0
        %v589 = vadd.f32 %v520, %v588
        %590 = vmatmul.bf16.gmra.mxu0 %v548
        %v591 = vpop.f32.mrf.mxu0
        %v592 = vadd.f32 %v520, %v591
        %v593 = vpop.f32.mrf.mxu0
        %v594 = vadd.f32 %v520, %v593
        %595 = vmatmul.bf16.gmra.mxu0 %v551
        %v596 = vpop.f32.mrf.mxu0
        %v597 = vadd.f32 %v520, %v596
        %v598 = vpop.f32.mrf.mxu0
        %v599 = vadd.f32 %v520, %v598
        %600 = vmatmul.bf16.gmra.mxu0 %v554
        %v601 = vpop.f32.mrf.mxu0
        %v602 = vadd.f32 %v520, %v601
        %v603 = vpop.f32.mrf.mxu0
        %v604 = vadd.f32 %v520, %v603
        %605 = vmatmul.bf16.gmra.mxu0 %v557
        %v606 = vpop.f32.mrf.mxu0
        %v607 = vadd.f32 %v520, %v606
        %v608 = vpop.f32.mrf.mxu0
        %v609 = vadd.f32 %v520, %v608
        %610 = vmatmul.bf16.gmra.mxu0 %v560
        %v611 = vpop.f32.mrf.mxu0
        %v612 = vadd.f32 %v520, %v611
        %v613 = vpop.f32.mrf.mxu0
        %v614 = vadd.f32 %v520, %v613
        %615 = vdwg.mxu0
        %618 = vrot.lane.b32.xlu0 %v577, 32
        %v619 = vpop.permute.xlu0 %618
        %620 = vrot.lane.b32.xlu0 %v579, 32
        %v621 = vpop.permute.xlu0 %620
        %626 = vrot.lane.b32.xlu0 %v582, 64
        %v627 = vpop.permute.xlu0 %626
        %628 = vrot.lane.b32.xlu0 %v584, 64
        %v629 = vpop.permute.xlu0 %628
        %634 = vrot.lane.b32.xlu0 %v587, 96
        %v635 = vpop.permute.xlu0 %634
        %636 = vrot.lane.b32.xlu0 %v589, 96
        %v637 = vpop.permute.xlu0 %636
        %642 = vrot.lane.b32.xlu0 %v597, 32
        %v643 = vpop.permute.xlu0 %642
        %644 = vrot.lane.b32.xlu0 %v599, 32
        %v645 = vpop.permute.xlu0 %644
        %650 = vrot.lane.b32.xlu0 %v602, 64
        %v651 = vpop.permute.xlu0 %650
        %652 = vrot.lane.b32.xlu0 %v604, 64
        %v653 = vpop.permute.xlu0 %652
        %658 = vrot.lane.b32.xlu0 %v607, 96
        %v659 = vpop.permute.xlu0 %658
        %660 = vrot.lane.b32.xlu0 %v609, 96
        %v661 = vpop.permute.xlu0 %660
        %v664 = vsel %vm534, %v572, %v619
        %v665 = vsel %vm534, %v574, %v621
        %vm666 = vcmask 523264
        %v667 = vsel %vm666, %v664, %v627
        %v668 = vsel %vm666, %v665, %v629
        %vm669 = vcmask 785408
        %v670 = vsel %vm669, %v667, %v635
        %v671 = vsel %vm669, %v668, %v637
        %v672 = vsel %vm534, %v592, %v643
        %v673 = vsel %vm534, %v594, %v645
        %v674 = vsel %vm666, %v672, %v651
        %v675 = vsel %vm666, %v673, %v653
        %v676 = vsel %vm669, %v674, %v659
        %v677 = vsel %vm669, %v675, %v661
        %v678 = vpack.c.bf16 %v671, %v670
        %v679 = vpack.c.bf16 %v677, %v676
        %v680 = vld [vmem:[%s4] sm:$0xf]
        %v681 = vld [vmem:[%s4 + $0x4] sm:$0xf]
        %v682 = vld [vmem:[%s4 + $0x8] sm:$0xf]
        %v683 = vld [vmem:[%s4 + $0xc] sm:$0xf]
        %v684 = vld [vmem:[%s4 + $0x10] sm:$0xf]
        %v685 = vld [vmem:[%s4 + $0x14] sm:$0xf]
        %v686 = vld [vmem:[%s4 + $0x18] sm:$0xf]
        %v687 = vld [vmem:[%s4 + $0x1c] sm:$0xf]
        %v688 = vld [vmem:[%s4 + $0x20] sm:$0xf]
        %v689 = vld [vmem:[%s4 + $0x24] sm:$0xf]
        %v690 = vld [vmem:[%s4 + $0x28] sm:$0xf]
        %v691 = vld [vmem:[%s4 + $0x2c] sm:$0xf]
        %v692 = vld [vmem:[%s4 + $0x30] sm:$0xf]
        %v693 = vld [vmem:[%s4 + $0x34] sm:$0xf]
        %v694 = vld [vmem:[%s4 + $0x38] sm:$0xf]
        %v695 = vld [vmem:[%s4 + $0x3c] sm:$0xf]
        %v696 = vld [vmem:[%s4 + $0x40] sm:$0xf]
        %v697 = vld [vmem:[%s4 + $0x44] sm:$0xf]
        %v698 = vld [vmem:[%s4 + $0x48] sm:$0xf]
        %v699 = vld [vmem:[%s4 + $0x4c] sm:$0xf]
        %v700 = vld [vmem:[%s4 + $0x50] sm:$0xf]
        %v701 = vld [vmem:[%s4 + $0x54] sm:$0xf]
        %v702 = vld [vmem:[%s4 + $0x58] sm:$0xf]
        %v703 = vld [vmem:[%s4 + $0x5c] sm:$0xf]
        %v704 = vld [vmem:[%s4 + $0x60] sm:$0xf]
        %v705 = vld [vmem:[%s4 + $0x64] sm:$0xf]
        %v706 = vld [vmem:[%s4 + $0x68] sm:$0xf]
        %v707 = vld [vmem:[%s4 + $0x6c] sm:$0xf]
        %v708 = vld [vmem:[%s4 + $0x70] sm:$0xf]
        %v709 = vld [vmem:[%s4 + $0x74] sm:$0xf]
        %v710 = vld [vmem:[%s4 + $0x78] sm:$0xf]
        %v711 = vld [vmem:[%s4 + $0x7c] sm:$0xf]
        %v712 = vld [vmem:[%s5] sm:$0x1]
        %v714 = vperm.slane %v712, 0
        %v748 = vunpack.c.l.b16 %v680
        %v749 = vunpack.c.l.b16 %v681
        %v750 = vunpack.c.l.b16 %v682
        %v751 = vunpack.c.l.b16 %v683
        %v752 = vunpack.c.l.b16 %v684
        %v753 = vunpack.c.l.b16 %v685
        %v754 = vunpack.c.l.b16 %v686
        %v755 = vunpack.c.l.b16 %v687
        %v756 = vunpack.c.l.b16 %v688
        %v757 = vunpack.c.l.b16 %v689
        %v758 = vunpack.c.l.b16 %v690
        %v759 = vunpack.c.l.b16 %v691
        %v760 = vunpack.c.l.b16 %v692
        %v761 = vunpack.c.l.b16 %v693
        %v762 = vunpack.c.l.b16 %v694
        %v763 = vunpack.c.l.b16 %v695
        %v764 = vunpack.c.l.b16 %v696
        %v765 = vunpack.c.l.b16 %v697
        %v766 = vunpack.c.l.b16 %v698
        %v767 = vunpack.c.l.b16 %v699
        %v768 = vunpack.c.l.b16 %v700
        %v769 = vunpack.c.l.b16 %v701
        %v770 = vunpack.c.l.b16 %v702
        %v771 = vunpack.c.l.b16 %v703
        %v772 = vunpack.c.l.b16 %v704
        %v773 = vunpack.c.l.b16 %v705
        %v774 = vunpack.c.l.b16 %v706
        %v775 = vunpack.c.l.b16 %v707
        %v776 = vunpack.c.l.b16 %v708
        %v777 = vunpack.c.l.b16 %v709
        %v778 = vunpack.c.l.b16 %v710
        %v779 = vunpack.c.l.b16 %v711
        %v780 = vpack.c.b16 %v749, %v748
        %v781 = vpack.c.b16 %v751, %v750
        %v782 = vpack.c.b16 %v753, %v752
        %v783 = vpack.c.b16 %v755, %v754
        %v784 = vpack.c.b16 %v757, %v756
        %v785 = vpack.c.b16 %v759, %v758
        %v786 = vpack.c.b16 %v761, %v760
        %v787 = vpack.c.b16 %v763, %v762
        %v788 = vpack.c.b16 %v765, %v764
        %v789 = vpack.c.b16 %v767, %v766
        %v790 = vpack.c.b16 %v769, %v768
        %v791 = vpack.c.b16 %v771, %v770
        %v792 = vpack.c.b16 %v773, %v772
        %v793 = vpack.c.b16 %v775, %v774
        %v794 = vpack.c.b16 %v777, %v776
        %v795 = vpack.c.b16 %v779, %v778
        %812 = vmatpush.bf16.msra.mxu0 %v787
        %813 = vmatpush.bf16.msra.mxu0 %v786
        %814 = vmatpush.bf16.msra.mxu0 %v785
        %815 = vmatpush.bf16.msra.mxu0 %v784
        %816 = vmatpush.bf16.msra.mxu0 %v783
        %817 = vmatpush.bf16.msra.mxu0 %v782
        %818 = vmatpush.bf16.msra.mxu0 %v781
        %819 = vmatpush.bf16.msra.mxu0 %v780
        %820 = vmatmul.bf16.gmra.mxu0 %v678
        %v821 = vpop.f32.mrf.mxu0
        %v822 = vadd.f32 %v714, %v821
        %v823 = vpop.f32.mrf.mxu0
        %v824 = vadd.f32 %v714, %v823
        %825 = vdwg.mxu0
        %826 = vmatpush.bf16.msra.mxu0 %v795
        %827 = vmatpush.bf16.msra.mxu0 %v794
        %828 = vmatpush.bf16.msra.mxu0 %v793
        %829 = vmatpush.bf16.msra.mxu0 %v792
        %830 = vmatpush.bf16.msra.mxu0 %v791
        %831 = vmatpush.bf16.msra.mxu0 %v790
        %832 = vmatpush.bf16.msra.mxu0 %v789
        %833 = vmatpush.bf16.msra.mxu0 %v788
        %834 = vmatmul.bf16.gmra.mxu0 %v679
        %v835 = vpop.f32.mrf.mxu0
        %v836 = vadd.f32 %v822, %v835
        %v837 = vpop.f32.mrf.mxu0
        %v838 = vadd.f32 %v824, %v837
        %839 = vdwg.mxu0
        %v840 = vmax.f32 %v836, 0.0
        %v841 = vmax.f32 %v838, 0.0
        %v842 = vmax.f32 %v612, 0.0
        %v843 = vmax.f32 %v614, 0.0
        %v844 = vsub.f32 %v842, %v840
        %v845 = vsub.f32 %v843, %v841
        %v846 = vld [vmem:[%s485] sm:$0xff]
        %v847 = vld [vmem:[%s485 + $0x8] sm:$0xff]
        %v848 = vld [vmem:[%s485 + $0x10] sm:$0xff]
        %v849 = vld [vmem:[%s485 + $0x18] sm:$0xff]
        %v850 = vld [vmem:[%s485 + $0x20] sm:$0xff]
        %v851 = vld [vmem:[%s485 + $0x28] sm:$0xff]
        %v852 = vld [vmem:[%s485 + $0x30] sm:$0xff]
        %v853 = vld [vmem:[%s485 + $0x38] sm:$0xff]
        %v854 = vld [vmem:[%s485 + $0x40] sm:$0xff]
        %v855 = vld [vmem:[%s485 + $0x48] sm:$0xff]
        %v856 = vld [vmem:[%s485 + $0x50] sm:$0xff]
        %v857 = vld [vmem:[%s485 + $0x58] sm:$0xff]
        %v858 = vld [vmem:[%s485 + $0x60] sm:$0xff]
        %v859 = vld [vmem:[%s485 + $0x68] sm:$0xff]
        %v860 = vld [vmem:[%s485 + $0x70] sm:$0xff]
        %v861 = vld [vmem:[%s485 + $0x78] sm:$0xff]
        %v862 = vld [vmem:[%s485 + $0x80] sm:$0xff]
        %v863 = vld [vmem:[%s485 + $0x88] sm:$0xff]
        %v864 = vpack.c.bf16 %v847, %v846
        %v865 = vpack.c.bf16 %v849, %v848
        %v866 = vpack.c.bf16 %v851, %v850
        %v867 = vpack.c.bf16 %v853, %v852
        %v868 = vpack.c.bf16 %v855, %v854
        %v869 = vpack.c.bf16 %v857, %v856
        %v870 = vpack.c.bf16 %v859, %v858
        %v871 = vpack.c.bf16 %v861, %v860
        %v872 = vpack.c.bf16 %v863, %v862
        %v873 = vld [vmem:[%s6] sm:$0xf]
        %v874 = vld [vmem:[%s6 + $0x4] sm:$0xf]
        %v875 = vld [vmem:[%s6 + $0x8] sm:$0xf]
        %v876 = vld [vmem:[%s6 + $0xc] sm:$0xf]
        %v877 = vld [vmem:[%s7] sm:$0x1]
        %v879 = vperm.slane %v877, 0
        %v885 = vunpack.c.l.b16 %v873
        %v886 = vunpack.c.l.b16 %v874
        %v887 = vunpack.c.l.b16 %v875
        %v888 = vunpack.c.l.b16 %v876
        %v889 = vpack.c.b16 %v886, %v885
        %v890 = vpack.c.b16 %v888, %v887
        %v894 = vsel %vm534, %v864, 0
        %v897 = vsel %vm534, %v865, 0
        %v900 = vsel %vm534, %v866, 0
        %v903 = vsel %vm534, %v867, 0
        %v906 = vsel %vm534, %v868, 0
        %v909 = vsel %vm534, %v869, 0
        %v912 = vsel %vm534, %v870, 0
        %v915 = vsel %vm534, %v871, 0
        %v918 = vsel %vm534, %v872, 0
        %920 = vmatpush.bf16.msra.mxu0 0
        %921 = vmatpush.bf16.msra.mxu0 0
        %922 = vmatpush.bf16.msra.mxu0 0
        %923 = vmatpush.bf16.msra.mxu0 0
        %924 = vmatpush.bf16.msra.mxu0 0
        %925 = vmatpush.bf16.msra.mxu0 0
        %926 = vmatpush.bf16.msra.mxu0 %v890
        %927 = vmatpush.bf16.msra.mxu0 %v889
        %928 = vmatmul.bf16.gmra.mxu0 %v894
        %v929 = vpop.f32.mrf.mxu0
        %v930 = vadd.f32 %v879, %v929
        %v931 = vpop.f32.mrf.mxu0
        %v932 = vadd.f32 %v879, %v931
        %933 = vmatmul.bf16.gmra.mxu0 %v897
        %v934 = vpop.f32.mrf.mxu0
        %v935 = vadd.f32 %v879, %v934
        %v936 = vpop.f32.mrf.mxu0
        %v937 = vadd.f32 %v879, %v936
        %938 = vmatmul.bf16.gmra.mxu0 %v900
        %v939 = vpop.f32.mrf.mxu0
        %v940 = vadd.f32 %v879, %v939
        %v941 = vpop.f32.mrf.mxu0
        %v942 = vadd.f32 %v879, %v941
        %943 = vmatmul.bf16.gmra.mxu0 %v903
        %v944 = vpop.f32.mrf.mxu0
        %v945 = vadd.f32 %v879, %v944
        %v946 = vpop.f32.mrf.mxu0
        %v947 = vadd.f32 %v879, %v946
        %948 = vmatmul.bf16.gmra.mxu0 %v906
        %v949 = vpop.f32.mrf.mxu0
        %v950 = vadd.f32 %v879, %v949
        %v951 = vpop.f32.mrf.mxu0
        %v952 = vadd.f32 %v879, %v951
        %953 = vmatmul.bf16.gmra.mxu0 %v909
        %v954 = vpop.f32.mrf.mxu0
        %v955 = vadd.f32 %v879, %v954
        %v956 = vpop.f32.mrf.mxu0
        %v957 = vadd.f32 %v879, %v956
        %958 = vmatmul.bf16.gmra.mxu0 %v912
        %v959 = vpop.f32.mrf.mxu0
        %v960 = vadd.f32 %v879, %v959
        %v961 = vpop.f32.mrf.mxu0
        %v962 = vadd.f32 %v879, %v961
        %963 = vmatmul.bf16.gmra.mxu0 %v915
        %v964 = vpop.f32.mrf.mxu0
        %v965 = vadd.f32 %v879, %v964
        %v966 = vpop.f32.mrf.mxu0
        %v967 = vadd.f32 %v879, %v966
        %968 = vmatmul.bf16.gmra.mxu0 %v918
        %v969 = vpop.f32.mrf.mxu0
        %v970 = vadd.f32 %v879, %v969
        %v971 = vpop.f32.mrf.mxu0
        %v972 = vadd.f32 %v879, %v971
        %973 = vdwg.mxu0
        %v974 = vmul.f32 %v930, %v930
        %v975 = vmul.f32 %v932, %v932
        %v976 = vmul.f32 %v935, %v935
        %v977 = vmul.f32 %v937, %v937
        %v978 = vmul.f32 %v940, %v940
        %v979 = vmul.f32 %v942, %v942
        %v980 = vmul.f32 %v945, %v945
        %v981 = vmul.f32 %v947, %v947
        %v982 = vmul.f32 %v950, %v950
        %v983 = vmul.f32 %v952, %v952
        %v984 = vmul.f32 %v955, %v955
        %v985 = vmul.f32 %v957, %v957
        %v986 = vmul.f32 %v960, %v960
        %v987 = vmul.f32 %v962, %v962
        %v988 = vmul.f32 %v965, %v965
        %v989 = vmul.f32 %v967, %v967
        %v990 = vmul.f32 %v970, %v970
        %v991 = vmul.f32 %v972, %v972
        %v992 = vmul.f32 %v930, %v974
        %v993 = vmul.f32 %v932, %v975
        %v994 = vmul.f32 %v935, %v976
        %v995 = vmul.f32 %v937, %v977
        %v996 = vmul.f32 %v940, %v978
        %v997 = vmul.f32 %v942, %v979
        %v998 = vmul.f32 %v945, %v980
        %v999 = vmul.f32 %v947, %v981
        %v1000 = vmul.f32 %v950, %v982
        %v1001 = vmul.f32 %v952, %v983
        %v1002 = vmul.f32 %v955, %v984
        %v1003 = vmul.f32 %v957, %v985
        %v1004 = vmul.f32 %v960, %v986
        %v1005 = vmul.f32 %v962, %v987
        %v1006 = vmul.f32 %v965, %v988
        %v1007 = vmul.f32 %v967, %v989
        %v1008 = vmul.f32 %v970, %v990
        %v1009 = vmul.f32 %v972, %v991
        %v1010 = vmul.f32 %v992, 0.044715
        %v1011 = vmul.f32 %v993, 0.044715
        %v1012 = vmul.f32 %v994, 0.044715
        %v1013 = vmul.f32 %v995, 0.044715
        %v1014 = vmul.f32 %v996, 0.044715
        %v1015 = vmul.f32 %v997, 0.044715
        %v1016 = vmul.f32 %v998, 0.044715
        %v1017 = vmul.f32 %v999, 0.044715
        %v1018 = vmul.f32 %v1000, 0.044715
        %v1019 = vmul.f32 %v1001, 0.044715
        %v1020 = vmul.f32 %v1002, 0.044715
        %v1021 = vmul.f32 %v1003, 0.044715
        %v1022 = vmul.f32 %v1004, 0.044715
        %v1023 = vmul.f32 %v1005, 0.044715
        %v1024 = vmul.f32 %v1006, 0.044715
        %v1025 = vmul.f32 %v1007, 0.044715
        %v1026 = vmul.f32 %v1008, 0.044715
        %v1027 = vmul.f32 %v1009, 0.044715
        %v1028 = vadd.f32 %v930, %v1010
        %v1029 = vadd.f32 %v932, %v1011
        %v1030 = vadd.f32 %v935, %v1012
        %v1031 = vadd.f32 %v937, %v1013
        %v1032 = vadd.f32 %v940, %v1014
        %v1033 = vadd.f32 %v942, %v1015
        %v1034 = vadd.f32 %v945, %v1016
        %v1035 = vadd.f32 %v947, %v1017
        %v1036 = vadd.f32 %v950, %v1018
        %v1037 = vadd.f32 %v952, %v1019
        %v1038 = vadd.f32 %v955, %v1020
        %v1039 = vadd.f32 %v957, %v1021
        %v1040 = vadd.f32 %v960, %v1022
        %v1041 = vadd.f32 %v962, %v1023
        %v1042 = vadd.f32 %v965, %v1024
        %v1043 = vadd.f32 %v967, %v1025
        %v1044 = vadd.f32 %v970, %v1026
        %v1045 = vadd.f32 %v972, %v1027
        %v1046 = vmul.f32 %v1028, 0.7978846
        %v1047 = vmul.f32 %v1029, 0.7978846
        %v1048 = vmul.f32 %v1030, 0.7978846
        %v1049 = vmul.f32 %v1031, 0.7978846
        %v1050 = vmul.f32 %v1032, 0.7978846
        %v1051 = vmul.f32 %v1033, 0.7978846
        %v1052 = vmul.f32 %v1034, 0.7978846
        %v1053 = vmul.f32 %v1035, 0.7978846
        %v1054 = vmul.f32 %v1036, 0.7978846
        %v1055 = vmul.f32 %v1037, 0.7978846
        %v1056 = vmul.f32 %v1038, 0.7978846
        %v1057 = vmul.f32 %v1039, 0.7978846
        %v1058 = vmul.f32 %v1040, 0.7978846
        %v1059 = vmul.f32 %v1041, 0.7978846
        %v1060 = vmul.f32 %v1042, 0.7978846
        %v1061 = vmul.f32 %v1043, 0.7978846
        %v1062 = vmul.f32 %v1044, 0.7978846
        %v1063 = vmul.f32 %v1045, 0.7978846
        %v1064 = vtanh.pop %v1046
        %v1065 = vtanh.pop %v1047
        %v1066 = vtanh.pop %v1048
        %v1067 = vtanh.pop %v1049
        %v1068 = vtanh.pop %v1050
        %v1069 = vtanh.pop %v1051
        %v1070 = vtanh.pop %v1052
        %v1071 = vtanh.pop %v1053
        %v1072 = vtanh.pop %v1054
        %v1073 = vtanh.pop %v1055
        %v1074 = vtanh.pop %v1056
        %v1075 = vtanh.pop %v1057
        %v1076 = vtanh.pop %v1058
        %v1077 = vtanh.pop %v1059
        %v1078 = vtanh.pop %v1060
        %v1079 = vtanh.pop %v1061
        %v1080 = vtanh.pop %v1062
        %v1081 = vtanh.pop %v1063
        %v1082 = vadd.f32 %v1064, 1.0
        %v1083 = vadd.f32 %v1065, 1.0
        %v1084 = vadd.f32 %v1066, 1.0
        %v1085 = vadd.f32 %v1067, 1.0
        %v1086 = vadd.f32 %v1068, 1.0
        %v1087 = vadd.f32 %v1069, 1.0
        %v1088 = vadd.f32 %v1070, 1.0
        %v1089 = vadd.f32 %v1071, 1.0
        %v1090 = vadd.f32 %v1072, 1.0
        %v1091 = vadd.f32 %v1073, 1.0
        %v1092 = vadd.f32 %v1074, 1.0
        %v1093 = vadd.f32 %v1075, 1.0
        %v1094 = vadd.f32 %v1076, 1.0
        %v1095 = vadd.f32 %v1077, 1.0
        %v1096 = vadd.f32 %v1078, 1.0
        %v1097 = vadd.f32 %v1079, 1.0
        %v1098 = vadd.f32 %v1080, 1.0
        %v1099 = vadd.f32 %v1081, 1.0
        %v1100 = vmul.f32 %v1082, 0.5
        %v1101 = vmul.f32 %v1083, 0.5
        %v1102 = vmul.f32 %v1084, 0.5
        %v1103 = vmul.f32 %v1085, 0.5
        %v1104 = vmul.f32 %v1086, 0.5
        %v1105 = vmul.f32 %v1087, 0.5
        %v1106 = vmul.f32 %v1088, 0.5
        %v1107 = vmul.f32 %v1089, 0.5
        %v1108 = vmul.f32 %v1090, 0.5
        %v1109 = vmul.f32 %v1091, 0.5
        %v1110 = vmul.f32 %v1092, 0.5
        %v1111 = vmul.f32 %v1093, 0.5
        %v1112 = vmul.f32 %v1094, 0.5
        %v1113 = vmul.f32 %v1095, 0.5
        %v1114 = vmul.f32 %v1096, 0.5
        %v1115 = vmul.f32 %v1097, 0.5
        %v1116 = vmul.f32 %v1098, 0.5
        %v1117 = vmul.f32 %v1099, 0.5
        %v1118 = vmul.f32 %v930, %v1100
        %v1119 = vmul.f32 %v932, %v1101
        %v1120 = vmul.f32 %v935, %v1102
        %v1121 = vmul.f32 %v937, %v1103
        %v1122 = vmul.f32 %v940, %v1104
        %v1123 = vmul.f32 %v942, %v1105
        %v1124 = vmul.f32 %v945, %v1106
        %v1125 = vmul.f32 %v947, %v1107
        %v1126 = vmul.f32 %v950, %v1108
        %v1127 = vmul.f32 %v952, %v1109
        %v1128 = vmul.f32 %v955, %v1110
        %v1129 = vmul.f32 %v957, %v1111
        %v1130 = vmul.f32 %v960, %v1112
        %v1131 = vmul.f32 %v962, %v1113
        %v1132 = vmul.f32 %v965, %v1114
        %v1133 = vmul.f32 %v967, %v1115
        %v1134 = vmul.f32 %v970, %v1116
        %v1135 = vmul.f32 %v972, %v1117
        %v1136 = vmul.f32 %v572, %v1118
        %v1137 = vmul.f32 %v574, %v1119
        %v1138 = vmul.f32 %v577, %v1120
        %v1139 = vmul.f32 %v579, %v1121
        %v1140 = vmul.f32 %v582, %v1122
        %v1141 = vmul.f32 %v584, %v1123
        %v1142 = vmul.f32 %v587, %v1124
        %v1143 = vmul.f32 %v589, %v1125
        %v1144 = vmul.f32 %v592, %v1126
        %v1145 = vmul.f32 %v594, %v1127
        %v1146 = vmul.f32 %v597, %v1128
        %v1147 = vmul.f32 %v599, %v1129
        %v1148 = vmul.f32 %v602, %v1130
        %v1149 = vmul.f32 %v604, %v1131
        %v1150 = vmul.f32 %v607, %v1132
        %v1151 = vmul.f32 %v609, %v1133
        %v1152 = vmul.f32 %v844, %v1134
        %v1153 = vmul.f32 %v845, %v1135
        %v1154 = vpack.c.bf16 %v1137, %v1136
        %v1155 = vpack.c.bf16 %v1139, %v1138
        %v1156 = vpack.c.bf16 %v1141, %v1140
        %v1157 = vpack.c.bf16 %v1143, %v1142
        %v1158 = vpack.c.bf16 %v1145, %v1144
        %v1159 = vpack.c.bf16 %v1147, %v1146
        %v1160 = vpack.c.bf16 %v1149, %v1148
        %v1161 = vpack.c.bf16 %v1151, %v1150
        %v1162 = vpack.c.bf16 %v1153, %v1152
        %v1163 = vld [vmem:[%s8] sm:$0xf]
        %v1164 = vld [vmem:[%s8 + $0x4] sm:$0xf]
        %v1165 = vld [vmem:[%s8 + $0x8] sm:$0xf]
        %v1166 = vld [vmem:[%s8 + $0xc] sm:$0xf]
        %v1167 = vld [vmem:[%s9] sm:$0x1]
        %v1169 = vperm.slane %v1167, 0
        %v1175 = vunpack.c.l.b16 %v1163
        %v1176 = vunpack.c.l.b16 %v1164
        %v1177 = vunpack.c.l.b16 %v1165
        %v1178 = vunpack.c.l.b16 %v1166
        %v1179 = vpack.c.b16 %v1176, %v1175
        %v1180 = vpack.c.b16 %v1178, %v1177
        %v1184 = vsel %vm534, %v1154, 0
        %v1187 = vsel %vm534, %v1155, 0
        %v1190 = vsel %vm534, %v1156, 0
        %v1193 = vsel %vm534, %v1157, 0
        %v1196 = vsel %vm534, %v1158, 0
        %v1199 = vsel %vm534, %v1159, 0
        %v1202 = vsel %vm534, %v1160, 0
        %v1205 = vsel %vm534, %v1161, 0
        %v1208 = vsel %vm534, %v1162, 0
        %1210 = vmatpush.bf16.msra.mxu0 0
        %1211 = vmatpush.bf16.msra.mxu0 0
        %1212 = vmatpush.bf16.msra.mxu0 0
        %1213 = vmatpush.bf16.msra.mxu0 0
        %1214 = vmatpush.bf16.msra.mxu0 0
        %1215 = vmatpush.bf16.msra.mxu0 0
        %1216 = vmatpush.bf16.msra.mxu0 %v1180
        %1217 = vmatpush.bf16.msra.mxu0 %v1179
        %1218 = vmatmul.bf16.gmra.mxu0 %v1184
        %v1219 = vpop.f32.mrf.mxu0
        %v1220 = vadd.f32 %v1169, %v1219
        %v1221 = vpop.f32.mrf.mxu0
        %v1222 = vadd.f32 %v1169, %v1221
        %1223 = vmatmul.bf16.gmra.mxu0 %v1187
        %v1224 = vpop.f32.mrf.mxu0
        %v1225 = vadd.f32 %v1169, %v1224
        %v1226 = vpop.f32.mrf.mxu0
        %v1227 = vadd.f32 %v1169, %v1226
        %1228 = vmatmul.bf16.gmra.mxu0 %v1190
        %v1229 = vpop.f32.mrf.mxu0
        %v1230 = vadd.f32 %v1169, %v1229
        %v1231 = vpop.f32.mrf.mxu0
        %v1232 = vadd.f32 %v1169, %v1231
        %1233 = vmatmul.bf16.gmra.mxu0 %v1193
        %v1234 = vpop.f32.mrf.mxu0
        %v1235 = vadd.f32 %v1169, %v1234
        %v1236 = vpop.f32.mrf.mxu0
        %v1237 = vadd.f32 %v1169, %v1236
        %1238 = vmatmul.bf16.gmra.mxu0 %v1196
        %v1239 = vpop.f32.mrf.mxu0
        %v1240 = vadd.f32 %v1169, %v1239
        %v1241 = vpop.f32.mrf.mxu0
        %v1242 = vadd.f32 %v1169, %v1241
        %1243 = vmatmul.bf16.gmra.mxu0 %v1199
        %v1244 = vpop.f32.mrf.mxu0
        %v1245 = vadd.f32 %v1169, %v1244
        %v1246 = vpop.f32.mrf.mxu0
        %v1247 = vadd.f32 %v1169, %v1246
        %1248 = vmatmul.bf16.gmra.mxu0 %v1202
        %v1249 = vpop.f32.mrf.mxu0
        %v1250 = vadd.f32 %v1169, %v1249
        %v1251 = vpop.f32.mrf.mxu0
        %v1252 = vadd.f32 %v1169, %v1251
        %1253 = vmatmul.bf16.gmra.mxu0 %v1205
        %v1254 = vpop.f32.mrf.mxu0
        %v1255 = vadd.f32 %v1169, %v1254
        %v1256 = vpop.f32.mrf.mxu0
        %v1257 = vadd.f32 %v1169, %v1256
        %1258 = vmatmul.bf16.gmra.mxu0 %v1208
        %v1259 = vpop.f32.mrf.mxu0
        %v1260 = vadd.f32 %v1169, %v1259
        %v1261 = vpop.f32.mrf.mxu0
        %v1262 = vadd.f32 %v1169, %v1261
        %1263 = vdwg.mxu0
        %v1264 = vpack.c.bf16 %v1220, %v1220
        %v1265 = vpack.c.bf16 %v1222, %v1222
        %v1266 = vpack.c.bf16 %v1225, %v1225
        %v1267 = vpack.c.bf16 %v1227, %v1227
        %v1268 = vpack.c.bf16 %v1230, %v1230
        %v1269 = vpack.c.bf16 %v1232, %v1232
        %v1270 = vpack.c.bf16 %v1235, %v1235
        %v1271 = vpack.c.bf16 %v1237, %v1237
        %v1272 = vpack.c.bf16 %v1240, %v1240
        %v1273 = vpack.c.bf16 %v1242, %v1242
        %v1274 = vpack.c.bf16 %v1245, %v1245
        %v1275 = vpack.c.bf16 %v1247, %v1247
        %v1276 = vpack.c.bf16 %v1250, %v1250
        %v1277 = vpack.c.bf16 %v1252, %v1252
        %v1278 = vpack.c.bf16 %v1255, %v1255
        %v1279 = vpack.c.bf16 %v1257, %v1257
        %v1280 = vpack.c.bf16 %v1260, %v1260
        %v1281 = vpack.c.bf16 %v1262, %v1262
        %v1282 = vld [vmem:[%s10] sm:$0xf]
        %v1283 = vld [vmem:[%s10 + $0x4] sm:$0xf]
        %v1284 = vld [vmem:[%s10 + $0x8] sm:$0xf]
        %v1285 = vld [vmem:[%s10 + $0xc] sm:$0xf]
        %v1286 = vld [vmem:[%s10 + $0x10] sm:$0xf]
        %v1287 = vld [vmem:[%s10 + $0x14] sm:$0xf]
        %v1288 = vld [vmem:[%s10 + $0x18] sm:$0xf]
        %v1289 = vld [vmem:[%s10 + $0x1c] sm:$0xf]
        %v1290 = vld [vmem:[%s10 + $0x20] sm:$0xf]
        %v1291 = vld [vmem:[%s10 + $0x24] sm:$0xf]
        %v1292 = vld [vmem:[%s10 + $0x28] sm:$0xf]
        %v1293 = vld [vmem:[%s10 + $0x2c] sm:$0xf]
        %v1294 = vld [vmem:[%s10 + $0x30] sm:$0xf]
        %v1295 = vld [vmem:[%s10 + $0x34] sm:$0xf]
        %v1296 = vld [vmem:[%s10 + $0x38] sm:$0xf]
        %v1297 = vld [vmem:[%s10 + $0x3c] sm:$0xf]
        %v1298 = vld [vmem:[%s10 + $0x40] sm:$0xf]
        %v1299 = vld [vmem:[%s10 + $0x44] sm:$0xf]
        %v1300 = vld [vmem:[%s10 + $0x48] sm:$0xf]
        %v1301 = vld [vmem:[%s10 + $0x4c] sm:$0xf]
        %v1302 = vld [vmem:[%s10 + $0x50] sm:$0xf]
        %v1303 = vld [vmem:[%s10 + $0x54] sm:$0xf]
        %v1304 = vld [vmem:[%s10 + $0x58] sm:$0xf]
        %v1305 = vld [vmem:[%s10 + $0x5c] sm:$0xf]
        %v1306 = vld [vmem:[%s10 + $0x60] sm:$0xf]
        %v1307 = vld [vmem:[%s10 + $0x64] sm:$0xf]
        %v1308 = vld [vmem:[%s10 + $0x68] sm:$0xf]
        %v1309 = vld [vmem:[%s10 + $0x6c] sm:$0xf]
        %v1310 = vld [vmem:[%s10 + $0x70] sm:$0xf]
        %v1311 = vld [vmem:[%s10 + $0x74] sm:$0xf]
        %v1312 = vld [vmem:[%s10 + $0x78] sm:$0xf]
        %v1313 = vld [vmem:[%s10 + $0x7c] sm:$0xf]
        %v1314 = vld [vmem:[%s10 + $0x80] sm:$0xf]
        %v1315 = vld [vmem:[%s10 + $0x84] sm:$0xf]
        %v1316 = vld [vmem:[%s10 + $0x88] sm:$0xf]
        %v1317 = vld [vmem:[%s10 + $0x8c] sm:$0xf]
        %v1318 = vld [vmem:[%s11] sm:$0x1]
        %v1337 = vunpack.c.l.b16 %v1264
        %v1338 = vunpack.c.l.b16 %v1265
        %v1339 = vunpack.c.l.b16 %v1266
        %v1340 = vunpack.c.l.b16 %v1267
        %v1341 = vunpack.c.l.b16 %v1268
        %v1342 = vunpack.c.l.b16 %v1269
        %v1343 = vunpack.c.l.b16 %v1270
        %v1344 = vunpack.c.l.b16 %v1271
        %v1345 = vunpack.c.l.b16 %v1272
        %v1346 = vunpack.c.l.b16 %v1273
        %v1347 = vunpack.c.l.b16 %v1274
        %v1348 = vunpack.c.l.b16 %v1275
        %v1349 = vunpack.c.l.b16 %v1276
        %v1350 = vunpack.c.l.b16 %v1277
        %v1351 = vunpack.c.l.b16 %v1278
        %v1352 = vunpack.c.l.b16 %v1279
        %v1353 = vunpack.c.l.b16 %v1280
        %v1354 = vunpack.c.l.b16 %v1281
        %v1355 = vpack.c.b16 %v1338, %v1337
        %v1356 = vpack.c.b16 %v1340, %v1339
        %v1357 = vpack.c.b16 %v1342, %v1341
        %v1358 = vpack.c.b16 %v1344, %v1343
        %v1359 = vpack.c.b16 %v1346, %v1345
        %v1360 = vpack.c.b16 %v1348, %v1347
        %v1361 = vpack.c.b16 %v1350, %v1349
        %v1362 = vpack.c.b16 %v1352, %v1351
        %v1363 = vpack.c.b16 %v1354, %v1353
        %v1365 = vshrl.u32 0, 16
        %v1367 = vrot.slane %v1365, 7
        %v1368 = vshll.u32 0, 16
        %v1370 = vor.u32 %v1367, %v1368
        %v1372 = vshrl.u32 %v1355, 16
        %v1374 = vrot.slane %v1372, 7
        %v1375 = vshll.u32 %v1355, 16
        %v1377 = vor.u32 %v1374, %v1375
        %v1379 = vshrl.u32 %v1356, 16
        %v1381 = vrot.slane %v1379, 7
        %v1382 = vshll.u32 %v1356, 16
        %v1384 = vor.u32 %v1381, %v1382
        %v1386 = vshrl.u32 %v1357, 16
        %v1388 = vrot.slane %v1386, 7
        %v1389 = vshll.u32 %v1357, 16
        %v1391 = vor.u32 %v1388, %v1389
        %v1393 = vshrl.u32 %v1358, 16
        %v1395 = vrot.slane %v1393, 7
        %v1396 = vshll.u32 %v1358, 16
        %v1398 = vor.u32 %v1395, %v1396
        %v1400 = vshrl.u32 %v1359, 16
        %v1402 = vrot.slane %v1400, 7
        %v1403 = vshll.u32 %v1359, 16
        %v1405 = vor.u32 %v1402, %v1403
        %v1407 = vshrl.u32 %v1360, 16
        %v1409 = vrot.slane %v1407, 7
        %v1410 = vshll.u32 %v1360, 16
        %v1412 = vor.u32 %v1409, %v1410
        %v1414 = vshrl.u32 %v1361, 16
        %v1416 = vrot.slane %v1414, 7
        %v1417 = vshll.u32 %v1361, 16
        %v1419 = vor.u32 %v1416, %v1417
        %v1421 = vshrl.u32 %v1362, 16
        %v1423 = vrot.slane %v1421, 7
        %v1424 = vshll.u32 %v1362, 16
        %v1426 = vor.u32 %v1423, %v1424
        %v1428 = vshrl.u32 %v1363, 16
        %v1430 = vrot.slane %v1428, 7
        %v1431 = vshll.u32 %v1363, 16
        %v1433 = vor.u32 %v1430, %v1431
        %vm1454 = vcmask 1040384
        %vm1455 = vsmask.f32 256
        %vm1456 = vmand %vm1454, %vm1455
        %v1457 = vsel %vm1456, 0, %v1370
        %v1458 = vsel %vm1456, 0, %v1377
        %v1459 = vsel %vm1456, 0, %v1384
        %v1460 = vsel %vm1456, 0, %v1391
        %v1461 = vsel %vm1456, 0, %v1398
        %v1462 = vsel %vm1456, 0, %v1405
        %v1463 = vsel %vm1456, 0, %v1412
        %v1464 = vsel %vm1456, 0, %v1419
        %v1465 = vsel %vm1456, 0, %v1426
        %v1466 = vsel %vm1456, 0, %v1433
        %v1467 = vsel %vm1456, %v1367, 0
        %v1468 = vsel %vm1456, %v1374, 0
        %v1469 = vsel %vm1456, %v1381, 0
        %v1470 = vsel %vm1456, %v1388, 0
        %v1471 = vsel %vm1456, %v1395, 0
        %v1472 = vsel %vm1456, %v1402, 0
        %v1473 = vsel %vm1456, %v1409, 0
        %v1474 = vsel %vm1456, %v1416, 0
        %v1475 = vsel %vm1456, %v1423, 0
        %v1476 = vsel %vm1456, %v1430, 0
        %vm1477 = vsmask.f32 7424
        %v1479 = vshrl.u32 %v1457, 16
        %v1481 = vshll.u32 %v1457, 16
        %v1483 = vrot.slane %v1481, 1
        %v1484 = vor.u32 %v1479, %v1483
        %v1486 = vshll.u32 %v1467, 16
        %v1488 = vrot.slane %v1486, 1
        %v1489 = vsel %vm1477, %v1484, %v1488
        %v1491 = vshrl.u32 %v1458, 16
        %v1493 = vshll.u32 %v1458, 16
        %v1495 = vrot.slane %v1493, 1
        %v1496 = vor.u32 %v1491, %v1495
        %v1498 = vshll.u32 %v1468, 16
        %v1500 = vrot.slane %v1498, 1
        %v1501 = vsel %vm1477, %v1496, %v1500
        %v1503 = vshrl.u32 %v1459, 16
        %v1505 = vshll.u32 %v1459, 16
        %v1507 = vrot.slane %v1505, 1
        %v1508 = vor.u32 %v1503, %v1507
        %v1510 = vshll.u32 %v1469, 16
        %v1512 = vrot.slane %v1510, 1
        %v1513 = vsel %vm1477, %v1508, %v1512
        %v1515 = vshrl.u32 %v1460, 16
        %v1517 = vshll.u32 %v1460, 16
        %v1519 = vrot.slane %v1517, 1
        %v1520 = vor.u32 %v1515, %v1519
        %v1522 = vshll.u32 %v1470, 16
        %v1524 = vrot.slane %v1522, 1
        %v1525 = vsel %vm1477, %v1520, %v1524
        %v1527 = vshrl.u32 %v1461, 16
        %v1529 = vshll.u32 %v1461, 16
        %v1531 = vrot.slane %v1529, 1
        %v1532 = vor.u32 %v1527, %v1531
        %v1534 = vshll.u32 %v1471, 16
        %v1536 = vrot.slane %v1534, 1
        %v1537 = vsel %vm1477, %v1532, %v1536
        %v1539 = vshrl.u32 %v1462, 16
        %v1541 = vshll.u32 %v1462, 16
        %v1543 = vrot.slane %v1541, 1
        %v1544 = vor.u32 %v1539, %v1543
        %v1546 = vshll.u32 %v1472, 16
        %v1548 = vrot.slane %v1546, 1
        %v1549 = vsel %vm1477, %v1544, %v1548
        %v1551 = vshrl.u32 %v1463, 16
        %v1553 = vshll.u32 %v1463, 16
        %v1555 = vrot.slane %v1553, 1
        %v1556 = vor.u32 %v1551, %v1555
        %v1558 = vshll.u32 %v1473, 16
        %v1560 = vrot.slane %v1558, 1
        %v1561 = vsel %vm1477, %v1556, %v1560
        %v1563 = vshrl.u32 %v1464, 16
        %v1565 = vshll.u32 %v1464, 16
        %v1567 = vrot.slane %v1565, 1
        %v1568 = vor.u32 %v1563, %v1567
        %v1570 = vshll.u32 %v1474, 16
        %v1572 = vrot.slane %v1570, 1
        %v1573 = vsel %vm1477, %v1568, %v1572
        %v1575 = vshrl.u32 %v1465, 16
        %v1577 = vshll.u32 %v1465, 16
        %v1579 = vrot.slane %v1577, 1
        %v1580 = vor.u32 %v1575, %v1579
        %v1582 = vshll.u32 %v1475, 16
        %v1584 = vrot.slane %v1582, 1
        %v1585 = vsel %vm1477, %v1580, %v1584
        %vm1604 = vcmask 1046528
        %v1605 = vrot.slane %v1457, 1
        %v1606 = vrot.slane %v1467, 1
        %v1607 = vsel %vm1604, %v1605, %v1606
        %v1608 = vrot.slane %v1458, 1
        %v1609 = vrot.slane %v1468, 1
        %v1610 = vsel %vm1604, %v1608, %v1609
        %v1611 = vrot.slane %v1459, 1
        %v1612 = vrot.slane %v1469, 1
        %v1613 = vsel %vm1604, %v1611, %v1612
        %v1614 = vrot.slane %v1460, 1
        %v1615 = vrot.slane %v1470, 1
        %v1616 = vsel %vm1604, %v1614, %v1615
        %v1617 = vrot.slane %v1461, 1
        %v1618 = vrot.slane %v1471, 1
        %v1619 = vsel %vm1604, %v1617, %v1618
        %v1620 = vrot.slane %v1462, 1
        %v1621 = vrot.slane %v1472, 1
        %v1622 = vsel %vm1604, %v1620, %v1621
        %v1623 = vrot.slane %v1463, 1
        %v1624 = vrot.slane %v1473, 1
        %v1625 = vsel %vm1604, %v1623, %v1624
        %v1626 = vrot.slane %v1464, 1
        %v1627 = vrot.slane %v1474, 1
        %v1628 = vsel %vm1604, %v1626, %v1627
        %v1629 = vrot.slane %v1465, 1
        %v1630 = vrot.slane %v1475, 1
        %v1631 = vsel %vm1604, %v1629, %v1630
        %v1633 = vshrl.u32 %v1466, 16
        %v1635 = vshll.u32 %v1466, 16
        %v1637 = vrot.slane %v1635, 1
        %v1638 = vor.u32 %v1633, %v1637
        %v1640 = vshll.u32 %v1476, 16
        %v1642 = vrot.slane %v1640, 1
        %v1643 = vsel %vm1477, %v1638, %v1642
        %v1646 = vrot.slane %v1466, 1
        %v1647 = vrot.slane %v1476, 1
        %v1648 = vsel %vm1604, %v1646, %v1647
        %1649 = vrot.lane.b32.xlu0 %v1489, 32
        %v1650 = vpop.permute.xlu0 %1649
        %1651 = vrot.lane.b32.xlu0 %v1501, 32
        %v1652 = vpop.permute.xlu0 %1651
        %1653 = vrot.lane.b32.xlu0 %v1513, 32
        %v1654 = vpop.permute.xlu0 %1653
        %1655 = vrot.lane.b32.xlu0 %v1525, 32
        %v1656 = vpop.permute.xlu0 %1655
        %1657 = vrot.lane.b32.xlu0 %v1537, 32
        %v1658 = vpop.permute.xlu0 %1657
        %1659 = vrot.lane.b32.xlu0 %v1549, 32
        %v1660 = vpop.permute.xlu0 %1659
        %1661 = vrot.lane.b32.xlu0 %v1561, 32
        %v1662 = vpop.permute.xlu0 %1661
        %1663 = vrot.lane.b32.xlu0 %v1573, 32
        %v1664 = vpop.permute.xlu0 %1663
        %1665 = vrot.lane.b32.xlu0 %v1585, 32
        %v1666 = vpop.permute.xlu0 %1665
        %1667 = vrot.lane.b32.xlu0 %v1607, 64
        %v1668 = vpop.permute.xlu0 %1667
        %1669 = vrot.lane.b32.xlu0 %v1610, 64
        %v1670 = vpop.permute.xlu0 %1669
        %1671 = vrot.lane.b32.xlu0 %v1613, 64
        %v1672 = vpop.permute.xlu0 %1671
        %1673 = vrot.lane.b32.xlu0 %v1616, 64
        %v1674 = vpop.permute.xlu0 %1673
        %1675 = vrot.lane.b32.xlu0 %v1619, 64
        %v1676 = vpop.permute.xlu0 %1675
        %1677 = vrot.lane.b32.xlu0 %v1622, 64
        %v1678 = vpop.permute.xlu0 %1677
        %1679 = vrot.lane.b32.xlu0 %v1625, 64
        %v1680 = vpop.permute.xlu0 %1679
        %1681 = vrot.lane.b32.xlu0 %v1628, 64
        %v1682 = vpop.permute.xlu0 %1681
        %1683 = vrot.lane.b32.xlu0 %v1631, 64
        %v1684 = vpop.permute.xlu0 %1683
        %1685 = vrot.lane.b32.xlu0 %v1458, 96
        %v1686 = vpop.permute.xlu0 %1685
        %1687 = vrot.lane.b32.xlu0 %v1459, 96
        %v1688 = vpop.permute.xlu0 %1687
        %1689 = vrot.lane.b32.xlu0 %v1460, 96
        %v1690 = vpop.permute.xlu0 %1689
        %1691 = vrot.lane.b32.xlu0 %v1461, 96
        %v1692 = vpop.permute.xlu0 %1691
        %1693 = vrot.lane.b32.xlu0 %v1462, 96
        %v1694 = vpop.permute.xlu0 %1693
        %1695 = vrot.lane.b32.xlu0 %v1463, 96
        %v1696 = vpop.permute.xlu0 %1695
        %1697 = vrot.lane.b32.xlu0 %v1464, 96
        %v1698 = vpop.permute.xlu0 %1697
        %1699 = vrot.lane.b32.xlu0 %v1465, 96
        %v1700 = vpop.permute.xlu0 %1699
        %1701 = vrot.lane.b32.xlu0 %v1466, 96
        %v1702 = vpop.permute.xlu0 %1701
        %1703 = vrot.lane.b32.xlu0 %v1610, 32
        %v1704 = vpop.permute.xlu0 %1703
        %1705 = vrot.lane.b32.xlu0 %v1613, 32
        %v1706 = vpop.permute.xlu0 %1705
        %1707 = vrot.lane.b32.xlu0 %v1616, 32
        %v1708 = vpop.permute.xlu0 %1707
        %1709 = vrot.lane.b32.xlu0 %v1619, 32
        %v1710 = vpop.permute.xlu0 %1709
        %1711 = vrot.lane.b32.xlu0 %v1622, 32
        %v1712 = vpop.permute.xlu0 %1711
        %1713 = vrot.lane.b32.xlu0 %v1625, 32
        %v1714 = vpop.permute.xlu0 %1713
        %1715 = vrot.lane.b32.xlu0 %v1628, 32
        %v1716 = vpop.permute.xlu0 %1715
        %1717 = vrot.lane.b32.xlu0 %v1631, 32
        %v1718 = vpop.permute.xlu0 %1717
        %1719 = vrot.lane.b32.xlu0 %v1648, 32
        %v1720 = vpop.permute.xlu0 %1719
        %1721 = vrot.lane.b32.xlu0 %v1459, 64
        %v1722 = vpop.permute.xlu0 %1721
        %1723 = vrot.lane.b32.xlu0 %v1460, 64
        %v1724 = vpop.permute.xlu0 %1723
        %1725 = vrot.lane.b32.xlu0 %v1461, 64
        %v1726 = vpop.permute.xlu0 %1725
        %1727 = vrot.lane.b32.xlu0 %v1462, 64
        %v1728 = vpop.permute.xlu0 %1727
        %1729 = vrot.lane.b32.xlu0 %v1463, 64
        %v1730 = vpop.permute.xlu0 %1729
        %1731 = vrot.lane.b32.xlu0 %v1464, 64
        %v1732 = vpop.permute.xlu0 %1731
        %1733 = vrot.lane.b32.xlu0 %v1465, 64
        %v1734 = vpop.permute.xlu0 %1733
        %1735 = vrot.lane.b32.xlu0 %v1466, 64
        %v1736 = vpop.permute.xlu0 %1735
        %1737 = vrot.lane.b32.xlu0 %v1457, 64
        %v1738 = vpop.permute.xlu0 %1737
        %1739 = vrot.lane.b32.xlu0 %v1513, 96
        %v1740 = vpop.permute.xlu0 %1739
        %1741 = vrot.lane.b32.xlu0 %v1525, 96
        %v1742 = vpop.permute.xlu0 %1741
        %1743 = vrot.lane.b32.xlu0 %v1537, 96
        %v1744 = vpop.permute.xlu0 %1743
        %1745 = vrot.lane.b32.xlu0 %v1549, 96
        %v1746 = vpop.permute.xlu0 %1745
        %1747 = vrot.lane.b32.xlu0 %v1561, 96
        %v1748 = vpop.permute.xlu0 %1747
        %1749 = vrot.lane.b32.xlu0 %v1573, 96
        %v1750 = vpop.permute.xlu0 %1749
        %1751 = vrot.lane.b32.xlu0 %v1585, 96
        %v1752 = vpop.permute.xlu0 %1751
        %1753 = vrot.lane.b32.xlu0 %v1643, 96
        %v1754 = vpop.permute.xlu0 %1753
        %1755 = vrot.lane.b32.xlu0 %v1489, 96
        %v1756 = vpop.permute.xlu0 %1755
        %v1758 = vsel %vm534, %v1457, %v1650
        %v1760 = vsel %vm534, %v1458, %v1652
        %v1762 = vsel %vm534, %v1459, %v1654
        %v1764 = vsel %vm534, %v1460, %v1656
        %v1766 = vsel %vm534, %v1461, %v1658
        %v1768 = vsel %vm534, %v1462, %v1660
        %v1770 = vsel %vm534, %v1463, %v1662
        %v1772 = vsel %vm534, %v1464, %v1664
        %v1774 = vsel %vm534, %v1465, %v1666
        %v1776 = vsel %vm666, %v1758, %v1668
        %v1778 = vsel %vm666, %v1760, %v1670
        %v1780 = vsel %vm666, %v1762, %v1672
        %v1782 = vsel %vm666, %v1764, %v1674
        %v1784 = vsel %vm666, %v1766, %v1676
        %v1786 = vsel %vm666, %v1768, %v1678
        %v1788 = vsel %vm666, %v1770, %v1680
        %v1790 = vsel %vm666, %v1772, %v1682
        %v1792 = vsel %vm666, %v1774, %v1684
        %v1794 = vsel %vm669, %v1776, %v1686
        %v1797 = vsel %vm669, %v1778, %v1688
        %v1800 = vsel %vm669, %v1780, %v1690
        %v1803 = vsel %vm669, %v1782, %v1692
        %v1806 = vsel %vm669, %v1784, %v1694
        %v1809 = vsel %vm669, %v1786, %v1696
        %v1812 = vsel %vm669, %v1788, %v1698
        %v1815 = vsel %vm669, %v1790, %v1700
        %v1818 = vsel %vm669, %v1792, %v1702
        %v1822 = vsel %vm534, %v1501, %v1704
        %v1825 = vsel %vm534, %v1513, %v1706
        %v1828 = vsel %vm534, %v1525, %v1708
        %v1831 = vsel %vm534, %v1537, %v1710
        %v1834 = vsel %vm534, %v1549, %v1712
        %v1837 = vsel %vm534, %v1561, %v1714
        %v1840 = vsel %vm534, %v1573, %v1716
        %v1843 = vsel %vm534, %v1585, %v1718
        %v1846 = vsel %vm534, %v1643, %v1720
        %v1848 = vsel %vm666, %v1822, %v1722
        %v1850 = vsel %vm666, %v1825, %v1724
        %v1852 = vsel %vm666, %v1828, %v1726
        %v1854 = vsel %vm666, %v1831, %v1728
        %v1856 = vsel %vm666, %v1834, %v1730
        %v1858 = vsel %vm666, %v1837, %v1732
        %v1860 = vsel %vm666, %v1840, %v1734
        %v1862 = vsel %vm666, %v1843, %v1736
        %v1864 = vsel %vm666, %v1846, %v1738
        %v1866 = vsel %vm669, %v1848, %v1740
        %v1869 = vsel %vm669, %v1850, %v1742
        %v1872 = vsel %vm669, %v1852, %v1744
        %v1875 = vsel %vm669, %v1854, %v1746
        %v1878 = vsel %vm669, %v1856, %v1748
        %v1881 = vsel %vm669, %v1858, %v1750
        %v1884 = vsel %vm669, %v1860, %v1752
        %v1887 = vsel %vm669, %v1862, %v1754
        %v1890 = vsel %vm669, %v1864, %v1756
        %v1893 = vperm.slane %v1318, 0
        %v1931 = vunpack.c.l.b16 %v1282
        %v1932 = vunpack.c.l.b16 %v1283
        %v1933 = vunpack.c.l.b16 %v1284
        %v1934 = vunpack.c.l.b16 %v1285
        %v1935 = vunpack.c.l.b16 %v1286
        %v1936 = vunpack.c.l.b16 %v1287
        %v1937 = vunpack.c.l.b16 %v1288
        %v1938 = vunpack.c.l.b16 %v1289
        %v1939 = vunpack.c.l.b16 %v1290
        %v1940 = vunpack.c.l.b16 %v1291
        %v1941 = vunpack.c.l.b16 %v1292
        %v1942 = vunpack.c.l.b16 %v1293
        %v1943 = vunpack.c.l.b16 %v1294
        %v1944 = vunpack.c.l.b16 %v1295
        %v1945 = vunpack.c.l.b16 %v1296
        %v1946 = vunpack.c.l.b16 %v1297
        %v1947 = vunpack.c.l.b16 %v1298
        %v1948 = vunpack.c.l.b16 %v1299
        %v1949 = vunpack.c.l.b16 %v1300
        %v1950 = vunpack.c.l.b16 %v1301
        %v1951 = vunpack.c.l.b16 %v1302
        %v1952 = vunpack.c.l.b16 %v1303
        %v1953 = vunpack.c.l.b16 %v1304
        %v1954 = vunpack.c.l.b16 %v1305
        %v1955 = vunpack.c.l.b16 %v1306
        %v1956 = vunpack.c.l.b16 %v1307
        %v1957 = vunpack.c.l.b16 %v1308
        %v1958 = vunpack.c.l.b16 %v1309
        %v1959 = vunpack.c.l.b16 %v1310
        %v1960 = vunpack.c.l.b16 %v1311
        %v1961 = vunpack.c.l.b16 %v1312
        %v1962 = vunpack.c.l.b16 %v1313
        %v1963 = vunpack.c.l.b16 %v1314
        %v1964 = vunpack.c.l.b16 %v1315
        %v1965 = vunpack.c.l.b16 %v1316
        %v1966 = vunpack.c.l.b16 %v1317
        %v1967 = vpack.c.b16 %v1932, %v1931
        %v1968 = vpack.c.b16 %v1934, %v1933
        %v1969 = vpack.c.b16 %v1936, %v1935
        %v1970 = vpack.c.b16 %v1938, %v1937
        %v1971 = vpack.c.b16 %v1940, %v1939
        %v1972 = vpack.c.b16 %v1942, %v1941
        %v1973 = vpack.c.b16 %v1944, %v1943
        %v1974 = vpack.c.b16 %v1946, %v1945
        %v1975 = vpack.c.b16 %v1948, %v1947
        %v1976 = vpack.c.b16 %v1950, %v1949
        %v1977 = vpack.c.b16 %v1952, %v1951
        %v1978 = vpack.c.b16 %v1954, %v1953
        %v1979 = vpack.c.b16 %v1956, %v1955
        %v1980 = vpack.c.b16 %v1958, %v1957
        %v1981 = vpack.c.b16 %v1960, %v1959
        %v1982 = vpack.c.b16 %v1962, %v1961
        %v1983 = vpack.c.b16 %v1964, %v1963
        %v1984 = vpack.c.b16 %v1966, %v1965
        %v2004 = vsel %vm534, %v1613, 0
        %v2007 = vsel %vm534, %v1616, 0
        %v2010 = vsel %vm534, %v1619, 0
        %v2013 = vsel %vm534, %v1622, 0
        %v2016 = vsel %vm534, %v1625, 0
        %v2019 = vsel %vm534, %v1628, 0
        %v2022 = vsel %vm534, %v1631, 0
        %v2025 = vsel %vm534, %v1648, 0
        %v2028 = vsel %vm534, %v1607, 0
        %2030 = vmatpush.bf16.msra.mxu0 %v1974
        %2031 = vmatpush.bf16.msra.mxu0 %v1973
        %2032 = vmatpush.bf16.msra.mxu0 %v1972
        %2033 = vmatpush.bf16.msra.mxu0 %v1971
        %2034 = vmatpush.bf16.msra.mxu0 %v1970
        %2035 = vmatpush.bf16.msra.mxu0 %v1969
        %2036 = vmatpush.bf16.msra.mxu0 %v1968
        %2037 = vmatpush.bf16.msra.mxu0 %v1967
        %2038 = vmatmul.bf16.gmra.mxu0 %v1794
        %v2039 = vpop.f32.mrf.mxu0
        %v2040 = vadd.f32 %v1893, %v2039
        %v2041 = vpop.f32.mrf.mxu0
        %v2042 = vadd.f32 %v1893, %v2041
        %2043 = vmatmul.bf16.gmra.mxu0 %v1797
        %v2044 = vpop.f32.mrf.mxu0
        %v2045 = vadd.f32 %v1893, %v2044
        %v2046 = vpop.f32.mrf.mxu0
        %v2047 = vadd.f32 %v1893, %v2046
        %2048 = vmatmul.bf16.gmra.mxu0 %v1800
        %v2049 = vpop.f32.mrf.mxu0
        %v2050 = vadd.f32 %v1893, %v2049
        %v2051 = vpop.f32.mrf.mxu0
        %v2052 = vadd.f32 %v1893, %v2051
        %2053 = vmatmul.bf16.gmra.mxu0 %v1803
        %v2054 = vpop.f32.mrf.mxu0
        %v2055 = vadd.f32 %v1893, %v2054
        %v2056 = vpop.f32.mrf.mxu0
        %v2057 = vadd.f32 %v1893, %v2056
        %2058 = vmatmul.bf16.gmra.mxu0 %v1806
        %v2059 = vpop.f32.mrf.mxu0
        %v2060 = vadd.f32 %v1893, %v2059
        %v2061 = vpop.f32.mrf.mxu0
        %v2062 = vadd.f32 %v1893, %v2061
        %2063 = vmatmul.bf16.gmra.mxu0 %v1809
        %v2064 = vpop.f32.mrf.mxu0
        %v2065 = vadd.f32 %v1893, %v2064
        %v2066 = vpop.f32.mrf.mxu0
        %v2067 = vadd.f32 %v1893, %v2066
        %2068 = vmatmul.bf16.gmra.mxu0 %v1812
        %v2069 = vpop.f32.mrf.mxu0
        %v2070 = vadd.f32 %v1893, %v2069
        %v2071 = vpop.f32.mrf.mxu0
        %v2072 = vadd.f32 %v1893, %v2071
        %2073 = vmatmul.bf16.gmra.mxu0 %v1815
        %v2074 = vpop.f32.mrf.mxu0
        %v2075 = vadd.f32 %v1893, %v2074
        %v2076 = vpop.f32.mrf.mxu0
        %v2077 = vadd.f32 %v1893, %v2076
        %2078 = vmatmul.bf16.gmra.mxu0 %v1818
        %v2079 = vpop.f32.mrf.mxu0
        %v2080 = vadd.f32 %v1893, %v2079
        %v2081 = vpop.f32.mrf.mxu0
        %v2082 = vadd.f32 %v1893, %v2081
        %2083 = vdwg.mxu0
        %2084 = vmatpush.bf16.msra.mxu0 %v1982
        %2085 = vmatpush.bf16.msra.mxu0 %v1981
        %2086 = vmatpush.bf16.msra.mxu0 %v1980
        %2087 = vmatpush.bf16.msra.mxu0 %v1979
        %2088 = vmatpush.bf16.msra.mxu0 %v1978
        %2089 = vmatpush.bf16.msra.mxu0 %v1977
        %2090 = vmatpush.bf16.msra.mxu0 %v1976
        %2091 = vmatpush.bf16.msra.mxu0 %v1975
        %2092 = vmatmul.bf16.gmra.mxu0 %v1866
        %v2093 = vpop.f32.mrf.mxu0
        %v2094 = vadd.f32 %v2040, %v2093
        %v2095 = vpop.f32.mrf.mxu0
        %v2096 = vadd.f32 %v2042, %v2095
        %2097 = vmatmul.bf16.gmra.mxu0 %v1869
        %v2098 = vpop.f32.mrf.mxu0
        %v2099 = vadd.f32 %v2045, %v2098
        %v2100 = vpop.f32.mrf.mxu0
        %v2101 = vadd.f32 %v2047, %v2100
        %2102 = vmatmul.bf16.gmra.mxu0 %v1872
        %v2103 = vpop.f32.mrf.mxu0
        %v2104 = vadd.f32 %v2050, %v2103
        %v2105 = vpop.f32.mrf.mxu0
        %v2106 = vadd.f32 %v2052, %v2105
        %2107 = vmatmul.bf16.gmra.mxu0 %v1875
        %v2108 = vpop.f32.mrf.mxu0
        %v2109 = vadd.f32 %v2055, %v2108
        %v2110 = vpop.f32.mrf.mxu0
        %v2111 = vadd.f32 %v2057, %v2110
        %2112 = vmatmul.bf16.gmra.mxu0 %v1878
        %v2113 = vpop.f32.mrf.mxu0
        %v2114 = vadd.f32 %v2060, %v2113
        %v2115 = vpop.f32.mrf.mxu0
        %v2116 = vadd.f32 %v2062, %v2115
        %2117 = vmatmul.bf16.gmra.mxu0 %v1881
        %v2118 = vpop.f32.mrf.mxu0
        %v2119 = vadd.f32 %v2065, %v2118
        %v2120 = vpop.f32.mrf.mxu0
        %v2121 = vadd.f32 %v2067, %v2120
        %2122 = vmatmul.bf16.gmra.mxu0 %v1884
        %v2123 = vpop.f32.mrf.mxu0
        %v2124 = vadd.f32 %v2070, %v2123
        %v2125 = vpop.f32.mrf.mxu0
        %v2126 = vadd.f32 %v2072, %v2125
        %2127 = vmatmul.bf16.gmra.mxu0 %v1887
        %v2128 = vpop.f32.mrf.mxu0
        %v2129 = vadd.f32 %v2075, %v2128
        %v2130 = vpop.f32.mrf.mxu0
        %v2131 = vadd.f32 %v2077, %v2130
        %2132 = vmatmul.bf16.gmra.mxu0 %v1890
        %v2133 = vpop.f32.mrf.mxu0
        %v2134 = vadd.f32 %v2080, %v2133
        %v2135 = vpop.f32.mrf.mxu0
        %v2136 = vadd.f32 %v2082, %v2135
        %2137 = vdwg.mxu0
        %2138 = vmatpush.bf16.msra.mxu0 0
        %2139 = vmatpush.bf16.msra.mxu0 0
        %2140 = vmatpush.bf16.msra.mxu0 0
        %2141 = vmatpush.bf16.msra.mxu0 0
        %2142 = vmatpush.bf16.msra.mxu0 0
        %2143 = vmatpush.bf16.msra.mxu0 0
        %2144 = vmatpush.bf16.msra.mxu0 %v1984
        %2145 = vmatpush.bf16.msra.mxu0 %v1983
        %2146 = vmatmul.bf16.gmra.mxu0 %v2004
        %v2147 = vpop.f32.mrf.mxu0
        %v2148 = vadd.f32 %v2094, %v2147
        %v2149 = vpop.f32.mrf.mxu0
        %v2150 = vadd.f32 %v2096, %v2149
        %2151 = vmatmul.bf16.gmra.mxu0 %v2007
        %v2152 = vpop.f32.mrf.mxu0
        %v2153 = vadd.f32 %v2099, %v2152
        %v2154 = vpop.f32.mrf.mxu0
        %v2155 = vadd.f32 %v2101, %v2154
        %2156 = vmatmul.bf16.gmra.mxu0 %v2010
        %v2157 = vpop.f32.mrf.mxu0
        %v2158 = vadd.f32 %v2104, %v2157
        %v2159 = vpop.f32.mrf.mxu0
        %v2160 = vadd.f32 %v2106, %v2159
        %2161 = vmatmul.bf16.gmra.mxu0 %v2013
        %v2162 = vpop.f32.mrf.mxu0
        %v2163 = vadd.f32 %v2109, %v2162
        %v2164 = vpop.f32.mrf.mxu0
        %v2165 = vadd.f32 %v2111, %v2164
        %2166 = vmatmul.bf16.gmra.mxu0 %v2016
        %v2167 = vpop.f32.mrf.mxu0
        %v2168 = vadd.f32 %v2114, %v2167
        %v2169 = vpop.f32.mrf.mxu0
        %v2170 = vadd.f32 %v2116, %v2169
        %2171 = vmatmul.bf16.gmra.mxu0 %v2019
        %v2172 = vpop.f32.mrf.mxu0
        %v2173 = vadd.f32 %v2119, %v2172
        %v2174 = vpop.f32.mrf.mxu0
        %v2175 = vadd.f32 %v2121, %v2174
        %2176 = vmatmul.bf16.gmra.mxu0 %v2022
        %v2177 = vpop.f32.mrf.mxu0
        %v2178 = vadd.f32 %v2124, %v2177
        %v2179 = vpop.f32.mrf.mxu0
        %v2180 = vadd.f32 %v2126, %v2179
        %2181 = vmatmul.bf16.gmra.mxu0 %v2025
        %v2182 = vpop.f32.mrf.mxu0
        %v2183 = vadd.f32 %v2129, %v2182
        %v2184 = vpop.f32.mrf.mxu0
        %v2185 = vadd.f32 %v2131, %v2184
        %2186 = vmatmul.bf16.gmra.mxu0 %v2028
        %v2187 = vpop.f32.mrf.mxu0
        %v2188 = vadd.f32 %v2134, %v2187
        %v2189 = vpop.f32.mrf.mxu0
        %v2190 = vadd.f32 %v2136, %v2189
        %2191 = vdwg.mxu0
        %v2192 = vmax.f32 %v2148, 0.0
        %v2193 = vmax.f32 %v2150, 0.0
        %v2194 = vmax.f32 %v2153, 0.0
        %v2195 = vmax.f32 %v2155, 0.0
        %v2196 = vmax.f32 %v2158, 0.0
        %v2197 = vmax.f32 %v2160, 0.0
        %v2198 = vmax.f32 %v2163, 0.0
        %v2199 = vmax.f32 %v2165, 0.0
        %v2200 = vmax.f32 %v2168, 0.0
        %v2201 = vmax.f32 %v2170, 0.0
        %v2202 = vmax.f32 %v2173, 0.0
        %v2203 = vmax.f32 %v2175, 0.0
        %v2204 = vmax.f32 %v2178, 0.0
        %v2205 = vmax.f32 %v2180, 0.0
        %v2206 = vmax.f32 %v2183, 0.0
        %v2207 = vmax.f32 %v2185, 0.0
        %v2208 = vmax.f32 %v2188, 0.0
        %v2209 = vmax.f32 %v2190, 0.0
        %v2210 = vpack.c.bf16 %v2192, %v2192
        %v2211 = vpack.c.bf16 %v2193, %v2193
        %v2212 = vpack.c.bf16 %v2194, %v2194
        %v2213 = vpack.c.bf16 %v2195, %v2195
        %v2214 = vpack.c.bf16 %v2196, %v2196
        %v2215 = vpack.c.bf16 %v2197, %v2197
        %v2216 = vpack.c.bf16 %v2198, %v2198
        %v2217 = vpack.c.bf16 %v2199, %v2199
        %v2218 = vpack.c.bf16 %v2200, %v2200
        %v2219 = vpack.c.bf16 %v2201, %v2201
        %v2220 = vpack.c.bf16 %v2202, %v2202
        %v2221 = vpack.c.bf16 %v2203, %v2203
        %v2222 = vpack.c.bf16 %v2204, %v2204
        %v2223 = vpack.c.bf16 %v2205, %v2205
        %v2224 = vpack.c.bf16 %v2206, %v2206
        %v2225 = vpack.c.bf16 %v2207, %v2207
        %v2226 = vpack.c.bf16 %v2208, %v2208
        %v2227 = vpack.c.bf16 %v2209, %v2209
        %v2228 = vld [vmem:[%s12] sm:$0xf]
        %v2229 = vld [vmem:[%s12 + $0x4] sm:$0xf]
        %v2230 = vld [vmem:[%s12 + $0x8] sm:$0xf]
        %v2231 = vld [vmem:[%s12 + $0xc] sm:$0xf]
        %v2232 = vld [vmem:[%s12 + $0x10] sm:$0xf]
        %v2233 = vld [vmem:[%s12 + $0x14] sm:$0xf]
        %v2234 = vld [vmem:[%s12 + $0x18] sm:$0xf]
        %v2235 = vld [vmem:[%s12 + $0x1c] sm:$0xf]
        %v2236 = vld [vmem:[%s12 + $0x20] sm:$0xf]
        %v2237 = vld [vmem:[%s12 + $0x24] sm:$0xf]
        %v2238 = vld [vmem:[%s12 + $0x28] sm:$0xf]
        %v2239 = vld [vmem:[%s12 + $0x2c] sm:$0xf]
        %v2240 = vld [vmem:[%s12 + $0x30] sm:$0xf]
        %v2241 = vld [vmem:[%s12 + $0x34] sm:$0xf]
        %v2242 = vld [vmem:[%s12 + $0x38] sm:$0xf]
        %v2243 = vld [vmem:[%s12 + $0x3c] sm:$0xf]
        %v2244 = vld [vmem:[%s12 + $0x40] sm:$0xf]
        %v2245 = vld [vmem:[%s12 + $0x44] sm:$0xf]
        %v2246 = vld [vmem:[%s12 + $0x48] sm:$0xf]
        %v2247 = vld [vmem:[%s12 + $0x4c] sm:$0xf]
        %v2248 = vld [vmem:[%s12 + $0x50] sm:$0xf]
        %v2249 = vld [vmem:[%s12 + $0x54] sm:$0xf]
        %v2250 = vld [vmem:[%s12 + $0x58] sm:$0xf]
        %v2251 = vld [vmem:[%s12 + $0x5c] sm:$0xf]
        %v2252 = vld [vmem:[%s12 + $0x60] sm:$0xf]
        %v2253 = vld [vmem:[%s12 + $0x64] sm:$0xf]
        %v2254 = vld [vmem:[%s12 + $0x68] sm:$0xf]
        %v2255 = vld [vmem:[%s12 + $0x6c] sm:$0xf]
        %v2256 = vld [vmem:[%s12 + $0x70] sm:$0xf]
        %v2257 = vld [vmem:[%s12 + $0x74] sm:$0xf]
        %v2258 = vld [vmem:[%s12 + $0x78] sm:$0xf]
        %v2259 = vld [vmem:[%s12 + $0x7c] sm:$0xf]
        %v2260 = vld [vmem:[%s12 + $0x80] sm:$0xf]
        %v2261 = vld [vmem:[%s12 + $0x84] sm:$0xf]
        %v2262 = vld [vmem:[%s12 + $0x88] sm:$0xf]
        %v2263 = vld [vmem:[%s12 + $0x8c] sm:$0xf]
        %v2264 = vld [vmem:[%s12 + $0x90] sm:$0xf]
        %v2265 = vld [vmem:[%s12 + $0x94] sm:$0xf]
        %v2266 = vld [vmem:[%s12 + $0x98] sm:$0xf]
        %v2267 = vld [vmem:[%s12 + $0x9c] sm:$0xf]
        %v2268 = vld [vmem:[%s12 + $0xa0] sm:$0xf]
        %v2269 = vld [vmem:[%s12 + $0xa4] sm:$0xf]
        %v2270 = vld [vmem:[%s12 + $0xa8] sm:$0xf]
        %v2271 = vld [vmem:[%s12 + $0xac] sm:$0xf]
        %v2272 = vld [vmem:[%s12 + $0xb0] sm:$0xf]
        %v2273 = vld [vmem:[%s12 + $0xb4] sm:$0xf]
        %v2274 = vld [vmem:[%s12 + $0xb8] sm:$0xf]
        %v2275 = vld [vmem:[%s12 + $0xbc] sm:$0xf]
        %v2276 = vld [vmem:[%s12 + $0xc0] sm:$0xf]
        %v2277 = vld [vmem:[%s12 + $0xc4] sm:$0xf]
        %v2278 = vld [vmem:[%s12 + $0xc8] sm:$0xf]
        %v2279 = vld [vmem:[%s12 + $0xcc] sm:$0xf]
        %v2280 = vld [vmem:[%s12 + $0xd0] sm:$0xf]
        %v2281 = vld [vmem:[%s12 + $0xd4] sm:$0xf]
        %v2282 = vld [vmem:[%s12 + $0xd8] sm:$0xf]
        %v2283 = vld [vmem:[%s12 + $0xdc] sm:$0xf]
        %v2284 = vld [vmem:[%s12 + $0xe0] sm:$0xf]
        %v2285 = vld [vmem:[%s12 + $0xe4] sm:$0xf]
        %v2286 = vld [vmem:[%s12 + $0xe8] sm:$0xf]
        %v2287 = vld [vmem:[%s12 + $0xec] sm:$0xf]
        %v2288 = vld [vmem:[%s12 + $0xf0] sm:$0xf]
        %v2289 = vld [vmem:[%s12 + $0xf4] sm:$0xf]
        %v2290 = vld [vmem:[%s12 + $0xf8] sm:$0xf]
        %v2291 = vld [vmem:[%s12 + $0xfc] sm:$0xf]
        %v2292 = vld [vmem:[%s12 + $0x100] sm:$0xf]
        %v2293 = vld [vmem:[%s12 + $0x104] sm:$0xf]
        %v2294 = vld [vmem:[%s12 + $0x108] sm:$0xf]
        %v2295 = vld [vmem:[%s12 + $0x10c] sm:$0xf]
        %v2296 = vld [vmem:[%s12 + $0x110] sm:$0xf]
        %v2297 = vld [vmem:[%s12 + $0x114] sm:$0xf]
        %v2298 = vld [vmem:[%s12 + $0x118] sm:$0xf]
        %v2299 = vld [vmem:[%s12 + $0x11c] sm:$0xf]
        %v2300 = vld [vmem:[%s12 + $0x120] sm:$0xf]
        %v2301 = vld [vmem:[%s12 + $0x124] sm:$0xf]
        %v2302 = vld [vmem:[%s12 + $0x128] sm:$0xf]
        %v2303 = vld [vmem:[%s12 + $0x12c] sm:$0xf]
        %v2304 = vld [vmem:[%s12 + $0x130] sm:$0xf]
        %v2305 = vld [vmem:[%s12 + $0x134] sm:$0xf]
        %v2306 = vld [vmem:[%s12 + $0x138] sm:$0xf]
        %v2307 = vld [vmem:[%s12 + $0x13c] sm:$0xf]
        %v2308 = vld [vmem:[%s12 + $0x140] sm:$0xf]
        %v2309 = vld [vmem:[%s12 + $0x144] sm:$0xf]
        %v2310 = vld [vmem:[%s12 + $0x148] sm:$0xf]
        %v2311 = vld [vmem:[%s12 + $0x14c] sm:$0xf]
        %v2312 = vld [vmem:[%s12 + $0x150] sm:$0xf]
        %v2313 = vld [vmem:[%s12 + $0x154] sm:$0xf]
        %v2314 = vld [vmem:[%s12 + $0x158] sm:$0xf]
        %v2315 = vld [vmem:[%s12 + $0x15c] sm:$0xf]
        %v2316 = vld [vmem:[%s12 + $0x160] sm:$0xf]
        %v2317 = vld [vmem:[%s12 + $0x164] sm:$0xf]
        %v2318 = vld [vmem:[%s12 + $0x168] sm:$0xf]
        %v2319 = vld [vmem:[%s12 + $0x16c] sm:$0xf]
        %v2320 = vld [vmem:[%s12 + $0x170] sm:$0xf]
        %v2321 = vld [vmem:[%s12 + $0x174] sm:$0xf]
        %v2322 = vld [vmem:[%s12 + $0x178] sm:$0xf]
        %v2323 = vld [vmem:[%s12 + $0x17c] sm:$0xf]
        %v2324 = vld [vmem:[%s12 + $0x180] sm:$0xf]
        %v2325 = vld [vmem:[%s12 + $0x184] sm:$0xf]
        %v2326 = vld [vmem:[%s12 + $0x188] sm:$0xf]
        %v2327 = vld [vmem:[%s12 + $0x18c] sm:$0xf]
        %v2328 = vld [vmem:[%s12 + $0x190] sm:$0xf]
        %v2329 = vld [vmem:[%s12 + $0x194] sm:$0xf]
        %v2330 = vld [vmem:[%s12 + $0x198] sm:$0xf]
        %v2331 = vld [vmem:[%s12 + $0x19c] sm:$0xf]
        %v2332 = vld [vmem:[%s12 + $0x1a0] sm:$0xf]
        %v2333 = vld [vmem:[%s12 + $0x1a4] sm:$0xf]
        %v2334 = vld [vmem:[%s12 + $0x1a8] sm:$0xf]
        %v2335 = vld [vmem:[%s12 + $0x1ac] sm:$0xf]
        %v2336 = vld [vmem:[%s12 + $0x1b0] sm:$0xf]
        %v2337 = vld [vmem:[%s12 + $0x1b4] sm:$0xf]
        %v2338 = vld [vmem:[%s12 + $0x1b8] sm:$0xf]
        %v2339 = vld [vmem:[%s12 + $0x1bc] sm:$0xf]
        %v2340 = vld [vmem:[%s12 + $0x1c0] sm:$0xf]
        %v2341 = vld [vmem:[%s12 + $0x1c4] sm:$0xf]
        %v2342 = vld [vmem:[%s12 + $0x1c8] sm:$0xf]
        %v2343 = vld [vmem:[%s12 + $0x1cc] sm:$0xf]
        %v2344 = vld [vmem:[%s12 + $0x1d0] sm:$0xf]
        %v2345 = vld [vmem:[%s12 + $0x1d4] sm:$0xf]
        %v2346 = vld [vmem:[%s12 + $0x1d8] sm:$0xf]
        %v2347 = vld [vmem:[%s12 + $0x1dc] sm:$0xf]
        %v2348 = vld [vmem:[%s12 + $0x1e0] sm:$0xf]
        %v2349 = vld [vmem:[%s12 + $0x1e4] sm:$0xf]
        %v2350 = vld [vmem:[%s12 + $0x1e8] sm:$0xf]
        %v2351 = vld [vmem:[%s12 + $0x1ec] sm:$0xf]
        %v2352 = vld [vmem:[%s12 + $0x1f0] sm:$0xf]
        %v2353 = vld [vmem:[%s12 + $0x1f4] sm:$0xf]
        %v2354 = vld [vmem:[%s12 + $0x1f8] sm:$0xf]
        %v2355 = vld [vmem:[%s12 + $0x1fc] sm:$0xf]
        %v2356 = vld [vmem:[%s12 + $0x200] sm:$0xf]
        %v2357 = vld [vmem:[%s12 + $0x204] sm:$0xf]
        %v2358 = vld [vmem:[%s12 + $0x208] sm:$0xf]
        %v2359 = vld [vmem:[%s12 + $0x20c] sm:$0xf]
        %v2360 = vld [vmem:[%s12 + $0x210] sm:$0xf]
        %v2361 = vld [vmem:[%s12 + $0x214] sm:$0xf]
        %v2362 = vld [vmem:[%s12 + $0x218] sm:$0xf]
        %v2363 = vld [vmem:[%s12 + $0x21c] sm:$0xf]
        %v2364 = vld [vmem:[%s12 + $0x220] sm:$0xf]
        %v2365 = vld [vmem:[%s12 + $0x224] sm:$0xf]
        %v2366 = vld [vmem:[%s12 + $0x228] sm:$0xf]
        %v2367 = vld [vmem:[%s12 + $0x22c] sm:$0xf]
        %v2368 = vld [vmem:[%s12 + $0x230] sm:$0xf]
        %v2369 = vld [vmem:[%s12 + $0x234] sm:$0xf]
        %v2370 = vld [vmem:[%s12 + $0x238] sm:$0xf]
        %v2371 = vld [vmem:[%s12 + $0x23c] sm:$0xf]
        %v2372 = vld [vmem:[%s13] sm:$0x1]
        %v2391 = vunpack.c.l.b16 %v2210
        %v2392 = vunpack.c.l.b16 %v2211
        %v2393 = vunpack.c.l.b16 %v2212
        %v2394 = vunpack.c.l.b16 %v2213
        %v2395 = vunpack.c.l.b16 %v2214
        %v2396 = vunpack.c.l.b16 %v2215
        %v2397 = vunpack.c.l.b16 %v2216
        %v2398 = vunpack.c.l.b16 %v2217
        %v2399 = vunpack.c.l.b16 %v2218
        %v2400 = vunpack.c.l.b16 %v2219
        %v2401 = vunpack.c.l.b16 %v2220
        %v2402 = vunpack.c.l.b16 %v2221
        %v2403 = vunpack.c.l.b16 %v2222
        %v2404 = vunpack.c.l.b16 %v2223
        %v2405 = vunpack.c.l.b16 %v2224
        %v2406 = vunpack.c.l.b16 %v2225
        %v2407 = vunpack.c.l.b16 %v2226
        %v2408 = vunpack.c.l.b16 %v2227
        %v2409 = vpack.c.b16 %v2392, %v2391
        %v2410 = vpack.c.b16 %v2394, %v2393
        %v2411 = vpack.c.b16 %v2396, %v2395
        %v2412 = vpack.c.b16 %v2398, %v2397
        %v2413 = vpack.c.b16 %v2400, %v2399
        %v2414 = vpack.c.b16 %v2402, %v2401
        %v2415 = vpack.c.b16 %v2404, %v2403
        %v2416 = vpack.c.b16 %v2406, %v2405
        %v2417 = vpack.c.b16 %v2408, %v2407
        %v2419 = vshrl.u32 %v2409, 16
        %v2421 = vrot.slane %v2419, 7
        %v2422 = vshll.u32 %v2409, 16
        %v2424 = vor.u32 %v2421, %v2422
        %v2426 = vshrl.u32 %v2410, 16
        %v2428 = vrot.slane %v2426, 7
        %v2429 = vshll.u32 %v2410, 16
        %v2431 = vor.u32 %v2428, %v2429
        %v2433 = vshrl.u32 %v2411, 16
        %v2435 = vrot.slane %v2433, 7
        %v2436 = vshll.u32 %v2411, 16
        %v2438 = vor.u32 %v2435, %v2436
        %v2440 = vshrl.u32 %v2412, 16
        %v2442 = vrot.slane %v2440, 7
        %v2443 = vshll.u32 %v2412, 16
        %v2445 = vor.u32 %v2442, %v2443
        %v2447 = vshrl.u32 %v2413, 16
        %v2449 = vrot.slane %v2447, 7
        %v2450 = vshll.u32 %v2413, 16
        %v2452 = vor.u32 %v2449, %v2450
        %v2454 = vshrl.u32 %v2414, 16
        %v2456 = vrot.slane %v2454, 7
        %v2457 = vshll.u32 %v2414, 16
        %v2459 = vor.u32 %v2456, %v2457
        %v2461 = vshrl.u32 %v2415, 16
        %v2463 = vrot.slane %v2461, 7
        %v2464 = vshll.u32 %v2415, 16
        %v2466 = vor.u32 %v2463, %v2464
        %v2468 = vshrl.u32 %v2416, 16
        %v2470 = vrot.slane %v2468, 7
        %v2471 = vshll.u32 %v2416, 16
        %v2473 = vor.u32 %v2470, %v2471
        %v2475 = vshrl.u32 %v2417, 16
        %v2477 = vrot.slane %v2475, 7
        %v2478 = vshll.u32 %v2417, 16
        %v2480 = vor.u32 %v2477, %v2478
        %v2499 = vsel %vm1456, 0, %v2424
        %v2500 = vsel %vm1456, 0, %v2431
        %v2501 = vsel %vm1456, 0, %v2438
        %v2502 = vsel %vm1456, 0, %v2445
        %v2503 = vsel %vm1456, 0, %v2452
        %v2504 = vsel %vm1456, 0, %v2459
        %v2505 = vsel %vm1456, 0, %v2466
        %v2506 = vsel %vm1456, 0, %v2473
        %v2507 = vsel %vm1456, 0, %v2480
        %v2508 = vsel %vm1456, %v2421, 0
        %v2509 = vsel %vm1456, %v2428, 0
        %v2510 = vsel %vm1456, %v2435, 0
        %v2511 = vsel %vm1456, %v2442, 0
        %v2512 = vsel %vm1456, %v2449, 0
        %v2513 = vsel %vm1456, %v2456, 0
        %v2514 = vsel %vm1456, %v2463, 0
        %v2515 = vsel %vm1456, %v2470, 0
        %v2516 = vsel %vm1456, %v2477, 0
        %v2518 = vshrl.u32 %v2499, 16
        %v2520 = vshll.u32 %v2499, 16
        %v2522 = vrot.slane %v2520, 1
        %v2523 = vor.u32 %v2518, %v2522
        %v2525 = vshll.u32 %v2508, 16
        %v2527 = vrot.slane %v2525, 1
        %v2528 = vsel %vm1477, %v2523, %v2527
        %v2530 = vshrl.u32 %v2500, 16
        %v2532 = vshll.u32 %v2500, 16
        %v2534 = vrot.slane %v2532, 1
        %v2535 = vor.u32 %v2530, %v2534
        %v2537 = vshll.u32 %v2509, 16
        %v2539 = vrot.slane %v2537, 1
        %v2540 = vsel %vm1477, %v2535, %v2539
        %v2542 = vshrl.u32 %v2501, 16
        %v2544 = vshll.u32 %v2501, 16
        %v2546 = vrot.slane %v2544, 1
        %v2547 = vor.u32 %v2542, %v2546
        %v2549 = vshll.u32 %v2510, 16
        %v2551 = vrot.slane %v2549, 1
        %v2552 = vsel %vm1477, %v2547, %v2551
        %v2554 = vshrl.u32 %v2502, 16
        %v2556 = vshll.u32 %v2502, 16
        %v2558 = vrot.slane %v2556, 1
        %v2559 = vor.u32 %v2554, %v2558
        %v2561 = vshll.u32 %v2511, 16
        %v2563 = vrot.slane %v2561, 1
        %v2564 = vsel %vm1477, %v2559, %v2563
        %v2566 = vshrl.u32 %v2503, 16
        %v2568 = vshll.u32 %v2503, 16
        %v2570 = vrot.slane %v2568, 1
        %v2571 = vor.u32 %v2566, %v2570
        %v2573 = vshll.u32 %v2512, 16
        %v2575 = vrot.slane %v2573, 1
        %v2576 = vsel %vm1477, %v2571, %v2575
        %v2578 = vshrl.u32 %v2504, 16
        %v2580 = vshll.u32 %v2504, 16
        %v2582 = vrot.slane %v2580, 1
        %v2583 = vor.u32 %v2578, %v2582
        %v2585 = vshll.u32 %v2513, 16
        %v2587 = vrot.slane %v2585, 1
        %v2588 = vsel %vm1477, %v2583, %v2587
        %v2590 = vshrl.u32 %v2505, 16
        %v2592 = vshll.u32 %v2505, 16
        %v2594 = vrot.slane %v2592, 1
        %v2595 = vor.u32 %v2590, %v2594
        %v2597 = vshll.u32 %v2514, 16
        %v2599 = vrot.slane %v2597, 1
        %v2600 = vsel %vm1477, %v2595, %v2599
        %v2602 = vshrl.u32 %v2506, 16
        %v2604 = vshll.u32 %v2506, 16
        %v2606 = vrot.slane %v2604, 1
        %v2607 = vor.u32 %v2602, %v2606
        %v2609 = vshll.u32 %v2515, 16
        %v2611 = vrot.slane %v2609, 1
        %v2612 = vsel %vm1477, %v2607, %v2611
        %v2638 = vrot.slane %v2499, 1
        %v2639 = vrot.slane %v2508, 1
        %v2640 = vsel %vm1604, %v2638, %v2639
        %v2641 = vrot.slane %v2500, 1
        %v2642 = vrot.slane %v2509, 1
        %v2643 = vsel %vm1604, %v2641, %v2642
        %v2644 = vrot.slane %v2501, 1
        %v2645 = vrot.slane %v2510, 1
        %v2646 = vsel %vm1604, %v2644, %v2645
        %v2647 = vrot.slane %v2502, 1
        %v2648 = vrot.slane %v2511, 1
        %v2649 = vsel %vm1604, %v2647, %v2648
        %v2650 = vrot.slane %v2503, 1
        %v2651 = vrot.slane %v2512, 1
        %v2652 = vsel %vm1604, %v2650, %v2651
        %v2653 = vrot.slane %v2504, 1
        %v2654 = vrot.slane %v2513, 1
        %v2655 = vsel %vm1604, %v2653, %v2654
        %v2656 = vrot.slane %v2505, 1
        %v2657 = vrot.slane %v2514, 1
        %v2658 = vsel %vm1604, %v2656, %v2657
        %v2659 = vrot.slane %v2506, 1
        %v2660 = vrot.slane %v2515, 1
        %v2661 = vsel %vm1604, %v2659, %v2660
        %v2672 = vshrl.u32 %v2507, 16
        %v2674 = vshll.u32 %v2507, 16
        %v2676 = vrot.slane %v2674, 1
        %v2677 = vor.u32 %v2672, %v2676
        %v2679 = vshll.u32 %v2516, 16
        %v2681 = vrot.slane %v2679, 1
        %v2682 = vsel %vm1477, %v2677, %v2681
        %v2686 = vrot.slane %v2507, 1
        %v2687 = vrot.slane %v2516, 1
        %v2688 = vsel %vm1604, %v2686, %v2687
        %v2691 = vperm.slane %v2372, 0
        %v2837 = vunpack.c.l.b16 %v2228
        %v2838 = vunpack.c.l.b16 %v2229
        %v2839 = vunpack.c.l.b16 %v2230
        %v2840 = vunpack.c.l.b16 %v2231
        %v2841 = vunpack.c.l.b16 %v2232
        %v2842 = vunpack.c.l.b16 %v2233
        %v2843 = vunpack.c.l.b16 %v2234
        %v2844 = vunpack.c.l.b16 %v2235
        %v2845 = vunpack.c.l.b16 %v2236
        %v2846 = vunpack.c.l.b16 %v2237
        %v2847 = vunpack.c.l.b16 %v2238
        %v2848 = vunpack.c.l.b16 %v2239
        %v2849 = vunpack.c.l.b16 %v2240
        %v2850 = vunpack.c.l.b16 %v2241
        %v2851 = vunpack.c.l.b16 %v2242
        %v2852 = vunpack.c.l.b16 %v2243
        %v2853 = vunpack.c.l.b16 %v2244
        %v2854 = vunpack.c.l.b16 %v2245
        %v2855 = vunpack.c.l.b16 %v2246
        %v2856 = vunpack.c.l.b16 %v2247
        %v2857 = vunpack.c.l.b16 %v2248
        %v2858 = vunpack.c.l.b16 %v2249
        %v2859 = vunpack.c.l.b16 %v2250
        %v2860 = vunpack.c.l.b16 %v2251
        %v2861 = vunpack.c.l.b16 %v2252
        %v2862 = vunpack.c.l.b16 %v2253
        %v2863 = vunpack.c.l.b16 %v2254
        %v2864 = vunpack.c.l.b16 %v2255
        %v2865 = vunpack.c.l.b16 %v2256
        %v2866 = vunpack.c.l.b16 %v2257
        %v2867 = vunpack.c.l.b16 %v2258
        %v2868 = vunpack.c.l.b16 %v2259
        %v2869 = vunpack.c.l.b16 %v2260
        %v2870 = vunpack.c.l.b16 %v2261
        %v2871 = vunpack.c.l.b16 %v2262
        %v2872 = vunpack.c.l.b16 %v2263
        %v2873 = vunpack.c.l.b16 %v2264
        %v2874 = vunpack.c.l.b16 %v2265
        %v2875 = vunpack.c.l.b16 %v2266
        %v2876 = vunpack.c.l.b16 %v2267
        %v2877 = vunpack.c.l.b16 %v2268
        %v2878 = vunpack.c.l.b16 %v2269
        %v2879 = vunpack.c.l.b16 %v2270
        %v2880 = vunpack.c.l.b16 %v2271
        %v2881 = vunpack.c.l.b16 %v2272
        %v2882 = vunpack.c.l.b16 %v2273
        %v2883 = vunpack.c.l.b16 %v2274
        %v2884 = vunpack.c.l.b16 %v2275
        %v2885 = vunpack.c.l.b16 %v2276
        %v2886 = vunpack.c.l.b16 %v2277
        %v2887 = vunpack.c.l.b16 %v2278
        %v2888 = vunpack.c.l.b16 %v2279
        %v2889 = vunpack.c.l.b16 %v2280
        %v2890 = vunpack.c.l.b16 %v2281
        %v2891 = vunpack.c.l.b16 %v2282
        %v2892 = vunpack.c.l.b16 %v2283
        %v2893 = vunpack.c.l.b16 %v2284
        %v2894 = vunpack.c.l.b16 %v2285
        %v2895 = vunpack.c.l.b16 %v2286
        %v2896 = vunpack.c.l.b16 %v2287
        %v2897 = vunpack.c.l.b16 %v2288
        %v2898 = vunpack.c.l.b16 %v2289
        %v2899 = vunpack.c.l.b16 %v2290
        %v2900 = vunpack.c.l.b16 %v2291
        %v2901 = vunpack.c.l.b16 %v2292
        %v2902 = vunpack.c.l.b16 %v2293
        %v2903 = vunpack.c.l.b16 %v2294
        %v2904 = vunpack.c.l.b16 %v2295
        %v2905 = vunpack.c.l.b16 %v2296
        %v2906 = vunpack.c.l.b16 %v2297
        %v2907 = vunpack.c.l.b16 %v2298
        %v2908 = vunpack.c.l.b16 %v2299
        %v2909 = vunpack.c.l.b16 %v2300
        %v2910 = vunpack.c.l.b16 %v2301
        %v2911 = vunpack.c.l.b16 %v2302
        %v2912 = vunpack.c.l.b16 %v2303
        %v2913 = vunpack.c.l.b16 %v2304
        %v2914 = vunpack.c.l.b16 %v2305
        %v2915 = vunpack.c.l.b16 %v2306
        %v2916 = vunpack.c.l.b16 %v2307
        %v2917 = vunpack.c.l.b16 %v2308
        %v2918 = vunpack.c.l.b16 %v2309
        %v2919 = vunpack.c.l.b16 %v2310
        %v2920 = vunpack.c.l.b16 %v2311
        %v2921 = vunpack.c.l.b16 %v2312
        %v2922 = vunpack.c.l.b16 %v2313
        %v2923 = vunpack.c.l.b16 %v2314
        %v2924 = vunpack.c.l.b16 %v2315
        %v2925 = vunpack.c.l.b16 %v2316
        %v2926 = vunpack.c.l.b16 %v2317
        %v2927 = vunpack.c.l.b16 %v2318
        %v2928 = vunpack.c.l.b16 %v2319
        %v2929 = vunpack.c.l.b16 %v2320
        %v2930 = vunpack.c.l.b16 %v2321
        %v2931 = vunpack.c.l.b16 %v2322
        %v2932 = vunpack.c.l.b16 %v2323
        %v2933 = vunpack.c.l.b16 %v2324
        %v2934 = vunpack.c.l.b16 %v2325
        %v2935 = vunpack.c.l.b16 %v2326
        %v2936 = vunpack.c.l.b16 %v2327
        %v2937 = vunpack.c.l.b16 %v2328
        %v2938 = vunpack.c.l.b16 %v2329
        %v2939 = vunpack.c.l.b16 %v2330
        %v2940 = vunpack.c.l.b16 %v2331
        %v2941 = vunpack.c.l.b16 %v2332
        %v2942 = vunpack.c.l.b16 %v2333
        %v2943 = vunpack.c.l.b16 %v2334
        %v2944 = vunpack.c.l.b16 %v2335
        %v2945 = vunpack.c.l.b16 %v2336
        %v2946 = vunpack.c.l.b16 %v2337
        %v2947 = vunpack.c.l.b16 %v2338
        %v2948 = vunpack.c.l.b16 %v2339
        %v2949 = vunpack.c.l.b16 %v2340
        %v2950 = vunpack.c.l.b16 %v2341
        %v2951 = vunpack.c.l.b16 %v2342
        %v2952 = vunpack.c.l.b16 %v2343
        %v2953 = vunpack.c.l.b16 %v2344
        %v2954 = vunpack.c.l.b16 %v2345
        %v2955 = vunpack.c.l.b16 %v2346
        %v2956 = vunpack.c.l.b16 %v2347
        %v2957 = vunpack.c.l.b16 %v2348
        %v2958 = vunpack.c.l.b16 %v2349
        %v2959 = vunpack.c.l.b16 %v2350
        %v2960 = vunpack.c.l.b16 %v2351
        %v2961 = vunpack.c.l.b16 %v2352
        %v2962 = vunpack.c.l.b16 %v2353
        %v2963 = vunpack.c.l.b16 %v2354
        %v2964 = vunpack.c.l.b16 %v2355
        %v2965 = vunpack.c.l.b16 %v2356
        %v2966 = vunpack.c.l.b16 %v2357
        %v2967 = vunpack.c.l.b16 %v2358
        %v2968 = vunpack.c.l.b16 %v2359
        %v2969 = vunpack.c.l.b16 %v2360
        %v2970 = vunpack.c.l.b16 %v2361
        %v2971 = vunpack.c.l.b16 %v2362
        %v2972 = vunpack.c.l.b16 %v2363
        %v2973 = vunpack.c.l.b16 %v2364
        %v2974 = vunpack.c.l.b16 %v2365
        %v2975 = vunpack.c.l.b16 %v2366
        %v2976 = vunpack.c.l.b16 %v2367
        %v2977 = vunpack.c.l.b16 %v2368
        %v2978 = vunpack.c.l.b16 %v2369
        %v2979 = vunpack.c.l.b16 %v2370
        %v2980 = vunpack.c.l.b16 %v2371
        %v2981 = vpack.c.b16 %v2838, %v2837
        %v2982 = vpack.c.b16 %v2840, %v2839
        %v2983 = vpack.c.b16 %v2842, %v2841
        %v2984 = vpack.c.b16 %v2844, %v2843
        %v2985 = vpack.c.b16 %v2846, %v2845
        %v2986 = vpack.c.b16 %v2848, %v2847
        %v2987 = vpack.c.b16 %v2850, %v2849
        %v2988 = vpack.c.b16 %v2852, %v2851
        %v2989 = vpack.c.b16 %v2854, %v2853
        %v2990 = vpack.c.b16 %v2856, %v2855
        %v2991 = vpack.c.b16 %v2858, %v2857
        %v2992 = vpack.c.b16 %v2860, %v2859
        %v2993 = vpack.c.b16 %v2862, %v2861
        %v2994 = vpack.c.b16 %v2864, %v2863
        %v2995 = vpack.c.b16 %v2866, %v2865
        %v2996 = vpack.c.b16 %v2868, %v2867
        %v2997 = vpack.c.b16 %v2870, %v2869
        %v2998 = vpack.c.b16 %v2872, %v2871
        %v2999 = vpack.c.b16 %v2874, %v2873
        %v3000 = vpack.c.b16 %v2876, %v2875
        %v3001 = vpack.c.b16 %v2878, %v2877
        %v3002 = vpack.c.b16 %v2880, %v2879
        %v3003 = vpack.c.b16 %v2882, %v2881
        %v3004 = vpack.c.b16 %v2884, %v2883
        %v3005 = vpack.c.b16 %v2886, %v2885
        %v3006 = vpack.c.b16 %v2888, %v2887
        %v3007 = vpack.c.b16 %v2890, %v2889
        %v3008 = vpack.c.b16 %v2892, %v2891
        %v3009 = vpack.c.b16 %v2894, %v2893
        %v3010 = vpack.c.b16 %v2896, %v2895
        %v3011 = vpack.c.b16 %v2898, %v2897
        %v3012 = vpack.c.b16 %v2900, %v2899
        %v3013 = vpack.c.b16 %v2902, %v2901
        %v3014 = vpack.c.b16 %v2904, %v2903
        %v3015 = vpack.c.b16 %v2906, %v2905
        %v3016 = vpack.c.b16 %v2908, %v2907
        %v3017 = vpack.c.b16 %v2910, %v2909
        %v3018 = vpack.c.b16 %v2912, %v2911
        %v3019 = vpack.c.b16 %v2914, %v2913
        %v3020 = vpack.c.b16 %v2916, %v2915
        %v3021 = vpack.c.b16 %v2918, %v2917
        %v3022 = vpack.c.b16 %v2920, %v2919
        %v3023 = vpack.c.b16 %v2922, %v2921
        %v3024 = vpack.c.b16 %v2924, %v2923
        %v3025 = vpack.c.b16 %v2926, %v2925
        %v3026 = vpack.c.b16 %v2928, %v2927
        %v3027 = vpack.c.b16 %v2930, %v2929
        %v3028 = vpack.c.b16 %v2932, %v2931
        %v3029 = vpack.c.b16 %v2934, %v2933
        %v3030 = vpack.c.b16 %v2936, %v2935
        %v3031 = vpack.c.b16 %v2938, %v2937
        %v3032 = vpack.c.b16 %v2940, %v2939
        %v3033 = vpack.c.b16 %v2942, %v2941
        %v3034 = vpack.c.b16 %v2944, %v2943
        %v3035 = vpack.c.b16 %v2946, %v2945
        %v3036 = vpack.c.b16 %v2948, %v2947
        %v3037 = vpack.c.b16 %v2950, %v2949
        %v3038 = vpack.c.b16 %v2952, %v2951
        %v3039 = vpack.c.b16 %v2954, %v2953
        %v3040 = vpack.c.b16 %v2956, %v2955
        %v3041 = vpack.c.b16 %v2958, %v2957
        %v3042 = vpack.c.b16 %v2960, %v2959
        %v3043 = vpack.c.b16 %v2962, %v2961
        %v3044 = vpack.c.b16 %v2964, %v2963
        %v3045 = vpack.c.b16 %v2966, %v2965
        %v3046 = vpack.c.b16 %v2968, %v2967
        %v3047 = vpack.c.b16 %v2970, %v2969
        %v3048 = vpack.c.b16 %v2972, %v2971
        %v3049 = vpack.c.b16 %v2974, %v2973
        %v3050 = vpack.c.b16 %v2976, %v2975
        %v3051 = vpack.c.b16 %v2978, %v2977
        %v3052 = vpack.c.b16 %v2980, %v2979
        %3125 = vmatpush.bf16.msra.mxu0 %v2988
        %3126 = vmatpush.bf16.msra.mxu0 %v2987
        %3127 = vmatpush.bf16.msra.mxu0 %v2986
        %3128 = vmatpush.bf16.msra.mxu0 %v2985
        %3129 = vmatpush.bf16.msra.mxu0 %v2984
        %3130 = vmatpush.bf16.msra.mxu0 %v2983
        %3131 = vmatpush.bf16.msra.mxu0 %v2982
        %3132 = vmatpush.bf16.msra.mxu0 %v2981
        %3133 = vmatmul.bf16.gmra.mxu0 %v1457
        %v3134 = vpop.f32.mrf.mxu0
        %v3135 = vadd.f32 %v2691, %v3134
        %v3136 = vpop.f32.mrf.mxu0
        %v3137 = vadd.f32 %v2691, %v3136
        %3138 = vmatmul.bf16.gmra.mxu0 %v2499
        %v3139 = vpop.f32.mrf.mxu0
        %v3140 = vadd.f32 %v2691, %v3139
        %v3141 = vpop.f32.mrf.mxu0
        %v3142 = vadd.f32 %v2691, %v3141
        %3143 = vmatmul.bf16.gmra.mxu0 %v2500
        %v3144 = vpop.f32.mrf.mxu0
        %v3145 = vadd.f32 %v2691, %v3144
        %v3146 = vpop.f32.mrf.mxu0
        %v3147 = vadd.f32 %v2691, %v3146
        %3148 = vmatmul.bf16.gmra.mxu0 %v2501
        %v3149 = vpop.f32.mrf.mxu0
        %v3150 = vadd.f32 %v2691, %v3149
        %v3151 = vpop.f32.mrf.mxu0
        %v3152 = vadd.f32 %v2691, %v3151
        %3153 = vmatmul.bf16.gmra.mxu0 %v2502
        %v3154 = vpop.f32.mrf.mxu0
        %v3155 = vadd.f32 %v2691, %v3154
        %v3156 = vpop.f32.mrf.mxu0
        %v3157 = vadd.f32 %v2691, %v3156
        %3158 = vmatmul.bf16.gmra.mxu0 %v2503
        %v3159 = vpop.f32.mrf.mxu0
        %v3160 = vadd.f32 %v2691, %v3159
        %v3161 = vpop.f32.mrf.mxu0
        %v3162 = vadd.f32 %v2691, %v3161
        %3163 = vmatmul.bf16.gmra.mxu0 %v2504
        %v3164 = vpop.f32.mrf.mxu0
        %v3165 = vadd.f32 %v2691, %v3164
        %v3166 = vpop.f32.mrf.mxu0
        %v3167 = vadd.f32 %v2691, %v3166
        %3168 = vmatmul.bf16.gmra.mxu0 %v2505
        %v3169 = vpop.f32.mrf.mxu0
        %v3170 = vadd.f32 %v2691, %v3169
        %v3171 = vpop.f32.mrf.mxu0
        %v3172 = vadd.f32 %v2691, %v3171
        %3173 = vmatmul.bf16.gmra.mxu0 %v2506
        %v3174 = vpop.f32.mrf.mxu0
        %v3175 = vadd.f32 %v2691, %v3174
        %v3176 = vpop.f32.mrf.mxu0
        %v3177 = vadd.f32 %v2691, %v3176
        %3178 = vdwg.mxu0
        %3179 = vmatpush.bf16.msra.mxu0 %v2996
        %3180 = vmatpush.bf16.msra.mxu0 %v2995
        %3181 = vmatpush.bf16.msra.mxu0 %v2994
        %3182 = vmatpush.bf16.msra.mxu0 %v2993
        %3183 = vmatpush.bf16.msra.mxu0 %v2992
        %3184 = vmatpush.bf16.msra.mxu0 %v2991
        %3185 = vmatpush.bf16.msra.mxu0 %v2990
        %3186 = vmatpush.bf16.msra.mxu0 %v2989
        %3187 = vmatmul.bf16.gmra.mxu0 %v1489
        %v3188 = vpop.f32.mrf.mxu0
        %v3189 = vadd.f32 %v3135, %v3188
        %v3190 = vpop.f32.mrf.mxu0
        %v3191 = vadd.f32 %v3137, %v3190
        %3192 = vmatmul.bf16.gmra.mxu0 %v2528
        %v3193 = vpop.f32.mrf.mxu0
        %v3194 = vadd.f32 %v3140, %v3193
        %v3195 = vpop.f32.mrf.mxu0
        %v3196 = vadd.f32 %v3142, %v3195
        %3197 = vmatmul.bf16.gmra.mxu0 %v2540
        %v3198 = vpop.f32.mrf.mxu0
        %v3199 = vadd.f32 %v3145, %v3198
        %v3200 = vpop.f32.mrf.mxu0
        %v3201 = vadd.f32 %v3147, %v3200
        %3202 = vmatmul.bf16.gmra.mxu0 %v2552
        %v3203 = vpop.f32.mrf.mxu0
        %v3204 = vadd.f32 %v3150, %v3203
        %v3205 = vpop.f32.mrf.mxu0
        %v3206 = vadd.f32 %v3152, %v3205
        %3207 = vmatmul.bf16.gmra.mxu0 %v2564
        %v3208 = vpop.f32.mrf.mxu0
        %v3209 = vadd.f32 %v3155, %v3208
        %v3210 = vpop.f32.mrf.mxu0
        %v3211 = vadd.f32 %v3157, %v3210
        %3212 = vmatmul.bf16.gmra.mxu0 %v2576
        %v3213 = vpop.f32.mrf.mxu0
        %v3214 = vadd.f32 %v3160, %v3213
        %v3215 = vpop.f32.mrf.mxu0
        %v3216 = vadd.f32 %v3162, %v3215
        %3217 = vmatmul.bf16.gmra.mxu0 %v2588
        %v3218 = vpop.f32.mrf.mxu0
        %v3219 = vadd.f32 %v3165, %v3218
        %v3220 = vpop.f32.mrf.mxu0
        %v3221 = vadd.f32 %v3167, %v3220
        %3222 = vmatmul.bf16.gmra.mxu0 %v2600
        %v3223 = vpop.f32.mrf.mxu0
        %v3224 = vadd.f32 %v3170, %v3223
        %v3225 = vpop.f32.mrf.mxu0
        %v3226 = vadd.f32 %v3172, %v3225
        %3227 = vmatmul.bf16.gmra.mxu0 %v2612
        %v3228 = vpop.f32.mrf.mxu0
        %v3229 = vadd.f32 %v3175, %v3228
        %v3230 = vpop.f32.mrf.mxu0
        %v3231 = vadd.f32 %v3177, %v3230
        %3232 = vdwg.mxu0
        %3233 = vmatpush.bf16.msra.mxu0 %v3004
        %3234 = vmatpush.bf16.msra.mxu0 %v3003
        %3235 = vmatpush.bf16.msra.mxu0 %v3002
        %3236 = vmatpush.bf16.msra.mxu0 %v3001
        %3237 = vmatpush.bf16.msra.mxu0 %v3000
        %3238 = vmatpush.bf16.msra.mxu0 %v2999
        %3239 = vmatpush.bf16.msra.mxu0 %v2998
        %3240 = vmatpush.bf16.msra.mxu0 %v2997
        %3241 = vmatmul.bf16.gmra.mxu0 %v1607
        %v3242 = vpop.f32.mrf.mxu0
        %v3243 = vadd.f32 %v3189, %v3242
        %v3244 = vpop.f32.mrf.mxu0
        %v3245 = vadd.f32 %v3191, %v3244
        %3246 = vmatmul.bf16.gmra.mxu0 %v2640
        %v3247 = vpop.f32.mrf.mxu0
        %v3248 = vadd.f32 %v3194, %v3247
        %v3249 = vpop.f32.mrf.mxu0
        %v3250 = vadd.f32 %v3196, %v3249
        %3251 = vmatmul.bf16.gmra.mxu0 %v2643
        %v3252 = vpop.f32.mrf.mxu0
        %v3253 = vadd.f32 %v3199, %v3252
        %v3254 = vpop.f32.mrf.mxu0
        %v3255 = vadd.f32 %v3201, %v3254
        %3256 = vmatmul.bf16.gmra.mxu0 %v2646
        %v3257 = vpop.f32.mrf.mxu0
        %v3258 = vadd.f32 %v3204, %v3257
        %v3259 = vpop.f32.mrf.mxu0
        %v3260 = vadd.f32 %v3206, %v3259
        %3261 = vmatmul.bf16.gmra.mxu0 %v2649
        %v3262 = vpop.f32.mrf.mxu0
        %v3263 = vadd.f32 %v3209, %v3262
        %v3264 = vpop.f32.mrf.mxu0
        %v3265 = vadd.f32 %v3211, %v3264
        %3266 = vmatmul.bf16.gmra.mxu0 %v2652
        %v3267 = vpop.f32.mrf.mxu0
        %v3268 = vadd.f32 %v3214, %v3267
        %v3269 = vpop.f32.mrf.mxu0
        %v3270 = vadd.f32 %v3216, %v3269
        %3271 = vmatmul.bf16.gmra.mxu0 %v2655
        %v3272 = vpop.f32.mrf.mxu0
        %v3273 = vadd.f32 %v3219, %v3272
        %v3274 = vpop.f32.mrf.mxu0
        %v3275 = vadd.f32 %v3221, %v3274
        %3276 = vmatmul.bf16.gmra.mxu0 %v2658
        %v3277 = vpop.f32.mrf.mxu0
        %v3278 = vadd.f32 %v3224, %v3277
        %v3279 = vpop.f32.mrf.mxu0
        %v3280 = vadd.f32 %v3226, %v3279
        %3281 = vmatmul.bf16.gmra.mxu0 %v2661
        %v3282 = vpop.f32.mrf.mxu0
        %v3283 = vadd.f32 %v3229, %v3282
        %v3284 = vpop.f32.mrf.mxu0
        %v3285 = vadd.f32 %v3231, %v3284
        %3286 = vdwg.mxu0
        %3287 = vmatpush.bf16.msra.mxu0 %v3012
        %3288 = vmatpush.bf16.msra.mxu0 %v3011
        %3289 = vmatpush.bf16.msra.mxu0 %v3010
        %3290 = vmatpush.bf16.msra.mxu0 %v3009
        %3291 = vmatpush.bf16.msra.mxu0 %v3008
        %3292 = vmatpush.bf16.msra.mxu0 %v3007
        %3293 = vmatpush.bf16.msra.mxu0 %v3006
        %3294 = vmatpush.bf16.msra.mxu0 %v3005
        %3295 = vmatmul.bf16.gmra.mxu0 %v2499
        %v3296 = vpop.f32.mrf.mxu0
        %v3297 = vadd.f32 %v3243, %v3296
        %v3298 = vpop.f32.mrf.mxu0
        %v3299 = vadd.f32 %v3245, %v3298
        %3300 = vmatmul.bf16.gmra.mxu0 %v2500
        %v3301 = vpop.f32.mrf.mxu0
        %v3302 = vadd.f32 %v3248, %v3301
        %v3303 = vpop.f32.mrf.mxu0
        %v3304 = vadd.f32 %v3250, %v3303
        %3305 = vmatmul.bf16.gmra.mxu0 %v2501
        %v3306 = vpop.f32.mrf.mxu0
        %v3307 = vadd.f32 %v3253, %v3306
        %v3308 = vpop.f32.mrf.mxu0
        %v3309 = vadd.f32 %v3255, %v3308
        %3310 = vmatmul.bf16.gmra.mxu0 %v2502
        %v3311 = vpop.f32.mrf.mxu0
        %v3312 = vadd.f32 %v3258, %v3311
        %v3313 = vpop.f32.mrf.mxu0
        %v3314 = vadd.f32 %v3260, %v3313
        %3315 = vmatmul.bf16.gmra.mxu0 %v2503
        %v3316 = vpop.f32.mrf.mxu0
        %v3317 = vadd.f32 %v3263, %v3316
        %v3318 = vpop.f32.mrf.mxu0
        %v3319 = vadd.f32 %v3265, %v3318
        %3320 = vmatmul.bf16.gmra.mxu0 %v2504
        %v3321 = vpop.f32.mrf.mxu0
        %v3322 = vadd.f32 %v3268, %v3321
        %v3323 = vpop.f32.mrf.mxu0
        %v3324 = vadd.f32 %v3270, %v3323
        %3325 = vmatmul.bf16.gmra.mxu0 %v2505
        %v3326 = vpop.f32.mrf.mxu0
        %v3327 = vadd.f32 %v3273, %v3326
        %v3328 = vpop.f32.mrf.mxu0
        %v3329 = vadd.f32 %v3275, %v3328
        %3330 = vmatmul.bf16.gmra.mxu0 %v2506
        %v3331 = vpop.f32.mrf.mxu0
        %v3332 = vadd.f32 %v3278, %v3331
        %v3333 = vpop.f32.mrf.mxu0
        %v3334 = vadd.f32 %v3280, %v3333
        %3335 = vmatmul.bf16.gmra.mxu0 %v2507
        %v3336 = vpop.f32.mrf.mxu0
        %v3337 = vadd.f32 %v3283, %v3336
        %v3338 = vpop.f32.mrf.mxu0
        %v3339 = vadd.f32 %v3285, %v3338
        %3340 = vdwg.mxu0
        %3341 = vmatpush.bf16.msra.mxu0 %v3020
        %3342 = vmatpush.bf16.msra.mxu0 %v3019
        %3343 = vmatpush.bf16.msra.mxu0 %v3018
        %3344 = vmatpush.bf16.msra.mxu0 %v3017
        %3345 = vmatpush.bf16.msra.mxu0 %v3016
        %3346 = vmatpush.bf16.msra.mxu0 %v3015
        %3347 = vmatpush.bf16.msra.mxu0 %v3014
        %3348 = vmatpush.bf16.msra.mxu0 %v3013
        %3349 = vmatmul.bf16.gmra.mxu0 %v2528
        %v3350 = vpop.f32.mrf.mxu0
        %v3351 = vadd.f32 %v3297, %v3350
        %v3352 = vpop.f32.mrf.mxu0
        %v3353 = vadd.f32 %v3299, %v3352
        %3354 = vmatmul.bf16.gmra.mxu0 %v2540
        %v3355 = vpop.f32.mrf.mxu0
        %v3356 = vadd.f32 %v3302, %v3355
        %v3357 = vpop.f32.mrf.mxu0
        %v3358 = vadd.f32 %v3304, %v3357
        %3359 = vmatmul.bf16.gmra.mxu0 %v2552
        %v3360 = vpop.f32.mrf.mxu0
        %v3361 = vadd.f32 %v3307, %v3360
        %v3362 = vpop.f32.mrf.mxu0
        %v3363 = vadd.f32 %v3309, %v3362
        %3364 = vmatmul.bf16.gmra.mxu0 %v2564
        %v3365 = vpop.f32.mrf.mxu0
        %v3366 = vadd.f32 %v3312, %v3365
        %v3367 = vpop.f32.mrf.mxu0
        %v3368 = vadd.f32 %v3314, %v3367
        %3369 = vmatmul.bf16.gmra.mxu0 %v2576
        %v3370 = vpop.f32.mrf.mxu0
        %v3371 = vadd.f32 %v3317, %v3370
        %v3372 = vpop.f32.mrf.mxu0
        %v3373 = vadd.f32 %v3319, %v3372
        %3374 = vmatmul.bf16.gmra.mxu0 %v2588
        %v3375 = vpop.f32.mrf.mxu0
        %v3376 = vadd.f32 %v3322, %v3375
        %v3377 = vpop.f32.mrf.mxu0
        %v3378 = vadd.f32 %v3324, %v3377
        %3379 = vmatmul.bf16.gmra.mxu0 %v2600
        %v3380 = vpop.f32.mrf.mxu0
        %v3381 = vadd.f32 %v3327, %v3380
        %v3382 = vpop.f32.mrf.mxu0
        %v3383 = vadd.f32 %v3329, %v3382
        %3384 = vmatmul.bf16.gmra.mxu0 %v2612
        %v3385 = vpop.f32.mrf.mxu0
        %v3386 = vadd.f32 %v3332, %v3385
        %v3387 = vpop.f32.mrf.mxu0
        %v3388 = vadd.f32 %v3334, %v3387
        %3389 = vmatmul.bf16.gmra.mxu0 %v2682
        %v3390 = vpop.f32.mrf.mxu0
        %v3391 = vadd.f32 %v3337, %v3390
        %v3392 = vpop.f32.mrf.mxu0
        %v3393 = vadd.f32 %v3339, %v3392
        %3394 = vdwg.mxu0
        %3395 = vmatpush.bf16.msra.mxu0 %v3028
        %3396 = vmatpush.bf16.msra.mxu0 %v3027
        %3397 = vmatpush.bf16.msra.mxu0 %v3026
        %3398 = vmatpush.bf16.msra.mxu0 %v3025
        %3399 = vmatpush.bf16.msra.mxu0 %v3024
        %3400 = vmatpush.bf16.msra.mxu0 %v3023
        %3401 = vmatpush.bf16.msra.mxu0 %v3022
        %3402 = vmatpush.bf16.msra.mxu0 %v3021
        %3403 = vmatmul.bf16.gmra.mxu0 %v2640
        %v3404 = vpop.f32.mrf.mxu0
        %v3405 = vadd.f32 %v3351, %v3404
        %v3406 = vpop.f32.mrf.mxu0
        %v3407 = vadd.f32 %v3353, %v3406
        %3408 = vmatmul.bf16.gmra.mxu0 %v2643
        %v3409 = vpop.f32.mrf.mxu0
        %v3410 = vadd.f32 %v3356, %v3409
        %v3411 = vpop.f32.mrf.mxu0
        %v3412 = vadd.f32 %v3358, %v3411
        %3413 = vmatmul.bf16.gmra.mxu0 %v2646
        %v3414 = vpop.f32.mrf.mxu0
        %v3415 = vadd.f32 %v3361, %v3414
        %v3416 = vpop.f32.mrf.mxu0
        %v3417 = vadd.f32 %v3363, %v3416
        %3418 = vmatmul.bf16.gmra.mxu0 %v2649
        %v3419 = vpop.f32.mrf.mxu0
        %v3420 = vadd.f32 %v3366, %v3419
        %v3421 = vpop.f32.mrf.mxu0
        %v3422 = vadd.f32 %v3368, %v3421
        %3423 = vmatmul.bf16.gmra.mxu0 %v2652
        %v3424 = vpop.f32.mrf.mxu0
        %v3425 = vadd.f32 %v3371, %v3424
        %v3426 = vpop.f32.mrf.mxu0
        %v3427 = vadd.f32 %v3373, %v3426
        %3428 = vmatmul.bf16.gmra.mxu0 %v2655
        %v3429 = vpop.f32.mrf.mxu0
        %v3430 = vadd.f32 %v3376, %v3429
        %v3431 = vpop.f32.mrf.mxu0
        %v3432 = vadd.f32 %v3378, %v3431
        %3433 = vmatmul.bf16.gmra.mxu0 %v2658
        %v3434 = vpop.f32.mrf.mxu0
        %v3435 = vadd.f32 %v3381, %v3434
        %v3436 = vpop.f32.mrf.mxu0
        %v3437 = vadd.f32 %v3383, %v3436
        %3438 = vmatmul.bf16.gmra.mxu0 %v2661
        %v3439 = vpop.f32.mrf.mxu0
        %v3440 = vadd.f32 %v3386, %v3439
        %v3441 = vpop.f32.mrf.mxu0
        %v3442 = vadd.f32 %v3388, %v3441
        %3443 = vmatmul.bf16.gmra.mxu0 %v2688
        %v3444 = vpop.f32.mrf.mxu0
        %v3445 = vadd.f32 %v3391, %v3444
        %v3446 = vpop.f32.mrf.mxu0
        %v3447 = vadd.f32 %v3393, %v3446
        %3448 = vdwg.mxu0
        %3449 = vmatpush.bf16.msra.mxu0 %v3036
        %3450 = vmatpush.bf16.msra.mxu0 %v3035
        %3451 = vmatpush.bf16.msra.mxu0 %v3034
        %3452 = vmatpush.bf16.msra.mxu0 %v3033
        %3453 = vmatpush.bf16.msra.mxu0 %v3032
        %3454 = vmatpush.bf16.msra.mxu0 %v3031
        %3455 = vmatpush.bf16.msra.mxu0 %v3030
        %3456 = vmatpush.bf16.msra.mxu0 %v3029
        %3457 = vmatmul.bf16.gmra.mxu0 %v2500
        %v3458 = vpop.f32.mrf.mxu0
        %v3459 = vadd.f32 %v3405, %v3458
        %v3460 = vpop.f32.mrf.mxu0
        %v3461 = vadd.f32 %v3407, %v3460
        %3462 = vmatmul.bf16.gmra.mxu0 %v2501
        %v3463 = vpop.f32.mrf.mxu0
        %v3464 = vadd.f32 %v3410, %v3463
        %v3465 = vpop.f32.mrf.mxu0
        %v3466 = vadd.f32 %v3412, %v3465
        %3467 = vmatmul.bf16.gmra.mxu0 %v2502
        %v3468 = vpop.f32.mrf.mxu0
        %v3469 = vadd.f32 %v3415, %v3468
        %v3470 = vpop.f32.mrf.mxu0
        %v3471 = vadd.f32 %v3417, %v3470
        %3472 = vmatmul.bf16.gmra.mxu0 %v2503
        %v3473 = vpop.f32.mrf.mxu0
        %v3474 = vadd.f32 %v3420, %v3473
        %v3475 = vpop.f32.mrf.mxu0
        %v3476 = vadd.f32 %v3422, %v3475
        %3477 = vmatmul.bf16.gmra.mxu0 %v2504
        %v3478 = vpop.f32.mrf.mxu0
        %v3479 = vadd.f32 %v3425, %v3478
        %v3480 = vpop.f32.mrf.mxu0
        %v3481 = vadd.f32 %v3427, %v3480
        %3482 = vmatmul.bf16.gmra.mxu0 %v2505
        %v3483 = vpop.f32.mrf.mxu0
        %v3484 = vadd.f32 %v3430, %v3483
        %v3485 = vpop.f32.mrf.mxu0
        %v3486 = vadd.f32 %v3432, %v3485
        %3487 = vmatmul.bf16.gmra.mxu0 %v2506
        %v3488 = vpop.f32.mrf.mxu0
        %v3489 = vadd.f32 %v3435, %v3488
        %v3490 = vpop.f32.mrf.mxu0
        %v3491 = vadd.f32 %v3437, %v3490
        %3492 = vmatmul.bf16.gmra.mxu0 %v2507
        %v3493 = vpop.f32.mrf.mxu0
        %v3494 = vadd.f32 %v3440, %v3493
        %v3495 = vpop.f32.mrf.mxu0
        %v3496 = vadd.f32 %v3442, %v3495
        %3497 = vmatmul.bf16.gmra.mxu0 %v1457
        %v3498 = vpop.f32.mrf.mxu0
        %v3499 = vadd.f32 %v3445, %v3498
        %v3500 = vpop.f32.mrf.mxu0
        %v3501 = vadd.f32 %v3447, %v3500
        %3502 = vdwg.mxu0
        %3503 = vmatpush.bf16.msra.mxu0 %v3044
        %3504 = vmatpush.bf16.msra.mxu0 %v3043
        %3505 = vmatpush.bf16.msra.mxu0 %v3042
        %3506 = vmatpush.bf16.msra.mxu0 %v3041
        %3507 = vmatpush.bf16.msra.mxu0 %v3040
        %3508 = vmatpush.bf16.msra.mxu0 %v3039
        %3509 = vmatpush.bf16.msra.mxu0 %v3038
        %3510 = vmatpush.bf16.msra.mxu0 %v3037
        %3511 = vmatmul.bf16.gmra.mxu0 %v2540
        %v3512 = vpop.f32.mrf.mxu0
        %v3513 = vadd.f32 %v3459, %v3512
        %v3514 = vpop.f32.mrf.mxu0
        %v3515 = vadd.f32 %v3461, %v3514
        %3516 = vmatmul.bf16.gmra.mxu0 %v2552
        %v3517 = vpop.f32.mrf.mxu0
        %v3518 = vadd.f32 %v3464, %v3517
        %v3519 = vpop.f32.mrf.mxu0
        %v3520 = vadd.f32 %v3466, %v3519
        %3521 = vmatmul.bf16.gmra.mxu0 %v2564
        %v3522 = vpop.f32.mrf.mxu0
        %v3523 = vadd.f32 %v3469, %v3522
        %v3524 = vpop.f32.mrf.mxu0
        %v3525 = vadd.f32 %v3471, %v3524
        %3526 = vmatmul.bf16.gmra.mxu0 %v2576
        %v3527 = vpop.f32.mrf.mxu0
        %v3528 = vadd.f32 %v3474, %v3527
        %v3529 = vpop.f32.mrf.mxu0
        %v3530 = vadd.f32 %v3476, %v3529
        %3531 = vmatmul.bf16.gmra.mxu0 %v2588
        %v3532 = vpop.f32.mrf.mxu0
        %v3533 = vadd.f32 %v3479, %v3532
        %v3534 = vpop.f32.mrf.mxu0
        %v3535 = vadd.f32 %v3481, %v3534
        %3536 = vmatmul.bf16.gmra.mxu0 %v2600
        %v3537 = vpop.f32.mrf.mxu0
        %v3538 = vadd.f32 %v3484, %v3537
        %v3539 = vpop.f32.mrf.mxu0
        %v3540 = vadd.f32 %v3486, %v3539
        %3541 = vmatmul.bf16.gmra.mxu0 %v2612
        %v3542 = vpop.f32.mrf.mxu0
        %v3543 = vadd.f32 %v3489, %v3542
        %v3544 = vpop.f32.mrf.mxu0
        %v3545 = vadd.f32 %v3491, %v3544
        %3546 = vmatmul.bf16.gmra.mxu0 %v2682
        %v3547 = vpop.f32.mrf.mxu0
        %v3548 = vadd.f32 %v3494, %v3547
        %v3549 = vpop.f32.mrf.mxu0
        %v3550 = vadd.f32 %v3496, %v3549
        %3551 = vmatmul.bf16.gmra.mxu0 %v1489
        %v3552 = vpop.f32.mrf.mxu0
        %v3553 = vadd.f32 %v3499, %v3552
        %v3554 = vpop.f32.mrf.mxu0
        %v3555 = vadd.f32 %v3501, %v3554
        %3556 = vdwg.mxu0
        %3557 = vmatpush.bf16.msra.mxu0 %v3052
        %3558 = vmatpush.bf16.msra.mxu0 %v3051
        %3559 = vmatpush.bf16.msra.mxu0 %v3050
        %3560 = vmatpush.bf16.msra.mxu0 %v3049
        %3561 = vmatpush.bf16.msra.mxu0 %v3048
        %3562 = vmatpush.bf16.msra.mxu0 %v3047
        %3563 = vmatpush.bf16.msra.mxu0 %v3046
        %3564 = vmatpush.bf16.msra.mxu0 %v3045
        %3565 = vmatmul.bf16.gmra.mxu0 %v2643
        %v3566 = vpop.f32.mrf.mxu0
        %v3567 = vadd.f32 %v3513, %v3566
        %v3568 = vpop.f32.mrf.mxu0
        %v3569 = vadd.f32 %v3515, %v3568
        %3570 = vmatmul.bf16.gmra.mxu0 %v2646
        %v3571 = vpop.f32.mrf.mxu0
        %v3572 = vadd.f32 %v3518, %v3571
        %v3573 = vpop.f32.mrf.mxu0
        %v3574 = vadd.f32 %v3520, %v3573
        %3575 = vmatmul.bf16.gmra.mxu0 %v2649
        %v3576 = vpop.f32.mrf.mxu0
        %v3577 = vadd.f32 %v3523, %v3576
        %v3578 = vpop.f32.mrf.mxu0
        %v3579 = vadd.f32 %v3525, %v3578
        %3580 = vmatmul.bf16.gmra.mxu0 %v2652
        %v3581 = vpop.f32.mrf.mxu0
        %v3582 = vadd.f32 %v3528, %v3581
        %v3583 = vpop.f32.mrf.mxu0
        %v3584 = vadd.f32 %v3530, %v3583
        %3585 = vmatmul.bf16.gmra.mxu0 %v2655
        %v3586 = vpop.f32.mrf.mxu0
        %v3587 = vadd.f32 %v3533, %v3586
        %v3588 = vpop.f32.mrf.mxu0
        %v3589 = vadd.f32 %v3535, %v3588
        %3590 = vmatmul.bf16.gmra.mxu0 %v2658
        %v3591 = vpop.f32.mrf.mxu0
        %v3592 = vadd.f32 %v3538, %v3591
        %v3593 = vpop.f32.mrf.mxu0
        %v3594 = vadd.f32 %v3540, %v3593
        %3595 = vmatmul.bf16.gmra.mxu0 %v2661
        %v3596 = vpop.f32.mrf.mxu0
        %v3597 = vadd.f32 %v3543, %v3596
        %v3598 = vpop.f32.mrf.mxu0
        %v3599 = vadd.f32 %v3545, %v3598
        %3600 = vmatmul.bf16.gmra.mxu0 %v2688
        %v3601 = vpop.f32.mrf.mxu0
        %v3602 = vadd.f32 %v3548, %v3601
        %v3603 = vpop.f32.mrf.mxu0
        %v3604 = vadd.f32 %v3550, %v3603
        %3605 = vmatmul.bf16.gmra.mxu0 %v1607
        %v3606 = vpop.f32.mrf.mxu0
        %v3607 = vadd.f32 %v3553, %v3606
        %v3608 = vpop.f32.mrf.mxu0
        %v3609 = vadd.f32 %v3555, %v3608
        %3610 = vdwg.mxu0
        %v3611 = vmax.f32 %v3567, 0.0
        %v3612 = vmax.f32 %v3569, 0.0
        %v3613 = vmax.f32 %v3572, 0.0
        %v3614 = vmax.f32 %v3574, 0.0
        %v3615 = vmax.f32 %v3577, 0.0
        %v3616 = vmax.f32 %v3579, 0.0
        %v3617 = vmax.f32 %v3582, 0.0
        %v3618 = vmax.f32 %v3584, 0.0
        %v3619 = vmax.f32 %v3587, 0.0
        %v3620 = vmax.f32 %v3589, 0.0
        %v3621 = vmax.f32 %v3592, 0.0
        %v3622 = vmax.f32 %v3594, 0.0
        %v3623 = vmax.f32 %v3597, 0.0
        %v3624 = vmax.f32 %v3599, 0.0
        %v3625 = vmax.f32 %v3602, 0.0
        %v3626 = vmax.f32 %v3604, 0.0
        %v3627 = vmax.f32 %v3607, 0.0
        %v3628 = vmax.f32 %v3609, 0.0
        %3635 = vrot.lane.b32.xlu0 %v572, 96
        %v3636 = vpop.permute.xlu0 %3635
        %3637 = vrot.lane.b32.xlu0 %v574, 96
        %v3638 = vpop.permute.xlu0 %3637
        %3639 = vrot.lane.b32.xlu0 %v577, 96
        %v3640 = vpop.permute.xlu0 %3639
        %3641 = vrot.lane.b32.xlu0 %v579, 96
        %v3642 = vpop.permute.xlu0 %3641
        %3643 = vrot.lane.b32.xlu0 %v582, 96
        %v3644 = vpop.permute.xlu0 %3643
        %3645 = vrot.lane.b32.xlu0 %v584, 96
        %v3646 = vpop.permute.xlu0 %3645
        %3647 = vrot.lane.b32.xlu0 %v592, 96
        %v3648 = vpop.permute.xlu0 %3647
        %3649 = vrot.lane.b32.xlu0 %v594, 96
        %v3650 = vpop.permute.xlu0 %3649
        %3651 = vrot.lane.b32.xlu0 %v597, 96
        %v3652 = vpop.permute.xlu0 %3651
        %3653 = vrot.lane.b32.xlu0 %v599, 96
        %v3654 = vpop.permute.xlu0 %3653
        %3655 = vrot.lane.b32.xlu0 %v602, 96
        %v3656 = vpop.permute.xlu0 %3655
        %3657 = vrot.lane.b32.xlu0 %v604, 96
        %v3658 = vpop.permute.xlu0 %3657
        %3659 = vrot.lane.b32.xlu0 %v612, 96
        %v3660 = vpop.permute.xlu0 %3659
        %3661 = vrot.lane.b32.xlu0 %v614, 96
        %v3662 = vpop.permute.xlu0 %3661
        %v3677 = vadd.f32 %v3611, %v3636
        %v3678 = vadd.f32 %v3612, %v3638
        %v3679 = vadd.f32 %v3613, %v3640
        %v3680 = vadd.f32 %v3614, %v3642
        %v3681 = vadd.f32 %v3615, %v3644
        %v3682 = vadd.f32 %v3616, %v3646
        %v3683 = vadd.f32 %v3617, %v635
        %v3684 = vadd.f32 %v3618, %v637
        %v3685 = vadd.f32 %v3619, %v3648
        %v3686 = vadd.f32 %v3620, %v3650
        %v3687 = vadd.f32 %v3621, %v3652
        %v3688 = vadd.f32 %v3622, %v3654
        %v3689 = vadd.f32 %v3623, %v3656
        %v3690 = vadd.f32 %v3624, %v3658
        %v3691 = vadd.f32 %v3625, %v659
        %v3692 = vadd.f32 %v3626, %v661
        %v3693 = vadd.f32 %v3627, %v3660
        %v3694 = vadd.f32 %v3628, %v3662
        %3695 = vst.msk [vmem:[%s475] sm:$0xff] %vm534, %v3677
        %3696 = vst.msk [vmem:[%s475 + $0x8] sm:$0xff] %vm534, %v3678
        %3697 = vst.msk [vmem:[%s475 + $0x10] sm:$0xff] %vm534, %v3679
        %3698 = vst.msk [vmem:[%s475 + $0x18] sm:$0xff] %vm534, %v3680
        %3699 = vst.msk [vmem:[%s475 + $0x20] sm:$0xff] %vm534, %v3681
        %3700 = vst.msk [vmem:[%s475 + $0x28] sm:$0xff] %vm534, %v3682
        %3701 = vst.msk [vmem:[%s475 + $0x30] sm:$0xff] %vm534, %v3683
        %3702 = vst.msk [vmem:[%s475 + $0x38] sm:$0xff] %vm534, %v3684
        %3703 = vst.msk [vmem:[%s475 + $0x40] sm:$0xff] %vm534, %v3685
        %3704 = vst.msk [vmem:[%s475 + $0x48] sm:$0xff] %vm534, %v3686
        %3705 = vst.msk [vmem:[%s475 + $0x50] sm:$0xff] %vm534, %v3687
        %3706 = vst.msk [vmem:[%s475 + $0x58] sm:$0xff] %vm534, %v3688
        %3707 = vst.msk [vmem:[%s475 + $0x60] sm:$0xff] %vm534, %v3689
        %3708 = vst.msk [vmem:[%s475 + $0x68] sm:$0xff] %vm534, %v3690
        %3709 = vst.msk [vmem:[%s475 + $0x70] sm:$0xff] %vm534, %v3691
        %3710 = vst.msk [vmem:[%s475 + $0x78] sm:$0xff] %vm534, %v3692
        %3711 = vst.msk [vmem:[%s475 + $0x80] sm:$0xff] %vm534, %v3693
        %3712 = vst.msk [vmem:[%s475 + $0x88] sm:$0xff] %vm534, %v3694
        %s3713 = sand.u32 %s340, 1
        %s3714 = scalar_lea.sflag [#allocation3], %s3713
        %s3715 = sand.u32 %s340, 1
        %s3716 = smul.addr %s3715, 144
        %s3717 = scalar_lea.vmem [#allocation2], %s3716
        // Predicated region
        $region77: #{gprb_pallas.3} parent=75 // pred_check
          %p3718 = pneg %p350
        $region78: #{gprb_pallas.3} parent=75 // pred_check_branch
          %3720 = sbr.rel (%p3718) target = $region80
        $region79: #{gprb_pallas.3} parent=75 // pred_region
          %3722 = vsyncadd %s3714, 0
          %s3723 = smul.addr %s28, 18
          %s3724 = smul.addr %s3723, 8
          %s3725 = scalar_lea.hbm %s14, %s3724
          %s3726 = sshll.u32 %s3717, 4
          %s3727 = int_to_ptr.vmem [resolvable:$true] %s3726
          %s3728 = sshll.u32 %s3725, 4
          %s3729 = int_to_ptr.hbm [resolvable:$true] %s3728
          %3734 = dma.vmem_to_hbm [thread:$0]  %s3727, 2304, %s3729, %s3714, 128, 128, 8
        $region80: #{gprb_pallas.3} parent=75 // pred_fallthru
          _
      $region76: #{gprb_pallas.3} parent=5 // pred_fallthru
        _
      %p3735 = scmp.le.s32.totalorder 2, %s23
      // Predicated region
      $region81: #{gprb_pallas.3} parent=5 // pred_check
        %p3736 = pneg %p3735
      $region82: #{gprb_pallas.3} parent=5 // pred_check_branch
        %3738 = sbr.rel (%p3736) target = $region84
      $region83: #{gprb_pallas.3} parent=5 // pred_region
        %s3739 = ssub.s32 %s23, 2
        // Predicated region
        $region85: #{gprb_pallas.3} parent=83 // pred_check
          %p3740 = pneg %p356
        $region86: #{gprb_pallas.3} parent=83 // pred_check_branch
          %3742 = sbr.rel (%p3740) target = $region88
        $region87: #{gprb_pallas.3} parent=83 // pred_region
          %s3743 = sand.u32 %s341, 1
          %s3744 = scalar_lea.sflag [#allocation3], %s3743
          %s3745 = sand.u32 %s341, 1
          %s3746 = smul.addr %s3745, 144
          %s3747 = scalar_lea.vmem [#allocation2], %s3746
          %3749 = dma.done %s3744, 2304
        $region88: #{gprb_pallas.3} parent=83 // pred_fallthru
          _
      $region84: #{gprb_pallas.3} parent=5 // pred_fallthru
        _
    $region6: #{gprb_pallas.3} parent=1 // loop_footer
      %s27 = sadd.s32 1, %s23
    $region7: #{gprb_pallas.3} parent=1 // loop_footer_branch
      %22 = sbr.rel target = $region3
    $region8: #{gprb_pallas.3} parent=1 // loop_exit
      _
    %3750 = vsyncpa [#allocation3], 1
    %s3751 = scalar_lea.sflag [#allocation3], 1
    %3752 = vsyncpa %s3751, 1

// kernel: gprb_pallas.2
$region0: #{gprb_pallas.2}
  #allocation0 [shape = 'u32[]', space=smem, size = 0x4, offset = 0x4, fixed_abs, tag = 'smem constant byte address 0x4 - core index']
  #allocation1 [shape = 'u32[72,128]{1,0:T(1,128)}', space=vmem, size = 0x9000, scoped, tag = 'internal scratch']
  %s0 = inlined_call_operand.vmem [shape: f32[2,16,32,9], index: 0, kind: input, shape index: {}]
  %s1 = inlined_call_operand.vmem [shape: bf16[32,32], index: 1, kind: input, shape index: {}]
  %s2 = inlined_call_operand.vmem [shape: f32[32,1], index: 2, kind: input, shape index: {}]
  %s3 = inlined_call_operand.vmem [shape: bf16[81,36], index: 3, kind: input, shape index: {}]
  %s4 = inlined_call_operand.vmem [shape: f32[1,36], index: 4, kind: input, shape index: {}]
  %s5 = inlined_call_operand.vmem [shape: bf16[324,9], index: 5, kind: input, shape index: {}]
  %s6 = inlined_call_operand.vmem [shape: f32[1,9], index: 6, kind: input, shape index: {}]
  %s7 = inlined_call_operand.vmem [shape: f32[2,512,9], index: 7, kind: output, shape index: {}]
  %s8 = sld [smem:[#allocation0]]
  $region61: #{gprb_pallas.2} parent=0
    _
  %s10 = ssub.s32 1, %s8
  %s11 = scalar_select 0, %s10, %s8
  loop: start=0, step=1, limit=4
  $region2: #{gprb_pallas.2} parent=0 // loop_pre_header
    _
  $region3: #{gprb_pallas.2} parent=0 // loop_header
    %s13 = sphi 0, %s17
    %p14 = scmp.ge.s32.totalorder %s13, 4
    %s23 = sphi 0, %s25
    %s26 = sphi 0, %s23
    %s27 = sphi 0, %s26
    %s43 = sphi 0, %s27
    %s47 = sphi 0, %s47
    %s49 = sphi 0, %s47
    %s50 = sphi 0, %s49
    %s64 = sphi 0, %s50
    %s68 = sphi 0, %s68
    %s70 = sphi 0, %s68
    %s71 = sphi 0, %s70
    %s85 = sphi 0, %s71
    %s89 = sphi 0, %s89
    %s91 = sphi 0, %s89
    %s92 = sphi 0, %s91
    %s106 = sphi 0, %s92
    %s110 = sphi 0, %s110
    %s112 = sphi 0, %s110
    %s113 = sphi 0, %s112
    %s127 = sphi 0, %s113
    %s131 = sphi 0, %s131
    %s133 = sphi 0, %s131
    %s134 = sphi 0, %s133
    %s148 = sphi 0, %s134
    %s152 = sphi 0, %s152
    %s154 = sphi 0, %s152
    %s155 = sphi 0, %s154
    %s169 = sphi 0, %s155
    %s175 = sphi 0, %s177
    %s178 = sphi 0, %s175
    %s179 = sphi 0, %s178
    %s195 = sphi 0, %s179
  $region4: #{gprb_pallas.2} parent=0 // loop_header_branch
    %16 = sbr.rel (%p14) target = $region8
  $region5: #{gprb_pallas.2} parent=0 // loop_body
    %s18 = ssub.s32 %s13, 1
    %s19 = ssub.s32 %s13, 2
    %s20 = sadd.s32 %s13, 1
    %s21 = ssub.s32 %s13, %s20
    %p22 = scmp.eq.s32.totalorder %s21, 0
    %s24 = sadd.s32 %s23, 1
    %s25 = scalar_select %p22, %s23, %s24
    %p28 = pneg %p22
    %p29 = scmp.eq.s32.totalorder %s13, 1
    %p30 = por %p28, %p29
    %p31 = scmp.ne.s32.totalorder %s23, %s26
    %p32 = scmp.eq.s32.totalorder %s13, 0
    %p33 = por %p31, %p32
    %p34 = scmp.ne.s32.totalorder %s23, %s26
    %p35 = scmp.eq.s32.totalorder %s18, 1
    %p36 = por %p34, %p35
    %p37 = scmp.ne.s32.totalorder %s26, %s27
    %p38 = scmp.eq.s32.totalorder %s18, 0
    %p39 = por %p37, %p38
    %p40 = scmp.ne.s32.totalorder %s26, %s27
    %p41 = scmp.eq.s32.totalorder %s19, 1
    %p42 = por %p40, %p41
    %p44 = scmp.ne.s32.totalorder %s27, %s43
    %p45 = scmp.eq.s32.totalorder %s19, 0
    %p46 = por %p44, %p45
    %s48 = sadd.s32 %s47, 1
    %p51 = scmp.eq.s32.totalorder %s13, 1
    %p52 = scmp.ne.s32.totalorder %s47, %s49
    %p53 = scmp.eq.s32.totalorder %s13, 0
    %p54 = por %p52, %p53
    %p55 = scmp.ne.s32.totalorder %s47, %s49
    %p56 = scmp.eq.s32.totalorder %s18, 1
    %p57 = por %p55, %p56
    %p58 = scmp.ne.s32.totalorder %s49, %s50
    %p59 = scmp.eq.s32.totalorder %s18, 0
    %p60 = por %p58, %p59
    %p61 = scmp.ne.s32.totalorder %s49, %s50
    %p62 = scmp.eq.s32.totalorder %s19, 1
    %p63 = por %p61, %p62
    %p65 = scmp.ne.s32.totalorder %s50, %s64
    %p66 = scmp.eq.s32.totalorder %s19, 0
    %p67 = por %p65, %p66
    %s69 = sadd.s32 %s68, 1
    %p72 = scmp.eq.s32.totalorder %s13, 1
    %p73 = scmp.ne.s32.totalorder %s68, %s70
    %p74 = scmp.eq.s32.totalorder %s13, 0
    %p75 = por %p73, %p74
    %p76 = scmp.ne.s32.totalorder %s68, %s70
    %p77 = scmp.eq.s32.totalorder %s18, 1
    %p78 = por %p76, %p77
    %p79 = scmp.ne.s32.totalorder %s70, %s71
    %p80 = scmp.eq.s32.totalorder %s18, 0
    %p81 = por %p79, %p80
    %p82 = scmp.ne.s32.totalorder %s70, %s71
    %p83 = scmp.eq.s32.totalorder %s19, 1
    %p84 = por %p82, %p83
    %p86 = scmp.ne.s32.totalorder %s71, %s85
    %p87 = scmp.eq.s32.totalorder %s19, 0
    %p88 = por %p86, %p87
    %s90 = sadd.s32 %s89, 1
    %p93 = scmp.eq.s32.totalorder %s13, 1
    %p94 = scmp.ne.s32.totalorder %s89, %s91
    %p95 = scmp.eq.s32.totalorder %s13, 0
    %p96 = por %p94, %p95
    %p97 = scmp.ne.s32.totalorder %s89, %s91
    %p98 = scmp.eq.s32.totalorder %s18, 1
    %p99 = por %p97, %p98
    %p100 = scmp.ne.s32.totalorder %s91, %s92
    %p101 = scmp.eq.s32.totalorder %s18, 0
    %p102 = por %p100, %p101
    %p103 = scmp.ne.s32.totalorder %s91, %s92
    %p104 = scmp.eq.s32.totalorder %s19, 1
    %p105 = por %p103, %p104
    %p107 = scmp.ne.s32.totalorder %s92, %s106
    %p108 = scmp.eq.s32.totalorder %s19, 0
    %p109 = por %p107, %p108
    %s111 = sadd.s32 %s110, 1
    %p114 = scmp.eq.s32.totalorder %s13, 1
    %p115 = scmp.ne.s32.totalorder %s110, %s112
    %p116 = scmp.eq.s32.totalorder %s13, 0
    %p117 = por %p115, %p116
    %p118 = scmp.ne.s32.totalorder %s110, %s112
    %p119 = scmp.eq.s32.totalorder %s18, 1
    %p120 = por %p118, %p119
    %p121 = scmp.ne.s32.totalorder %s112, %s113
    %p122 = scmp.eq.s32.totalorder %s18, 0
    %p123 = por %p121, %p122
    %p124 = scmp.ne.s32.totalorder %s112, %s113
    %p125 = scmp.eq.s32.totalorder %s19, 1
    %p126 = por %p124, %p125
    %p128 = scmp.ne.s32.totalorder %s113, %s127
    %p129 = scmp.eq.s32.totalorder %s19, 0
    %p130 = por %p128, %p129
    %s132 = sadd.s32 %s131, 1
    %p135 = scmp.eq.s32.totalorder %s13, 1
    %p136 = scmp.ne.s32.totalorder %s131, %s133
    %p137 = scmp.eq.s32.totalorder %s13, 0
    %p138 = por %p136, %p137
    %p139 = scmp.ne.s32.totalorder %s131, %s133
    %p140 = scmp.eq.s32.totalorder %s18, 1
    %p141 = por %p139, %p140
    %p142 = scmp.ne.s32.totalorder %s133, %s134
    %p143 = scmp.eq.s32.totalorder %s18, 0
    %p144 = por %p142, %p143
    %p145 = scmp.ne.s32.totalorder %s133, %s134
    %p146 = scmp.eq.s32.totalorder %s19, 1
    %p147 = por %p145, %p146
    %p149 = scmp.ne.s32.totalorder %s134, %s148
    %p150 = scmp.eq.s32.totalorder %s19, 0
    %p151 = por %p149, %p150
    %s153 = sadd.s32 %s152, 1
    %p156 = scmp.eq.s32.totalorder %s13, 1
    %p157 = scmp.ne.s32.totalorder %s152, %s154
    %p158 = scmp.eq.s32.totalorder %s13, 0
    %p159 = por %p157, %p158
    %p160 = scmp.ne.s32.totalorder %s152, %s154
    %p161 = scmp.eq.s32.totalorder %s18, 1
    %p162 = por %p160, %p161
    %p163 = scmp.ne.s32.totalorder %s154, %s155
    %p164 = scmp.eq.s32.totalorder %s18, 0
    %p165 = por %p163, %p164
    %p166 = scmp.ne.s32.totalorder %s154, %s155
    %p167 = scmp.eq.s32.totalorder %s19, 1
    %p168 = por %p166, %p167
    %p170 = scmp.ne.s32.totalorder %s155, %s169
    %p171 = scmp.eq.s32.totalorder %s19, 0
    %p172 = por %p170, %p171
    %s173 = ssub.s32 %s13, %s20
    %p174 = scmp.eq.s32.totalorder %s173, 0
    %s176 = sadd.s32 %s175, 1
    %s177 = scalar_select %p174, %s175, %s176
    %p180 = pneg %p174
    %p181 = scmp.eq.s32.totalorder %s13, 1
    %p182 = por %p180, %p181
    %p183 = scmp.ne.s32.totalorder %s175, %s178
    %p184 = scmp.eq.s32.totalorder %s13, 0
    %p185 = por %p183, %p184
    %p186 = scmp.ne.s32.totalorder %s175, %s178
    %p187 = scmp.eq.s32.totalorder %s18, 1
    %p188 = por %p186, %p187
    %p189 = scmp.ne.s32.totalorder %s178, %s179
    %p190 = scmp.eq.s32.totalorder %s18, 0
    %p191 = por %p189, %p190
    %p192 = scmp.ne.s32.totalorder %s178, %s179
    %p193 = scmp.eq.s32.totalorder %s19, 1
    %p194 = por %p192, %p193
    %p196 = scmp.ne.s32.totalorder %s179, %s195
    %p197 = scmp.eq.s32.totalorder %s19, 0
    %p198 = por %p196, %p197
    %p199 = scmp.le.s32.totalorder 1, %s13
    %p200 = scmp.lt.s32.totalorder %s13, 3
    %p201 = pnand %p199, %p200
    %p202 = pneg %p201
    // Predicated region
    $region9: #{gprb_pallas.2} parent=5 // pred_check
      _
    $region10: #{gprb_pallas.2} parent=5 // pred_check_branch
      %204 = sbr.rel (%p201) target = $region12
    $region11: #{gprb_pallas.2} parent=5 // pred_region
      %s205 = ssub.s32 %s13, 1
      // Predicated region
      $region13: #{gprb_pallas.2} parent=11 // pred_check
        %p206 = pneg %p60
      $region14: #{gprb_pallas.2} parent=11 // pred_check_branch
        %208 = sbr.rel (%p206) target = $region16
      $region15: #{gprb_pallas.2} parent=11 // pred_region
        _
      $region16: #{gprb_pallas.2} parent=11 // pred_fallthru
        _
      // Predicated region
      $region17: #{gprb_pallas.2} parent=11 // pred_check
        %p209 = pneg %p81
      $region18: #{gprb_pallas.2} parent=11 // pred_check_branch
        %211 = sbr.rel (%p209) target = $region20
      $region19: #{gprb_pallas.2} parent=11 // pred_region
        _
      $region20: #{gprb_pallas.2} parent=11 // pred_fallthru
        _
      // Predicated region
      $region21: #{gprb_pallas.2} parent=11 // pred_check
        %p212 = pneg %p102
      $region22: #{gprb_pallas.2} parent=11 // pred_check_branch
        %214 = sbr.rel (%p212) target = $region24
      $region23: #{gprb_pallas.2} parent=11 // pred_region
        _
      $region24: #{gprb_pallas.2} parent=11 // pred_fallthru
        _
      // Predicated region
      $region25: #{gprb_pallas.2} parent=11 // pred_check
        %p215 = pneg %p123
      $region26: #{gprb_pallas.2} parent=11 // pred_check_branch
        %217 = sbr.rel (%p215) target = $region28
      $region27: #{gprb_pallas.2} parent=11 // pred_region
        _
      $region28: #{gprb_pallas.2} parent=11 // pred_fallthru
        _
      // Predicated region
      $region29: #{gprb_pallas.2} parent=11 // pred_check
        %p218 = pneg %p144
      $region30: #{gprb_pallas.2} parent=11 // pred_check_branch
        %220 = sbr.rel (%p218) target = $region32
      $region31: #{gprb_pallas.2} parent=11 // pred_region
        _
      $region32: #{gprb_pallas.2} parent=11 // pred_fallthru
        _
      // Predicated region
      $region33: #{gprb_pallas.2} parent=11 // pred_check
        %p221 = pneg %p165
      $region34: #{gprb_pallas.2} parent=11 // pred_check_branch
        %223 = sbr.rel (%p221) target = $region36
      $region35: #{gprb_pallas.2} parent=11 // pred_region
        _
      $region36: #{gprb_pallas.2} parent=11 // pred_fallthru
        _
    $region12: #{gprb_pallas.2} parent=5 // pred_fallthru
      _
    %p224 = scmp.lt.s32.totalorder %s13, 2
    // Predicated region
    $region37: #{gprb_pallas.2} parent=5 // pred_check
      %p225 = pneg %p224
    $region38: #{gprb_pallas.2} parent=5 // pred_check_branch
      %227 = sbr.rel (%p225) target = $region40
    $region39: #{gprb_pallas.2} parent=5 // pred_region
      // Predicated region
      $region41: #{gprb_pallas.2} parent=39 // pred_check
        %p228 = pneg %p33
      $region42: #{gprb_pallas.2} parent=39 // pred_check_branch
        %230 = sbr.rel (%p228) target = $region44
      $region43: #{gprb_pallas.2} parent=39 // pred_region
        %p231 = scmp.lt.s32.totalorder %s13, 1
        %s232 = scalar_select %p231, %s13, 1
        %s233 = smul.addr %s232, 64
        %s234 = smul.addr %s233, 8
        %s235 = scalar_lea.vmem %s0, %s234
      $region44: #{gprb_pallas.2} parent=39 // pred_fallthru
        _
    $region40: #{gprb_pallas.2} parent=5 // pred_fallthru
      _
    %p236 = scmp.le.s32.totalorder 1, %s13
    %p237 = scmp.lt.s32.totalorder %s13, 3
    %p238 = pnand %p236, %p237
    %p239 = pneg %p238
    // Predicated region
    $region45: #{gprb_pallas.2} parent=5 // pred_check
      _
    $region46: #{gprb_pallas.2} parent=5 // pred_check_branch
      %241 = sbr.rel (%p238) target = $region48
    $region47: #{gprb_pallas.2} parent=5 // pred_region
      %s242 = ssub.s32 %s13, 1
      %p243 = scmp.lt.s32.totalorder %s18, 1
      %s244 = scalar_select %p243, %s18, 1
      %s245 = smul.addr %s244, 64
      %s246 = smul.addr %s245, 8
      %s247 = scalar_lea.vmem %s0, %s246
      %p248 = pneg %p39
      %p249 = pneg %p36
      %p250 = pneg %p60
      %p251 = pneg %p57
      %p252 = pneg %p81
      %p253 = pneg %p78
      %p254 = pneg %p102
      %p255 = pneg %p99
      %p256 = pneg %p123
      %p257 = pneg %p120
      %p258 = pneg %p144
      %p259 = pneg %p141
      %p260 = pneg %p165
      %p261 = pneg %p162
      %p262 = pneg %p191
      %p263 = pneg %p188
      %p264 = scmp.lt.s32.totalorder %s18, 1
      %s265 = scalar_select %p264, %s18, 1
      %s266 = smul.addr %s265, 64
      %s267 = smul.addr %s266, 8
      %s268 = scalar_lea.vmem %s7, %s267
      %p269 = scmp.lt.s32.totalorder %s18, 1
      %s270 = scalar_select %p269, %s18, 1
      %s271 = smul.addr %s270, 64
      %s272 = smul.addr %s271, 8
      %s273 = scalar_lea.vmem %s0, %s272
      %p274 = scmp.lt.s32.totalorder %s18, 1
      %s275 = scalar_select %p274, %s18, 1
      %s276 = smul.addr %s275, 64
      %s277 = smul.addr %s276, 8
      %s278 = scalar_lea.vmem %s7, %s277
      %v280 = vld [vmem:[%s273] sm:$0xff]
      %v281 = vld [vmem:[%s273 + $0x8] sm:$0xff]
      %v282 = vld [vmem:[%s273 + $0x10] sm:$0xff]
      %v283 = vld [vmem:[%s273 + $0x18] sm:$0xff]
      %v284 = vld [vmem:[%s273 + $0x20] sm:$0xff]
      %v285 = vld [vmem:[%s273 + $0x28] sm:$0xff]
      %v286 = vld [vmem:[%s273 + $0x30] sm:$0xff]
      %v287 = vld [vmem:[%s273 + $0x38] sm:$0xff]
      %v288 = vld [vmem:[%s273 + $0x40] sm:$0xff]
      %v289 = vld [vmem:[%s273 + $0x48] sm:$0xff]
      %v290 = vld [vmem:[%s273 + $0x50] sm:$0xff]
      %v291 = vld [vmem:[%s273 + $0x58] sm:$0xff]
      %v292 = vld [vmem:[%s273 + $0x60] sm:$0xff]
      %v293 = vld [vmem:[%s273 + $0x68] sm:$0xff]
      %v294 = vld [vmem:[%s273 + $0x70] sm:$0xff]
      %v295 = vld [vmem:[%s273 + $0x78] sm:$0xff]
      %v296 = vld [vmem:[%s273 + $0x80] sm:$0xff]
      %v297 = vld [vmem:[%s273 + $0x88] sm:$0xff]
      %v298 = vld [vmem:[%s273 + $0x90] sm:$0xff]
      %v299 = vld [vmem:[%s273 + $0x98] sm:$0xff]
      %v300 = vld [vmem:[%s273 + $0xa0] sm:$0xff]
      %v301 = vld [vmem:[%s273 + $0xa8] sm:$0xff]
      %v302 = vld [vmem:[%s273 + $0xb0] sm:$0xff]
      %v303 = vld [vmem:[%s273 + $0xb8] sm:$0xff]
      %v304 = vld [vmem:[%s273 + $0xc0] sm:$0xff]
      %v305 = vld [vmem:[%s273 + $0xc8] sm:$0xff]
      %v306 = vld [vmem:[%s273 + $0xd0] sm:$0xff]
      %v307 = vld [vmem:[%s273 + $0xd8] sm:$0xff]
      %v308 = vld [vmem:[%s273 + $0xe0] sm:$0xff]
      %v309 = vld [vmem:[%s273 + $0xe8] sm:$0xff]
      %v310 = vld [vmem:[%s273 + $0xf0] sm:$0xff]
      %v311 = vld [vmem:[%s273 + $0xf8] sm:$0xff]
      %v312 = vld [vmem:[%s273 + $0x100] sm:$0xff]
      %v313 = vld [vmem:[%s273 + $0x108] sm:$0xff]
      %v314 = vld [vmem:[%s273 + $0x110] sm:$0xff]
      %v315 = vld [vmem:[%s273 + $0x118] sm:$0xff]
      %v316 = vld [vmem:[%s273 + $0x120] sm:$0xff]
      %v317 = vld [vmem:[%s273 + $0x128] sm:$0xff]
      %v318 = vld [vmem:[%s273 + $0x130] sm:$0xff]
      %v319 = vld [vmem:[%s273 + $0x138] sm:$0xff]
      %v320 = vld [vmem:[%s273 + $0x140] sm:$0xff]
      %v321 = vld [vmem:[%s273 + $0x148] sm:$0xff]
      %v322 = vld [vmem:[%s273 + $0x150] sm:$0xff]
      %v323 = vld [vmem:[%s273 + $0x158] sm:$0xff]
      %v324 = vld [vmem:[%s273 + $0x160] sm:$0xff]
      %v325 = vld [vmem:[%s273 + $0x168] sm:$0xff]
      %v326 = vld [vmem:[%s273 + $0x170] sm:$0xff]
      %v327 = vld [vmem:[%s273 + $0x178] sm:$0xff]
      %v328 = vld [vmem:[%s273 + $0x180] sm:$0xff]
      %v329 = vld [vmem:[%s273 + $0x188] sm:$0xff]
      %v330 = vld [vmem:[%s273 + $0x190] sm:$0xff]
      %v331 = vld [vmem:[%s273 + $0x198] sm:$0xff]
      %v332 = vld [vmem:[%s273 + $0x1a0] sm:$0xff]
      %v333 = vld [vmem:[%s273 + $0x1a8] sm:$0xff]
      %v334 = vld [vmem:[%s273 + $0x1b0] sm:$0xff]
      %v335 = vld [vmem:[%s273 + $0x1b8] sm:$0xff]
      %v336 = vld [vmem:[%s273 + $0x1c0] sm:$0xff]
      %v337 = vld [vmem:[%s273 + $0x1c8] sm:$0xff]
      %v338 = vld [vmem:[%s273 + $0x1d0] sm:$0xff]
      %v339 = vld [vmem:[%s273 + $0x1d8] sm:$0xff]
      %v340 = vld [vmem:[%s273 + $0x1e0] sm:$0xff]
      %v341 = vld [vmem:[%s273 + $0x1e8] sm:$0xff]
      %v342 = vld [vmem:[%s273 + $0x1f0] sm:$0xff]
      %v343 = vld [vmem:[%s273 + $0x1f8] sm:$0xff]
      %v344 = vpack.c.bf16 %v280, %v280
      %v345 = vpack.c.bf16 %v281, %v281
      %v346 = vpack.c.bf16 %v282, %v282
      %v347 = vpack.c.bf16 %v283, %v283
      %v348 = vpack.c.bf16 %v284, %v284
      %v349 = vpack.c.bf16 %v285, %v285
      %v350 = vpack.c.bf16 %v286, %v286
      %v351 = vpack.c.bf16 %v287, %v287
      %v352 = vpack.c.bf16 %v288, %v288
      %v353 = vpack.c.bf16 %v289, %v289
      %v354 = vpack.c.bf16 %v290, %v290
      %v355 = vpack.c.bf16 %v291, %v291
      %v356 = vpack.c.bf16 %v292, %v292
      %v357 = vpack.c.bf16 %v293, %v293
      %v358 = vpack.c.bf16 %v294, %v294
      %v359 = vpack.c.bf16 %v295, %v295
      %v360 = vpack.c.bf16 %v296, %v296
      %v361 = vpack.c.bf16 %v297, %v297
      %v362 = vpack.c.bf16 %v298, %v298
      %v363 = vpack.c.bf16 %v299, %v299
      %v364 = vpack.c.bf16 %v300, %v300
      %v365 = vpack.c.bf16 %v301, %v301
      %v366 = vpack.c.bf16 %v302, %v302
      %v367 = vpack.c.bf16 %v303, %v303
      %v368 = vpack.c.bf16 %v304, %v304
      %v369 = vpack.c.bf16 %v305, %v305
      %v370 = vpack.c.bf16 %v306, %v306
      %v371 = vpack.c.bf16 %v307, %v307
      %v372 = vpack.c.bf16 %v308, %v308
      %v373 = vpack.c.bf16 %v309, %v309
      %v374 = vpack.c.bf16 %v310, %v310
      %v375 = vpack.c.bf16 %v311, %v311
      %v376 = vpack.c.bf16 %v312, %v312
      %v377 = vpack.c.bf16 %v313, %v313
      %v378 = vpack.c.bf16 %v314, %v314
      %v379 = vpack.c.bf16 %v315, %v315
      %v380 = vpack.c.bf16 %v316, %v316
      %v381 = vpack.c.bf16 %v317, %v317
      %v382 = vpack.c.bf16 %v318, %v318
      %v383 = vpack.c.bf16 %v319, %v319
      %v384 = vpack.c.bf16 %v320, %v320
      %v385 = vpack.c.bf16 %v321, %v321
      %v386 = vpack.c.bf16 %v322, %v322
      %v387 = vpack.c.bf16 %v323, %v323
      %v388 = vpack.c.bf16 %v324, %v324
      %v389 = vpack.c.bf16 %v325, %v325
      %v390 = vpack.c.bf16 %v326, %v326
      %v391 = vpack.c.bf16 %v327, %v327
      %v392 = vpack.c.bf16 %v328, %v328
      %v393 = vpack.c.bf16 %v329, %v329
      %v394 = vpack.c.bf16 %v330, %v330
      %v395 = vpack.c.bf16 %v331, %v331
      %v396 = vpack.c.bf16 %v332, %v332
      %v397 = vpack.c.bf16 %v333, %v333
      %v398 = vpack.c.bf16 %v334, %v334
      %v399 = vpack.c.bf16 %v335, %v335
      %v400 = vpack.c.bf16 %v336, %v336
      %v401 = vpack.c.bf16 %v337, %v337
      %v402 = vpack.c.bf16 %v338, %v338
      %v403 = vpack.c.bf16 %v339, %v339
      %v404 = vpack.c.bf16 %v340, %v340
      %v405 = vpack.c.bf16 %v341, %v341
      %v406 = vpack.c.bf16 %v342, %v342
      %v407 = vpack.c.bf16 %v343, %v343
      %v408 = vld [vmem:[%s1] sm:$0xf]
      %v409 = vld [vmem:[%s1 + $0x4] sm:$0xf]
      %v410 = vld [vmem:[%s1 + $0x8] sm:$0xf]
      %v411 = vld [vmem:[%s1 + $0xc] sm:$0xf]
      %v412 = vld [vmem:[%s2] sm:$0xff]
      %v413 = vld [vmem:[%s2 + $0x8] sm:$0xff]
      %v414 = vld [vmem:[%s2 + $0x10] sm:$0xff]
      %v415 = vld [vmem:[%s2 + $0x18] sm:$0xff]
      %417 = vset.pattern.permute.xlu0 0
      %418 = vperm.xlu0 %417, %v412
      %v419 = vpop.permute.xlu0 %418
      %422 = vset.pattern.permute.xlu0 0
      %423 = vperm.xlu0 %422, %v413
      %v424 = vpop.permute.xlu0 %423
      %427 = vset.pattern.permute.xlu0 0
      %428 = vperm.xlu0 %427, %v414
      %v429 = vpop.permute.xlu0 %428
      %432 = vset.pattern.permute.xlu0 0
      %433 = vperm.xlu0 %432, %v415
      %v434 = vpop.permute.xlu0 %433
      %v440 = vunpack.c.l.b16 %v408
      %v441 = vunpack.c.l.b16 %v409
      %v442 = vunpack.c.l.b16 %v410
      %v443 = vunpack.c.l.b16 %v411
      %v444 = vpack.c.b16 %v441, %v440
      %v445 = vpack.c.b16 %v443, %v442
      %v450 = vunpack.c.l.b16 %v344
      %v451 = vunpack.c.l.b16 %v345
      %v452 = vunpack.c.l.b16 %v346
      %v453 = vunpack.c.l.b16 %v347
      %v454 = vpack.c.b16 %v451, %v450
      %v455 = vpack.c.b16 %v453, %v452
      %vm458 = vcmask 261120
      %v460 = vsel %vm458, %v444, 0
      %v463 = vsel %vm458, %v445, 0
      %465 = vmatpush.bf16.msra.mxu0 0
      %466 = vmatpush.bf16.msra.mxu0 0
      %467 = vmatpush.bf16.msra.mxu0 0
      %468 = vmatpush.bf16.msra.mxu0 0
      %469 = vmatpush.bf16.msra.mxu0 0
      %470 = vmatpush.bf16.msra.mxu0 0
      %471 = vmatpush.bf16.msra.mxu0 %v455
      %472 = vmatpush.bf16.msra.mxu0 %v454
      %473 = vmatmul.bf16.gmra.mxu0 %v460
      %v474 = vpop.f32.mrf.mxu0
      %v475 = vadd.f32 %v419, %v474
      %v476 = vpop.f32.mrf.mxu0
      %v477 = vadd.f32 %v424, %v476
      %478 = vmatmul.bf16.gmra.mxu0 %v463
      %v479 = vpop.f32.mrf.mxu0
      %v480 = vadd.f32 %v429, %v479
      %v481 = vpop.f32.mrf.mxu0
      %v482 = vadd.f32 %v434, %v481
      %483 = vdwg.mxu0
      %v488 = vunpack.c.l.b16 %v348
      %v489 = vunpack.c.l.b16 %v349
      %v490 = vunpack.c.l.b16 %v350
      %v491 = vunpack.c.l.b16 %v351
      %v492 = vpack.c.b16 %v489, %v488
      %v493 = vpack.c.b16 %v491, %v490
      %496 = vmatpush.bf16.msra.mxu0 0
      %497 = vmatpush.bf16.msra.mxu0 0
      %498 = vmatpush.bf16.msra.mxu0 0
      %499 = vmatpush.bf16.msra.mxu0 0
      %500 = vmatpush.bf16.msra.mxu0 0
      %501 = vmatpush.bf16.msra.mxu0 0
      %502 = vmatpush.bf16.msra.mxu0 %v493
      %503 = vmatpush.bf16.msra.mxu0 %v492
      %504 = vmatmul.bf16.gmra.mxu0 %v460
      %v505 = vpop.f32.mrf.mxu0
      %v506 = vadd.f32 %v419, %v505
      %v507 = vpop.f32.mrf.mxu0
      %v508 = vadd.f32 %v424, %v507
      %509 = vmatmul.bf16.gmra.mxu0 %v463
      %v510 = vpop.f32.mrf.mxu0
      %v511 = vadd.f32 %v429, %v510
      %v512 = vpop.f32.mrf.mxu0
      %v513 = vadd.f32 %v434, %v512
      %514 = vdwg.mxu0
      %v519 = vunpack.c.l.b16 %v352
      %v520 = vunpack.c.l.b16 %v353
      %v521 = vunpack.c.l.b16 %v354
      %v522 = vunpack.c.l.b16 %v355
      %v523 = vpack.c.b16 %v520, %v519
      %v524 = vpack.c.b16 %v522, %v521
      %527 = vmatpush.bf16.msra.mxu0 0
      %528 = vmatpush.bf16.msra.mxu0 0
      %529 = vmatpush.bf16.msra.mxu0 0
      %530 = vmatpush.bf16.msra.mxu0 0
      %531 = vmatpush.bf16.msra.mxu0 0
      %532 = vmatpush.bf16.msra.mxu0 0
      %533 = vmatpush.bf16.msra.mxu0 %v524
      %534 = vmatpush.bf16.msra.mxu0 %v523
      %535 = vmatmul.bf16.gmra.mxu0 %v460
      %v536 = vpop.f32.mrf.mxu0
      %v537 = vadd.f32 %v419, %v536
      %v538 = vpop.f32.mrf.mxu0
      %v539 = vadd.f32 %v424, %v538
      %540 = vmatmul.bf16.gmra.mxu0 %v463
      %v541 = vpop.f32.mrf.mxu0
      %v542 = vadd.f32 %v429, %v541
      %v543 = vpop.f32.mrf.mxu0
      %v544 = vadd.f32 %v434, %v543
      %545 = vdwg.mxu0
      %v550 = vunpack.c.l.b16 %v356
      %v551 = vunpack.c.l.b16 %v357
      %v552 = vunpack.c.l.b16 %v358
      %v553 = vunpack.c.l.b16 %v359
      %v554 = vpack.c.b16 %v551, %v550
      %v555 = vpack.c.b16 %v553, %v552
      %558 = vmatpush.bf16.msra.mxu0 0
      %559 = vmatpush.bf16.msra.mxu0 0
      %560 = vmatpush.bf16.msra.mxu0 0
      %561 = vmatpush.bf16.msra.mxu0 0
      %562 = vmatpush.bf16.msra.mxu0 0
      %563 = vmatpush.bf16.msra.mxu0 0
      %564 = vmatpush.bf16.msra.mxu0 %v555
      %565 = vmatpush.bf16.msra.mxu0 %v554
      %566 = vmatmul.bf16.gmra.mxu0 %v460
      %v567 = vpop.f32.mrf.mxu0
      %v568 = vadd.f32 %v419, %v567
      %v569 = vpop.f32.mrf.mxu0
      %v570 = vadd.f32 %v424, %v569
      %571 = vmatmul.bf16.gmra.mxu0 %v463
      %v572 = vpop.f32.mrf.mxu0
      %v573 = vadd.f32 %v429, %v572
      %v574 = vpop.f32.mrf.mxu0
      %v575 = vadd.f32 %v434, %v574
      %576 = vdwg.mxu0
      %v581 = vunpack.c.l.b16 %v360
      %v582 = vunpack.c.l.b16 %v361
      %v583 = vunpack.c.l.b16 %v362
      %v584 = vunpack.c.l.b16 %v363
      %v585 = vpack.c.b16 %v582, %v581
      %v586 = vpack.c.b16 %v584, %v583
      %589 = vmatpush.bf16.msra.mxu0 0
      %590 = vmatpush.bf16.msra.mxu0 0
      %591 = vmatpush.bf16.msra.mxu0 0
      %592 = vmatpush.bf16.msra.mxu0 0
      %593 = vmatpush.bf16.msra.mxu0 0
      %594 = vmatpush.bf16.msra.mxu0 0
      %595 = vmatpush.bf16.msra.mxu0 %v586
      %596 = vmatpush.bf16.msra.mxu0 %v585
      %597 = vmatmul.bf16.gmra.mxu0 %v460
      %v598 = vpop.f32.mrf.mxu0
      %v599 = vadd.f32 %v419, %v598
      %v600 = vpop.f32.mrf.mxu0
      %v601 = vadd.f32 %v424, %v600
      %602 = vmatmul.bf16.gmra.mxu0 %v463
      %v603 = vpop.f32.mrf.mxu0
      %v604 = vadd.f32 %v429, %v603
      %v605 = vpop.f32.mrf.mxu0
      %v606 = vadd.f32 %v434, %v605
      %607 = vdwg.mxu0
      %v612 = vunpack.c.l.b16 %v364
      %v613 = vunpack.c.l.b16 %v365
      %v614 = vunpack.c.l.b16 %v366
      %v615 = vunpack.c.l.b16 %v367
      %v616 = vpack.c.b16 %v613, %v612
      %v617 = vpack.c.b16 %v615, %v614
      %620 = vmatpush.bf16.msra.mxu0 0
      %621 = vmatpush.bf16.msra.mxu0 0
      %622 = vmatpush.bf16.msra.mxu0 0
      %623 = vmatpush.bf16.msra.mxu0 0
      %624 = vmatpush.bf16.msra.mxu0 0
      %625 = vmatpush.bf16.msra.mxu0 0
      %626 = vmatpush.bf16.msra.mxu0 %v617
      %627 = vmatpush.bf16.msra.mxu0 %v616
      %628 = vmatmul.bf16.gmra.mxu0 %v460
      %v629 = vpop.f32.mrf.mxu0
      %v630 = vadd.f32 %v419, %v629
      %v631 = vpop.f32.mrf.mxu0
      %v632 = vadd.f32 %v424, %v631
      %633 = vmatmul.bf16.gmra.mxu0 %v463
      %v634 = vpop.f32.mrf.mxu0
      %v635 = vadd.f32 %v429, %v634
      %v636 = vpop.f32.mrf.mxu0
      %v637 = vadd.f32 %v434, %v636
      %638 = vdwg.mxu0
      %v643 = vunpack.c.l.b16 %v368
      %v644 = vunpack.c.l.b16 %v369
      %v645 = vunpack.c.l.b16 %v370
      %v646 = vunpack.c.l.b16 %v371
      %v647 = vpack.c.b16 %v644, %v643
      %v648 = vpack.c.b16 %v646, %v645
      %651 = vmatpush.bf16.msra.mxu0 0
      %652 = vmatpush.bf16.msra.mxu0 0
      %653 = vmatpush.bf16.msra.mxu0 0
      %654 = vmatpush.bf16.msra.mxu0 0
      %655 = vmatpush.bf16.msra.mxu0 0
      %656 = vmatpush.bf16.msra.mxu0 0
      %657 = vmatpush.bf16.msra.mxu0 %v648
      %658 = vmatpush.bf16.msra.mxu0 %v647
      %659 = vmatmul.bf16.gmra.mxu0 %v460
      %v660 = vpop.f32.mrf.mxu0
      %v661 = vadd.f32 %v419, %v660
      %v662 = vpop.f32.mrf.mxu0
      %v663 = vadd.f32 %v424, %v662
      %664 = vmatmul.bf16.gmra.mxu0 %v463
      %v665 = vpop.f32.mrf.mxu0
      %v666 = vadd.f32 %v429, %v665
      %v667 = vpop.f32.mrf.mxu0
      %v668 = vadd.f32 %v434, %v667
      %669 = vdwg.mxu0
      %v674 = vunpack.c.l.b16 %v372
      %v675 = vunpack.c.l.b16 %v373
      %v676 = vunpack.c.l.b16 %v374
      %v677 = vunpack.c.l.b16 %v375
      %v678 = vpack.c.b16 %v675, %v674
      %v679 = vpack.c.b16 %v677, %v676
      %682 = vmatpush.bf16.msra.mxu0 0
      %683 = vmatpush.bf16.msra.mxu0 0
      %684 = vmatpush.bf16.msra.mxu0 0
      %685 = vmatpush.bf16.msra.mxu0 0
      %686 = vmatpush.bf16.msra.mxu0 0
      %687 = vmatpush.bf16.msra.mxu0 0
      %688 = vmatpush.bf16.msra.mxu0 %v679
      %689 = vmatpush.bf16.msra.mxu0 %v678
      %690 = vmatmul.bf16.gmra.mxu0 %v460
      %v691 = vpop.f32.mrf.mxu0
      %v692 = vadd.f32 %v419, %v691
      %v693 = vpop.f32.mrf.mxu0
      %v694 = vadd.f32 %v424, %v693
      %695 = vmatmul.bf16.gmra.mxu0 %v463
      %v696 = vpop.f32.mrf.mxu0
      %v697 = vadd.f32 %v429, %v696
      %v698 = vpop.f32.mrf.mxu0
      %v699 = vadd.f32 %v434, %v698
      %700 = vdwg.mxu0
      %v705 = vunpack.c.l.b16 %v376
      %v706 = vunpack.c.l.b16 %v377
      %v707 = vunpack.c.l.b16 %v378
      %v708 = vunpack.c.l.b16 %v379
      %v709 = vpack.c.b16 %v706, %v705
      %v710 = vpack.c.b16 %v708, %v707
      %713 = vmatpush.bf16.msra.mxu0 0
      %714 = vmatpush.bf16.msra.mxu0 0
      %715 = vmatpush.bf16.msra.mxu0 0
      %716 = vmatpush.bf16.msra.mxu0 0
      %717 = vmatpush.bf16.msra.mxu0 0
      %718 = vmatpush.bf16.msra.mxu0 0
      %719 = vmatpush.bf16.msra.mxu0 %v710
      %720 = vmatpush.bf16.msra.mxu0 %v709
      %721 = vmatmul.bf16.gmra.mxu0 %v460
      %v722 = vpop.f32.mrf.mxu0
      %v723 = vadd.f32 %v419, %v722
      %v724 = vpop.f32.mrf.mxu0
      %v725 = vadd.f32 %v424, %v724
      %726 = vmatmul.bf16.gmra.mxu0 %v463
      %v727 = vpop.f32.mrf.mxu0
      %v728 = vadd.f32 %v429, %v727
      %v729 = vpop.f32.mrf.mxu0
      %v730 = vadd.f32 %v434, %v729
      %731 = vdwg.mxu0
      %v736 = vunpack.c.l.b16 %v380
      %v737 = vunpack.c.l.b16 %v381
      %v738 = vunpack.c.l.b16 %v382
      %v739 = vunpack.c.l.b16 %v383
      %v740 = vpack.c.b16 %v737, %v736
      %v741 = vpack.c.b16 %v739, %v738
      %744 = vmatpush.bf16.msra.mxu0 0
      %745 = vmatpush.bf16.msra.mxu0 0
      %746 = vmatpush.bf16.msra.mxu0 0
      %747 = vmatpush.bf16.msra.mxu0 0
      %748 = vmatpush.bf16.msra.mxu0 0
      %749 = vmatpush.bf16.msra.mxu0 0
      %750 = vmatpush.bf16.msra.mxu0 %v741
      %751 = vmatpush.bf16.msra.mxu0 %v740
      %752 = vmatmul.bf16.gmra.mxu0 %v460
      %v753 = vpop.f32.mrf.mxu0
      %v754 = vadd.f32 %v419, %v753
      %v755 = vpop.f32.mrf.mxu0
      %v756 = vadd.f32 %v424, %v755
      %757 = vmatmul.bf16.gmra.mxu0 %v463
      %v758 = vpop.f32.mrf.mxu0
      %v759 = vadd.f32 %v429, %v758
      %v760 = vpop.f32.mrf.mxu0
      %v761 = vadd.f32 %v434, %v760
      %762 = vdwg.mxu0
      %v767 = vunpack.c.l.b16 %v384
      %v768 = vunpack.c.l.b16 %v385
      %v769 = vunpack.c.l.b16 %v386
      %v770 = vunpack.c.l.b16 %v387
      %v771 = vpack.c.b16 %v768, %v767
      %v772 = vpack.c.b16 %v770, %v769
      %775 = vmatpush.bf16.msra.mxu0 0
      %776 = vmatpush.bf16.msra.mxu0 0
      %777 = vmatpush.bf16.msra.mxu0 0
      %778 = vmatpush.bf16.msra.mxu0 0
      %779 = vmatpush.bf16.msra.mxu0 0
      %780 = vmatpush.bf16.msra.mxu0 0
      %781 = vmatpush.bf16.msra.mxu0 %v772
      %782 = vmatpush.bf16.msra.mxu0 %v771
      %783 = vmatmul.bf16.gmra.mxu0 %v460
      %v784 = vpop.f32.mrf.mxu0
      %v785 = vadd.f32 %v419, %v784
      %v786 = vpop.f32.mrf.mxu0
      %v787 = vadd.f32 %v424, %v786
      %788 = vmatmul.bf16.gmra.mxu0 %v463
      %v789 = vpop.f32.mrf.mxu0
      %v790 = vadd.f32 %v429, %v789
      %v791 = vpop.f32.mrf.mxu0
      %v792 = vadd.f32 %v434, %v791
      %793 = vdwg.mxu0
      %v798 = vunpack.c.l.b16 %v388
      %v799 = vunpack.c.l.b16 %v389
      %v800 = vunpack.c.l.b16 %v390
      %v801 = vunpack.c.l.b16 %v391
      %v802 = vpack.c.b16 %v799, %v798
      %v803 = vpack.c.b16 %v801, %v800
      %806 = vmatpush.bf16.msra.mxu0 0
      %807 = vmatpush.bf16.msra.mxu0 0
      %808 = vmatpush.bf16.msra.mxu0 0
      %809 = vmatpush.bf16.msra.mxu0 0
      %810 = vmatpush.bf16.msra.mxu0 0
      %811 = vmatpush.bf16.msra.mxu0 0
      %812 = vmatpush.bf16.msra.mxu0 %v803
      %813 = vmatpush.bf16.msra.mxu0 %v802
      %814 = vmatmul.bf16.gmra.mxu0 %v460
      %v815 = vpop.f32.mrf.mxu0
      %v816 = vadd.f32 %v419, %v815
      %v817 = vpop.f32.mrf.mxu0
      %v818 = vadd.f32 %v424, %v817
      %819 = vmatmul.bf16.gmra.mxu0 %v463
      %v820 = vpop.f32.mrf.mxu0
      %v821 = vadd.f32 %v429, %v820
      %v822 = vpop.f32.mrf.mxu0
      %v823 = vadd.f32 %v434, %v822
      %824 = vdwg.mxu0
      %v829 = vunpack.c.l.b16 %v392
      %v830 = vunpack.c.l.b16 %v393
      %v831 = vunpack.c.l.b16 %v394
      %v832 = vunpack.c.l.b16 %v395
      %v833 = vpack.c.b16 %v830, %v829
      %v834 = vpack.c.b16 %v832, %v831
      %837 = vmatpush.bf16.msra.mxu0 0
      %838 = vmatpush.bf16.msra.mxu0 0
      %839 = vmatpush.bf16.msra.mxu0 0
      %840 = vmatpush.bf16.msra.mxu0 0
      %841 = vmatpush.bf16.msra.mxu0 0
      %842 = vmatpush.bf16.msra.mxu0 0
      %843 = vmatpush.bf16.msra.mxu0 %v834
      %844 = vmatpush.bf16.msra.mxu0 %v833
      %845 = vmatmul.bf16.gmra.mxu0 %v460
      %v846 = vpop.f32.mrf.mxu0
      %v847 = vadd.f32 %v419, %v846
      %v848 = vpop.f32.mrf.mxu0
      %v849 = vadd.f32 %v424, %v848
      %850 = vmatmul.bf16.gmra.mxu0 %v463
      %v851 = vpop.f32.mrf.mxu0
      %v852 = vadd.f32 %v429, %v851
      %v853 = vpop.f32.mrf.mxu0
      %v854 = vadd.f32 %v434, %v853
      %855 = vdwg.mxu0
      %v860 = vunpack.c.l.b16 %v396
      %v861 = vunpack.c.l.b16 %v397
      %v862 = vunpack.c.l.b16 %v398
      %v863 = vunpack.c.l.b16 %v399
      %v864 = vpack.c.b16 %v861, %v860
      %v865 = vpack.c.b16 %v863, %v862
      %868 = vmatpush.bf16.msra.mxu0 0
      %869 = vmatpush.bf16.msra.mxu0 0
      %870 = vmatpush.bf16.msra.mxu0 0
      %871 = vmatpush.bf16.msra.mxu0 0
      %872 = vmatpush.bf16.msra.mxu0 0
      %873 = vmatpush.bf16.msra.mxu0 0
      %874 = vmatpush.bf16.msra.mxu0 %v865
      %875 = vmatpush.bf16.msra.mxu0 %v864
      %876 = vmatmul.bf16.gmra.mxu0 %v460
      %v877 = vpop.f32.mrf.mxu0
      %v878 = vadd.f32 %v419, %v877
      %v879 = vpop.f32.mrf.mxu0
      %v880 = vadd.f32 %v424, %v879
      %881 = vmatmul.bf16.gmra.mxu0 %v463
      %v882 = vpop.f32.mrf.mxu0
      %v883 = vadd.f32 %v429, %v882
      %v884 = vpop.f32.mrf.mxu0
      %v885 = vadd.f32 %v434, %v884
      %886 = vdwg.mxu0
      %v891 = vunpack.c.l.b16 %v400
      %v892 = vunpack.c.l.b16 %v401
      %v893 = vunpack.c.l.b16 %v402
      %v894 = vunpack.c.l.b16 %v403
      %v895 = vpack.c.b16 %v892, %v891
      %v896 = vpack.c.b16 %v894, %v893
      %899 = vmatpush.bf16.msra.mxu0 0
      %900 = vmatpush.bf16.msra.mxu0 0
      %901 = vmatpush.bf16.msra.mxu0 0
      %902 = vmatpush.bf16.msra.mxu0 0
      %903 = vmatpush.bf16.msra.mxu0 0
      %904 = vmatpush.bf16.msra.mxu0 0
      %905 = vmatpush.bf16.msra.mxu0 %v896
      %906 = vmatpush.bf16.msra.mxu0 %v895
      %907 = vmatmul.bf16.gmra.mxu0 %v460
      %v908 = vpop.f32.mrf.mxu0
      %v909 = vadd.f32 %v419, %v908
      %v910 = vpop.f32.mrf.mxu0
      %v911 = vadd.f32 %v424, %v910
      %912 = vmatmul.bf16.gmra.mxu0 %v463
      %v913 = vpop.f32.mrf.mxu0
      %v914 = vadd.f32 %v429, %v913
      %v915 = vpop.f32.mrf.mxu0
      %v916 = vadd.f32 %v434, %v915
      %917 = vdwg.mxu0
      %v922 = vunpack.c.l.b16 %v404
      %v923 = vunpack.c.l.b16 %v405
      %v924 = vunpack.c.l.b16 %v406
      %v925 = vunpack.c.l.b16 %v407
      %v926 = vpack.c.b16 %v923, %v922
      %v927 = vpack.c.b16 %v925, %v924
      %930 = vmatpush.bf16.msra.mxu0 0
      %931 = vmatpush.bf16.msra.mxu0 0
      %932 = vmatpush.bf16.msra.mxu0 0
      %933 = vmatpush.bf16.msra.mxu0 0
      %934 = vmatpush.bf16.msra.mxu0 0
      %935 = vmatpush.bf16.msra.mxu0 0
      %936 = vmatpush.bf16.msra.mxu0 %v927
      %937 = vmatpush.bf16.msra.mxu0 %v926
      %938 = vmatmul.bf16.gmra.mxu0 %v460
      %v939 = vpop.f32.mrf.mxu0
      %v940 = vadd.f32 %v419, %v939
      %v941 = vpop.f32.mrf.mxu0
      %v942 = vadd.f32 %v424, %v941
      %943 = vmatmul.bf16.gmra.mxu0 %v463
      %v944 = vpop.f32.mrf.mxu0
      %v945 = vadd.f32 %v429, %v944
      %v946 = vpop.f32.mrf.mxu0
      %v947 = vadd.f32 %v434, %v946
      %948 = vdwg.mxu0
      %v949 = vpack.c.bf16 %v475, %v475
      %v950 = vpack.c.bf16 %v477, %v477
      %v951 = vpack.c.bf16 %v480, %v480
      %v952 = vpack.c.bf16 %v482, %v482
      %v953 = vpack.c.bf16 %v506, %v506
      %v954 = vpack.c.bf16 %v508, %v508
      %v955 = vpack.c.bf16 %v511, %v511
      %v956 = vpack.c.bf16 %v513, %v513
      %v957 = vpack.c.bf16 %v537, %v537
      %v958 = vpack.c.bf16 %v539, %v539
      %v959 = vpack.c.bf16 %v542, %v542
      %v960 = vpack.c.bf16 %v544, %v544
      %v961 = vpack.c.bf16 %v568, %v568
      %v962 = vpack.c.bf16 %v570, %v570
      %v963 = vpack.c.bf16 %v573, %v573
      %v964 = vpack.c.bf16 %v575, %v575
      %v965 = vpack.c.bf16 %v599, %v599
      %v966 = vpack.c.bf16 %v601, %v601
      %v967 = vpack.c.bf16 %v604, %v604
      %v968 = vpack.c.bf16 %v606, %v606
      %v969 = vpack.c.bf16 %v630, %v630
      %v970 = vpack.c.bf16 %v632, %v632
      %v971 = vpack.c.bf16 %v635, %v635
      %v972 = vpack.c.bf16 %v637, %v637
      %v973 = vpack.c.bf16 %v661, %v661
      %v974 = vpack.c.bf16 %v663, %v663
      %v975 = vpack.c.bf16 %v666, %v666
      %v976 = vpack.c.bf16 %v668, %v668
      %v977 = vpack.c.bf16 %v692, %v692
      %v978 = vpack.c.bf16 %v694, %v694
      %v979 = vpack.c.bf16 %v697, %v697
      %v980 = vpack.c.bf16 %v699, %v699
      %v981 = vpack.c.bf16 %v723, %v723
      %v982 = vpack.c.bf16 %v725, %v725
      %v983 = vpack.c.bf16 %v728, %v728
      %v984 = vpack.c.bf16 %v730, %v730
      %v985 = vpack.c.bf16 %v754, %v754
      %v986 = vpack.c.bf16 %v756, %v756
      %v987 = vpack.c.bf16 %v759, %v759
      %v988 = vpack.c.bf16 %v761, %v761
      %v989 = vpack.c.bf16 %v785, %v785
      %v990 = vpack.c.bf16 %v787, %v787
      %v991 = vpack.c.bf16 %v790, %v790
      %v992 = vpack.c.bf16 %v792, %v792
      %v993 = vpack.c.bf16 %v816, %v816
      %v994 = vpack.c.bf16 %v818, %v818
      %v995 = vpack.c.bf16 %v821, %v821
      %v996 = vpack.c.bf16 %v823, %v823
      %v997 = vpack.c.bf16 %v847, %v847
      %v998 = vpack.c.bf16 %v849, %v849
      %v999 = vpack.c.bf16 %v852, %v852
      %v1000 = vpack.c.bf16 %v854, %v854
      %v1001 = vpack.c.bf16 %v878, %v878
      %v1002 = vpack.c.bf16 %v880, %v880
      %v1003 = vpack.c.bf16 %v883, %v883
      %v1004 = vpack.c.bf16 %v885, %v885
      %v1005 = vpack.c.bf16 %v909, %v909
      %v1006 = vpack.c.bf16 %v911, %v911
      %v1007 = vpack.c.bf16 %v914, %v914
      %v1008 = vpack.c.bf16 %v916, %v916
      %v1009 = vpack.c.bf16 %v940, %v940
      %v1010 = vpack.c.bf16 %v942, %v942
      %v1011 = vpack.c.bf16 %v945, %v945
      %v1012 = vpack.c.bf16 %v947, %v947
      %v1013 = vld [vmem:[%s3] sm:$0xf]
      %v1014 = vld [vmem:[%s3 + $0x4] sm:$0xf]
      %v1015 = vld [vmem:[%s3 + $0x8] sm:$0xf]
      %v1016 = vld [vmem:[%s3 + $0xc] sm:$0xf]
      %v1017 = vld [vmem:[%s3 + $0x10] sm:$0xf]
      %v1018 = vld [vmem:[%s3 + $0x14] sm:$0xf]
      %v1019 = vld [vmem:[%s3 + $0x18] sm:$0xf]
      %v1020 = vld [vmem:[%s3 + $0x1c] sm:$0xf]
      %v1021 = vld [vmem:[%s3 + $0x20] sm:$0xf]
      %v1022 = vld [vmem:[%s3 + $0x24] sm:$0xf]
      %v1023 = vld [vmem:[%s3 + $0x28] sm:$0x1]
      %v1024 = vld [vmem:[%s4] sm:$0x1]
      %v1089 = vunpack.c.l.b16 %v949
      %v1090 = vunpack.c.l.b16 %v950
      %v1091 = vunpack.c.l.b16 %v951
      %v1092 = vunpack.c.l.b16 %v952
      %v1093 = vunpack.c.l.b16 %v953
      %v1094 = vunpack.c.l.b16 %v954
      %v1095 = vunpack.c.l.b16 %v955
      %v1096 = vunpack.c.l.b16 %v956
      %v1097 = vunpack.c.l.b16 %v957
      %v1098 = vunpack.c.l.b16 %v958
      %v1099 = vunpack.c.l.b16 %v959
      %v1100 = vunpack.c.l.b16 %v960
      %v1101 = vunpack.c.l.b16 %v961
      %v1102 = vunpack.c.l.b16 %v962
      %v1103 = vunpack.c.l.b16 %v963
      %v1104 = vunpack.c.l.b16 %v964
      %v1105 = vunpack.c.l.b16 %v965
      %v1106 = vunpack.c.l.b16 %v966
      %v1107 = vunpack.c.l.b16 %v967
      %v1108 = vunpack.c.l.b16 %v968
      %v1109 = vunpack.c.l.b16 %v969
      %v1110 = vunpack.c.l.b16 %v970
      %v1111 = vunpack.c.l.b16 %v971
      %v1112 = vunpack.c.l.b16 %v972
      %v1113 = vunpack.c.l.b16 %v973
      %v1114 = vunpack.c.l.b16 %v974
      %v1115 = vunpack.c.l.b16 %v975
      %v1116 = vunpack.c.l.b16 %v976
      %v1117 = vunpack.c.l.b16 %v977
      %v1118 = vunpack.c.l.b16 %v978
      %v1119 = vunpack.c.l.b16 %v979
      %v1120 = vunpack.c.l.b16 %v980
      %v1121 = vunpack.c.l.b16 %v981
      %v1122 = vunpack.c.l.b16 %v982
      %v1123 = vunpack.c.l.b16 %v983
      %v1124 = vunpack.c.l.b16 %v984
      %v1125 = vunpack.c.l.b16 %v985
      %v1126 = vunpack.c.l.b16 %v986
      %v1127 = vunpack.c.l.b16 %v987
      %v1128 = vunpack.c.l.b16 %v988
      %v1129 = vunpack.c.l.b16 %v989
      %v1130 = vunpack.c.l.b16 %v990
      %v1131 = vunpack.c.l.b16 %v991
      %v1132 = vunpack.c.l.b16 %v992
      %v1133 = vunpack.c.l.b16 %v993
      %v1134 = vunpack.c.l.b16 %v994
      %v1135 = vunpack.c.l.b16 %v995
      %v1136 = vunpack.c.l.b16 %v996
      %v1137 = vunpack.c.l.b16 %v997
      %v1138 = vunpack.c.l.b16 %v998
      %v1139 = vunpack.c.l.b16 %v999
      %v1140 = vunpack.c.l.b16 %v1000
      %v1141 = vunpack.c.l.b16 %v1001
      %v1142 = vunpack.c.l.b16 %v1002
      %v1143 = vunpack.c.l.b16 %v1003
      %v1144 = vunpack.c.l.b16 %v1004
      %v1145 = vunpack.c.l.b16 %v1005
      %v1146 = vunpack.c.l.b16 %v1006
      %v1147 = vunpack.c.l.b16 %v1007
      %v1148 = vunpack.c.l.b16 %v1008
      %v1149 = vunpack.c.l.b16 %v1009
      %v1150 = vunpack.c.l.b16 %v1010
      %v1151 = vunpack.c.l.b16 %v1011
      %v1152 = vunpack.c.l.b16 %v1012
      %v1153 = vpack.c.b16 %v1090, %v1089
      %v1154 = vpack.c.b16 %v1092, %v1091
      %v1155 = vpack.c.b16 %v1094, %v1093
      %v1156 = vpack.c.b16 %v1096, %v1095
      %v1157 = vpack.c.b16 %v1098, %v1097
      %v1158 = vpack.c.b16 %v1100, %v1099
      %v1159 = vpack.c.b16 %v1102, %v1101
      %v1160 = vpack.c.b16 %v1104, %v1103
      %v1161 = vpack.c.b16 %v1106, %v1105
      %v1162 = vpack.c.b16 %v1108, %v1107
      %v1163 = vpack.c.b16 %v1110, %v1109
      %v1164 = vpack.c.b16 %v1112, %v1111
      %v1165 = vpack.c.b16 %v1114, %v1113
      %v1166 = vpack.c.b16 %v1116, %v1115
      %v1167 = vpack.c.b16 %v1118, %v1117
      %v1168 = vpack.c.b16 %v1120, %v1119
      %v1169 = vpack.c.b16 %v1122, %v1121
      %v1170 = vpack.c.b16 %v1124, %v1123
      %v1171 = vpack.c.b16 %v1126, %v1125
      %v1172 = vpack.c.b16 %v1128, %v1127
      %v1173 = vpack.c.b16 %v1130, %v1129
      %v1174 = vpack.c.b16 %v1132, %v1131
      %v1175 = vpack.c.b16 %v1134, %v1133
      %v1176 = vpack.c.b16 %v1136, %v1135
      %v1177 = vpack.c.b16 %v1138, %v1137
      %v1178 = vpack.c.b16 %v1140, %v1139
      %v1179 = vpack.c.b16 %v1142, %v1141
      %v1180 = vpack.c.b16 %v1144, %v1143
      %v1181 = vpack.c.b16 %v1146, %v1145
      %v1182 = vpack.c.b16 %v1148, %v1147
      %v1183 = vpack.c.b16 %v1150, %v1149
      %v1184 = vpack.c.b16 %v1152, %v1151
      %vm1185 = vsmask.f32 256
      %v1187 = vshrl.u32 0, 16
      %v1189 = vrot.slane %v1187, 7
      %v1190 = vshll.u32 0, 16
      %v1192 = vor.u32 %v1189, %v1190
      %v1193 = vsel %vm1185, %v1189, %v1192
      %v1195 = vshrl.u32 %v1153, 16
      %v1197 = vrot.slane %v1195, 7
      %v1198 = vshll.u32 %v1153, 16
      %v1200 = vor.u32 %v1197, %v1198
      %v1202 = vshrl.u32 %v1154, 16
      %v1204 = vrot.slane %v1202, 7
      %v1205 = vshll.u32 %v1154, 16
      %v1207 = vor.u32 %v1204, %v1205
      %v1208 = vsel %vm1185, %v1197, %v1207
      %v1210 = vshrl.u32 %v1155, 16
      %v1212 = vrot.slane %v1210, 7
      %v1213 = vshll.u32 %v1155, 16
      %v1215 = vor.u32 %v1212, %v1213
      %v1217 = vshrl.u32 %v1156, 16
      %v1219 = vrot.slane %v1217, 7
      %v1220 = vshll.u32 %v1156, 16
      %v1222 = vor.u32 %v1219, %v1220
      %v1223 = vsel %vm1185, %v1212, %v1222
      %v1225 = vshrl.u32 %v1157, 16
      %v1227 = vrot.slane %v1225, 7
      %v1228 = vshll.u32 %v1157, 16
      %v1230 = vor.u32 %v1227, %v1228
      %v1232 = vshrl.u32 %v1158, 16
      %v1234 = vrot.slane %v1232, 7
      %v1235 = vshll.u32 %v1158, 16
      %v1237 = vor.u32 %v1234, %v1235
      %v1238 = vsel %vm1185, %v1227, %v1237
      %v1240 = vshrl.u32 %v1159, 16
      %v1242 = vrot.slane %v1240, 7
      %v1243 = vshll.u32 %v1159, 16
      %v1245 = vor.u32 %v1242, %v1243
      %v1247 = vshrl.u32 %v1160, 16
      %v1249 = vrot.slane %v1247, 7
      %v1250 = vshll.u32 %v1160, 16
      %v1252 = vor.u32 %v1249, %v1250
      %v1253 = vsel %vm1185, %v1242, %v1252
      %v1255 = vshrl.u32 %v1161, 16
      %v1257 = vrot.slane %v1255, 7
      %v1258 = vshll.u32 %v1161, 16
      %v1260 = vor.u32 %v1257, %v1258
      %v1262 = vshrl.u32 %v1162, 16
      %v1264 = vrot.slane %v1262, 7
      %v1265 = vshll.u32 %v1162, 16
      %v1267 = vor.u32 %v1264, %v1265
      %v1268 = vsel %vm1185, %v1257, %v1267
      %v1270 = vshrl.u32 %v1163, 16
      %v1272 = vrot.slane %v1270, 7
      %v1273 = vshll.u32 %v1163, 16
      %v1275 = vor.u32 %v1272, %v1273
      %v1277 = vshrl.u32 %v1164, 16
      %v1279 = vrot.slane %v1277, 7
      %v1280 = vshll.u32 %v1164, 16
      %v1282 = vor.u32 %v1279, %v1280
      %v1283 = vsel %vm1185, %v1272, %v1282
      %v1285 = vshrl.u32 %v1165, 16
      %v1287 = vrot.slane %v1285, 7
      %v1288 = vshll.u32 %v1165, 16
      %v1290 = vor.u32 %v1287, %v1288
      %v1292 = vshrl.u32 %v1166, 16
      %v1294 = vrot.slane %v1292, 7
      %v1295 = vshll.u32 %v1166, 16
      %v1297 = vor.u32 %v1294, %v1295
      %v1298 = vsel %vm1185, %v1287, %v1297
      %v1300 = vshrl.u32 %v1167, 16
      %v1302 = vrot.slane %v1300, 7
      %v1303 = vshll.u32 %v1167, 16
      %v1305 = vor.u32 %v1302, %v1303
      %v1307 = vshrl.u32 %v1168, 16
      %v1309 = vrot.slane %v1307, 7
      %v1310 = vshll.u32 %v1168, 16
      %v1312 = vor.u32 %v1309, %v1310
      %v1313 = vsel %vm1185, %v1302, %v1312
      %v1315 = vshrl.u32 %v1169, 16
      %v1317 = vrot.slane %v1315, 7
      %v1318 = vshll.u32 %v1169, 16
      %v1320 = vor.u32 %v1317, %v1318
      %v1322 = vshrl.u32 %v1170, 16
      %v1324 = vrot.slane %v1322, 7
      %v1325 = vshll.u32 %v1170, 16
      %v1327 = vor.u32 %v1324, %v1325
      %v1328 = vsel %vm1185, %v1317, %v1327
      %v1330 = vshrl.u32 %v1171, 16
      %v1332 = vrot.slane %v1330, 7
      %v1333 = vshll.u32 %v1171, 16
      %v1335 = vor.u32 %v1332, %v1333
      %v1337 = vshrl.u32 %v1172, 16
      %v1339 = vrot.slane %v1337, 7
      %v1340 = vshll.u32 %v1172, 16
      %v1342 = vor.u32 %v1339, %v1340
      %v1343 = vsel %vm1185, %v1332, %v1342
      %v1345 = vshrl.u32 %v1173, 16
      %v1347 = vrot.slane %v1345, 7
      %v1348 = vshll.u32 %v1173, 16
      %v1350 = vor.u32 %v1347, %v1348
      %v1352 = vshrl.u32 %v1174, 16
      %v1354 = vrot.slane %v1352, 7
      %v1355 = vshll.u32 %v1174, 16
      %v1357 = vor.u32 %v1354, %v1355
      %v1358 = vsel %vm1185, %v1347, %v1357
      %v1360 = vshrl.u32 %v1175, 16
      %v1362 = vrot.slane %v1360, 7
      %v1363 = vshll.u32 %v1175, 16
      %v1365 = vor.u32 %v1362, %v1363
      %v1367 = vshrl.u32 %v1176, 16
      %v1369 = vrot.slane %v1367, 7
      %v1370 = vshll.u32 %v1176, 16
      %v1372 = vor.u32 %v1369, %v1370
      %v1373 = vsel %vm1185, %v1362, %v1372
      %v1375 = vshrl.u32 %v1177, 16
      %v1377 = vrot.slane %v1375, 7
      %v1378 = vshll.u32 %v1177, 16
      %v1380 = vor.u32 %v1377, %v1378
      %v1382 = vshrl.u32 %v1178, 16
      %v1384 = vrot.slane %v1382, 7
      %v1385 = vshll.u32 %v1178, 16
      %v1387 = vor.u32 %v1384, %v1385
      %v1388 = vsel %vm1185, %v1377, %v1387
      %v1390 = vshrl.u32 %v1179, 16
      %v1392 = vrot.slane %v1390, 7
      %v1393 = vshll.u32 %v1179, 16
      %v1395 = vor.u32 %v1392, %v1393
      %v1397 = vshrl.u32 %v1180, 16
      %v1399 = vrot.slane %v1397, 7
      %v1400 = vshll.u32 %v1180, 16
      %v1402 = vor.u32 %v1399, %v1400
      %v1403 = vsel %vm1185, %v1392, %v1402
      %v1405 = vshrl.u32 %v1181, 16
      %v1407 = vrot.slane %v1405, 7
      %v1408 = vshll.u32 %v1181, 16
      %v1410 = vor.u32 %v1407, %v1408
      %v1412 = vshrl.u32 %v1182, 16
      %v1414 = vrot.slane %v1412, 7
      %v1415 = vshll.u32 %v1182, 16
      %v1417 = vor.u32 %v1414, %v1415
      %v1418 = vsel %vm1185, %v1407, %v1417
      %v1420 = vshrl.u32 %v1183, 16
      %v1422 = vrot.slane %v1420, 7
      %v1423 = vshll.u32 %v1183, 16
      %v1425 = vor.u32 %v1422, %v1423
      %v1427 = vshrl.u32 %v1184, 16
      %v1429 = vrot.slane %v1427, 7
      %v1430 = vshll.u32 %v1184, 16
      %v1432 = vor.u32 %v1429, %v1430
      %v1433 = vsel %vm1185, %v1422, %v1432
      %vm1468 = vcmask 1040384
      %vm1469 = vmand %vm1468, %vm1185
      %v1470 = vsel %vm1469, 0, %v1192
      %v1471 = vsel %vm1469, 0, %v1200
      %v1472 = vsel %vm1469, 0, %v1215
      %v1473 = vsel %vm1469, 0, %v1230
      %v1474 = vsel %vm1469, 0, %v1245
      %v1475 = vsel %vm1469, 0, %v1260
      %v1476 = vsel %vm1469, 0, %v1275
      %v1477 = vsel %vm1469, 0, %v1290
      %v1478 = vsel %vm1469, 0, %v1305
      %v1479 = vsel %vm1469, 0, %v1320
      %v1480 = vsel %vm1469, 0, %v1335
      %v1481 = vsel %vm1469, 0, %v1350
      %v1482 = vsel %vm1469, 0, %v1365
      %v1483 = vsel %vm1469, 0, %v1380
      %v1484 = vsel %vm1469, 0, %v1395
      %v1485 = vsel %vm1469, 0, %v1410
      %v1486 = vsel %vm1469, 0, %v1425
      %v1487 = vsel %vm1469, %v1189, 0
      %v1488 = vsel %vm1469, %v1204, 0
      %v1489 = vsel %vm1469, %v1219, 0
      %v1490 = vsel %vm1469, %v1234, 0
      %v1491 = vsel %vm1469, %v1249, 0
      %v1492 = vsel %vm1469, %v1264, 0
      %v1493 = vsel %vm1469, %v1279, 0
      %v1494 = vsel %vm1469, %v1294, 0
      %v1495 = vsel %vm1469, %v1309, 0
      %v1496 = vsel %vm1469, %v1324, 0
      %v1497 = vsel %vm1469, %v1339, 0
      %v1498 = vsel %vm1469, %v1354, 0
      %v1499 = vsel %vm1469, %v1369, 0
      %v1500 = vsel %vm1469, %v1384, 0
      %v1501 = vsel %vm1469, %v1399, 0
      %v1502 = vsel %vm1469, %v1414, 0
      %v1503 = vsel %vm1469, %v1429, 0
      %vm1504 = vsmask.f32 7424
      %v1506 = vshrl.u32 %v1470, 16
      %v1508 = vshll.u32 %v1470, 16
      %v1510 = vrot.slane %v1508, 1
      %v1511 = vor.u32 %v1506, %v1510
      %v1513 = vshll.u32 %v1193, 16
      %v1515 = vrot.slane %v1513, 1
      %v1516 = vsel %vm1504, %v1511, %v1515
      %v1517 = vshrl.u32 %v1193, 16
      %v1519 = vor.u32 %v1517, %v1515
      %v1521 = vshll.u32 %v1487, 16
      %v1523 = vrot.slane %v1521, 1
      %v1524 = vsel %vm1504, %v1519, %v1523
      %v1526 = vshrl.u32 %v1471, 16
      %v1528 = vshll.u32 %v1471, 16
      %v1530 = vrot.slane %v1528, 1
      %v1531 = vor.u32 %v1526, %v1530
      %v1533 = vshll.u32 %v1208, 16
      %v1535 = vrot.slane %v1533, 1
      %v1536 = vsel %vm1504, %v1531, %v1535
      %v1537 = vshrl.u32 %v1208, 16
      %v1539 = vor.u32 %v1537, %v1535
      %v1541 = vshll.u32 %v1488, 16
      %v1543 = vrot.slane %v1541, 1
      %v1544 = vsel %vm1504, %v1539, %v1543
      %v1546 = vshrl.u32 %v1472, 16
      %v1548 = vshll.u32 %v1472, 16
      %v1550 = vrot.slane %v1548, 1
      %v1551 = vor.u32 %v1546, %v1550
      %v1553 = vshll.u32 %v1223, 16
      %v1555 = vrot.slane %v1553, 1
      %v1556 = vsel %vm1504, %v1551, %v1555
      %v1557 = vshrl.u32 %v1223, 16
      %v1559 = vor.u32 %v1557, %v1555
      %v1561 = vshll.u32 %v1489, 16
      %v1563 = vrot.slane %v1561, 1
      %v1564 = vsel %vm1504, %v1559, %v1563
      %v1566 = vshrl.u32 %v1473, 16
      %v1568 = vshll.u32 %v1473, 16
      %v1570 = vrot.slane %v1568, 1
      %v1571 = vor.u32 %v1566, %v1570
      %v1573 = vshll.u32 %v1238, 16
      %v1575 = vrot.slane %v1573, 1
      %v1576 = vsel %vm1504, %v1571, %v1575
      %v1577 = vshrl.u32 %v1238, 16
      %v1579 = vor.u32 %v1577, %v1575
      %v1581 = vshll.u32 %v1490, 16
      %v1583 = vrot.slane %v1581, 1
      %v1584 = vsel %vm1504, %v1579, %v1583
      %v1586 = vshrl.u32 %v1474, 16
      %v1588 = vshll.u32 %v1474, 16
      %v1590 = vrot.slane %v1588, 1
      %v1591 = vor.u32 %v1586, %v1590
      %v1593 = vshll.u32 %v1253, 16
      %v1595 = vrot.slane %v1593, 1
      %v1596 = vsel %vm1504, %v1591, %v1595
      %v1597 = vshrl.u32 %v1253, 16
      %v1599 = vor.u32 %v1597, %v1595
      %v1601 = vshll.u32 %v1491, 16
      %v1603 = vrot.slane %v1601, 1
      %v1604 = vsel %vm1504, %v1599, %v1603
      %v1606 = vshrl.u32 %v1475, 16
      %v1608 = vshll.u32 %v1475, 16
      %v1610 = vrot.slane %v1608, 1
      %v1611 = vor.u32 %v1606, %v1610
      %v1613 = vshll.u32 %v1268, 16
      %v1615 = vrot.slane %v1613, 1
      %v1616 = vsel %vm1504, %v1611, %v1615
      %v1617 = vshrl.u32 %v1268, 16
      %v1619 = vor.u32 %v1617, %v1615
      %v1621 = vshll.u32 %v1492, 16
      %v1623 = vrot.slane %v1621, 1
      %v1624 = vsel %vm1504, %v1619, %v1623
      %v1626 = vshrl.u32 %v1476, 16
      %v1628 = vshll.u32 %v1476, 16
      %v1630 = vrot.slane %v1628, 1
      %v1631 = vor.u32 %v1626, %v1630
      %v1633 = vshll.u32 %v1283, 16
      %v1635 = vrot.slane %v1633, 1
      %v1636 = vsel %vm1504, %v1631, %v1635
      %v1637 = vshrl.u32 %v1283, 16
      %v1639 = vor.u32 %v1637, %v1635
      %v1641 = vshll.u32 %v1493, 16
      %v1643 = vrot.slane %v1641, 1
      %v1644 = vsel %vm1504, %v1639, %v1643
      %v1646 = vshrl.u32 %v1477, 16
      %v1648 = vshll.u32 %v1477, 16
      %v1650 = vrot.slane %v1648, 1
      %v1651 = vor.u32 %v1646, %v1650
      %v1653 = vshll.u32 %v1298, 16
      %v1655 = vrot.slane %v1653, 1
      %v1656 = vsel %vm1504, %v1651, %v1655
      %v1657 = vshrl.u32 %v1298, 16
      %v1659 = vor.u32 %v1657, %v1655
      %v1661 = vshll.u32 %v1494, 16
      %v1663 = vrot.slane %v1661, 1
      %v1664 = vsel %vm1504, %v1659, %v1663
      %v1666 = vshrl.u32 %v1478, 16
      %v1668 = vshll.u32 %v1478, 16
      %v1670 = vrot.slane %v1668, 1
      %v1671 = vor.u32 %v1666, %v1670
      %v1673 = vshll.u32 %v1313, 16
      %v1675 = vrot.slane %v1673, 1
      %v1676 = vsel %vm1504, %v1671, %v1675
      %v1677 = vshrl.u32 %v1313, 16
      %v1679 = vor.u32 %v1677, %v1675
      %v1681 = vshll.u32 %v1495, 16
      %v1683 = vrot.slane %v1681, 1
      %v1684 = vsel %vm1504, %v1679, %v1683
      %v1686 = vshrl.u32 %v1479, 16
      %v1688 = vshll.u32 %v1479, 16
      %v1690 = vrot.slane %v1688, 1
      %v1691 = vor.u32 %v1686, %v1690
      %v1693 = vshll.u32 %v1328, 16
      %v1695 = vrot.slane %v1693, 1
      %v1696 = vsel %vm1504, %v1691, %v1695
      %v1697 = vshrl.u32 %v1328, 16
      %v1699 = vor.u32 %v1697, %v1695
      %v1701 = vshll.u32 %v1496, 16
      %v1703 = vrot.slane %v1701, 1
      %v1704 = vsel %vm1504, %v1699, %v1703
      %v1706 = vshrl.u32 %v1480, 16
      %v1708 = vshll.u32 %v1480, 16
      %v1710 = vrot.slane %v1708, 1
      %v1711 = vor.u32 %v1706, %v1710
      %v1713 = vshll.u32 %v1343, 16
      %v1715 = vrot.slane %v1713, 1
      %v1716 = vsel %vm1504, %v1711, %v1715
      %v1717 = vshrl.u32 %v1343, 16
      %v1719 = vor.u32 %v1717, %v1715
      %v1721 = vshll.u32 %v1497, 16
      %v1723 = vrot.slane %v1721, 1
      %v1724 = vsel %vm1504, %v1719, %v1723
      %v1726 = vshrl.u32 %v1481, 16
      %v1728 = vshll.u32 %v1481, 16
      %v1730 = vrot.slane %v1728, 1
      %v1731 = vor.u32 %v1726, %v1730
      %v1733 = vshll.u32 %v1358, 16
      %v1735 = vrot.slane %v1733, 1
      %v1736 = vsel %vm1504, %v1731, %v1735
      %v1737 = vshrl.u32 %v1358, 16
      %v1739 = vor.u32 %v1737, %v1735
      %v1741 = vshll.u32 %v1498, 16
      %v1743 = vrot.slane %v1741, 1
      %v1744 = vsel %vm1504, %v1739, %v1743
      %v1746 = vshrl.u32 %v1482, 16
      %v1748 = vshll.u32 %v1482, 16
      %v1750 = vrot.slane %v1748, 1
      %v1751 = vor.u32 %v1746, %v1750
      %v1753 = vshll.u32 %v1373, 16
      %v1755 = vrot.slane %v1753, 1
      %v1756 = vsel %vm1504, %v1751, %v1755
      %v1757 = vshrl.u32 %v1373, 16
      %v1759 = vor.u32 %v1757, %v1755
      %v1761 = vshll.u32 %v1499, 16
      %v1763 = vrot.slane %v1761, 1
      %v1764 = vsel %vm1504, %v1759, %v1763
      %v1766 = vshrl.u32 %v1483, 16
      %v1768 = vshll.u32 %v1483, 16
      %v1770 = vrot.slane %v1768, 1
      %v1771 = vor.u32 %v1766, %v1770
      %v1773 = vshll.u32 %v1388, 16
      %v1775 = vrot.slane %v1773, 1
      %v1776 = vsel %vm1504, %v1771, %v1775
      %v1777 = vshrl.u32 %v1388, 16
      %v1779 = vor.u32 %v1777, %v1775
      %v1781 = vshll.u32 %v1500, 16
      %v1783 = vrot.slane %v1781, 1
      %v1784 = vsel %vm1504, %v1779, %v1783
      %v1786 = vshrl.u32 %v1484, 16
      %v1788 = vshll.u32 %v1484, 16
      %v1790 = vrot.slane %v1788, 1
      %v1791 = vor.u32 %v1786, %v1790
      %v1793 = vshll.u32 %v1403, 16
      %v1795 = vrot.slane %v1793, 1
      %v1796 = vsel %vm1504, %v1791, %v1795
      %v1797 = vshrl.u32 %v1403, 16
      %v1799 = vor.u32 %v1797, %v1795
      %v1801 = vshll.u32 %v1501, 16
      %v1803 = vrot.slane %v1801, 1
      %v1804 = vsel %vm1504, %v1799, %v1803
      %v1806 = vshrl.u32 %v1485, 16
      %v1808 = vshll.u32 %v1485, 16
      %v1810 = vrot.slane %v1808, 1
      %v1811 = vor.u32 %v1806, %v1810
      %v1813 = vshll.u32 %v1418, 16
      %v1815 = vrot.slane %v1813, 1
      %v1816 = vsel %vm1504, %v1811, %v1815
      %v1817 = vshrl.u32 %v1418, 16
      %v1819 = vor.u32 %v1817, %v1815
      %v1821 = vshll.u32 %v1502, 16
      %v1823 = vrot.slane %v1821, 1
      %v1824 = vsel %vm1504, %v1819, %v1823
      %vm1857 = vcmask 1046528
      %v1858 = vrot.slane %v1470, 1
      %v1859 = vrot.slane %v1193, 1
      %v1860 = vsel %vm1857, %v1858, %v1859
      %v1861 = vrot.slane %v1487, 1
      %v1862 = vsel %vm1857, %v1859, %v1861
      %v1863 = vrot.slane %v1471, 1
      %v1864 = vrot.slane %v1208, 1
      %v1865 = vsel %vm1857, %v1863, %v1864
      %v1866 = vrot.slane %v1488, 1
      %v1867 = vsel %vm1857, %v1864, %v1866
      %v1868 = vrot.slane %v1472, 1
      %v1869 = vrot.slane %v1223, 1
      %v1870 = vsel %vm1857, %v1868, %v1869
      %v1871 = vrot.slane %v1489, 1
      %v1872 = vsel %vm1857, %v1869, %v1871
      %v1873 = vrot.slane %v1473, 1
      %v1874 = vrot.slane %v1238, 1
      %v1875 = vsel %vm1857, %v1873, %v1874
      %v1876 = vrot.slane %v1490, 1
      %v1877 = vsel %vm1857, %v1874, %v1876
      %v1878 = vrot.slane %v1474, 1
      %v1879 = vrot.slane %v1253, 1
      %v1880 = vsel %vm1857, %v1878, %v1879
      %v1881 = vrot.slane %v1491, 1
      %v1882 = vsel %vm1857, %v1879, %v1881
      %v1883 = vrot.slane %v1475, 1
      %v1884 = vrot.slane %v1268, 1
      %v1885 = vsel %vm1857, %v1883, %v1884
      %v1886 = vrot.slane %v1492, 1
      %v1887 = vsel %vm1857, %v1884, %v1886
      %v1888 = vrot.slane %v1476, 1
      %v1889 = vrot.slane %v1283, 1
      %v1890 = vsel %vm1857, %v1888, %v1889
      %v1891 = vrot.slane %v1493, 1
      %v1892 = vsel %vm1857, %v1889, %v1891
      %v1893 = vrot.slane %v1477, 1
      %v1894 = vrot.slane %v1298, 1
      %v1895 = vsel %vm1857, %v1893, %v1894
      %v1896 = vrot.slane %v1494, 1
      %v1897 = vsel %vm1857, %v1894, %v1896
      %v1898 = vrot.slane %v1478, 1
      %v1899 = vrot.slane %v1313, 1
      %v1900 = vsel %vm1857, %v1898, %v1899
      %v1901 = vrot.slane %v1495, 1
      %v1902 = vsel %vm1857, %v1899, %v1901
      %v1903 = vrot.slane %v1479, 1
      %v1904 = vrot.slane %v1328, 1
      %v1905 = vsel %vm1857, %v1903, %v1904
      %v1906 = vrot.slane %v1496, 1
      %v1907 = vsel %vm1857, %v1904, %v1906
      %v1908 = vrot.slane %v1480, 1
      %v1909 = vrot.slane %v1343, 1
      %v1910 = vsel %vm1857, %v1908, %v1909
      %v1911 = vrot.slane %v1497, 1
      %v1912 = vsel %vm1857, %v1909, %v1911
      %v1913 = vrot.slane %v1481, 1
      %v1914 = vrot.slane %v1358, 1
      %v1915 = vsel %vm1857, %v1913, %v1914
      %v1916 = vrot.slane %v1498, 1
      %v1917 = vsel %vm1857, %v1914, %v1916
      %v1918 = vrot.slane %v1482, 1
      %v1919 = vrot.slane %v1373, 1
      %v1920 = vsel %vm1857, %v1918, %v1919
      %v1921 = vrot.slane %v1499, 1
      %v1922 = vsel %vm1857, %v1919, %v1921
      %v1923 = vrot.slane %v1483, 1
      %v1924 = vrot.slane %v1388, 1
      %v1925 = vsel %vm1857, %v1923, %v1924
      %v1926 = vrot.slane %v1500, 1
      %v1927 = vsel %vm1857, %v1924, %v1926
      %v1928 = vrot.slane %v1484, 1
      %v1929 = vrot.slane %v1403, 1
      %v1930 = vsel %vm1857, %v1928, %v1929
      %v1931 = vrot.slane %v1501, 1
      %v1932 = vsel %vm1857, %v1929, %v1931
      %v1933 = vrot.slane %v1485, 1
      %v1934 = vrot.slane %v1418, 1
      %v1935 = vsel %vm1857, %v1933, %v1934
      %v1936 = vrot.slane %v1502, 1
      %v1937 = vsel %vm1857, %v1934, %v1936
      %v1939 = vshrl.u32 %v1486, 16
      %v1941 = vshll.u32 %v1486, 16
      %v1943 = vrot.slane %v1941, 1
      %v1944 = vor.u32 %v1939, %v1943
      %v1946 = vshll.u32 %v1433, 16
      %v1948 = vrot.slane %v1946, 1
      %v1949 = vsel %vm1504, %v1944, %v1948
      %v1950 = vshrl.u32 %v1433, 16
      %v1952 = vor.u32 %v1950, %v1948
      %v1954 = vshll.u32 %v1503, 16
      %v1956 = vrot.slane %v1954, 1
      %v1957 = vsel %vm1504, %v1952, %v1956
      %v1960 = vrot.slane %v1486, 1
      %v1961 = vrot.slane %v1433, 1
      %v1962 = vsel %vm1857, %v1960, %v1961
      %v1963 = vrot.slane %v1503, 1
      %v1964 = vsel %vm1857, %v1961, %v1963
      %1965 = vrot.lane.b32.xlu0 %v1516, 9
      %v1966 = vpop.permute.xlu0 %1965
      %1967 = vrot.lane.b32.xlu0 %v1524, 9
      %v1968 = vpop.permute.xlu0 %1967
      %1969 = vrot.lane.b32.xlu0 %v1536, 9
      %v1970 = vpop.permute.xlu0 %1969
      %1971 = vrot.lane.b32.xlu0 %v1544, 9
      %v1972 = vpop.permute.xlu0 %1971
      %1973 = vrot.lane.b32.xlu0 %v1556, 9
      %v1974 = vpop.permute.xlu0 %1973
      %1975 = vrot.lane.b32.xlu0 %v1564, 9
      %v1976 = vpop.permute.xlu0 %1975
      %1977 = vrot.lane.b32.xlu0 %v1576, 9
      %v1978 = vpop.permute.xlu0 %1977
      %1979 = vrot.lane.b32.xlu0 %v1584, 9
      %v1980 = vpop.permute.xlu0 %1979
      %1981 = vrot.lane.b32.xlu0 %v1596, 9
      %v1982 = vpop.permute.xlu0 %1981
      %1983 = vrot.lane.b32.xlu0 %v1604, 9
      %v1984 = vpop.permute.xlu0 %1983
      %1985 = vrot.lane.b32.xlu0 %v1616, 9
      %v1986 = vpop.permute.xlu0 %1985
      %1987 = vrot.lane.b32.xlu0 %v1624, 9
      %v1988 = vpop.permute.xlu0 %1987
      %1989 = vrot.lane.b32.xlu0 %v1636, 9
      %v1990 = vpop.permute.xlu0 %1989
      %1991 = vrot.lane.b32.xlu0 %v1644, 9
      %v1992 = vpop.permute.xlu0 %1991
      %1993 = vrot.lane.b32.xlu0 %v1656, 9
      %v1994 = vpop.permute.xlu0 %1993
      %1995 = vrot.lane.b32.xlu0 %v1664, 9
      %v1996 = vpop.permute.xlu0 %1995
      %1997 = vrot.lane.b32.xlu0 %v1676, 9
      %v1998 = vpop.permute.xlu0 %1997
      %1999 = vrot.lane.b32.xlu0 %v1684, 9
      %v2000 = vpop.permute.xlu0 %1999
      %2001 = vrot.lane.b32.xlu0 %v1696, 9
      %v2002 = vpop.permute.xlu0 %2001
      %2003 = vrot.lane.b32.xlu0 %v1704, 9
      %v2004 = vpop.permute.xlu0 %2003
      %2005 = vrot.lane.b32.xlu0 %v1716, 9
      %v2006 = vpop.permute.xlu0 %2005
      %2007 = vrot.lane.b32.xlu0 %v1724, 9
      %v2008 = vpop.permute.xlu0 %2007
      %2009 = vrot.lane.b32.xlu0 %v1736, 9
      %v2010 = vpop.permute.xlu0 %2009
      %2011 = vrot.lane.b32.xlu0 %v1744, 9
      %v2012 = vpop.permute.xlu0 %2011
      %2013 = vrot.lane.b32.xlu0 %v1756, 9
      %v2014 = vpop.permute.xlu0 %2013
      %2015 = vrot.lane.b32.xlu0 %v1764, 9
      %v2016 = vpop.permute.xlu0 %2015
      %2017 = vrot.lane.b32.xlu0 %v1776, 9
      %v2018 = vpop.permute.xlu0 %2017
      %2019 = vrot.lane.b32.xlu0 %v1784, 9
      %v2020 = vpop.permute.xlu0 %2019
      %2021 = vrot.lane.b32.xlu0 %v1796, 9
      %v2022 = vpop.permute.xlu0 %2021
      %2023 = vrot.lane.b32.xlu0 %v1804, 9
      %v2024 = vpop.permute.xlu0 %2023
      %2025 = vrot.lane.b32.xlu0 %v1816, 9
      %v2026 = vpop.permute.xlu0 %2025
      %2027 = vrot.lane.b32.xlu0 %v1824, 9
      %v2028 = vpop.permute.xlu0 %2027
      %2029 = vrot.lane.b32.xlu0 %v1860, 18
      %v2030 = vpop.permute.xlu0 %2029
      %2031 = vrot.lane.b32.xlu0 %v1862, 18
      %v2032 = vpop.permute.xlu0 %2031
      %2033 = vrot.lane.b32.xlu0 %v1865, 18
      %v2034 = vpop.permute.xlu0 %2033
      %2035 = vrot.lane.b32.xlu0 %v1867, 18
      %v2036 = vpop.permute.xlu0 %2035
      %2037 = vrot.lane.b32.xlu0 %v1870, 18
      %v2038 = vpop.permute.xlu0 %2037
      %2039 = vrot.lane.b32.xlu0 %v1872, 18
      %v2040 = vpop.permute.xlu0 %2039
      %2041 = vrot.lane.b32.xlu0 %v1875, 18
      %v2042 = vpop.permute.xlu0 %2041
      %2043 = vrot.lane.b32.xlu0 %v1877, 18
      %v2044 = vpop.permute.xlu0 %2043
      %2045 = vrot.lane.b32.xlu0 %v1880, 18
      %v2046 = vpop.permute.xlu0 %2045
      %2047 = vrot.lane.b32.xlu0 %v1882, 18
      %v2048 = vpop.permute.xlu0 %2047
      %2049 = vrot.lane.b32.xlu0 %v1885, 18
      %v2050 = vpop.permute.xlu0 %2049
      %2051 = vrot.lane.b32.xlu0 %v1887, 18
      %v2052 = vpop.permute.xlu0 %2051
      %2053 = vrot.lane.b32.xlu0 %v1890, 18
      %v2054 = vpop.permute.xlu0 %2053
      %2055 = vrot.lane.b32.xlu0 %v1892, 18
      %v2056 = vpop.permute.xlu0 %2055
      %2057 = vrot.lane.b32.xlu0 %v1895, 18
      %v2058 = vpop.permute.xlu0 %2057
      %2059 = vrot.lane.b32.xlu0 %v1897, 18
      %v2060 = vpop.permute.xlu0 %2059
      %2061 = vrot.lane.b32.xlu0 %v1900, 18
      %v2062 = vpop.permute.xlu0 %2061
      %2063 = vrot.lane.b32.xlu0 %v1902, 18
      %v2064 = vpop.permute.xlu0 %2063
      %2065 = vrot.lane.b32.xlu0 %v1905, 18
      %v2066 = vpop.permute.xlu0 %2065
      %2067 = vrot.lane.b32.xlu0 %v1907, 18
      %v2068 = vpop.permute.xlu0 %2067
      %2069 = vrot.lane.b32.xlu0 %v1910, 18
      %v2070 = vpop.permute.xlu0 %2069
      %2071 = vrot.lane.b32.xlu0 %v1912, 18
      %v2072 = vpop.permute.xlu0 %2071
      %2073 = vrot.lane.b32.xlu0 %v1915, 18
      %v2074 = vpop.permute.xlu0 %2073
      %2075 = vrot.lane.b32.xlu0 %v1917, 18
      %v2076 = vpop.permute.xlu0 %2075
      %2077 = vrot.lane.b32.xlu0 %v1920, 18
      %v2078 = vpop.permute.xlu0 %2077
      %2079 = vrot.lane.b32.xlu0 %v1922, 18
      %v2080 = vpop.permute.xlu0 %2079
      %2081 = vrot.lane.b32.xlu0 %v1925, 18
      %v2082 = vpop.permute.xlu0 %2081
      %2083 = vrot.lane.b32.xlu0 %v1927, 18
      %v2084 = vpop.permute.xlu0 %2083
      %2085 = vrot.lane.b32.xlu0 %v1930, 18
      %v2086 = vpop.permute.xlu0 %2085
      %2087 = vrot.lane.b32.xlu0 %v1932, 18
      %v2088 = vpop.permute.xlu0 %2087
      %2089 = vrot.lane.b32.xlu0 %v1935, 18
      %v2090 = vpop.permute.xlu0 %2089
      %2091 = vrot.lane.b32.xlu0 %v1937, 18
      %v2092 = vpop.permute.xlu0 %2091
      %2093 = vrot.lane.b32.xlu0 %v1471, 27
      %v2094 = vpop.permute.xlu0 %2093
      %2095 = vrot.lane.b32.xlu0 %v1208, 27
      %v2096 = vpop.permute.xlu0 %2095
      %2097 = vrot.lane.b32.xlu0 %v1472, 27
      %v2098 = vpop.permute.xlu0 %2097
      %2099 = vrot.lane.b32.xlu0 %v1223, 27
      %v2100 = vpop.permute.xlu0 %2099
      %2101 = vrot.lane.b32.xlu0 %v1473, 27
      %v2102 = vpop.permute.xlu0 %2101
      %2103 = vrot.lane.b32.xlu0 %v1238, 27
      %v2104 = vpop.permute.xlu0 %2103
      %2105 = vrot.lane.b32.xlu0 %v1474, 27
      %v2106 = vpop.permute.xlu0 %2105
      %2107 = vrot.lane.b32.xlu0 %v1253, 27
      %v2108 = vpop.permute.xlu0 %2107
      %2109 = vrot.lane.b32.xlu0 %v1475, 27
      %v2110 = vpop.permute.xlu0 %2109
      %2111 = vrot.lane.b32.xlu0 %v1268, 27
      %v2112 = vpop.permute.xlu0 %2111
      %2113 = vrot.lane.b32.xlu0 %v1476, 27
      %v2114 = vpop.permute.xlu0 %2113
      %2115 = vrot.lane.b32.xlu0 %v1283, 27
      %v2116 = vpop.permute.xlu0 %2115
      %2117 = vrot.lane.b32.xlu0 %v1477, 27
      %v2118 = vpop.permute.xlu0 %2117
      %2119 = vrot.lane.b32.xlu0 %v1298, 27
      %v2120 = vpop.permute.xlu0 %2119
      %2121 = vrot.lane.b32.xlu0 %v1478, 27
      %v2122 = vpop.permute.xlu0 %2121
      %2123 = vrot.lane.b32.xlu0 %v1313, 27
      %v2124 = vpop.permute.xlu0 %2123
      %2125 = vrot.lane.b32.xlu0 %v1479, 27
      %v2126 = vpop.permute.xlu0 %2125
      %2127 = vrot.lane.b32.xlu0 %v1328, 27
      %v2128 = vpop.permute.xlu0 %2127
      %2129 = vrot.lane.b32.xlu0 %v1480, 27
      %v2130 = vpop.permute.xlu0 %2129
      %2131 = vrot.lane.b32.xlu0 %v1343, 27
      %v2132 = vpop.permute.xlu0 %2131
      %2133 = vrot.lane.b32.xlu0 %v1481, 27
      %v2134 = vpop.permute.xlu0 %2133
      %2135 = vrot.lane.b32.xlu0 %v1358, 27
      %v2136 = vpop.permute.xlu0 %2135
      %2137 = vrot.lane.b32.xlu0 %v1482, 27
      %v2138 = vpop.permute.xlu0 %2137
      %2139 = vrot.lane.b32.xlu0 %v1373, 27
      %v2140 = vpop.permute.xlu0 %2139
      %2141 = vrot.lane.b32.xlu0 %v1483, 27
      %v2142 = vpop.permute.xlu0 %2141
      %2143 = vrot.lane.b32.xlu0 %v1388, 27
      %v2144 = vpop.permute.xlu0 %2143
      %2145 = vrot.lane.b32.xlu0 %v1484, 27
      %v2146 = vpop.permute.xlu0 %2145
      %2147 = vrot.lane.b32.xlu0 %v1403, 27
      %v2148 = vpop.permute.xlu0 %2147
      %2149 = vrot.lane.b32.xlu0 %v1485, 27
      %v2150 = vpop.permute.xlu0 %2149
      %2151 = vrot.lane.b32.xlu0 %v1418, 27
      %v2152 = vpop.permute.xlu0 %2151
      %2153 = vrot.lane.b32.xlu0 %v1486, 27
      %v2154 = vpop.permute.xlu0 %2153
      %2155 = vrot.lane.b32.xlu0 %v1433, 27
      %v2156 = vpop.permute.xlu0 %2155
      %2157 = vrot.lane.b32.xlu0 %v1536, 36
      %v2158 = vpop.permute.xlu0 %2157
      %2159 = vrot.lane.b32.xlu0 %v1544, 36
      %v2160 = vpop.permute.xlu0 %2159
      %2161 = vrot.lane.b32.xlu0 %v1556, 36
      %v2162 = vpop.permute.xlu0 %2161
      %2163 = vrot.lane.b32.xlu0 %v1564, 36
      %v2164 = vpop.permute.xlu0 %2163
      %2165 = vrot.lane.b32.xlu0 %v1576, 36
      %v2166 = vpop.permute.xlu0 %2165
      %2167 = vrot.lane.b32.xlu0 %v1584, 36
      %v2168 = vpop.permute.xlu0 %2167
      %2169 = vrot.lane.b32.xlu0 %v1596, 36
      %v2170 = vpop.permute.xlu0 %2169
      %2171 = vrot.lane.b32.xlu0 %v1604, 36
      %v2172 = vpop.permute.xlu0 %2171
      %2173 = vrot.lane.b32.xlu0 %v1616, 36
      %v2174 = vpop.permute.xlu0 %2173
      %2175 = vrot.lane.b32.xlu0 %v1624, 36
      %v2176 = vpop.permute.xlu0 %2175
      %2177 = vrot.lane.b32.xlu0 %v1636, 36
      %v2178 = vpop.permute.xlu0 %2177
      %2179 = vrot.lane.b32.xlu0 %v1644, 36
      %v2180 = vpop.permute.xlu0 %2179
      %2181 = vrot.lane.b32.xlu0 %v1656, 36
      %v2182 = vpop.permute.xlu0 %2181
      %2183 = vrot.lane.b32.xlu0 %v1664, 36
      %v2184 = vpop.permute.xlu0 %2183
      %2185 = vrot.lane.b32.xlu0 %v1676, 36
      %v2186 = vpop.permute.xlu0 %2185
      %2187 = vrot.lane.b32.xlu0 %v1684, 36
      %v2188 = vpop.permute.xlu0 %2187
      %2189 = vrot.lane.b32.xlu0 %v1696, 36
      %v2190 = vpop.permute.xlu0 %2189
      %2191 = vrot.lane.b32.xlu0 %v1704, 36
      %v2192 = vpop.permute.xlu0 %2191
      %2193 = vrot.lane.b32.xlu0 %v1716, 36
      %v2194 = vpop.permute.xlu0 %2193
      %2195 = vrot.lane.b32.xlu0 %v1724, 36
      %v2196 = vpop.permute.xlu0 %2195
      %2197 = vrot.lane.b32.xlu0 %v1736, 36
      %v2198 = vpop.permute.xlu0 %2197
      %2199 = vrot.lane.b32.xlu0 %v1744, 36
      %v2200 = vpop.permute.xlu0 %2199
      %2201 = vrot.lane.b32.xlu0 %v1756, 36
      %v2202 = vpop.permute.xlu0 %2201
      %2203 = vrot.lane.b32.xlu0 %v1764, 36
      %v2204 = vpop.permute.xlu0 %2203
      %2205 = vrot.lane.b32.xlu0 %v1776, 36
      %v2206 = vpop.permute.xlu0 %2205
      %2207 = vrot.lane.b32.xlu0 %v1784, 36
      %v2208 = vpop.permute.xlu0 %2207
      %2209 = vrot.lane.b32.xlu0 %v1796, 36
      %v2210 = vpop.permute.xlu0 %2209
      %2211 = vrot.lane.b32.xlu0 %v1804, 36
      %v2212 = vpop.permute.xlu0 %2211
      %2213 = vrot.lane.b32.xlu0 %v1816, 36
      %v2214 = vpop.permute.xlu0 %2213
      %2215 = vrot.lane.b32.xlu0 %v1824, 36
      %v2216 = vpop.permute.xlu0 %2215
      %2217 = vrot.lane.b32.xlu0 %v1949, 36
      %v2218 = vpop.permute.xlu0 %2217
      %2219 = vrot.lane.b32.xlu0 %v1957, 36
      %v2220 = vpop.permute.xlu0 %2219
      %2221 = vrot.lane.b32.xlu0 %v1865, 45
      %v2222 = vpop.permute.xlu0 %2221
      %2223 = vrot.lane.b32.xlu0 %v1867, 45
      %v2224 = vpop.permute.xlu0 %2223
      %2225 = vrot.lane.b32.xlu0 %v1870, 45
      %v2226 = vpop.permute.xlu0 %2225
      %2227 = vrot.lane.b32.xlu0 %v1872, 45
      %v2228 = vpop.permute.xlu0 %2227
      %2229 = vrot.lane.b32.xlu0 %v1875, 45
      %v2230 = vpop.permute.xlu0 %2229
      %2231 = vrot.lane.b32.xlu0 %v1877, 45
      %v2232 = vpop.permute.xlu0 %2231
      %2233 = vrot.lane.b32.xlu0 %v1880, 45
      %v2234 = vpop.permute.xlu0 %2233
      %2235 = vrot.lane.b32.xlu0 %v1882, 45
      %v2236 = vpop.permute.xlu0 %2235
      %2237 = vrot.lane.b32.xlu0 %v1885, 45
      %v2238 = vpop.permute.xlu0 %2237
      %2239 = vrot.lane.b32.xlu0 %v1887, 45
      %v2240 = vpop.permute.xlu0 %2239
      %2241 = vrot.lane.b32.xlu0 %v1890, 45
      %v2242 = vpop.permute.xlu0 %2241
      %2243 = vrot.lane.b32.xlu0 %v1892, 45
      %v2244 = vpop.permute.xlu0 %2243
      %2245 = vrot.lane.b32.xlu0 %v1895, 45
      %v2246 = vpop.permute.xlu0 %2245
      %2247 = vrot.lane.b32.xlu0 %v1897, 45
      %v2248 = vpop.permute.xlu0 %2247
      %2249 = vrot.lane.b32.xlu0 %v1900, 45
      %v2250 = vpop.permute.xlu0 %2249
      %2251 = vrot.lane.b32.xlu0 %v1902, 45
      %v2252 = vpop.permute.xlu0 %2251
      %2253 = vrot.lane.b32.xlu0 %v1905, 45
      %v2254 = vpop.permute.xlu0 %2253
      %2255 = vrot.lane.b32.xlu0 %v1907, 45
      %v2256 = vpop.permute.xlu0 %2255
      %2257 = vrot.lane.b32.xlu0 %v1910, 45
      %v2258 = vpop.permute.xlu0 %2257
      %2259 = vrot.lane.b32.xlu0 %v1912, 45
      %v2260 = vpop.permute.xlu0 %2259
      %2261 = vrot.lane.b32.xlu0 %v1915, 45
      %v2262 = vpop.permute.xlu0 %2261
      %2263 = vrot.lane.b32.xlu0 %v1917, 45
      %v2264 = vpop.permute.xlu0 %2263
      %2265 = vrot.lane.b32.xlu0 %v1920, 45
      %v2266 = vpop.permute.xlu0 %2265
      %2267 = vrot.lane.b32.xlu0 %v1922, 45
      %v2268 = vpop.permute.xlu0 %2267
      %2269 = vrot.lane.b32.xlu0 %v1925, 45
      %v2270 = vpop.permute.xlu0 %2269
      %2271 = vrot.lane.b32.xlu0 %v1927, 45
      %v2272 = vpop.permute.xlu0 %2271
      %2273 = vrot.lane.b32.xlu0 %v1930, 45
      %v2274 = vpop.permute.xlu0 %2273
      %2275 = vrot.lane.b32.xlu0 %v1932, 45
      %v2276 = vpop.permute.xlu0 %2275
      %2277 = vrot.lane.b32.xlu0 %v1935, 45
      %v2278 = vpop.permute.xlu0 %2277
      %2279 = vrot.lane.b32.xlu0 %v1937, 45
      %v2280 = vpop.permute.xlu0 %2279
      %2281 = vrot.lane.b32.xlu0 %v1962, 45
      %v2282 = vpop.permute.xlu0 %2281
      %2283 = vrot.lane.b32.xlu0 %v1964, 45
      %v2284 = vpop.permute.xlu0 %2283
      %2285 = vrot.lane.b32.xlu0 %v1472, 54
      %v2286 = vpop.permute.xlu0 %2285
      %2287 = vrot.lane.b32.xlu0 %v1223, 54
      %v2288 = vpop.permute.xlu0 %2287
      %2289 = vrot.lane.b32.xlu0 %v1473, 54
      %v2290 = vpop.permute.xlu0 %2289
      %2291 = vrot.lane.b32.xlu0 %v1238, 54
      %v2292 = vpop.permute.xlu0 %2291
      %2293 = vrot.lane.b32.xlu0 %v1474, 54
      %v2294 = vpop.permute.xlu0 %2293
      %2295 = vrot.lane.b32.xlu0 %v1253, 54
      %v2296 = vpop.permute.xlu0 %2295
      %2297 = vrot.lane.b32.xlu0 %v1475, 54
      %v2298 = vpop.permute.xlu0 %2297
      %2299 = vrot.lane.b32.xlu0 %v1268, 54
      %v2300 = vpop.permute.xlu0 %2299
      %2301 = vrot.lane.b32.xlu0 %v1476, 54
      %v2302 = vpop.permute.xlu0 %2301
      %2303 = vrot.lane.b32.xlu0 %v1283, 54
      %v2304 = vpop.permute.xlu0 %2303
      %2305 = vrot.lane.b32.xlu0 %v1477, 54
      %v2306 = vpop.permute.xlu0 %2305
      %2307 = vrot.lane.b32.xlu0 %v1298, 54
      %v2308 = vpop.permute.xlu0 %2307
      %2309 = vrot.lane.b32.xlu0 %v1478, 54
      %v2310 = vpop.permute.xlu0 %2309
      %2311 = vrot.lane.b32.xlu0 %v1313, 54
      %v2312 = vpop.permute.xlu0 %2311
      %2313 = vrot.lane.b32.xlu0 %v1479, 54
      %v2314 = vpop.permute.xlu0 %2313
      %2315 = vrot.lane.b32.xlu0 %v1328, 54
      %v2316 = vpop.permute.xlu0 %2315
      %2317 = vrot.lane.b32.xlu0 %v1480, 54
      %v2318 = vpop.permute.xlu0 %2317
      %2319 = vrot.lane.b32.xlu0 %v1343, 54
      %v2320 = vpop.permute.xlu0 %2319
      %2321 = vrot.lane.b32.xlu0 %v1481, 54
      %v2322 = vpop.permute.xlu0 %2321
      %2323 = vrot.lane.b32.xlu0 %v1358, 54
      %v2324 = vpop.permute.xlu0 %2323
      %2325 = vrot.lane.b32.xlu0 %v1482, 54
      %v2326 = vpop.permute.xlu0 %2325
      %2327 = vrot.lane.b32.xlu0 %v1373, 54
      %v2328 = vpop.permute.xlu0 %2327
      %2329 = vrot.lane.b32.xlu0 %v1483, 54
      %v2330 = vpop.permute.xlu0 %2329
      %2331 = vrot.lane.b32.xlu0 %v1388, 54
      %v2332 = vpop.permute.xlu0 %2331
      %2333 = vrot.lane.b32.xlu0 %v1484, 54
      %v2334 = vpop.permute.xlu0 %2333
      %2335 = vrot.lane.b32.xlu0 %v1403, 54
      %v2336 = vpop.permute.xlu0 %2335
      %2337 = vrot.lane.b32.xlu0 %v1485, 54
      %v2338 = vpop.permute.xlu0 %2337
      %2339 = vrot.lane.b32.xlu0 %v1418, 54
      %v2340 = vpop.permute.xlu0 %2339
      %2341 = vrot.lane.b32.xlu0 %v1486, 54
      %v2342 = vpop.permute.xlu0 %2341
      %2343 = vrot.lane.b32.xlu0 %v1433, 54
      %v2344 = vpop.permute.xlu0 %2343
      %2345 = vrot.lane.b32.xlu0 %v1470, 54
      %v2346 = vpop.permute.xlu0 %2345
      %2347 = vrot.lane.b32.xlu0 %v1193, 54
      %v2348 = vpop.permute.xlu0 %2347
      %2349 = vrot.lane.b32.xlu0 %v1556, 63
      %v2350 = vpop.permute.xlu0 %2349
      %2351 = vrot.lane.b32.xlu0 %v1564, 63
      %v2352 = vpop.permute.xlu0 %2351
      %2353 = vrot.lane.b32.xlu0 %v1576, 63
      %v2354 = vpop.permute.xlu0 %2353
      %2355 = vrot.lane.b32.xlu0 %v1584, 63
      %v2356 = vpop.permute.xlu0 %2355
      %2357 = vrot.lane.b32.xlu0 %v1596, 63
      %v2358 = vpop.permute.xlu0 %2357
      %2359 = vrot.lane.b32.xlu0 %v1604, 63
      %v2360 = vpop.permute.xlu0 %2359
      %2361 = vrot.lane.b32.xlu0 %v1616, 63
      %v2362 = vpop.permute.xlu0 %2361
      %2363 = vrot.lane.b32.xlu0 %v1624, 63
      %v2364 = vpop.permute.xlu0 %2363
      %2365 = vrot.lane.b32.xlu0 %v1636, 63
      %v2366 = vpop.permute.xlu0 %2365
      %2367 = vrot.lane.b32.xlu0 %v1644, 63
      %v2368 = vpop.permute.xlu0 %2367
      %2369 = vrot.lane.b32.xlu0 %v1656, 63
      %v2370 = vpop.permute.xlu0 %2369
      %2371 = vrot.lane.b32.xlu0 %v1664, 63
      %v2372 = vpop.permute.xlu0 %2371
      %2373 = vrot.lane.b32.xlu0 %v1676, 63
      %v2374 = vpop.permute.xlu0 %2373
      %2375 = vrot.lane.b32.xlu0 %v1684, 63
      %v2376 = vpop.permute.xlu0 %2375
      %2377 = vrot.lane.b32.xlu0 %v1696, 63
      %v2378 = vpop.permute.xlu0 %2377
      %2379 = vrot.lane.b32.xlu0 %v1704, 63
      %v2380 = vpop.permute.xlu0 %2379
      %2381 = vrot.lane.b32.xlu0 %v1716, 63
      %v2382 = vpop.permute.xlu0 %2381
      %2383 = vrot.lane.b32.xlu0 %v1724, 63
      %v2384 = vpop.permute.xlu0 %2383
      %2385 = vrot.lane.b32.xlu0 %v1736, 63
      %v2386 = vpop.permute.xlu0 %2385
      %2387 = vrot.lane.b32.xlu0 %v1744, 63
      %v2388 = vpop.permute.xlu0 %2387
      %2389 = vrot.lane.b32.xlu0 %v1756, 63
      %v2390 = vpop.permute.xlu0 %2389
      %2391 = vrot.lane.b32.xlu0 %v1764, 63
      %v2392 = vpop.permute.xlu0 %2391
      %2393 = vrot.lane.b32.xlu0 %v1776, 63
      %v2394 = vpop.permute.xlu0 %2393
      %2395 = vrot.lane.b32.xlu0 %v1784, 63
      %v2396 = vpop.permute.xlu0 %2395
      %2397 = vrot.lane.b32.xlu0 %v1796, 63
      %v2398 = vpop.permute.xlu0 %2397
      %2399 = vrot.lane.b32.xlu0 %v1804, 63
      %v2400 = vpop.permute.xlu0 %2399
      %2401 = vrot.lane.b32.xlu0 %v1816, 63
      %v2402 = vpop.permute.xlu0 %2401
      %2403 = vrot.lane.b32.xlu0 %v1824, 63
      %v2404 = vpop.permute.xlu0 %2403
      %2405 = vrot.lane.b32.xlu0 %v1949, 63
      %v2406 = vpop.permute.xlu0 %2405
      %2407 = vrot.lane.b32.xlu0 %v1957, 63
      %v2408 = vpop.permute.xlu0 %2407
      %2409 = vrot.lane.b32.xlu0 %v1516, 63
      %v2410 = vpop.permute.xlu0 %2409
      %2411 = vrot.lane.b32.xlu0 %v1524, 63
      %v2412 = vpop.permute.xlu0 %2411
      %2413 = vrot.lane.b32.xlu0 %v1870, 72
      %v2414 = vpop.permute.xlu0 %2413
      %2415 = vrot.lane.b32.xlu0 %v1872, 72
      %v2416 = vpop.permute.xlu0 %2415
      %2417 = vrot.lane.b32.xlu0 %v1875, 72
      %v2418 = vpop.permute.xlu0 %2417
      %2419 = vrot.lane.b32.xlu0 %v1877, 72
      %v2420 = vpop.permute.xlu0 %2419
      %2421 = vrot.lane.b32.xlu0 %v1880, 72
      %v2422 = vpop.permute.xlu0 %2421
      %2423 = vrot.lane.b32.xlu0 %v1882, 72
      %v2424 = vpop.permute.xlu0 %2423
      %2425 = vrot.lane.b32.xlu0 %v1885, 72
      %v2426 = vpop.permute.xlu0 %2425
      %2427 = vrot.lane.b32.xlu0 %v1887, 72
      %v2428 = vpop.permute.xlu0 %2427
      %2429 = vrot.lane.b32.xlu0 %v1890, 72
      %v2430 = vpop.permute.xlu0 %2429
      %2431 = vrot.lane.b32.xlu0 %v1892, 72
      %v2432 = vpop.permute.xlu0 %2431
      %2433 = vrot.lane.b32.xlu0 %v1895, 72
      %v2434 = vpop.permute.xlu0 %2433
      %2435 = vrot.lane.b32.xlu0 %v1897, 72
      %v2436 = vpop.permute.xlu0 %2435
      %2437 = vrot.lane.b32.xlu0 %v1900, 72
      %v2438 = vpop.permute.xlu0 %2437
      %2439 = vrot.lane.b32.xlu0 %v1902, 72
      %v2440 = vpop.permute.xlu0 %2439
      %2441 = vrot.lane.b32.xlu0 %v1905, 72
      %v2442 = vpop.permute.xlu0 %2441
      %2443 = vrot.lane.b32.xlu0 %v1907, 72
      %v2444 = vpop.permute.xlu0 %2443
      %2445 = vrot.lane.b32.xlu0 %v1910, 72
      %v2446 = vpop.permute.xlu0 %2445
      %2447 = vrot.lane.b32.xlu0 %v1912, 72
      %v2448 = vpop.permute.xlu0 %2447
      %2449 = vrot.lane.b32.xlu0 %v1915, 72
      %v2450 = vpop.permute.xlu0 %2449
      %2451 = vrot.lane.b32.xlu0 %v1917, 72
      %v2452 = vpop.permute.xlu0 %2451
      %2453 = vrot.lane.b32.xlu0 %v1920, 72
      %v2454 = vpop.permute.xlu0 %2453
      %2455 = vrot.lane.b32.xlu0 %v1922, 72
      %v2456 = vpop.permute.xlu0 %2455
      %2457 = vrot.lane.b32.xlu0 %v1925, 72
      %v2458 = vpop.permute.xlu0 %2457
      %2459 = vrot.lane.b32.xlu0 %v1927, 72
      %v2460 = vpop.permute.xlu0 %2459
      %2461 = vrot.lane.b32.xlu0 %v1930, 72
      %v2462 = vpop.permute.xlu0 %2461
      %2463 = vrot.lane.b32.xlu0 %v1932, 72
      %v2464 = vpop.permute.xlu0 %2463
      %2465 = vrot.lane.b32.xlu0 %v1935, 72
      %v2466 = vpop.permute.xlu0 %2465
      %2467 = vrot.lane.b32.xlu0 %v1937, 72
      %v2468 = vpop.permute.xlu0 %2467
      %2469 = vrot.lane.b32.xlu0 %v1962, 72
      %v2470 = vpop.permute.xlu0 %2469
      %2471 = vrot.lane.b32.xlu0 %v1964, 72
      %v2472 = vpop.permute.xlu0 %2471
      %2473 = vrot.lane.b32.xlu0 %v1860, 72
      %v2474 = vpop.permute.xlu0 %2473
      %2475 = vrot.lane.b32.xlu0 %v1862, 72
      %v2476 = vpop.permute.xlu0 %2475
      %vm2477 = vcmask 72704
      %v2479 = vsel %vm2477, %v1470, %v1966
      %v2481 = vsel %vm2477, %v1193, %v1968
      %v2483 = vsel %vm2477, %v1471, %v1970
      %v2485 = vsel %vm2477, %v1208, %v1972
      %v2487 = vsel %vm2477, %v1472, %v1974
      %v2489 = vsel %vm2477, %v1223, %v1976
      %v2491 = vsel %vm2477, %v1473, %v1978
      %v2493 = vsel %vm2477, %v1238, %v1980
      %v2495 = vsel %vm2477, %v1474, %v1982
      %v2497 = vsel %vm2477, %v1253, %v1984
      %v2499 = vsel %vm2477, %v1475, %v1986
      %v2501 = vsel %vm2477, %v1268, %v1988
      %v2503 = vsel %vm2477, %v1476, %v1990
      %v2505 = vsel %vm2477, %v1283, %v1992
      %v2507 = vsel %vm2477, %v1477, %v1994
      %v2509 = vsel %vm2477, %v1298, %v1996
      %v2511 = vsel %vm2477, %v1478, %v1998
      %v2513 = vsel %vm2477, %v1313, %v2000
      %v2515 = vsel %vm2477, %v1479, %v2002
      %v2517 = vsel %vm2477, %v1328, %v2004
      %v2519 = vsel %vm2477, %v1480, %v2006
      %v2521 = vsel %vm2477, %v1343, %v2008
      %v2523 = vsel %vm2477, %v1481, %v2010
      %v2525 = vsel %vm2477, %v1358, %v2012
      %v2527 = vsel %vm2477, %v1482, %v2014
      %v2529 = vsel %vm2477, %v1373, %v2016
      %v2531 = vsel %vm2477, %v1483, %v2018
      %v2533 = vsel %vm2477, %v1388, %v2020
      %v2535 = vsel %vm2477, %v1484, %v2022
      %v2537 = vsel %vm2477, %v1403, %v2024
      %v2539 = vsel %vm2477, %v1485, %v2026
      %v2541 = vsel %vm2477, %v1418, %v2028
      %vm2542 = vcmask 146432
      %v2544 = vsel %vm2542, %v2479, %v2030
      %v2546 = vsel %vm2542, %v2481, %v2032
      %v2548 = vsel %vm2542, %v2483, %v2034
      %v2550 = vsel %vm2542, %v2485, %v2036
      %v2552 = vsel %vm2542, %v2487, %v2038
      %v2554 = vsel %vm2542, %v2489, %v2040
      %v2556 = vsel %vm2542, %v2491, %v2042
      %v2558 = vsel %vm2542, %v2493, %v2044
      %v2560 = vsel %vm2542, %v2495, %v2046
      %v2562 = vsel %vm2542, %v2497, %v2048
      %v2564 = vsel %vm2542, %v2499, %v2050
      %v2566 = vsel %vm2542, %v2501, %v2052
      %v2568 = vsel %vm2542, %v2503, %v2054
      %v2570 = vsel %vm2542, %v2505, %v2056
      %v2572 = vsel %vm2542, %v2507, %v2058
      %v2574 = vsel %vm2542, %v2509, %v2060
      %v2576 = vsel %vm2542, %v2511, %v2062
      %v2578 = vsel %vm2542, %v2513, %v2064
      %v2580 = vsel %vm2542, %v2515, %v2066
      %v2582 = vsel %vm2542, %v2517, %v2068
      %v2584 = vsel %vm2542, %v2519, %v2070
      %v2586 = vsel %vm2542, %v2521, %v2072
      %v2588 = vsel %vm2542, %v2523, %v2074
      %v2590 = vsel %vm2542, %v2525, %v2076
      %v2592 = vsel %vm2542, %v2527, %v2078
      %v2594 = vsel %vm2542, %v2529, %v2080
      %v2596 = vsel %vm2542, %v2531, %v2082
      %v2598 = vsel %vm2542, %v2533, %v2084
      %v2600 = vsel %vm2542, %v2535, %v2086
      %v2602 = vsel %vm2542, %v2537, %v2088
      %v2604 = vsel %vm2542, %v2539, %v2090
      %v2606 = vsel %vm2542, %v2541, %v2092
      %vm2607 = vcmask 220160
      %v2609 = vsel %vm2607, %v2544, %v2094
      %v2611 = vsel %vm2607, %v2546, %v2096
      %v2613 = vsel %vm2607, %v2548, %v2098
      %v2615 = vsel %vm2607, %v2550, %v2100
      %v2617 = vsel %vm2607, %v2552, %v2102
      %v2619 = vsel %vm2607, %v2554, %v2104
      %v2621 = vsel %vm2607, %v2556, %v2106
      %v2623 = vsel %vm2607, %v2558, %v2108
      %v2625 = vsel %vm2607, %v2560, %v2110
      %v2627 = vsel %vm2607, %v2562, %v2112
      %v2629 = vsel %vm2607, %v2564, %v2114
      %v2631 = vsel %vm2607, %v2566, %v2116
      %v2633 = vsel %vm2607, %v2568, %v2118
      %v2635 = vsel %vm2607, %v2570, %v2120
      %v2637 = vsel %vm2607, %v2572, %v2122
      %v2639 = vsel %vm2607, %v2574, %v2124
      %v2641 = vsel %vm2607, %v2576, %v2126
      %v2643 = vsel %vm2607, %v2578, %v2128
      %v2645 = vsel %vm2607, %v2580, %v2130
      %v2647 = vsel %vm2607, %v2582, %v2132
      %v2649 = vsel %vm2607, %v2584, %v2134
      %v2651 = vsel %vm2607, %v2586, %v2136
      %v2653 = vsel %vm2607, %v2588, %v2138
      %v2655 = vsel %vm2607, %v2590, %v2140
      %v2657 = vsel %vm2607, %v2592, %v2142
      %v2659 = vsel %vm2607, %v2594, %v2144
      %v2661 = vsel %vm2607, %v2596, %v2146
      %v2663 = vsel %vm2607, %v2598, %v2148
      %v2665 = vsel %vm2607, %v2600, %v2150
      %v2667 = vsel %vm2607, %v2602, %v2152
      %v2669 = vsel %vm2607, %v2604, %v2154
      %v2671 = vsel %vm2607, %v2606, %v2156
      %vm2672 = vcmask 293888
      %v2674 = vsel %vm2672, %v2609, %v2158
      %v2676 = vsel %vm2672, %v2611, %v2160
      %v2678 = vsel %vm2672, %v2613, %v2162
      %v2680 = vsel %vm2672, %v2615, %v2164
      %v2682 = vsel %vm2672, %v2617, %v2166
      %v2684 = vsel %vm2672, %v2619, %v2168
      %v2686 = vsel %vm2672, %v2621, %v2170
      %v2688 = vsel %vm2672, %v2623, %v2172
      %v2690 = vsel %vm2672, %v2625, %v2174
      %v2692 = vsel %vm2672, %v2627, %v2176
      %v2694 = vsel %vm2672, %v2629, %v2178
      %v2696 = vsel %vm2672, %v2631, %v2180
      %v2698 = vsel %vm2672, %v2633, %v2182
      %v2700 = vsel %vm2672, %v2635, %v2184
      %v2702 = vsel %vm2672, %v2637, %v2186
      %v2704 = vsel %vm2672, %v2639, %v2188
      %v2706 = vsel %vm2672, %v2641, %v2190
      %v2708 = vsel %vm2672, %v2643, %v2192
      %v2710 = vsel %vm2672, %v2645, %v2194
      %v2712 = vsel %vm2672, %v2647, %v2196
      %v2714 = vsel %vm2672, %v2649, %v2198
      %v2716 = vsel %vm2672, %v2651, %v2200
      %v2718 = vsel %vm2672, %v2653, %v2202
      %v2720 = vsel %vm2672, %v2655, %v2204
      %v2722 = vsel %vm2672, %v2657, %v2206
      %v2724 = vsel %vm2672, %v2659, %v2208
      %v2726 = vsel %vm2672, %v2661, %v2210
      %v2728 = vsel %vm2672, %v2663, %v2212
      %v2730 = vsel %vm2672, %v2665, %v2214
      %v2732 = vsel %vm2672, %v2667, %v2216
      %v2734 = vsel %vm2672, %v2669, %v2218
      %v2736 = vsel %vm2672, %v2671, %v2220
      %vm2737 = vcmask 367616
      %v2739 = vsel %vm2737, %v2674, %v2222
      %v2741 = vsel %vm2737, %v2676, %v2224
      %v2743 = vsel %vm2737, %v2678, %v2226
      %v2745 = vsel %vm2737, %v2680, %v2228
      %v2747 = vsel %vm2737, %v2682, %v2230
      %v2749 = vsel %vm2737, %v2684, %v2232
      %v2751 = vsel %vm2737, %v2686, %v2234
      %v2753 = vsel %vm2737, %v2688, %v2236
      %v2755 = vsel %vm2737, %v2690, %v2238
      %v2757 = vsel %vm2737, %v2692, %v2240
      %v2759 = vsel %vm2737, %v2694, %v2242
      %v2761 = vsel %vm2737, %v2696, %v2244
      %v2763 = vsel %vm2737, %v2698, %v2246
      %v2765 = vsel %vm2737, %v2700, %v2248
      %v2767 = vsel %vm2737, %v2702, %v2250
      %v2769 = vsel %vm2737, %v2704, %v2252
      %v2771 = vsel %vm2737, %v2706, %v2254
      %v2773 = vsel %vm2737, %v2708, %v2256
      %v2775 = vsel %vm2737, %v2710, %v2258
      %v2777 = vsel %vm2737, %v2712, %v2260
      %v2779 = vsel %vm2737, %v2714, %v2262
      %v2781 = vsel %vm2737, %v2716, %v2264
      %v2783 = vsel %vm2737, %v2718, %v2266
      %v2785 = vsel %vm2737, %v2720, %v2268
      %v2787 = vsel %vm2737, %v2722, %v2270
      %v2789 = vsel %vm2737, %v2724, %v2272
      %v2791 = vsel %vm2737, %v2726, %v2274
      %v2793 = vsel %vm2737, %v2728, %v2276
      %v2795 = vsel %vm2737, %v2730, %v2278
      %v2797 = vsel %vm2737, %v2732, %v2280
      %v2799 = vsel %vm2737, %v2734, %v2282
      %v2801 = vsel %vm2737, %v2736, %v2284
      %vm2802 = vcmask 441344
      %v2804 = vsel %vm2802, %v2739, %v2286
      %v2806 = vsel %vm2802, %v2741, %v2288
      %v2808 = vsel %vm2802, %v2743, %v2290
      %v2810 = vsel %vm2802, %v2745, %v2292
      %v2812 = vsel %vm2802, %v2747, %v2294
      %v2814 = vsel %vm2802, %v2749, %v2296
      %v2816 = vsel %vm2802, %v2751, %v2298
      %v2818 = vsel %vm2802, %v2753, %v2300
      %v2820 = vsel %vm2802, %v2755, %v2302
      %v2822 = vsel %vm2802, %v2757, %v2304
      %v2824 = vsel %vm2802, %v2759, %v2306
      %v2826 = vsel %vm2802, %v2761, %v2308
      %v2828 = vsel %vm2802, %v2763, %v2310
      %v2830 = vsel %vm2802, %v2765, %v2312
      %v2832 = vsel %vm2802, %v2767, %v2314
      %v2834 = vsel %vm2802, %v2769, %v2316
      %v2836 = vsel %vm2802, %v2771, %v2318
      %v2838 = vsel %vm2802, %v2773, %v2320
      %v2840 = vsel %vm2802, %v2775, %v2322
      %v2842 = vsel %vm2802, %v2777, %v2324
      %v2844 = vsel %vm2802, %v2779, %v2326
      %v2846 = vsel %vm2802, %v2781, %v2328
      %v2848 = vsel %vm2802, %v2783, %v2330
      %v2850 = vsel %vm2802, %v2785, %v2332
      %v2852 = vsel %vm2802, %v2787, %v2334
      %v2854 = vsel %vm2802, %v2789, %v2336
      %v2856 = vsel %vm2802, %v2791, %v2338
      %v2858 = vsel %vm2802, %v2793, %v2340
      %v2860 = vsel %vm2802, %v2795, %v2342
      %v2862 = vsel %vm2802, %v2797, %v2344
      %v2864 = vsel %vm2802, %v2799, %v2346
      %v2866 = vsel %vm2802, %v2801, %v2348
      %vm2867 = vcmask 515072
      %v2869 = vsel %vm2867, %v2804, %v2350
      %v2871 = vsel %vm2867, %v2806, %v2352
      %v2873 = vsel %vm2867, %v2808, %v2354
      %v2875 = vsel %vm2867, %v2810, %v2356
      %v2877 = vsel %vm2867, %v2812, %v2358
      %v2879 = vsel %vm2867, %v2814, %v2360
      %v2881 = vsel %vm2867, %v2816, %v2362
      %v2883 = vsel %vm2867, %v2818, %v2364
      %v2885 = vsel %vm2867, %v2820, %v2366
      %v2887 = vsel %vm2867, %v2822, %v2368
      %v2889 = vsel %vm2867, %v2824, %v2370
      %v2891 = vsel %vm2867, %v2826, %v2372
      %v2893 = vsel %vm2867, %v2828, %v2374
      %v2895 = vsel %vm2867, %v2830, %v2376
      %v2897 = vsel %vm2867, %v2832, %v2378
      %v2899 = vsel %vm2867, %v2834, %v2380
      %v2901 = vsel %vm2867, %v2836, %v2382
      %v2903 = vsel %vm2867, %v2838, %v2384
      %v2905 = vsel %vm2867, %v2840, %v2386
      %v2907 = vsel %vm2867, %v2842, %v2388
      %v2909 = vsel %vm2867, %v2844, %v2390
      %v2911 = vsel %vm2867, %v2846, %v2392
      %v2913 = vsel %vm2867, %v2848, %v2394
      %v2915 = vsel %vm2867, %v2850, %v2396
      %v2917 = vsel %vm2867, %v2852, %v2398
      %v2919 = vsel %vm2867, %v2854, %v2400
      %v2921 = vsel %vm2867, %v2856, %v2402
      %v2923 = vsel %vm2867, %v2858, %v2404
      %v2925 = vsel %vm2867, %v2860, %v2406
      %v2927 = vsel %vm2867, %v2862, %v2408
      %v2929 = vsel %vm2867, %v2864, %v2410
      %v2931 = vsel %vm2867, %v2866, %v2412
      %vm2932 = vcmask 588800
      %v2934 = vsel %vm2932, %v2869, %v2414
      %v2936 = vsel %vm2932, %v2871, %v2416
      %v2938 = vsel %vm2932, %v2873, %v2418
      %v2940 = vsel %vm2932, %v2875, %v2420
      %v2942 = vsel %vm2932, %v2877, %v2422
      %v2944 = vsel %vm2932, %v2879, %v2424
      %v2946 = vsel %vm2932, %v2881, %v2426
      %v2948 = vsel %vm2932, %v2883, %v2428
      %v2950 = vsel %vm2932, %v2885, %v2430
      %v2952 = vsel %vm2932, %v2887, %v2432
      %v2954 = vsel %vm2932, %v2889, %v2434
      %v2956 = vsel %vm2932, %v2891, %v2436
      %v2958 = vsel %vm2932, %v2893, %v2438
      %v2960 = vsel %vm2932, %v2895, %v2440
      %v2962 = vsel %vm2932, %v2897, %v2442
      %v2964 = vsel %vm2932, %v2899, %v2444
      %v2966 = vsel %vm2932, %v2901, %v2446
      %v2968 = vsel %vm2932, %v2903, %v2448
      %v2970 = vsel %vm2932, %v2905, %v2450
      %v2972 = vsel %vm2932, %v2907, %v2452
      %v2974 = vsel %vm2932, %v2909, %v2454
      %v2976 = vsel %vm2932, %v2911, %v2456
      %v2978 = vsel %vm2932, %v2913, %v2458
      %v2980 = vsel %vm2932, %v2915, %v2460
      %v2982 = vsel %vm2932, %v2917, %v2462
      %v2984 = vsel %vm2932, %v2919, %v2464
      %v2986 = vsel %vm2932, %v2921, %v2466
      %v2988 = vsel %vm2932, %v2923, %v2468
      %v2990 = vsel %vm2932, %v2925, %v2470
      %v2992 = vsel %vm2932, %v2927, %v2472
      %v2994 = vsel %vm2932, %v2929, %v2474
      %v2996 = vsel %vm2932, %v2931, %v2476
      %v2998 = vperm.slane %v1024, 0
      %v3011 = vunpack.c.l.b16 %v1013
      %v3012 = vunpack.c.l.b16 %v1014
      %v3013 = vunpack.c.l.b16 %v1015
      %v3014 = vunpack.c.l.b16 %v1016
      %v3015 = vunpack.c.l.b16 %v1017
      %v3016 = vunpack.c.l.b16 %v1018
      %v3017 = vunpack.c.l.b16 %v1019
      %v3018 = vunpack.c.l.b16 %v1020
      %v3019 = vunpack.c.l.b16 %v1021
      %v3020 = vunpack.c.l.b16 %v1022
      %v3021 = vunpack.c.l.b16 %v1023
      %v3022 = vpack.c.b16 %v3012, %v3011
      %v3023 = vpack.c.b16 %v3014, %v3013
      %v3024 = vpack.c.b16 %v3016, %v3015
      %v3025 = vpack.c.b16 %v3018, %v3017
      %v3026 = vpack.c.b16 %v3020, %v3019
      %v3027 = vpack.c.b16 %v3021, %v3021
      %vm3033 = vcmask 662528
      %v3034 = vsel %vm3033, %v2934, 0
      %v3036 = vsel %vm3033, %v2936, 0
      %v3038 = vsel %vm3033, %v2938, 0
      %v3040 = vsel %vm3033, %v2940, 0
      %v3042 = vsel %vm3033, %v2942, 0
      %v3044 = vsel %vm3033, %v2944, 0
      %v3046 = vsel %vm3033, %v2946, 0
      %v3048 = vsel %vm3033, %v2948, 0
      %v3050 = vsel %vm3033, %v2950, 0
      %v3052 = vsel %vm3033, %v2952, 0
      %v3054 = vsel %vm3033, %v2954, 0
      %v3056 = vsel %vm3033, %v2956, 0
      %v3058 = vsel %vm3033, %v2958, 0
      %v3060 = vsel %vm3033, %v2960, 0
      %v3062 = vsel %vm3033, %v2962, 0
      %v3064 = vsel %vm3033, %v2964, 0
      %v3066 = vsel %vm3033, %v2966, 0
      %v3068 = vsel %vm3033, %v2968, 0
      %v3070 = vsel %vm3033, %v2970, 0
      %v3072 = vsel %vm3033, %v2972, 0
      %v3074 = vsel %vm3033, %v2974, 0
      %v3076 = vsel %vm3033, %v2976, 0
      %v3078 = vsel %vm3033, %v2978, 0
      %v3080 = vsel %vm3033, %v2980, 0
      %v3082 = vsel %vm3033, %v2982, 0
      %v3084 = vsel %vm3033, %v2984, 0
      %v3086 = vsel %vm3033, %v2986, 0
      %v3088 = vsel %vm3033, %v2988, 0
      %v3090 = vsel %vm3033, %v2990, 0
      %v3092 = vsel %vm3033, %v2992, 0
      %v3094 = vsel %vm3033, %v2994, 0
      %v3096 = vsel %vm3033, %v2996, 0
      %vm3098 = vcmask 1040384
      %v3099 = vsel 0, 4294967295, 65535
      %v3100 = vsel %vm3098, %v3099, 0
      %v3102 = vand.u32 %v3027, %v3100
      %3104 = vmatpush.bf16.msra.mxu0 0
      %3105 = vmatpush.bf16.msra.mxu0 0
      %3106 = vmatpush.bf16.msra.mxu0 %v3102
      %3107 = vmatpush.bf16.msra.mxu0 %v3026
      %3108 = vmatpush.bf16.msra.mxu0 %v3025
      %3109 = vmatpush.bf16.msra.mxu0 %v3024
      %3110 = vmatpush.bf16.msra.mxu0 %v3023
      %3111 = vmatpush.bf16.msra.mxu0 %v3022
      %3112 = vmatmul.bf16.gmra.mxu0 %v3034
      %v3113 = vpop.f32.mrf.mxu0
      %v3114 = vadd.f32 %v2998, %v3113
      %v3115 = vpop.f32.mrf.mxu0
      %v3116 = vadd.f32 %v2998, %v3115
      %3117 = vmatmul.bf16.gmra.mxu0 %v3036
      %v3118 = vpop.f32.mrf.mxu0
      %v3119 = vadd.f32 %v2998, %v3118
      %v3120 = vpop.f32.mrf.mxu0
      %v3121 = vadd.f32 %v2998, %v3120
      %3122 = vmatmul.bf16.gmra.mxu0 %v3038
      %v3123 = vpop.f32.mrf.mxu0
      %v3124 = vadd.f32 %v2998, %v3123
      %v3125 = vpop.f32.mrf.mxu0
      %v3126 = vadd.f32 %v2998, %v3125
      %3127 = vmatmul.bf16.gmra.mxu0 %v3040
      %v3128 = vpop.f32.mrf.mxu0
      %v3129 = vadd.f32 %v2998, %v3128
      %v3130 = vpop.f32.mrf.mxu0
      %v3131 = vadd.f32 %v2998, %v3130
      %3132 = vmatmul.bf16.gmra.mxu0 %v3042
      %v3133 = vpop.f32.mrf.mxu0
      %v3134 = vadd.f32 %v2998, %v3133
      %v3135 = vpop.f32.mrf.mxu0
      %v3136 = vadd.f32 %v2998, %v3135
      %3137 = vmatmul.bf16.gmra.mxu0 %v3044
      %v3138 = vpop.f32.mrf.mxu0
      %v3139 = vadd.f32 %v2998, %v3138
      %v3140 = vpop.f32.mrf.mxu0
      %v3141 = vadd.f32 %v2998, %v3140
      %3142 = vmatmul.bf16.gmra.mxu0 %v3046
      %v3143 = vpop.f32.mrf.mxu0
      %v3144 = vadd.f32 %v2998, %v3143
      %v3145 = vpop.f32.mrf.mxu0
      %v3146 = vadd.f32 %v2998, %v3145
      %3147 = vmatmul.bf16.gmra.mxu0 %v3048
      %v3148 = vpop.f32.mrf.mxu0
      %v3149 = vadd.f32 %v2998, %v3148
      %v3150 = vpop.f32.mrf.mxu0
      %v3151 = vadd.f32 %v2998, %v3150
      %3152 = vmatmul.bf16.gmra.mxu0 %v3050
      %v3153 = vpop.f32.mrf.mxu0
      %v3154 = vadd.f32 %v2998, %v3153
      %v3155 = vpop.f32.mrf.mxu0
      %v3156 = vadd.f32 %v2998, %v3155
      %3157 = vmatmul.bf16.gmra.mxu0 %v3052
      %v3158 = vpop.f32.mrf.mxu0
      %v3159 = vadd.f32 %v2998, %v3158
      %v3160 = vpop.f32.mrf.mxu0
      %v3161 = vadd.f32 %v2998, %v3160
      %3162 = vmatmul.bf16.gmra.mxu0 %v3054
      %v3163 = vpop.f32.mrf.mxu0
      %v3164 = vadd.f32 %v2998, %v3163
      %v3165 = vpop.f32.mrf.mxu0
      %v3166 = vadd.f32 %v2998, %v3165
      %3167 = vmatmul.bf16.gmra.mxu0 %v3056
      %v3168 = vpop.f32.mrf.mxu0
      %v3169 = vadd.f32 %v2998, %v3168
      %v3170 = vpop.f32.mrf.mxu0
      %v3171 = vadd.f32 %v2998, %v3170
      %3172 = vmatmul.bf16.gmra.mxu0 %v3058
      %v3173 = vpop.f32.mrf.mxu0
      %v3174 = vadd.f32 %v2998, %v3173
      %v3175 = vpop.f32.mrf.mxu0
      %v3176 = vadd.f32 %v2998, %v3175
      %3177 = vmatmul.bf16.gmra.mxu0 %v3060
      %v3178 = vpop.f32.mrf.mxu0
      %v3179 = vadd.f32 %v2998, %v3178
      %v3180 = vpop.f32.mrf.mxu0
      %v3181 = vadd.f32 %v2998, %v3180
      %3182 = vmatmul.bf16.gmra.mxu0 %v3062
      %v3183 = vpop.f32.mrf.mxu0
      %v3184 = vadd.f32 %v2998, %v3183
      %v3185 = vpop.f32.mrf.mxu0
      %v3186 = vadd.f32 %v2998, %v3185
      %3187 = vmatmul.bf16.gmra.mxu0 %v3064
      %v3188 = vpop.f32.mrf.mxu0
      %v3189 = vadd.f32 %v2998, %v3188
      %v3190 = vpop.f32.mrf.mxu0
      %v3191 = vadd.f32 %v2998, %v3190
      %3192 = vmatmul.bf16.gmra.mxu0 %v3066
      %v3193 = vpop.f32.mrf.mxu0
      %v3194 = vadd.f32 %v2998, %v3193
      %v3195 = vpop.f32.mrf.mxu0
      %v3196 = vadd.f32 %v2998, %v3195
      %3197 = vmatmul.bf16.gmra.mxu0 %v3068
      %v3198 = vpop.f32.mrf.mxu0
      %v3199 = vadd.f32 %v2998, %v3198
      %v3200 = vpop.f32.mrf.mxu0
      %v3201 = vadd.f32 %v2998, %v3200
      %3202 = vmatmul.bf16.gmra.mxu0 %v3070
      %v3203 = vpop.f32.mrf.mxu0
      %v3204 = vadd.f32 %v2998, %v3203
      %v3205 = vpop.f32.mrf.mxu0
      %v3206 = vadd.f32 %v2998, %v3205
      %3207 = vmatmul.bf16.gmra.mxu0 %v3072
      %v3208 = vpop.f32.mrf.mxu0
      %v3209 = vadd.f32 %v2998, %v3208
      %v3210 = vpop.f32.mrf.mxu0
      %v3211 = vadd.f32 %v2998, %v3210
      %3212 = vmatmul.bf16.gmra.mxu0 %v3074
      %v3213 = vpop.f32.mrf.mxu0
      %v3214 = vadd.f32 %v2998, %v3213
      %v3215 = vpop.f32.mrf.mxu0
      %v3216 = vadd.f32 %v2998, %v3215
      %3217 = vmatmul.bf16.gmra.mxu0 %v3076
      %v3218 = vpop.f32.mrf.mxu0
      %v3219 = vadd.f32 %v2998, %v3218
      %v3220 = vpop.f32.mrf.mxu0
      %v3221 = vadd.f32 %v2998, %v3220
      %3222 = vmatmul.bf16.gmra.mxu0 %v3078
      %v3223 = vpop.f32.mrf.mxu0
      %v3224 = vadd.f32 %v2998, %v3223
      %v3225 = vpop.f32.mrf.mxu0
      %v3226 = vadd.f32 %v2998, %v3225
      %3227 = vmatmul.bf16.gmra.mxu0 %v3080
      %v3228 = vpop.f32.mrf.mxu0
      %v3229 = vadd.f32 %v2998, %v3228
      %v3230 = vpop.f32.mrf.mxu0
      %v3231 = vadd.f32 %v2998, %v3230
      %3232 = vmatmul.bf16.gmra.mxu0 %v3082
      %v3233 = vpop.f32.mrf.mxu0
      %v3234 = vadd.f32 %v2998, %v3233
      %v3235 = vpop.f32.mrf.mxu0
      %v3236 = vadd.f32 %v2998, %v3235
      %3237 = vmatmul.bf16.gmra.mxu0 %v3084
      %v3238 = vpop.f32.mrf.mxu0
      %v3239 = vadd.f32 %v2998, %v3238
      %v3240 = vpop.f32.mrf.mxu0
      %v3241 = vadd.f32 %v2998, %v3240
      %3242 = vmatmul.bf16.gmra.mxu0 %v3086
      %v3243 = vpop.f32.mrf.mxu0
      %v3244 = vadd.f32 %v2998, %v3243
      %v3245 = vpop.f32.mrf.mxu0
      %v3246 = vadd.f32 %v2998, %v3245
      %3247 = vmatmul.bf16.gmra.mxu0 %v3088
      %v3248 = vpop.f32.mrf.mxu0
      %v3249 = vadd.f32 %v2998, %v3248
      %v3250 = vpop.f32.mrf.mxu0
      %v3251 = vadd.f32 %v2998, %v3250
      %3252 = vmatmul.bf16.gmra.mxu0 %v3090
      %v3253 = vpop.f32.mrf.mxu0
      %v3254 = vadd.f32 %v2998, %v3253
      %v3255 = vpop.f32.mrf.mxu0
      %v3256 = vadd.f32 %v2998, %v3255
      %3257 = vmatmul.bf16.gmra.mxu0 %v3092
      %v3258 = vpop.f32.mrf.mxu0
      %v3259 = vadd.f32 %v2998, %v3258
      %v3260 = vpop.f32.mrf.mxu0
      %v3261 = vadd.f32 %v2998, %v3260
      %3262 = vmatmul.bf16.gmra.mxu0 %v3094
      %v3263 = vpop.f32.mrf.mxu0
      %v3264 = vadd.f32 %v2998, %v3263
      %v3265 = vpop.f32.mrf.mxu0
      %v3266 = vadd.f32 %v2998, %v3265
      %3267 = vmatmul.bf16.gmra.mxu0 %v3096
      %v3268 = vpop.f32.mrf.mxu0
      %v3269 = vadd.f32 %v2998, %v3268
      %v3270 = vpop.f32.mrf.mxu0
      %v3271 = vadd.f32 %v2998, %v3270
      %3272 = vdwg.mxu0
      %v3273 = vmax.f32 %v3114, 0.0
      %v3274 = vmax.f32 %v3116, 0.0
      %v3275 = vmax.f32 %v3119, 0.0
      %v3276 = vmax.f32 %v3121, 0.0
      %v3277 = vmax.f32 %v3124, 0.0
      %v3278 = vmax.f32 %v3126, 0.0
      %v3279 = vmax.f32 %v3129, 0.0
      %v3280 = vmax.f32 %v3131, 0.0
      %v3281 = vmax.f32 %v3134, 0.0
      %v3282 = vmax.f32 %v3136, 0.0
      %v3283 = vmax.f32 %v3139, 0.0
      %v3284 = vmax.f32 %v3141, 0.0
      %v3285 = vmax.f32 %v3144, 0.0
      %v3286 = vmax.f32 %v3146, 0.0
      %v3287 = vmax.f32 %v3149, 0.0
      %v3288 = vmax.f32 %v3151, 0.0
      %v3289 = vmax.f32 %v3154, 0.0
      %v3290 = vmax.f32 %v3156, 0.0
      %v3291 = vmax.f32 %v3159, 0.0
      %v3292 = vmax.f32 %v3161, 0.0
      %v3293 = vmax.f32 %v3164, 0.0
      %v3294 = vmax.f32 %v3166, 0.0
      %v3295 = vmax.f32 %v3169, 0.0
      %v3296 = vmax.f32 %v3171, 0.0
      %v3297 = vmax.f32 %v3174, 0.0
      %v3298 = vmax.f32 %v3176, 0.0
      %v3299 = vmax.f32 %v3179, 0.0
      %v3300 = vmax.f32 %v3181, 0.0
      %v3301 = vmax.f32 %v3184, 0.0
      %v3302 = vmax.f32 %v3186, 0.0
      %v3303 = vmax.f32 %v3189, 0.0
      %v3304 = vmax.f32 %v3191, 0.0
      %v3305 = vmax.f32 %v3194, 0.0
      %v3306 = vmax.f32 %v3196, 0.0
      %v3307 = vmax.f32 %v3199, 0.0
      %v3308 = vmax.f32 %v3201, 0.0
      %v3309 = vmax.f32 %v3204, 0.0
      %v3310 = vmax.f32 %v3206, 0.0
      %v3311 = vmax.f32 %v3209, 0.0
      %v3312 = vmax.f32 %v3211, 0.0
      %v3313 = vmax.f32 %v3214, 0.0
      %v3314 = vmax.f32 %v3216, 0.0
      %v3315 = vmax.f32 %v3219, 0.0
      %v3316 = vmax.f32 %v3221, 0.0
      %v3317 = vmax.f32 %v3224, 0.0
      %v3318 = vmax.f32 %v3226, 0.0
      %v3319 = vmax.f32 %v3229, 0.0
      %v3320 = vmax.f32 %v3231, 0.0
      %v3321 = vmax.f32 %v3234, 0.0
      %v3322 = vmax.f32 %v3236, 0.0
      %v3323 = vmax.f32 %v3239, 0.0
      %v3324 = vmax.f32 %v3241, 0.0
      %v3325 = vmax.f32 %v3244, 0.0
      %v3326 = vmax.f32 %v3246, 0.0
      %v3327 = vmax.f32 %v3249, 0.0
      %v3328 = vmax.f32 %v3251, 0.0
      %v3329 = vmax.f32 %v3254, 0.0
      %v3330 = vmax.f32 %v3256, 0.0
      %v3331 = vmax.f32 %v3259, 0.0
      %v3332 = vmax.f32 %v3261, 0.0
      %v3333 = vmax.f32 %v3264, 0.0
      %v3334 = vmax.f32 %v3266, 0.0
      %v3335 = vmax.f32 %v3269, 0.0
      %v3336 = vmax.f32 %v3271, 0.0
      %v3337 = vpack.c.bf16 %v3273, %v3273
      %v3338 = vpack.c.bf16 %v3274, %v3274
      %v3339 = vpack.c.bf16 %v3275, %v3275
      %v3340 = vpack.c.bf16 %v3276, %v3276
      %v3341 = vpack.c.bf16 %v3277, %v3277
      %v3342 = vpack.c.bf16 %v3278, %v3278
      %v3343 = vpack.c.bf16 %v3279, %v3279
      %v3344 = vpack.c.bf16 %v3280, %v3280
      %v3345 = vpack.c.bf16 %v3281, %v3281
      %v3346 = vpack.c.bf16 %v3282, %v3282
      %v3347 = vpack.c.bf16 %v3283, %v3283
      %v3348 = vpack.c.bf16 %v3284, %v3284
      %v3349 = vpack.c.bf16 %v3285, %v3285
      %v3350 = vpack.c.bf16 %v3286, %v3286
      %v3351 = vpack.c.bf16 %v3287, %v3287
      %v3352 = vpack.c.bf16 %v3288, %v3288
      %v3353 = vpack.c.bf16 %v3289, %v3289
      %v3354 = vpack.c.bf16 %v3290, %v3290
      %v3355 = vpack.c.bf16 %v3291, %v3291
      %v3356 = vpack.c.bf16 %v3292, %v3292
      %v3357 = vpack.c.bf16 %v3293, %v3293
      %v3358 = vpack.c.bf16 %v3294, %v3294
      %v3359 = vpack.c.bf16 %v3295, %v3295
      %v3360 = vpack.c.bf16 %v3296, %v3296
      %v3361 = vpack.c.bf16 %v3297, %v3297
      %v3362 = vpack.c.bf16 %v3298, %v3298
      %v3363 = vpack.c.bf16 %v3299, %v3299
      %v3364 = vpack.c.bf16 %v3300, %v3300
      %v3365 = vpack.c.bf16 %v3301, %v3301
      %v3366 = vpack.c.bf16 %v3302, %v3302
      %v3367 = vpack.c.bf16 %v3303, %v3303
      %v3368 = vpack.c.bf16 %v3304, %v3304
      %v3369 = vpack.c.bf16 %v3305, %v3305
      %v3370 = vpack.c.bf16 %v3306, %v3306
      %v3371 = vpack.c.bf16 %v3307, %v3307
      %v3372 = vpack.c.bf16 %v3308, %v3308
      %v3373 = vpack.c.bf16 %v3309, %v3309
      %v3374 = vpack.c.bf16 %v3310, %v3310
      %v3375 = vpack.c.bf16 %v3311, %v3311
      %v3376 = vpack.c.bf16 %v3312, %v3312
      %v3377 = vpack.c.bf16 %v3313, %v3313
      %v3378 = vpack.c.bf16 %v3314, %v3314
      %v3379 = vpack.c.bf16 %v3315, %v3315
      %v3380 = vpack.c.bf16 %v3316, %v3316
      %v3381 = vpack.c.bf16 %v3317, %v3317
      %v3382 = vpack.c.bf16 %v3318, %v3318
      %v3383 = vpack.c.bf16 %v3319, %v3319
      %v3384 = vpack.c.bf16 %v3320, %v3320
      %v3385 = vpack.c.bf16 %v3321, %v3321
      %v3386 = vpack.c.bf16 %v3322, %v3322
      %v3387 = vpack.c.bf16 %v3323, %v3323
      %v3388 = vpack.c.bf16 %v3324, %v3324
      %v3389 = vpack.c.bf16 %v3325, %v3325
      %v3390 = vpack.c.bf16 %v3326, %v3326
      %v3391 = vpack.c.bf16 %v3327, %v3327
      %v3392 = vpack.c.bf16 %v3328, %v3328
      %v3393 = vpack.c.bf16 %v3329, %v3329
      %v3394 = vpack.c.bf16 %v3330, %v3330
      %v3395 = vpack.c.bf16 %v3331, %v3331
      %v3396 = vpack.c.bf16 %v3332, %v3332
      %v3397 = vpack.c.bf16 %v3333, %v3333
      %v3398 = vpack.c.bf16 %v3334, %v3334
      %v3399 = vpack.c.bf16 %v3335, %v3335
      %v3400 = vpack.c.bf16 %v3336, %v3336
      %v3401 = vld [vmem:[%s5] sm:$0xf]
      %v3402 = vld [vmem:[%s5 + $0x4] sm:$0xf]
      %v3403 = vld [vmem:[%s5 + $0x8] sm:$0xf]
      %v3404 = vld [vmem:[%s5 + $0xc] sm:$0xf]
      %v3405 = vld [vmem:[%s5 + $0x10] sm:$0xf]
      %v3406 = vld [vmem:[%s5 + $0x14] sm:$0xf]
      %v3407 = vld [vmem:[%s5 + $0x18] sm:$0xf]
      %v3408 = vld [vmem:[%s5 + $0x1c] sm:$0xf]
      %v3409 = vld [vmem:[%s5 + $0x20] sm:$0xf]
      %v3410 = vld [vmem:[%s5 + $0x24] sm:$0xf]
      %v3411 = vld [vmem:[%s5 + $0x28] sm:$0xf]
      %v3412 = vld [vmem:[%s5 + $0x2c] sm:$0xf]
      %v3413 = vld [vmem:[%s5 + $0x30] sm:$0xf]
      %v3414 = vld [vmem:[%s5 + $0x34] sm:$0xf]
      %v3415 = vld [vmem:[%s5 + $0x38] sm:$0xf]
      %v3416 = vld [vmem:[%s5 + $0x3c] sm:$0xf]
      %v3417 = vld [vmem:[%s5 + $0x40] sm:$0xf]
      %v3418 = vld [vmem:[%s5 + $0x44] sm:$0xf]
      %v3419 = vld [vmem:[%s5 + $0x48] sm:$0xf]
      %v3420 = vld [vmem:[%s5 + $0x4c] sm:$0xf]
      %v3421 = vld [vmem:[%s5 + $0x50] sm:$0xf]
      %v3422 = vld [vmem:[%s5 + $0x54] sm:$0xf]
      %v3423 = vld [vmem:[%s5 + $0x58] sm:$0xf]
      %v3424 = vld [vmem:[%s5 + $0x5c] sm:$0xf]
      %v3425 = vld [vmem:[%s5 + $0x60] sm:$0xf]
      %v3426 = vld [vmem:[%s5 + $0x64] sm:$0xf]
      %v3427 = vld [vmem:[%s5 + $0x68] sm:$0xf]
      %v3428 = vld [vmem:[%s5 + $0x6c] sm:$0xf]
      %v3429 = vld [vmem:[%s5 + $0x70] sm:$0xf]
      %v3430 = vld [vmem:[%s5 + $0x74] sm:$0xf]
      %v3431 = vld [vmem:[%s5 + $0x78] sm:$0xf]
      %v3432 = vld [vmem:[%s5 + $0x7c] sm:$0xf]
      %v3433 = vld [vmem:[%s5 + $0x80] sm:$0xf]
      %v3434 = vld [vmem:[%s5 + $0x84] sm:$0xf]
      %v3435 = vld [vmem:[%s5 + $0x88] sm:$0xf]
      %v3436 = vld [vmem:[%s5 + $0x8c] sm:$0xf]
      %v3437 = vld [vmem:[%s5 + $0x90] sm:$0xf]
      %v3438 = vld [vmem:[%s5 + $0x94] sm:$0xf]
      %v3439 = vld [vmem:[%s5 + $0x98] sm:$0xf]
      %v3440 = vld [vmem:[%s5 + $0x9c] sm:$0xf]
      %v3441 = vld [vmem:[%s5 + $0xa0] sm:$0x3]
      %v3442 = vld [vmem:[%s6] sm:$0x1]
      %v3507 = vunpack.c.l.b16 %v3337
      %v3508 = vunpack.c.l.b16 %v3338
      %v3509 = vunpack.c.l.b16 %v3339
      %v3510 = vunpack.c.l.b16 %v3340
      %v3511 = vunpack.c.l.b16 %v3341
      %v3512 = vunpack.c.l.b16 %v3342
      %v3513 = vunpack.c.l.b16 %v3343
      %v3514 = vunpack.c.l.b16 %v3344
      %v3515 = vunpack.c.l.b16 %v3345
      %v3516 = vunpack.c.l.b16 %v3346
      %v3517 = vunpack.c.l.b16 %v3347
      %v3518 = vunpack.c.l.b16 %v3348
      %v3519 = vunpack.c.l.b16 %v3349
      %v3520 = vunpack.c.l.b16 %v3350
      %v3521 = vunpack.c.l.b16 %v3351
      %v3522 = vunpack.c.l.b16 %v3352
      %v3523 = vunpack.c.l.b16 %v3353
      %v3524 = vunpack.c.l.b16 %v3354
      %v3525 = vunpack.c.l.b16 %v3355
      %v3526 = vunpack.c.l.b16 %v3356
      %v3527 = vunpack.c.l.b16 %v3357
      %v3528 = vunpack.c.l.b16 %v3358
      %v3529 = vunpack.c.l.b16 %v3359
      %v3530 = vunpack.c.l.b16 %v3360
      %v3531 = vunpack.c.l.b16 %v3361
      %v3532 = vunpack.c.l.b16 %v3362
      %v3533 = vunpack.c.l.b16 %v3363
      %v3534 = vunpack.c.l.b16 %v3364
      %v3535 = vunpack.c.l.b16 %v3365
      %v3536 = vunpack.c.l.b16 %v3366
      %v3537 = vunpack.c.l.b16 %v3367
      %v3538 = vunpack.c.l.b16 %v3368
      %v3539 = vunpack.c.l.b16 %v3369
      %v3540 = vunpack.c.l.b16 %v3370
      %v3541 = vunpack.c.l.b16 %v3371
      %v3542 = vunpack.c.l.b16 %v3372
      %v3543 = vunpack.c.l.b16 %v3373
      %v3544 = vunpack.c.l.b16 %v3374
      %v3545 = vunpack.c.l.b16 %v3375
      %v3546 = vunpack.c.l.b16 %v3376
      %v3547 = vunpack.c.l.b16 %v3377
      %v3548 = vunpack.c.l.b16 %v3378
      %v3549 = vunpack.c.l.b16 %v3379
      %v3550 = vunpack.c.l.b16 %v3380
      %v3551 = vunpack.c.l.b16 %v3381
      %v3552 = vunpack.c.l.b16 %v3382
      %v3553 = vunpack.c.l.b16 %v3383
      %v3554 = vunpack.c.l.b16 %v3384
      %v3555 = vunpack.c.l.b16 %v3385
      %v3556 = vunpack.c.l.b16 %v3386
      %v3557 = vunpack.c.l.b16 %v3387
      %v3558 = vunpack.c.l.b16 %v3388
      %v3559 = vunpack.c.l.b16 %v3389
      %v3560 = vunpack.c.l.b16 %v3390
      %v3561 = vunpack.c.l.b16 %v3391
      %v3562 = vunpack.c.l.b16 %v3392
      %v3563 = vunpack.c.l.b16 %v3393
      %v3564 = vunpack.c.l.b16 %v3394
      %v3565 = vunpack.c.l.b16 %v3395
      %v3566 = vunpack.c.l.b16 %v3396
      %v3567 = vunpack.c.l.b16 %v3397
      %v3568 = vunpack.c.l.b16 %v3398
      %v3569 = vunpack.c.l.b16 %v3399
      %v3570 = vunpack.c.l.b16 %v3400
      %v3571 = vpack.c.b16 %v3508, %v3507
      %v3572 = vpack.c.b16 %v3510, %v3509
      %v3573 = vpack.c.b16 %v3512, %v3511
      %v3574 = vpack.c.b16 %v3514, %v3513
      %v3575 = vpack.c.b16 %v3516, %v3515
      %v3576 = vpack.c.b16 %v3518, %v3517
      %v3577 = vpack.c.b16 %v3520, %v3519
      %v3578 = vpack.c.b16 %v3522, %v3521
      %v3579 = vpack.c.b16 %v3524, %v3523
      %v3580 = vpack.c.b16 %v3526, %v3525
      %v3581 = vpack.c.b16 %v3528, %v3527
      %v3582 = vpack.c.b16 %v3530, %v3529
      %v3583 = vpack.c.b16 %v3532, %v3531
      %v3584 = vpack.c.b16 %v3534, %v3533
      %v3585 = vpack.c.b16 %v3536, %v3535
      %v3586 = vpack.c.b16 %v3538, %v3537
      %v3587 = vpack.c.b16 %v3540, %v3539
      %v3588 = vpack.c.b16 %v3542, %v3541
      %v3589 = vpack.c.b16 %v3544, %v3543
      %v3590 = vpack.c.b16 %v3546, %v3545
      %v3591 = vpack.c.b16 %v3548, %v3547
      %v3592 = vpack.c.b16 %v3550, %v3549
      %v3593 = vpack.c.b16 %v3552, %v3551
      %v3594 = vpack.c.b16 %v3554, %v3553
      %v3595 = vpack.c.b16 %v3556, %v3555
      %v3596 = vpack.c.b16 %v3558, %v3557
      %v3597 = vpack.c.b16 %v3560, %v3559
      %v3598 = vpack.c.b16 %v3562, %v3561
      %v3599 = vpack.c.b16 %v3564, %v3563
      %v3600 = vpack.c.b16 %v3566, %v3565
      %v3601 = vpack.c.b16 %v3568, %v3567
      %v3602 = vpack.c.b16 %v3570, %v3569
      %v3604 = vshrl.u32 %v3571, 16
      %v3606 = vrot.slane %v3604, 7
      %v3607 = vshll.u32 %v3571, 16
      %v3609 = vor.u32 %v3606, %v3607
      %v3611 = vshrl.u32 %v3572, 16
      %v3613 = vrot.slane %v3611, 7
      %v3614 = vshll.u32 %v3572, 16
      %v3616 = vor.u32 %v3613, %v3614
      %v3617 = vsel %vm1185, %v3606, %v3616
      %v3619 = vshrl.u32 %v3573, 16
      %v3621 = vrot.slane %v3619, 7
      %v3622 = vshll.u32 %v3573, 16
      %v3624 = vor.u32 %v3621, %v3622
      %v3626 = vshrl.u32 %v3574, 16
      %v3628 = vrot.slane %v3626, 7
      %v3629 = vshll.u32 %v3574, 16
      %v3631 = vor.u32 %v3628, %v3629
      %v3632 = vsel %vm1185, %v3621, %v3631
      %v3634 = vshrl.u32 %v3575, 16
      %v3636 = vrot.slane %v3634, 7
      %v3637 = vshll.u32 %v3575, 16
      %v3639 = vor.u32 %v3636, %v3637
      %v3641 = vshrl.u32 %v3576, 16
      %v3643 = vrot.slane %v3641, 7
      %v3644 = vshll.u32 %v3576, 16
      %v3646 = vor.u32 %v3643, %v3644
      %v3647 = vsel %vm1185, %v3636, %v3646
      %v3649 = vshrl.u32 %v3577, 16
      %v3651 = vrot.slane %v3649, 7
      %v3652 = vshll.u32 %v3577, 16
      %v3654 = vor.u32 %v3651, %v3652
      %v3656 = vshrl.u32 %v3578, 16
      %v3658 = vrot.slane %v3656, 7
      %v3659 = vshll.u32 %v3578, 16
      %v3661 = vor.u32 %v3658, %v3659
      %v3662 = vsel %vm1185, %v3651, %v3661
      %v3664 = vshrl.u32 %v3579, 16
      %v3666 = vrot.slane %v3664, 7
      %v3667 = vshll.u32 %v3579, 16
      %v3669 = vor.u32 %v3666, %v3667
      %v3671 = vshrl.u32 %v3580, 16
      %v3673 = vrot.slane %v3671, 7
      %v3674 = vshll.u32 %v3580, 16
      %v3676 = vor.u32 %v3673, %v3674
      %v3677 = vsel %vm1185, %v3666, %v3676
      %v3679 = vshrl.u32 %v3581, 16
      %v3681 = vrot.slane %v3679, 7
      %v3682 = vshll.u32 %v3581, 16
      %v3684 = vor.u32 %v3681, %v3682
      %v3686 = vshrl.u32 %v3582, 16
      %v3688 = vrot.slane %v3686, 7
      %v3689 = vshll.u32 %v3582, 16
      %v3691 = vor.u32 %v3688, %v3689
      %v3692 = vsel %vm1185, %v3681, %v3691
      %v3694 = vshrl.u32 %v3583, 16
      %v3696 = vrot.slane %v3694, 7
      %v3697 = vshll.u32 %v3583, 16
      %v3699 = vor.u32 %v3696, %v3697
      %v3701 = vshrl.u32 %v3584, 16
      %v3703 = vrot.slane %v3701, 7
      %v3704 = vshll.u32 %v3584, 16
      %v3706 = vor.u32 %v3703, %v3704
      %v3707 = vsel %vm1185, %v3696, %v3706
      %v3709 = vshrl.u32 %v3585, 16
      %v3711 = vrot.slane %v3709, 7
      %v3712 = vshll.u32 %v3585, 16
      %v3714 = vor.u32 %v3711, %v3712
      %v3716 = vshrl.u32 %v3586, 16
      %v3718 = vrot.slane %v3716, 7
      %v3719 = vshll.u32 %v3586, 16
      %v3721 = vor.u32 %v3718, %v3719
      %v3722 = vsel %vm1185, %v3711, %v3721
      %v3724 = vshrl.u32 %v3587, 16
      %v3726 = vrot.slane %v3724, 7
      %v3727 = vshll.u32 %v3587, 16
      %v3729 = vor.u32 %v3726, %v3727
      %v3731 = vshrl.u32 %v3588, 16
      %v3733 = vrot.slane %v3731, 7
      %v3734 = vshll.u32 %v3588, 16
      %v3736 = vor.u32 %v3733, %v3734
      %v3737 = vsel %vm1185, %v3726, %v3736
      %v3739 = vshrl.u32 %v3589, 16
      %v3741 = vrot.slane %v3739, 7
      %v3742 = vshll.u32 %v3589, 16
      %v3744 = vor.u32 %v3741, %v3742
      %v3746 = vshrl.u32 %v3590, 16
      %v3748 = vrot.slane %v3746, 7
      %v3749 = vshll.u32 %v3590, 16
      %v3751 = vor.u32 %v3748, %v3749
      %v3752 = vsel %vm1185, %v3741, %v3751
      %v3754 = vshrl.u32 %v3591, 16
      %v3756 = vrot.slane %v3754, 7
      %v3757 = vshll.u32 %v3591, 16
      %v3759 = vor.u32 %v3756, %v3757
      %v3761 = vshrl.u32 %v3592, 16
      %v3763 = vrot.slane %v3761, 7
      %v3764 = vshll.u32 %v3592, 16
      %v3766 = vor.u32 %v3763, %v3764
      %v3767 = vsel %vm1185, %v3756, %v3766
      %v3769 = vshrl.u32 %v3593, 16
      %v3771 = vrot.slane %v3769, 7
      %v3772 = vshll.u32 %v3593, 16
      %v3774 = vor.u32 %v3771, %v3772
      %v3776 = vshrl.u32 %v3594, 16
      %v3778 = vrot.slane %v3776, 7
      %v3779 = vshll.u32 %v3594, 16
      %v3781 = vor.u32 %v3778, %v3779
      %v3782 = vsel %vm1185, %v3771, %v3781
      %v3784 = vshrl.u32 %v3595, 16
      %v3786 = vrot.slane %v3784, 7
      %v3787 = vshll.u32 %v3595, 16
      %v3789 = vor.u32 %v3786, %v3787
      %v3791 = vshrl.u32 %v3596, 16
      %v3793 = vrot.slane %v3791, 7
      %v3794 = vshll.u32 %v3596, 16
      %v3796 = vor.u32 %v3793, %v3794
      %v3797 = vsel %vm1185, %v3786, %v3796
      %v3799 = vshrl.u32 %v3597, 16
      %v3801 = vrot.slane %v3799, 7
      %v3802 = vshll.u32 %v3597, 16
      %v3804 = vor.u32 %v3801, %v3802
      %v3806 = vshrl.u32 %v3598, 16
      %v3808 = vrot.slane %v3806, 7
      %v3809 = vshll.u32 %v3598, 16
      %v3811 = vor.u32 %v3808, %v3809
      %v3812 = vsel %vm1185, %v3801, %v3811
      %v3814 = vshrl.u32 %v3599, 16
      %v3816 = vrot.slane %v3814, 7
      %v3817 = vshll.u32 %v3599, 16
      %v3819 = vor.u32 %v3816, %v3817
      %v3821 = vshrl.u32 %v3600, 16
      %v3823 = vrot.slane %v3821, 7
      %v3824 = vshll.u32 %v3600, 16
      %v3826 = vor.u32 %v3823, %v3824
      %v3827 = vsel %vm1185, %v3816, %v3826
      %v3829 = vshrl.u32 %v3601, 16
      %v3831 = vrot.slane %v3829, 7
      %v3832 = vshll.u32 %v3601, 16
      %v3834 = vor.u32 %v3831, %v3832
      %v3836 = vshrl.u32 %v3602, 16
      %v3838 = vrot.slane %v3836, 7
      %v3839 = vshll.u32 %v3602, 16
      %v3841 = vor.u32 %v3838, %v3839
      %v3842 = vsel %vm1185, %v3831, %v3841
      %v3875 = vsel %vm1469, 0, %v3609
      %v3876 = vsel %vm1469, 0, %v3624
      %v3877 = vsel %vm1469, 0, %v3639
      %v3878 = vsel %vm1469, 0, %v3654
      %v3879 = vsel %vm1469, 0, %v3669
      %v3880 = vsel %vm1469, 0, %v3684
      %v3881 = vsel %vm1469, 0, %v3699
      %v3882 = vsel %vm1469, 0, %v3714
      %v3883 = vsel %vm1469, 0, %v3729
      %v3884 = vsel %vm1469, 0, %v3744
      %v3885 = vsel %vm1469, 0, %v3759
      %v3886 = vsel %vm1469, 0, %v3774
      %v3887 = vsel %vm1469, 0, %v3789
      %v3888 = vsel %vm1469, 0, %v3804
      %v3889 = vsel %vm1469, 0, %v3819
      %v3890 = vsel %vm1469, 0, %v3834
      %v3891 = vsel %vm1469, %v3613, 0
      %v3892 = vsel %vm1469, %v3628, 0
      %v3893 = vsel %vm1469, %v3643, 0
      %v3894 = vsel %vm1469, %v3658, 0
      %v3895 = vsel %vm1469, %v3673, 0
      %v3896 = vsel %vm1469, %v3688, 0
      %v3897 = vsel %vm1469, %v3703, 0
      %v3898 = vsel %vm1469, %v3718, 0
      %v3899 = vsel %vm1469, %v3733, 0
      %v3900 = vsel %vm1469, %v3748, 0
      %v3901 = vsel %vm1469, %v3763, 0
      %v3902 = vsel %vm1469, %v3778, 0
      %v3903 = vsel %vm1469, %v3793, 0
      %v3904 = vsel %vm1469, %v3808, 0
      %v3905 = vsel %vm1469, %v3823, 0
      %v3906 = vsel %vm1469, %v3838, 0
      %v3908 = vshrl.u32 %v3875, 16
      %v3910 = vshll.u32 %v3875, 16
      %v3912 = vrot.slane %v3910, 1
      %v3913 = vor.u32 %v3908, %v3912
      %v3915 = vshll.u32 %v3617, 16
      %v3917 = vrot.slane %v3915, 1
      %v3918 = vsel %vm1504, %v3913, %v3917
      %v3919 = vshrl.u32 %v3617, 16
      %v3921 = vor.u32 %v3919, %v3917
      %v3923 = vshll.u32 %v3891, 16
      %v3925 = vrot.slane %v3923, 1
      %v3926 = vsel %vm1504, %v3921, %v3925
      %v3928 = vshrl.u32 %v3876, 16
      %v3930 = vshll.u32 %v3876, 16
      %v3932 = vrot.slane %v3930, 1
      %v3933 = vor.u32 %v3928, %v3932
      %v3935 = vshll.u32 %v3632, 16
      %v3937 = vrot.slane %v3935, 1
      %v3938 = vsel %vm1504, %v3933, %v3937
      %v3939 = vshrl.u32 %v3632, 16
      %v3941 = vor.u32 %v3939, %v3937
      %v3943 = vshll.u32 %v3892, 16
      %v3945 = vrot.slane %v3943, 1
      %v3946 = vsel %vm1504, %v3941, %v3945
      %v3948 = vshrl.u32 %v3877, 16
      %v3950 = vshll.u32 %v3877, 16
      %v3952 = vrot.slane %v3950, 1
      %v3953 = vor.u32 %v3948, %v3952
      %v3955 = vshll.u32 %v3647, 16
      %v3957 = vrot.slane %v3955, 1
      %v3958 = vsel %vm1504, %v3953, %v3957
      %v3959 = vshrl.u32 %v3647, 16
      %v3961 = vor.u32 %v3959, %v3957
      %v3963 = vshll.u32 %v3893, 16
      %v3965 = vrot.slane %v3963, 1
      %v3966 = vsel %vm1504, %v3961, %v3965
      %v3968 = vshrl.u32 %v3878, 16
      %v3970 = vshll.u32 %v3878, 16
      %v3972 = vrot.slane %v3970, 1
      %v3973 = vor.u32 %v3968, %v3972
      %v3975 = vshll.u32 %v3662, 16
      %v3977 = vrot.slane %v3975, 1
      %v3978 = vsel %vm1504, %v3973, %v3977
      %v3979 = vshrl.u32 %v3662, 16
      %v3981 = vor.u32 %v3979, %v3977
      %v3983 = vshll.u32 %v3894, 16
      %v3985 = vrot.slane %v3983, 1
      %v3986 = vsel %vm1504, %v3981, %v3985
      %v3988 = vshrl.u32 %v3879, 16
      %v3990 = vshll.u32 %v3879, 16
      %v3992 = vrot.slane %v3990, 1
      %v3993 = vor.u32 %v3988, %v3992
      %v3995 = vshll.u32 %v3677, 16
      %v3997 = vrot.slane %v3995, 1
      %v3998 = vsel %vm1504, %v3993, %v3997
      %v3999 = vshrl.u32 %v3677, 16
      %v4001 = vor.u32 %v3999, %v3997
      %v4003 = vshll.u32 %v3895, 16
      %v4005 = vrot.slane %v4003, 1
      %v4006 = vsel %vm1504, %v4001, %v4005
      %v4008 = vshrl.u32 %v3880, 16
      %v4010 = vshll.u32 %v3880, 16
      %v4012 = vrot.slane %v4010, 1
      %v4013 = vor.u32 %v4008, %v4012
      %v4015 = vshll.u32 %v3692, 16
      %v4017 = vrot.slane %v4015, 1
      %v4018 = vsel %vm1504, %v4013, %v4017
      %v4019 = vshrl.u32 %v3692, 16
      %v4021 = vor.u32 %v4019, %v4017
      %v4023 = vshll.u32 %v3896, 16
      %v4025 = vrot.slane %v4023, 1
      %v4026 = vsel %vm1504, %v4021, %v4025
      %v4028 = vshrl.u32 %v3881, 16
      %v4030 = vshll.u32 %v3881, 16
      %v4032 = vrot.slane %v4030, 1
      %v4033 = vor.u32 %v4028, %v4032
      %v4035 = vshll.u32 %v3707, 16
      %v4037 = vrot.slane %v4035, 1
      %v4038 = vsel %vm1504, %v4033, %v4037
      %v4039 = vshrl.u32 %v3707, 16
      %v4041 = vor.u32 %v4039, %v4037
      %v4043 = vshll.u32 %v3897, 16
      %v4045 = vrot.slane %v4043, 1
      %v4046 = vsel %vm1504, %v4041, %v4045
      %v4048 = vshrl.u32 %v3882, 16
      %v4050 = vshll.u32 %v3882, 16
      %v4052 = vrot.slane %v4050, 1
      %v4053 = vor.u32 %v4048, %v4052
      %v4055 = vshll.u32 %v3722, 16
      %v4057 = vrot.slane %v4055, 1
      %v4058 = vsel %vm1504, %v4053, %v4057
      %v4059 = vshrl.u32 %v3722, 16
      %v4061 = vor.u32 %v4059, %v4057
      %v4063 = vshll.u32 %v3898, 16
      %v4065 = vrot.slane %v4063, 1
      %v4066 = vsel %vm1504, %v4061, %v4065
      %v4068 = vshrl.u32 %v3883, 16
      %v4070 = vshll.u32 %v3883, 16
      %v4072 = vrot.slane %v4070, 1
      %v4073 = vor.u32 %v4068, %v4072
      %v4075 = vshll.u32 %v3737, 16
      %v4077 = vrot.slane %v4075, 1
      %v4078 = vsel %vm1504, %v4073, %v4077
      %v4079 = vshrl.u32 %v3737, 16
      %v4081 = vor.u32 %v4079, %v4077
      %v4083 = vshll.u32 %v3899, 16
      %v4085 = vrot.slane %v4083, 1
      %v4086 = vsel %vm1504, %v4081, %v4085
      %v4088 = vshrl.u32 %v3884, 16
      %v4090 = vshll.u32 %v3884, 16
      %v4092 = vrot.slane %v4090, 1
      %v4093 = vor.u32 %v4088, %v4092
      %v4095 = vshll.u32 %v3752, 16
      %v4097 = vrot.slane %v4095, 1
      %v4098 = vsel %vm1504, %v4093, %v4097
      %v4099 = vshrl.u32 %v3752, 16
      %v4101 = vor.u32 %v4099, %v4097
      %v4103 = vshll.u32 %v3900, 16
      %v4105 = vrot.slane %v4103, 1
      %v4106 = vsel %vm1504, %v4101, %v4105
      %v4108 = vshrl.u32 %v3885, 16
      %v4110 = vshll.u32 %v3885, 16
      %v4112 = vrot.slane %v4110, 1
      %v4113 = vor.u32 %v4108, %v4112
      %v4115 = vshll.u32 %v3767, 16
      %v4117 = vrot.slane %v4115, 1
      %v4118 = vsel %vm1504, %v4113, %v4117
      %v4119 = vshrl.u32 %v3767, 16
      %v4121 = vor.u32 %v4119, %v4117
      %v4123 = vshll.u32 %v3901, 16
      %v4125 = vrot.slane %v4123, 1
      %v4126 = vsel %vm1504, %v4121, %v4125
      %v4128 = vshrl.u32 %v3886, 16
      %v4130 = vshll.u32 %v3886, 16
      %v4132 = vrot.slane %v4130, 1
      %v4133 = vor.u32 %v4128, %v4132
      %v4135 = vshll.u32 %v3782, 16
      %v4137 = vrot.slane %v4135, 1
      %v4138 = vsel %vm1504, %v4133, %v4137
      %v4139 = vshrl.u32 %v3782, 16
      %v4141 = vor.u32 %v4139, %v4137
      %v4143 = vshll.u32 %v3902, 16
      %v4145 = vrot.slane %v4143, 1
      %v4146 = vsel %vm1504, %v4141, %v4145
      %v4148 = vshrl.u32 %v3887, 16
      %v4150 = vshll.u32 %v3887, 16
      %v4152 = vrot.slane %v4150, 1
      %v4153 = vor.u32 %v4148, %v4152
      %v4155 = vshll.u32 %v3797, 16
      %v4157 = vrot.slane %v4155, 1
      %v4158 = vsel %vm1504, %v4153, %v4157
      %v4159 = vshrl.u32 %v3797, 16
      %v4161 = vor.u32 %v4159, %v4157
      %v4163 = vshll.u32 %v3903, 16
      %v4165 = vrot.slane %v4163, 1
      %v4166 = vsel %vm1504, %v4161, %v4165
      %v4168 = vshrl.u32 %v3888, 16
      %v4170 = vshll.u32 %v3888, 16
      %v4172 = vrot.slane %v4170, 1
      %v4173 = vor.u32 %v4168, %v4172
      %v4175 = vshll.u32 %v3812, 16
      %v4177 = vrot.slane %v4175, 1
      %v4178 = vsel %vm1504, %v4173, %v4177
      %v4179 = vshrl.u32 %v3812, 16
      %v4181 = vor.u32 %v4179, %v4177
      %v4183 = vshll.u32 %v3904, 16
      %v4185 = vrot.slane %v4183, 1
      %v4186 = vsel %vm1504, %v4181, %v4185
      %v4188 = vshrl.u32 %v3889, 16
      %v4190 = vshll.u32 %v3889, 16
      %v4192 = vrot.slane %v4190, 1
      %v4193 = vor.u32 %v4188, %v4192
      %v4195 = vshll.u32 %v3827, 16
      %v4197 = vrot.slane %v4195, 1
      %v4198 = vsel %vm1504, %v4193, %v4197
      %v4199 = vshrl.u32 %v3827, 16
      %v4201 = vor.u32 %v4199, %v4197
      %v4203 = vshll.u32 %v3905, 16
      %v4205 = vrot.slane %v4203, 1
      %v4206 = vsel %vm1504, %v4201, %v4205
      %v4237 = vrot.slane %v3875, 1
      %v4238 = vrot.slane %v3617, 1
      %v4239 = vsel %vm1857, %v4237, %v4238
      %v4240 = vrot.slane %v3891, 1
      %v4241 = vsel %vm1857, %v4238, %v4240
      %v4242 = vrot.slane %v3876, 1
      %v4243 = vrot.slane %v3632, 1
      %v4244 = vsel %vm1857, %v4242, %v4243
      %v4245 = vrot.slane %v3892, 1
      %v4246 = vsel %vm1857, %v4243, %v4245
      %v4247 = vrot.slane %v3877, 1
      %v4248 = vrot.slane %v3647, 1
      %v4249 = vsel %vm1857, %v4247, %v4248
      %v4250 = vrot.slane %v3893, 1
      %v4251 = vsel %vm1857, %v4248, %v4250
      %v4252 = vrot.slane %v3878, 1
      %v4253 = vrot.slane %v3662, 1
      %v4254 = vsel %vm1857, %v4252, %v4253
      %v4255 = vrot.slane %v3894, 1
      %v4256 = vsel %vm1857, %v4253, %v4255
      %v4257 = vrot.slane %v3879, 1
      %v4258 = vrot.slane %v3677, 1
      %v4259 = vsel %vm1857, %v4257, %v4258
      %v4260 = vrot.slane %v3895, 1
      %v4261 = vsel %vm1857, %v4258, %v4260
      %v4262 = vrot.slane %v3880, 1
      %v4263 = vrot.slane %v3692, 1
      %v4264 = vsel %vm1857, %v4262, %v4263
      %v4265 = vrot.slane %v3896, 1
      %v4266 = vsel %vm1857, %v4263, %v4265
      %v4267 = vrot.slane %v3881, 1
      %v4268 = vrot.slane %v3707, 1
      %v4269 = vsel %vm1857, %v4267, %v4268
      %v4270 = vrot.slane %v3897, 1
      %v4271 = vsel %vm1857, %v4268, %v4270
      %v4272 = vrot.slane %v3882, 1
      %v4273 = vrot.slane %v3722, 1
      %v4274 = vsel %vm1857, %v4272, %v4273
      %v4275 = vrot.slane %v3898, 1
      %v4276 = vsel %vm1857, %v4273, %v4275
      %v4277 = vrot.slane %v3883, 1
      %v4278 = vrot.slane %v3737, 1
      %v4279 = vsel %vm1857, %v4277, %v4278
      %v4280 = vrot.slane %v3899, 1
      %v4281 = vsel %vm1857, %v4278, %v4280
      %v4282 = vrot.slane %v3884, 1
      %v4283 = vrot.slane %v3752, 1
      %v4284 = vsel %vm1857, %v4282, %v4283
      %v4285 = vrot.slane %v3900, 1
      %v4286 = vsel %vm1857, %v4283, %v4285
      %v4287 = vrot.slane %v3885, 1
      %v4288 = vrot.slane %v3767, 1
      %v4289 = vsel %vm1857, %v4287, %v4288
      %v4290 = vrot.slane %v3901, 1
      %v4291 = vsel %vm1857, %v4288, %v4290
      %v4292 = vrot.slane %v3886, 1
      %v4293 = vrot.slane %v3782, 1
      %v4294 = vsel %vm1857, %v4292, %v4293
      %v4295 = vrot.slane %v3902, 1
      %v4296 = vsel %vm1857, %v4293, %v4295
      %v4297 = vrot.slane %v3887, 1
      %v4298 = vrot.slane %v3797, 1
      %v4299 = vsel %vm1857, %v4297, %v4298
      %v4300 = vrot.slane %v3903, 1
      %v4301 = vsel %vm1857, %v4298, %v4300
      %v4302 = vrot.slane %v3888, 1
      %v4303 = vrot.slane %v3812, 1
      %v4304 = vsel %vm1857, %v4302, %v4303
      %v4305 = vrot.slane %v3904, 1
      %v4306 = vsel %vm1857, %v4303, %v4305
      %v4307 = vrot.slane %v3889, 1
      %v4308 = vrot.slane %v3827, 1
      %v4309 = vsel %vm1857, %v4307, %v4308
      %v4310 = vrot.slane %v3905, 1
      %v4311 = vsel %vm1857, %v4308, %v4310
      %v4313 = vshrl.u32 %v3890, 16
      %v4315 = vshll.u32 %v3890, 16
      %v4317 = vrot.slane %v4315, 1
      %v4318 = vor.u32 %v4313, %v4317
      %v4320 = vshll.u32 %v3842, 16
      %v4322 = vrot.slane %v4320, 1
      %v4323 = vsel %vm1504, %v4318, %v4322
      %v4324 = vshrl.u32 %v3842, 16
      %v4326 = vor.u32 %v4324, %v4322
      %v4328 = vshll.u32 %v3906, 16
      %v4330 = vrot.slane %v4328, 1
      %v4331 = vsel %vm1504, %v4326, %v4330
      %v4334 = vrot.slane %v3890, 1
      %v4335 = vrot.slane %v3842, 1
      %v4336 = vsel %vm1857, %v4334, %v4335
      %v4337 = vrot.slane %v3906, 1
      %v4338 = vsel %vm1857, %v4335, %v4337
      %4339 = vrot.lane.b32.xlu0 %v1516, 36
      %v4340 = vpop.permute.xlu0 %4339
      %4341 = vrot.lane.b32.xlu0 %v1524, 36
      %v4342 = vpop.permute.xlu0 %4341
      %4343 = vrot.lane.b32.xlu0 %v3918, 36
      %v4344 = vpop.permute.xlu0 %4343
      %4345 = vrot.lane.b32.xlu0 %v3926, 36
      %v4346 = vpop.permute.xlu0 %4345
      %4347 = vrot.lane.b32.xlu0 %v3938, 36
      %v4348 = vpop.permute.xlu0 %4347
      %4349 = vrot.lane.b32.xlu0 %v3946, 36
      %v4350 = vpop.permute.xlu0 %4349
      %4351 = vrot.lane.b32.xlu0 %v3958, 36
      %v4352 = vpop.permute.xlu0 %4351
      %4353 = vrot.lane.b32.xlu0 %v3966, 36
      %v4354 = vpop.permute.xlu0 %4353
      %4355 = vrot.lane.b32.xlu0 %v3978, 36
      %v4356 = vpop.permute.xlu0 %4355
      %4357 = vrot.lane.b32.xlu0 %v3986, 36
      %v4358 = vpop.permute.xlu0 %4357
      %4359 = vrot.lane.b32.xlu0 %v3998, 36
      %v4360 = vpop.permute.xlu0 %4359
      %4361 = vrot.lane.b32.xlu0 %v4006, 36
      %v4362 = vpop.permute.xlu0 %4361
      %4363 = vrot.lane.b32.xlu0 %v4018, 36
      %v4364 = vpop.permute.xlu0 %4363
      %4365 = vrot.lane.b32.xlu0 %v4026, 36
      %v4366 = vpop.permute.xlu0 %4365
      %4367 = vrot.lane.b32.xlu0 %v4038, 36
      %v4368 = vpop.permute.xlu0 %4367
      %4369 = vrot.lane.b32.xlu0 %v4046, 36
      %v4370 = vpop.permute.xlu0 %4369
      %4371 = vrot.lane.b32.xlu0 %v4058, 36
      %v4372 = vpop.permute.xlu0 %4371
      %4373 = vrot.lane.b32.xlu0 %v4066, 36
      %v4374 = vpop.permute.xlu0 %4373
      %4375 = vrot.lane.b32.xlu0 %v4078, 36
      %v4376 = vpop.permute.xlu0 %4375
      %4377 = vrot.lane.b32.xlu0 %v4086, 36
      %v4378 = vpop.permute.xlu0 %4377
      %4379 = vrot.lane.b32.xlu0 %v4098, 36
      %v4380 = vpop.permute.xlu0 %4379
      %4381 = vrot.lane.b32.xlu0 %v4106, 36
      %v4382 = vpop.permute.xlu0 %4381
      %4383 = vrot.lane.b32.xlu0 %v4118, 36
      %v4384 = vpop.permute.xlu0 %4383
      %4385 = vrot.lane.b32.xlu0 %v4126, 36
      %v4386 = vpop.permute.xlu0 %4385
      %4387 = vrot.lane.b32.xlu0 %v4138, 36
      %v4388 = vpop.permute.xlu0 %4387
      %4389 = vrot.lane.b32.xlu0 %v4146, 36
      %v4390 = vpop.permute.xlu0 %4389
      %4391 = vrot.lane.b32.xlu0 %v4158, 36
      %v4392 = vpop.permute.xlu0 %4391
      %4393 = vrot.lane.b32.xlu0 %v4166, 36
      %v4394 = vpop.permute.xlu0 %4393
      %4395 = vrot.lane.b32.xlu0 %v4178, 36
      %v4396 = vpop.permute.xlu0 %4395
      %4397 = vrot.lane.b32.xlu0 %v4186, 36
      %v4398 = vpop.permute.xlu0 %4397
      %4399 = vrot.lane.b32.xlu0 %v4198, 36
      %v4400 = vpop.permute.xlu0 %4399
      %4401 = vrot.lane.b32.xlu0 %v4206, 36
      %v4402 = vpop.permute.xlu0 %4401
      %4403 = vrot.lane.b32.xlu0 %v4239, 72
      %v4404 = vpop.permute.xlu0 %4403
      %4405 = vrot.lane.b32.xlu0 %v4241, 72
      %v4406 = vpop.permute.xlu0 %4405
      %4407 = vrot.lane.b32.xlu0 %v4244, 72
      %v4408 = vpop.permute.xlu0 %4407
      %4409 = vrot.lane.b32.xlu0 %v4246, 72
      %v4410 = vpop.permute.xlu0 %4409
      %4411 = vrot.lane.b32.xlu0 %v4249, 72
      %v4412 = vpop.permute.xlu0 %4411
      %4413 = vrot.lane.b32.xlu0 %v4251, 72
      %v4414 = vpop.permute.xlu0 %4413
      %4415 = vrot.lane.b32.xlu0 %v4254, 72
      %v4416 = vpop.permute.xlu0 %4415
      %4417 = vrot.lane.b32.xlu0 %v4256, 72
      %v4418 = vpop.permute.xlu0 %4417
      %4419 = vrot.lane.b32.xlu0 %v4259, 72
      %v4420 = vpop.permute.xlu0 %4419
      %4421 = vrot.lane.b32.xlu0 %v4261, 72
      %v4422 = vpop.permute.xlu0 %4421
      %4423 = vrot.lane.b32.xlu0 %v4264, 72
      %v4424 = vpop.permute.xlu0 %4423
      %4425 = vrot.lane.b32.xlu0 %v4266, 72
      %v4426 = vpop.permute.xlu0 %4425
      %4427 = vrot.lane.b32.xlu0 %v4269, 72
      %v4428 = vpop.permute.xlu0 %4427
      %4429 = vrot.lane.b32.xlu0 %v4271, 72
      %v4430 = vpop.permute.xlu0 %4429
      %4431 = vrot.lane.b32.xlu0 %v4274, 72
      %v4432 = vpop.permute.xlu0 %4431
      %4433 = vrot.lane.b32.xlu0 %v4276, 72
      %v4434 = vpop.permute.xlu0 %4433
      %4435 = vrot.lane.b32.xlu0 %v4279, 72
      %v4436 = vpop.permute.xlu0 %4435
      %4437 = vrot.lane.b32.xlu0 %v4281, 72
      %v4438 = vpop.permute.xlu0 %4437
      %4439 = vrot.lane.b32.xlu0 %v4284, 72
      %v4440 = vpop.permute.xlu0 %4439
      %4441 = vrot.lane.b32.xlu0 %v4286, 72
      %v4442 = vpop.permute.xlu0 %4441
      %4443 = vrot.lane.b32.xlu0 %v4289, 72
      %v4444 = vpop.permute.xlu0 %4443
      %4445 = vrot.lane.b32.xlu0 %v4291, 72
      %v4446 = vpop.permute.xlu0 %4445
      %4447 = vrot.lane.b32.xlu0 %v4294, 72
      %v4448 = vpop.permute.xlu0 %4447
      %4449 = vrot.lane.b32.xlu0 %v4296, 72
      %v4450 = vpop.permute.xlu0 %4449
      %4451 = vrot.lane.b32.xlu0 %v4299, 72
      %v4452 = vpop.permute.xlu0 %4451
      %4453 = vrot.lane.b32.xlu0 %v4301, 72
      %v4454 = vpop.permute.xlu0 %4453
      %4455 = vrot.lane.b32.xlu0 %v4304, 72
      %v4456 = vpop.permute.xlu0 %4455
      %4457 = vrot.lane.b32.xlu0 %v4306, 72
      %v4458 = vpop.permute.xlu0 %4457
      %4459 = vrot.lane.b32.xlu0 %v4309, 72
      %v4460 = vpop.permute.xlu0 %4459
      %4461 = vrot.lane.b32.xlu0 %v4311, 72
      %v4462 = vpop.permute.xlu0 %4461
      %4463 = vrot.lane.b32.xlu0 %v3875, 108
      %v4464 = vpop.permute.xlu0 %4463
      %4465 = vrot.lane.b32.xlu0 %v3617, 108
      %v4466 = vpop.permute.xlu0 %4465
      %4467 = vrot.lane.b32.xlu0 %v3876, 108
      %v4468 = vpop.permute.xlu0 %4467
      %4469 = vrot.lane.b32.xlu0 %v3632, 108
      %v4470 = vpop.permute.xlu0 %4469
      %4471 = vrot.lane.b32.xlu0 %v3877, 108
      %v4472 = vpop.permute.xlu0 %4471
      %4473 = vrot.lane.b32.xlu0 %v3647, 108
      %v4474 = vpop.permute.xlu0 %4473
      %4475 = vrot.lane.b32.xlu0 %v3878, 108
      %v4476 = vpop.permute.xlu0 %4475
      %4477 = vrot.lane.b32.xlu0 %v3662, 108
      %v4478 = vpop.permute.xlu0 %4477
      %4479 = vrot.lane.b32.xlu0 %v3879, 108
      %v4480 = vpop.permute.xlu0 %4479
      %4481 = vrot.lane.b32.xlu0 %v3677, 108
      %v4482 = vpop.permute.xlu0 %4481
      %4483 = vrot.lane.b32.xlu0 %v3880, 108
      %v4484 = vpop.permute.xlu0 %4483
      %4485 = vrot.lane.b32.xlu0 %v3692, 108
      %v4486 = vpop.permute.xlu0 %4485
      %4487 = vrot.lane.b32.xlu0 %v3881, 108
      %v4488 = vpop.permute.xlu0 %4487
      %4489 = vrot.lane.b32.xlu0 %v3707, 108
      %v4490 = vpop.permute.xlu0 %4489
      %4491 = vrot.lane.b32.xlu0 %v3882, 108
      %v4492 = vpop.permute.xlu0 %4491
      %4493 = vrot.lane.b32.xlu0 %v3722, 108
      %v4494 = vpop.permute.xlu0 %4493
      %4495 = vrot.lane.b32.xlu0 %v3883, 108
      %v4496 = vpop.permute.xlu0 %4495
      %4497 = vrot.lane.b32.xlu0 %v3737, 108
      %v4498 = vpop.permute.xlu0 %4497
      %4499 = vrot.lane.b32.xlu0 %v3884, 108
      %v4500 = vpop.permute.xlu0 %4499
      %4501 = vrot.lane.b32.xlu0 %v3752, 108
      %v4502 = vpop.permute.xlu0 %4501
      %4503 = vrot.lane.b32.xlu0 %v3885, 108
      %v4504 = vpop.permute.xlu0 %4503
      %4505 = vrot.lane.b32.xlu0 %v3767, 108
      %v4506 = vpop.permute.xlu0 %4505
      %4507 = vrot.lane.b32.xlu0 %v3886, 108
      %v4508 = vpop.permute.xlu0 %4507
      %4509 = vrot.lane.b32.xlu0 %v3782, 108
      %v4510 = vpop.permute.xlu0 %4509
      %4511 = vrot.lane.b32.xlu0 %v3887, 108
      %v4512 = vpop.permute.xlu0 %4511
      %4513 = vrot.lane.b32.xlu0 %v3797, 108
      %v4514 = vpop.permute.xlu0 %4513
      %4515 = vrot.lane.b32.xlu0 %v3888, 108
      %v4516 = vpop.permute.xlu0 %4515
      %4517 = vrot.lane.b32.xlu0 %v3812, 108
      %v4518 = vpop.permute.xlu0 %4517
      %4519 = vrot.lane.b32.xlu0 %v3889, 108
      %v4520 = vpop.permute.xlu0 %4519
      %4521 = vrot.lane.b32.xlu0 %v3827, 108
      %v4522 = vpop.permute.xlu0 %4521
      %4523 = vrot.lane.b32.xlu0 %v3890, 108
      %v4524 = vpop.permute.xlu0 %4523
      %4525 = vrot.lane.b32.xlu0 %v3842, 108
      %v4526 = vpop.permute.xlu0 %4525
      %4527 = vrot.lane.b32.xlu0 %v3918, 16
      %v4528 = vpop.permute.xlu0 %4527
      %4529 = vrot.lane.b32.xlu0 %v3926, 16
      %v4530 = vpop.permute.xlu0 %4529
      %4531 = vrot.lane.b32.xlu0 %v3938, 16
      %v4532 = vpop.permute.xlu0 %4531
      %4533 = vrot.lane.b32.xlu0 %v3946, 16
      %v4534 = vpop.permute.xlu0 %4533
      %4535 = vrot.lane.b32.xlu0 %v3958, 16
      %v4536 = vpop.permute.xlu0 %4535
      %4537 = vrot.lane.b32.xlu0 %v3966, 16
      %v4538 = vpop.permute.xlu0 %4537
      %4539 = vrot.lane.b32.xlu0 %v3978, 16
      %v4540 = vpop.permute.xlu0 %4539
      %4541 = vrot.lane.b32.xlu0 %v3986, 16
      %v4542 = vpop.permute.xlu0 %4541
      %4543 = vrot.lane.b32.xlu0 %v3998, 16
      %v4544 = vpop.permute.xlu0 %4543
      %4545 = vrot.lane.b32.xlu0 %v4006, 16
      %v4546 = vpop.permute.xlu0 %4545
      %4547 = vrot.lane.b32.xlu0 %v4018, 16
      %v4548 = vpop.permute.xlu0 %4547
      %4549 = vrot.lane.b32.xlu0 %v4026, 16
      %v4550 = vpop.permute.xlu0 %4549
      %4551 = vrot.lane.b32.xlu0 %v4038, 16
      %v4552 = vpop.permute.xlu0 %4551
      %4553 = vrot.lane.b32.xlu0 %v4046, 16
      %v4554 = vpop.permute.xlu0 %4553
      %4555 = vrot.lane.b32.xlu0 %v4058, 16
      %v4556 = vpop.permute.xlu0 %4555
      %4557 = vrot.lane.b32.xlu0 %v4066, 16
      %v4558 = vpop.permute.xlu0 %4557
      %4559 = vrot.lane.b32.xlu0 %v4078, 16
      %v4560 = vpop.permute.xlu0 %4559
      %4561 = vrot.lane.b32.xlu0 %v4086, 16
      %v4562 = vpop.permute.xlu0 %4561
      %4563 = vrot.lane.b32.xlu0 %v4098, 16
      %v4564 = vpop.permute.xlu0 %4563
      %4565 = vrot.lane.b32.xlu0 %v4106, 16
      %v4566 = vpop.permute.xlu0 %4565
      %4567 = vrot.lane.b32.xlu0 %v4118, 16
      %v4568 = vpop.permute.xlu0 %4567
      %4569 = vrot.lane.b32.xlu0 %v4126, 16
      %v4570 = vpop.permute.xlu0 %4569
      %4571 = vrot.lane.b32.xlu0 %v4138, 16
      %v4572 = vpop.permute.xlu0 %4571
      %4573 = vrot.lane.b32.xlu0 %v4146, 16
      %v4574 = vpop.permute.xlu0 %4573
      %4575 = vrot.lane.b32.xlu0 %v4158, 16
      %v4576 = vpop.permute.xlu0 %4575
      %4577 = vrot.lane.b32.xlu0 %v4166, 16
      %v4578 = vpop.permute.xlu0 %4577
      %4579 = vrot.lane.b32.xlu0 %v4178, 16
      %v4580 = vpop.permute.xlu0 %4579
      %4581 = vrot.lane.b32.xlu0 %v4186, 16
      %v4582 = vpop.permute.xlu0 %4581
      %4583 = vrot.lane.b32.xlu0 %v4198, 16
      %v4584 = vpop.permute.xlu0 %4583
      %4585 = vrot.lane.b32.xlu0 %v4206, 16
      %v4586 = vpop.permute.xlu0 %4585
      %4587 = vrot.lane.b32.xlu0 %v4323, 16
      %v4588 = vpop.permute.xlu0 %4587
      %4589 = vrot.lane.b32.xlu0 %v4331, 16
      %v4590 = vpop.permute.xlu0 %4589
      %4591 = vrot.lane.b32.xlu0 %v4239, 52
      %v4592 = vpop.permute.xlu0 %4591
      %4593 = vrot.lane.b32.xlu0 %v4241, 52
      %v4594 = vpop.permute.xlu0 %4593
      %4595 = vrot.lane.b32.xlu0 %v4244, 52
      %v4596 = vpop.permute.xlu0 %4595
      %4597 = vrot.lane.b32.xlu0 %v4246, 52
      %v4598 = vpop.permute.xlu0 %4597
      %4599 = vrot.lane.b32.xlu0 %v4249, 52
      %v4600 = vpop.permute.xlu0 %4599
      %4601 = vrot.lane.b32.xlu0 %v4251, 52
      %v4602 = vpop.permute.xlu0 %4601
      %4603 = vrot.lane.b32.xlu0 %v4254, 52
      %v4604 = vpop.permute.xlu0 %4603
      %4605 = vrot.lane.b32.xlu0 %v4256, 52
      %v4606 = vpop.permute.xlu0 %4605
      %4607 = vrot.lane.b32.xlu0 %v4259, 52
      %v4608 = vpop.permute.xlu0 %4607
      %4609 = vrot.lane.b32.xlu0 %v4261, 52
      %v4610 = vpop.permute.xlu0 %4609
      %4611 = vrot.lane.b32.xlu0 %v4264, 52
      %v4612 = vpop.permute.xlu0 %4611
      %4613 = vrot.lane.b32.xlu0 %v4266, 52
      %v4614 = vpop.permute.xlu0 %4613
      %4615 = vrot.lane.b32.xlu0 %v4269, 52
      %v4616 = vpop.permute.xlu0 %4615
      %4617 = vrot.lane.b32.xlu0 %v4271, 52
      %v4618 = vpop.permute.xlu0 %4617
      %4619 = vrot.lane.b32.xlu0 %v4274, 52
      %v4620 = vpop.permute.xlu0 %4619
      %4621 = vrot.lane.b32.xlu0 %v4276, 52
      %v4622 = vpop.permute.xlu0 %4621
      %4623 = vrot.lane.b32.xlu0 %v4279, 52
      %v4624 = vpop.permute.xlu0 %4623
      %4625 = vrot.lane.b32.xlu0 %v4281, 52
      %v4626 = vpop.permute.xlu0 %4625
      %4627 = vrot.lane.b32.xlu0 %v4284, 52
      %v4628 = vpop.permute.xlu0 %4627
      %4629 = vrot.lane.b32.xlu0 %v4286, 52
      %v4630 = vpop.permute.xlu0 %4629
      %4631 = vrot.lane.b32.xlu0 %v4289, 52
      %v4632 = vpop.permute.xlu0 %4631
      %4633 = vrot.lane.b32.xlu0 %v4291, 52
      %v4634 = vpop.permute.xlu0 %4633
      %4635 = vrot.lane.b32.xlu0 %v4294, 52
      %v4636 = vpop.permute.xlu0 %4635
      %4637 = vrot.lane.b32.xlu0 %v4296, 52
      %v4638 = vpop.permute.xlu0 %4637
      %4639 = vrot.lane.b32.xlu0 %v4299, 52
      %v4640 = vpop.permute.xlu0 %4639
      %4641 = vrot.lane.b32.xlu0 %v4301, 52
      %v4642 = vpop.permute.xlu0 %4641
      %4643 = vrot.lane.b32.xlu0 %v4304, 52
      %v4644 = vpop.permute.xlu0 %4643
      %4645 = vrot.lane.b32.xlu0 %v4306, 52
      %v4646 = vpop.permute.xlu0 %4645
      %4647 = vrot.lane.b32.xlu0 %v4309, 52
      %v4648 = vpop.permute.xlu0 %4647
      %4649 = vrot.lane.b32.xlu0 %v4311, 52
      %v4650 = vpop.permute.xlu0 %4649
      %4651 = vrot.lane.b32.xlu0 %v4336, 52
      %v4652 = vpop.permute.xlu0 %4651
      %4653 = vrot.lane.b32.xlu0 %v4338, 52
      %v4654 = vpop.permute.xlu0 %4653
      %4655 = vrot.lane.b32.xlu0 %v3876, 88
      %v4656 = vpop.permute.xlu0 %4655
      %4657 = vrot.lane.b32.xlu0 %v3632, 88
      %v4658 = vpop.permute.xlu0 %4657
      %4659 = vrot.lane.b32.xlu0 %v3877, 88
      %v4660 = vpop.permute.xlu0 %4659
      %4661 = vrot.lane.b32.xlu0 %v3647, 88
      %v4662 = vpop.permute.xlu0 %4661
      %4663 = vrot.lane.b32.xlu0 %v3878, 88
      %v4664 = vpop.permute.xlu0 %4663
      %4665 = vrot.lane.b32.xlu0 %v3662, 88
      %v4666 = vpop.permute.xlu0 %4665
      %4667 = vrot.lane.b32.xlu0 %v3879, 88
      %v4668 = vpop.permute.xlu0 %4667
      %4669 = vrot.lane.b32.xlu0 %v3677, 88
      %v4670 = vpop.permute.xlu0 %4669
      %4671 = vrot.lane.b32.xlu0 %v3880, 88
      %v4672 = vpop.permute.xlu0 %4671
      %4673 = vrot.lane.b32.xlu0 %v3692, 88
      %v4674 = vpop.permute.xlu0 %4673
      %4675 = vrot.lane.b32.xlu0 %v3881, 88
      %v4676 = vpop.permute.xlu0 %4675
      %4677 = vrot.lane.b32.xlu0 %v3707, 88
      %v4678 = vpop.permute.xlu0 %4677
      %4679 = vrot.lane.b32.xlu0 %v3882, 88
      %v4680 = vpop.permute.xlu0 %4679
      %4681 = vrot.lane.b32.xlu0 %v3722, 88
      %v4682 = vpop.permute.xlu0 %4681
      %4683 = vrot.lane.b32.xlu0 %v3883, 88
      %v4684 = vpop.permute.xlu0 %4683
      %4685 = vrot.lane.b32.xlu0 %v3737, 88
      %v4686 = vpop.permute.xlu0 %4685
      %4687 = vrot.lane.b32.xlu0 %v3884, 88
      %v4688 = vpop.permute.xlu0 %4687
      %4689 = vrot.lane.b32.xlu0 %v3752, 88
      %v4690 = vpop.permute.xlu0 %4689
      %4691 = vrot.lane.b32.xlu0 %v3885, 88
      %v4692 = vpop.permute.xlu0 %4691
      %4693 = vrot.lane.b32.xlu0 %v3767, 88
      %v4694 = vpop.permute.xlu0 %4693
      %4695 = vrot.lane.b32.xlu0 %v3886, 88
      %v4696 = vpop.permute.xlu0 %4695
      %4697 = vrot.lane.b32.xlu0 %v3782, 88
      %v4698 = vpop.permute.xlu0 %4697
      %4699 = vrot.lane.b32.xlu0 %v3887, 88
      %v4700 = vpop.permute.xlu0 %4699
      %4701 = vrot.lane.b32.xlu0 %v3797, 88
      %v4702 = vpop.permute.xlu0 %4701
      %4703 = vrot.lane.b32.xlu0 %v3888, 88
      %v4704 = vpop.permute.xlu0 %4703
      %4705 = vrot.lane.b32.xlu0 %v3812, 88
      %v4706 = vpop.permute.xlu0 %4705
      %4707 = vrot.lane.b32.xlu0 %v3889, 88
      %v4708 = vpop.permute.xlu0 %4707
      %4709 = vrot.lane.b32.xlu0 %v3827, 88
      %v4710 = vpop.permute.xlu0 %4709
      %4711 = vrot.lane.b32.xlu0 %v3890, 88
      %v4712 = vpop.permute.xlu0 %4711
      %4713 = vrot.lane.b32.xlu0 %v3842, 88
      %v4714 = vpop.permute.xlu0 %4713
      %4715 = vrot.lane.b32.xlu0 %v1470, 88
      %v4716 = vpop.permute.xlu0 %4715
      %4717 = vrot.lane.b32.xlu0 %v1193, 88
      %v4718 = vpop.permute.xlu0 %4717
      %4719 = vrot.lane.b32.xlu0 %v3938, 124
      %v4720 = vpop.permute.xlu0 %4719
      %4721 = vrot.lane.b32.xlu0 %v3946, 124
      %v4722 = vpop.permute.xlu0 %4721
      %4723 = vrot.lane.b32.xlu0 %v3958, 124
      %v4724 = vpop.permute.xlu0 %4723
      %4725 = vrot.lane.b32.xlu0 %v3966, 124
      %v4726 = vpop.permute.xlu0 %4725
      %4727 = vrot.lane.b32.xlu0 %v3978, 124
      %v4728 = vpop.permute.xlu0 %4727
      %4729 = vrot.lane.b32.xlu0 %v3986, 124
      %v4730 = vpop.permute.xlu0 %4729
      %4731 = vrot.lane.b32.xlu0 %v3998, 124
      %v4732 = vpop.permute.xlu0 %4731
      %4733 = vrot.lane.b32.xlu0 %v4006, 124
      %v4734 = vpop.permute.xlu0 %4733
      %4735 = vrot.lane.b32.xlu0 %v4018, 124
      %v4736 = vpop.permute.xlu0 %4735
      %4737 = vrot.lane.b32.xlu0 %v4026, 124
      %v4738 = vpop.permute.xlu0 %4737
      %4739 = vrot.lane.b32.xlu0 %v4038, 124
      %v4740 = vpop.permute.xlu0 %4739
      %4741 = vrot.lane.b32.xlu0 %v4046, 124
      %v4742 = vpop.permute.xlu0 %4741
      %4743 = vrot.lane.b32.xlu0 %v4058, 124
      %v4744 = vpop.permute.xlu0 %4743
      %4745 = vrot.lane.b32.xlu0 %v4066, 124
      %v4746 = vpop.permute.xlu0 %4745
      %4747 = vrot.lane.b32.xlu0 %v4078, 124
      %v4748 = vpop.permute.xlu0 %4747
      %4749 = vrot.lane.b32.xlu0 %v4086, 124
      %v4750 = vpop.permute.xlu0 %4749
      %4751 = vrot.lane.b32.xlu0 %v4098, 124
      %v4752 = vpop.permute.xlu0 %4751
      %4753 = vrot.lane.b32.xlu0 %v4106, 124
      %v4754 = vpop.permute.xlu0 %4753
      %4755 = vrot.lane.b32.xlu0 %v4118, 124
      %v4756 = vpop.permute.xlu0 %4755
      %4757 = vrot.lane.b32.xlu0 %v4126, 124
      %v4758 = vpop.permute.xlu0 %4757
      %4759 = vrot.lane.b32.xlu0 %v4138, 124
      %v4760 = vpop.permute.xlu0 %4759
      %4761 = vrot.lane.b32.xlu0 %v4146, 124
      %v4762 = vpop.permute.xlu0 %4761
      %4763 = vrot.lane.b32.xlu0 %v4158, 124
      %v4764 = vpop.permute.xlu0 %4763
      %4765 = vrot.lane.b32.xlu0 %v4166, 124
      %v4766 = vpop.permute.xlu0 %4765
      %4767 = vrot.lane.b32.xlu0 %v4178, 124
      %v4768 = vpop.permute.xlu0 %4767
      %4769 = vrot.lane.b32.xlu0 %v4186, 124
      %v4770 = vpop.permute.xlu0 %4769
      %4771 = vrot.lane.b32.xlu0 %v4198, 124
      %v4772 = vpop.permute.xlu0 %4771
      %4773 = vrot.lane.b32.xlu0 %v4206, 124
      %v4774 = vpop.permute.xlu0 %4773
      %4775 = vrot.lane.b32.xlu0 %v4323, 124
      %v4776 = vpop.permute.xlu0 %4775
      %4777 = vrot.lane.b32.xlu0 %v4331, 124
      %v4778 = vpop.permute.xlu0 %4777
      %4779 = vrot.lane.b32.xlu0 %v1516, 124
      %v4780 = vpop.permute.xlu0 %4779
      %4781 = vrot.lane.b32.xlu0 %v1524, 124
      %v4782 = vpop.permute.xlu0 %4781
      %4783 = vrot.lane.b32.xlu0 %v4244, 32
      %v4784 = vpop.permute.xlu0 %4783
      %4785 = vrot.lane.b32.xlu0 %v4246, 32
      %v4786 = vpop.permute.xlu0 %4785
      %4787 = vrot.lane.b32.xlu0 %v4249, 32
      %v4788 = vpop.permute.xlu0 %4787
      %4789 = vrot.lane.b32.xlu0 %v4251, 32
      %v4790 = vpop.permute.xlu0 %4789
      %4791 = vrot.lane.b32.xlu0 %v4254, 32
      %v4792 = vpop.permute.xlu0 %4791
      %4793 = vrot.lane.b32.xlu0 %v4256, 32
      %v4794 = vpop.permute.xlu0 %4793
      %4795 = vrot.lane.b32.xlu0 %v4259, 32
      %v4796 = vpop.permute.xlu0 %4795
      %4797 = vrot.lane.b32.xlu0 %v4261, 32
      %v4798 = vpop.permute.xlu0 %4797
      %4799 = vrot.lane.b32.xlu0 %v4264, 32
      %v4800 = vpop.permute.xlu0 %4799
      %4801 = vrot.lane.b32.xlu0 %v4266, 32
      %v4802 = vpop.permute.xlu0 %4801
      %4803 = vrot.lane.b32.xlu0 %v4269, 32
      %v4804 = vpop.permute.xlu0 %4803
      %4805 = vrot.lane.b32.xlu0 %v4271, 32
      %v4806 = vpop.permute.xlu0 %4805
      %4807 = vrot.lane.b32.xlu0 %v4274, 32
      %v4808 = vpop.permute.xlu0 %4807
      %4809 = vrot.lane.b32.xlu0 %v4276, 32
      %v4810 = vpop.permute.xlu0 %4809
      %4811 = vrot.lane.b32.xlu0 %v4279, 32
      %v4812 = vpop.permute.xlu0 %4811
      %4813 = vrot.lane.b32.xlu0 %v4281, 32
      %v4814 = vpop.permute.xlu0 %4813
      %4815 = vrot.lane.b32.xlu0 %v4284, 32
      %v4816 = vpop.permute.xlu0 %4815
      %4817 = vrot.lane.b32.xlu0 %v4286, 32
      %v4818 = vpop.permute.xlu0 %4817
      %4819 = vrot.lane.b32.xlu0 %v4289, 32
      %v4820 = vpop.permute.xlu0 %4819
      %4821 = vrot.lane.b32.xlu0 %v4291, 32
      %v4822 = vpop.permute.xlu0 %4821
      %4823 = vrot.lane.b32.xlu0 %v4294, 32
      %v4824 = vpop.permute.xlu0 %4823
      %4825 = vrot.lane.b32.xlu0 %v4296, 32
      %v4826 = vpop.permute.xlu0 %4825
      %4827 = vrot.lane.b32.xlu0 %v4299, 32
      %v4828 = vpop.permute.xlu0 %4827
      %4829 = vrot.lane.b32.xlu0 %v4301, 32
      %v4830 = vpop.permute.xlu0 %4829
      %4831 = vrot.lane.b32.xlu0 %v4304, 32
      %v4832 = vpop.permute.xlu0 %4831
      %4833 = vrot.lane.b32.xlu0 %v4306, 32
      %v4834 = vpop.permute.xlu0 %4833
      %4835 = vrot.lane.b32.xlu0 %v4309, 32
      %v4836 = vpop.permute.xlu0 %4835
      %4837 = vrot.lane.b32.xlu0 %v4311, 32
      %v4838 = vpop.permute.xlu0 %4837
      %4839 = vrot.lane.b32.xlu0 %v4336, 32
      %v4840 = vpop.permute.xlu0 %4839
      %4841 = vrot.lane.b32.xlu0 %v4338, 32
      %v4842 = vpop.permute.xlu0 %4841
      %4843 = vrot.lane.b32.xlu0 %v1860, 32
      %v4844 = vpop.permute.xlu0 %4843
      %4845 = vrot.lane.b32.xlu0 %v1862, 32
      %v4846 = vpop.permute.xlu0 %4845
      %v4848 = vsel %vm2672, %v1470, %v4340
      %v4850 = vsel %vm2672, %v1193, %v4342
      %v4852 = vsel %vm2672, %v3875, %v4344
      %v4854 = vsel %vm2672, %v3617, %v4346
      %v4856 = vsel %vm2672, %v3876, %v4348
      %v4858 = vsel %vm2672, %v3632, %v4350
      %v4860 = vsel %vm2672, %v3877, %v4352
      %v4862 = vsel %vm2672, %v3647, %v4354
      %v4864 = vsel %vm2672, %v3878, %v4356
      %v4866 = vsel %vm2672, %v3662, %v4358
      %v4868 = vsel %vm2672, %v3879, %v4360
      %v4870 = vsel %vm2672, %v3677, %v4362
      %v4872 = vsel %vm2672, %v3880, %v4364
      %v4874 = vsel %vm2672, %v3692, %v4366
      %v4876 = vsel %vm2672, %v3881, %v4368
      %v4878 = vsel %vm2672, %v3707, %v4370
      %v4880 = vsel %vm2672, %v3882, %v4372
      %v4882 = vsel %vm2672, %v3722, %v4374
      %v4884 = vsel %vm2672, %v3883, %v4376
      %v4886 = vsel %vm2672, %v3737, %v4378
      %v4888 = vsel %vm2672, %v3884, %v4380
      %v4890 = vsel %vm2672, %v3752, %v4382
      %v4892 = vsel %vm2672, %v3885, %v4384
      %v4894 = vsel %vm2672, %v3767, %v4386
      %v4896 = vsel %vm2672, %v3886, %v4388
      %v4898 = vsel %vm2672, %v3782, %v4390
      %v4900 = vsel %vm2672, %v3887, %v4392
      %v4902 = vsel %vm2672, %v3797, %v4394
      %v4904 = vsel %vm2672, %v3888, %v4396
      %v4906 = vsel %vm2672, %v3812, %v4398
      %v4908 = vsel %vm2672, %v3889, %v4400
      %v4910 = vsel %vm2672, %v3827, %v4402
      %v4911 = vsel %vm2932, %v4848, %v2474
      %v4912 = vsel %vm2932, %v4850, %v2476
      %v4914 = vsel %vm2932, %v4852, %v4404
      %v4916 = vsel %vm2932, %v4854, %v4406
      %v4918 = vsel %vm2932, %v4856, %v4408
      %v4920 = vsel %vm2932, %v4858, %v4410
      %v4922 = vsel %vm2932, %v4860, %v4412
      %v4924 = vsel %vm2932, %v4862, %v4414
      %v4926 = vsel %vm2932, %v4864, %v4416
      %v4928 = vsel %vm2932, %v4866, %v4418
      %v4930 = vsel %vm2932, %v4868, %v4420
      %v4932 = vsel %vm2932, %v4870, %v4422
      %v4934 = vsel %vm2932, %v4872, %v4424
      %v4936 = vsel %vm2932, %v4874, %v4426
      %v4938 = vsel %vm2932, %v4876, %v4428
      %v4940 = vsel %vm2932, %v4878, %v4430
      %v4942 = vsel %vm2932, %v4880, %v4432
      %v4944 = vsel %vm2932, %v4882, %v4434
      %v4946 = vsel %vm2932, %v4884, %v4436
      %v4948 = vsel %vm2932, %v4886, %v4438
      %v4950 = vsel %vm2932, %v4888, %v4440
      %v4952 = vsel %vm2932, %v4890, %v4442
      %v4954 = vsel %vm2932, %v4892, %v4444
      %v4956 = vsel %vm2932, %v4894, %v4446
      %v4958 = vsel %vm2932, %v4896, %v4448
      %v4960 = vsel %vm2932, %v4898, %v4450
      %v4962 = vsel %vm2932, %v4900, %v4452
      %v4964 = vsel %vm2932, %v4902, %v4454
      %v4966 = vsel %vm2932, %v4904, %v4456
      %v4968 = vsel %vm2932, %v4906, %v4458
      %v4970 = vsel %vm2932, %v4908, %v4460
      %v4972 = vsel %vm2932, %v4910, %v4462
      %vm4973 = vcmask 883712
      %v4975 = vsel %vm4973, %v4911, %v4464
      %v4978 = vsel %vm4973, %v4912, %v4466
      %v4981 = vsel %vm4973, %v4914, %v4468
      %v4984 = vsel %vm4973, %v4916, %v4470
      %v4987 = vsel %vm4973, %v4918, %v4472
      %v4990 = vsel %vm4973, %v4920, %v4474
      %v4993 = vsel %vm4973, %v4922, %v4476
      %v4996 = vsel %vm4973, %v4924, %v4478
      %v4999 = vsel %vm4973, %v4926, %v4480
      %v5002 = vsel %vm4973, %v4928, %v4482
      %v5005 = vsel %vm4973, %v4930, %v4484
      %v5008 = vsel %vm4973, %v4932, %v4486
      %v5011 = vsel %vm4973, %v4934, %v4488
      %v5014 = vsel %vm4973, %v4936, %v4490
      %v5017 = vsel %vm4973, %v4938, %v4492
      %v5020 = vsel %vm4973, %v4940, %v4494
      %v5023 = vsel %vm4973, %v4942, %v4496
      %v5026 = vsel %vm4973, %v4944, %v4498
      %v5029 = vsel %vm4973, %v4946, %v4500
      %v5032 = vsel %vm4973, %v4948, %v4502
      %v5035 = vsel %vm4973, %v4950, %v4504
      %v5038 = vsel %vm4973, %v4952, %v4506
      %v5041 = vsel %vm4973, %v4954, %v4508
      %v5044 = vsel %vm4973, %v4956, %v4510
      %v5047 = vsel %vm4973, %v4958, %v4512
      %v5050 = vsel %vm4973, %v4960, %v4514
      %v5053 = vsel %vm4973, %v4962, %v4516
      %v5056 = vsel %vm4973, %v4964, %v4518
      %v5059 = vsel %vm4973, %v4966, %v4520
      %v5062 = vsel %vm4973, %v4968, %v4522
      %v5065 = vsel %vm4973, %v4970, %v4524
      %v5068 = vsel %vm4973, %v4972, %v4526
      %vm5070 = vcmask 130048
      %v5072 = vsel %vm5070, %v4464, %v4528
      %v5074 = vsel %vm5070, %v4466, %v4530
      %v5076 = vsel %vm5070, %v4468, %v4532
      %v5078 = vsel %vm5070, %v4470, %v4534
      %v5080 = vsel %vm5070, %v4472, %v4536
      %v5082 = vsel %vm5070, %v4474, %v4538
      %v5084 = vsel %vm5070, %v4476, %v4540
      %v5086 = vsel %vm5070, %v4478, %v4542
      %v5088 = vsel %vm5070, %v4480, %v4544
      %v5090 = vsel %vm5070, %v4482, %v4546
      %v5092 = vsel %vm5070, %v4484, %v4548
      %v5094 = vsel %vm5070, %v4486, %v4550
      %v5096 = vsel %vm5070, %v4488, %v4552
      %v5098 = vsel %vm5070, %v4490, %v4554
      %v5100 = vsel %vm5070, %v4492, %v4556
      %v5102 = vsel %vm5070, %v4494, %v4558
      %v5104 = vsel %vm5070, %v4496, %v4560
      %v5106 = vsel %vm5070, %v4498, %v4562
      %v5108 = vsel %vm5070, %v4500, %v4564
      %v5110 = vsel %vm5070, %v4502, %v4566
      %v5112 = vsel %vm5070, %v4504, %v4568
      %v5114 = vsel %vm5070, %v4506, %v4570
      %v5116 = vsel %vm5070, %v4508, %v4572
      %v5118 = vsel %vm5070, %v4510, %v4574
      %v5120 = vsel %vm5070, %v4512, %v4576
      %v5122 = vsel %vm5070, %v4514, %v4578
      %v5124 = vsel %vm5070, %v4516, %v4580
      %v5126 = vsel %vm5070, %v4518, %v4582
      %v5128 = vsel %vm5070, %v4520, %v4584
      %v5130 = vsel %vm5070, %v4522, %v4586
      %v5132 = vsel %vm5070, %v4524, %v4588
      %v5134 = vsel %vm5070, %v4526, %v4590
      %vm5135 = vcmask 424960
      %v5137 = vsel %vm5135, %v5072, %v4592
      %v5139 = vsel %vm5135, %v5074, %v4594
      %v5141 = vsel %vm5135, %v5076, %v4596
      %v5143 = vsel %vm5135, %v5078, %v4598
      %v5145 = vsel %vm5135, %v5080, %v4600
      %v5147 = vsel %vm5135, %v5082, %v4602
      %v5149 = vsel %vm5135, %v5084, %v4604
      %v5151 = vsel %vm5135, %v5086, %v4606
      %v5153 = vsel %vm5135, %v5088, %v4608
      %v5155 = vsel %vm5135, %v5090, %v4610
      %v5157 = vsel %vm5135, %v5092, %v4612
      %v5159 = vsel %vm5135, %v5094, %v4614
      %v5161 = vsel %vm5135, %v5096, %v4616
      %v5163 = vsel %vm5135, %v5098, %v4618
      %v5165 = vsel %vm5135, %v5100, %v4620
      %v5167 = vsel %vm5135, %v5102, %v4622
      %v5169 = vsel %vm5135, %v5104, %v4624
      %v5171 = vsel %vm5135, %v5106, %v4626
      %v5173 = vsel %vm5135, %v5108, %v4628
      %v5175 = vsel %vm5135, %v5110, %v4630
      %v5177 = vsel %vm5135, %v5112, %v4632
      %v5179 = vsel %vm5135, %v5114, %v4634
      %v5181 = vsel %vm5135, %v5116, %v4636
      %v5183 = vsel %vm5135, %v5118, %v4638
      %v5185 = vsel %vm5135, %v5120, %v4640
      %v5187 = vsel %vm5135, %v5122, %v4642
      %v5189 = vsel %vm5135, %v5124, %v4644
      %v5191 = vsel %vm5135, %v5126, %v4646
      %v5193 = vsel %vm5135, %v5128, %v4648
      %v5195 = vsel %vm5135, %v5130, %v4650
      %v5197 = vsel %vm5135, %v5132, %v4652
      %v5199 = vsel %vm5135, %v5134, %v4654
      %vm5200 = vcmask 719872
      %v5202 = vsel %vm5200, %v5137, %v4656
      %v5204 = vsel %vm5200, %v5139, %v4658
      %v5206 = vsel %vm5200, %v5141, %v4660
      %v5208 = vsel %vm5200, %v5143, %v4662
      %v5210 = vsel %vm5200, %v5145, %v4664
      %v5212 = vsel %vm5200, %v5147, %v4666
      %v5214 = vsel %vm5200, %v5149, %v4668
      %v5216 = vsel %vm5200, %v5151, %v4670
      %v5218 = vsel %vm5200, %v5153, %v4672
      %v5220 = vsel %vm5200, %v5155, %v4674
      %v5222 = vsel %vm5200, %v5157, %v4676
      %v5224 = vsel %vm5200, %v5159, %v4678
      %v5226 = vsel %vm5200, %v5161, %v4680
      %v5228 = vsel %vm5200, %v5163, %v4682
      %v5230 = vsel %vm5200, %v5165, %v4684
      %v5232 = vsel %vm5200, %v5167, %v4686
      %v5234 = vsel %vm5200, %v5169, %v4688
      %v5236 = vsel %vm5200, %v5171, %v4690
      %v5238 = vsel %vm5200, %v5173, %v4692
      %v5240 = vsel %vm5200, %v5175, %v4694
      %v5242 = vsel %vm5200, %v5177, %v4696
      %v5244 = vsel %vm5200, %v5179, %v4698
      %v5246 = vsel %vm5200, %v5181, %v4700
      %v5248 = vsel %vm5200, %v5183, %v4702
      %v5250 = vsel %vm5200, %v5185, %v4704
      %v5252 = vsel %vm5200, %v5187, %v4706
      %v5254 = vsel %vm5200, %v5189, %v4708
      %v5256 = vsel %vm5200, %v5191, %v4710
      %v5258 = vsel %vm5200, %v5193, %v4712
      %v5260 = vsel %vm5200, %v5195, %v4714
      %v5262 = vsel %vm5200, %v5197, %v4716
      %v5264 = vsel %vm5200, %v5199, %v4718
      %vm5265 = vcmask 1014784
      %v5267 = vsel %vm5265, %v5202, %v4720
      %v5270 = vsel %vm5265, %v5204, %v4722
      %v5273 = vsel %vm5265, %v5206, %v4724
      %v5276 = vsel %vm5265, %v5208, %v4726
      %v5279 = vsel %vm5265, %v5210, %v4728
      %v5282 = vsel %vm5265, %v5212, %v4730
      %v5285 = vsel %vm5265, %v5214, %v4732
      %v5288 = vsel %vm5265, %v5216, %v4734
      %v5291 = vsel %vm5265, %v5218, %v4736
      %v5294 = vsel %vm5265, %v5220, %v4738
      %v5297 = vsel %vm5265, %v5222, %v4740
      %v5300 = vsel %vm5265, %v5224, %v4742
      %v5303 = vsel %vm5265, %v5226, %v4744
      %v5306 = vsel %vm5265, %v5228, %v4746
      %v5309 = vsel %vm5265, %v5230, %v4748
      %v5312 = vsel %vm5265, %v5232, %v4750
      %v5315 = vsel %vm5265, %v5234, %v4752
      %v5318 = vsel %vm5265, %v5236, %v4754
      %v5321 = vsel %vm5265, %v5238, %v4756
      %v5324 = vsel %vm5265, %v5240, %v4758
      %v5327 = vsel %vm5265, %v5242, %v4760
      %v5330 = vsel %vm5265, %v5244, %v4762
      %v5333 = vsel %vm5265, %v5246, %v4764
      %v5336 = vsel %vm5265, %v5248, %v4766
      %v5339 = vsel %vm5265, %v5250, %v4768
      %v5342 = vsel %vm5265, %v5252, %v4770
      %v5345 = vsel %vm5265, %v5254, %v4772
      %v5348 = vsel %vm5265, %v5256, %v4774
      %v5351 = vsel %vm5265, %v5258, %v4776
      %v5354 = vsel %vm5265, %v5260, %v4778
      %v5357 = vsel %vm5265, %v5262, %v4780
      %v5360 = vsel %vm5265, %v5264, %v4782
      %v5363 = vsel %vm458, %v4720, %v4784
      %v5365 = vsel %vm458, %v4722, %v4786
      %v5367 = vsel %vm458, %v4724, %v4788
      %v5369 = vsel %vm458, %v4726, %v4790
      %v5371 = vsel %vm458, %v4728, %v4792
      %v5373 = vsel %vm458, %v4730, %v4794
      %v5375 = vsel %vm458, %v4732, %v4796
      %v5377 = vsel %vm458, %v4734, %v4798
      %v5379 = vsel %vm458, %v4736, %v4800
      %v5381 = vsel %vm458, %v4738, %v4802
      %v5383 = vsel %vm458, %v4740, %v4804
      %v5385 = vsel %vm458, %v4742, %v4806
      %v5387 = vsel %vm458, %v4744, %v4808
      %v5389 = vsel %vm458, %v4746, %v4810
      %v5391 = vsel %vm458, %v4748, %v4812
      %v5393 = vsel %vm458, %v4750, %v4814
      %v5395 = vsel %vm458, %v4752, %v4816
      %v5397 = vsel %vm458, %v4754, %v4818
      %v5399 = vsel %vm458, %v4756, %v4820
      %v5401 = vsel %vm458, %v4758, %v4822
      %v5403 = vsel %vm458, %v4760, %v4824
      %v5405 = vsel %vm458, %v4762, %v4826
      %v5407 = vsel %vm458, %v4764, %v4828
      %v5409 = vsel %vm458, %v4766, %v4830
      %v5411 = vsel %vm458, %v4768, %v4832
      %v5413 = vsel %vm458, %v4770, %v4834
      %v5415 = vsel %vm458, %v4772, %v4836
      %v5417 = vsel %vm458, %v4774, %v4838
      %v5419 = vsel %vm458, %v4776, %v4840
      %v5421 = vsel %vm458, %v4778, %v4842
      %v5423 = vsel %vm458, %v4780, %v4844
      %v5425 = vsel %vm458, %v4782, %v4846
      %v5427 = vperm.slane %v3442, 0
      %v5470 = vunpack.c.l.b16 %v3401
      %v5471 = vunpack.c.l.b16 %v3402
      %v5472 = vunpack.c.l.b16 %v3403
      %v5473 = vunpack.c.l.b16 %v3404
      %v5474 = vunpack.c.l.b16 %v3405
      %v5475 = vunpack.c.l.b16 %v3406
      %v5476 = vunpack.c.l.b16 %v3407
      %v5477 = vunpack.c.l.b16 %v3408
      %v5478 = vunpack.c.l.b16 %v3409
      %v5479 = vunpack.c.l.b16 %v3410
      %v5480 = vunpack.c.l.b16 %v3411
      %v5481 = vunpack.c.l.b16 %v3412
      %v5482 = vunpack.c.l.b16 %v3413
      %v5483 = vunpack.c.l.b16 %v3414
      %v5484 = vunpack.c.l.b16 %v3415
      %v5485 = vunpack.c.l.b16 %v3416
      %v5486 = vunpack.c.l.b16 %v3417
      %v5487 = vunpack.c.l.b16 %v3418
      %v5488 = vunpack.c.l.b16 %v3419
      %v5489 = vunpack.c.l.b16 %v3420
      %v5490 = vunpack.c.l.b16 %v3421
      %v5491 = vunpack.c.l.b16 %v3422
      %v5492 = vunpack.c.l.b16 %v3423
      %v5493 = vunpack.c.l.b16 %v3424
      %v5494 = vunpack.c.l.b16 %v3425
      %v5495 = vunpack.c.l.b16 %v3426
      %v5496 = vunpack.c.l.b16 %v3427
      %v5497 = vunpack.c.l.b16 %v3428
      %v5498 = vunpack.c.l.b16 %v3429
      %v5499 = vunpack.c.l.b16 %v3430
      %v5500 = vunpack.c.l.b16 %v3431
      %v5501 = vunpack.c.l.b16 %v3432
      %v5502 = vunpack.c.l.b16 %v3433
      %v5503 = vunpack.c.l.b16 %v3434
      %v5504 = vunpack.c.l.b16 %v3435
      %v5505 = vunpack.c.l.b16 %v3436
      %v5506 = vunpack.c.l.b16 %v3437
      %v5507 = vunpack.c.l.b16 %v3438
      %v5508 = vunpack.c.l.b16 %v3439
      %v5509 = vunpack.c.l.b16 %v3440
      %v5510 = vunpack.c.l.b16 %v3441
      %v5511 = vpack.c.b16 %v5471, %v5470
      %v5512 = vpack.c.b16 %v5473, %v5472
      %v5513 = vpack.c.b16 %v5475, %v5474
      %v5514 = vpack.c.b16 %v5477, %v5476
      %v5515 = vpack.c.b16 %v5479, %v5478
      %v5516 = vpack.c.b16 %v5481, %v5480
      %v5517 = vpack.c.b16 %v5483, %v5482
      %v5518 = vpack.c.b16 %v5485, %v5484
      %v5519 = vpack.c.b16 %v5487, %v5486
      %v5520 = vpack.c.b16 %v5489, %v5488
      %v5521 = vpack.c.b16 %v5491, %v5490
      %v5522 = vpack.c.b16 %v5493, %v5492
      %v5523 = vpack.c.b16 %v5495, %v5494
      %v5524 = vpack.c.b16 %v5497, %v5496
      %v5525 = vpack.c.b16 %v5499, %v5498
      %v5526 = vpack.c.b16 %v5501, %v5500
      %v5527 = vpack.c.b16 %v5503, %v5502
      %v5528 = vpack.c.b16 %v5505, %v5504
      %v5529 = vpack.c.b16 %v5507, %v5506
      %v5530 = vpack.c.b16 %v5509, %v5508
      %v5531 = vpack.c.b16 %v5510, %v5510
      %vm5552 = vcmask 556032
      %v5553 = vsel %vm5552, %v5363, 0
      %v5555 = vsel %vm5552, %v5365, 0
      %v5557 = vsel %vm5552, %v5367, 0
      %v5559 = vsel %vm5552, %v5369, 0
      %v5561 = vsel %vm5552, %v5371, 0
      %v5563 = vsel %vm5552, %v5373, 0
      %v5565 = vsel %vm5552, %v5375, 0
      %v5567 = vsel %vm5552, %v5377, 0
      %v5569 = vsel %vm5552, %v5379, 0
      %v5571 = vsel %vm5552, %v5381, 0
      %v5573 = vsel %vm5552, %v5383, 0
      %v5575 = vsel %vm5552, %v5385, 0
      %v5577 = vsel %vm5552, %v5387, 0
      %v5579 = vsel %vm5552, %v5389, 0
      %v5581 = vsel %vm5552, %v5391, 0
      %v5583 = vsel %vm5552, %v5393, 0
      %v5585 = vsel %vm5552, %v5395, 0
      %v5587 = vsel %vm5552, %v5397, 0
      %v5589 = vsel %vm5552, %v5399, 0
      %v5591 = vsel %vm5552, %v5401, 0
      %v5593 = vsel %vm5552, %v5403, 0
      %v5595 = vsel %vm5552, %v5405, 0
      %v5597 = vsel %vm5552, %v5407, 0
      %v5599 = vsel %vm5552, %v5409, 0
      %v5601 = vsel %vm5552, %v5411, 0
      %v5603 = vsel %vm5552, %v5413, 0
      %v5605 = vsel %vm5552, %v5415, 0
      %v5607 = vsel %vm5552, %v5417, 0
      %v5609 = vsel %vm5552, %v5419, 0
      %v5611 = vsel %vm5552, %v5421, 0
      %v5613 = vsel %vm5552, %v5423, 0
      %v5615 = vsel %vm5552, %v5425, 0
      %vm5617 = vcmask 1041408
      %v5619 = vsel %vm5617, %v5531, 0
      %5621 = vmatpush.bf16.msra.mxu0 %v5518
      %5622 = vmatpush.bf16.msra.mxu0 %v5517
      %5623 = vmatpush.bf16.msra.mxu0 %v5516
      %5624 = vmatpush.bf16.msra.mxu0 %v5515
      %5625 = vmatpush.bf16.msra.mxu0 %v5514
      %5626 = vmatpush.bf16.msra.mxu0 %v5513
      %5627 = vmatpush.bf16.msra.mxu0 %v5512
      %5628 = vmatpush.bf16.msra.mxu0 %v5511
      %5629 = vmatmul.bf16.gmra.mxu0 %v4975
      %v5630 = vpop.f32.mrf.mxu0
      %v5631 = vadd.f32 %v5427, %v5630
      %v5632 = vpop.f32.mrf.mxu0
      %v5633 = vadd.f32 %v5427, %v5632
      %5634 = vmatmul.bf16.gmra.mxu0 %v4978
      %v5635 = vpop.f32.mrf.mxu0
      %v5636 = vadd.f32 %v5427, %v5635
      %v5637 = vpop.f32.mrf.mxu0
      %v5638 = vadd.f32 %v5427, %v5637
      %5639 = vmatmul.bf16.gmra.mxu0 %v4981
      %v5640 = vpop.f32.mrf.mxu0
      %v5641 = vadd.f32 %v5427, %v5640
      %v5642 = vpop.f32.mrf.mxu0
      %v5643 = vadd.f32 %v5427, %v5642
      %5644 = vmatmul.bf16.gmra.mxu0 %v4984
      %v5645 = vpop.f32.mrf.mxu0
      %v5646 = vadd.f32 %v5427, %v5645
      %v5647 = vpop.f32.mrf.mxu0
      %v5648 = vadd.f32 %v5427, %v5647
      %5649 = vmatmul.bf16.gmra.mxu0 %v4987
      %v5650 = vpop.f32.mrf.mxu0
      %v5651 = vadd.f32 %v5427, %v5650
      %v5652 = vpop.f32.mrf.mxu0
      %v5653 = vadd.f32 %v5427, %v5652
      %5654 = vmatmul.bf16.gmra.mxu0 %v4990
      %v5655 = vpop.f32.mrf.mxu0
      %v5656 = vadd.f32 %v5427, %v5655
      %v5657 = vpop.f32.mrf.mxu0
      %v5658 = vadd.f32 %v5427, %v5657
      %5659 = vmatmul.bf16.gmra.mxu0 %v4993
      %v5660 = vpop.f32.mrf.mxu0
      %v5661 = vadd.f32 %v5427, %v5660
      %v5662 = vpop.f32.mrf.mxu0
      %v5663 = vadd.f32 %v5427, %v5662
      %5664 = vmatmul.bf16.gmra.mxu0 %v4996
      %v5665 = vpop.f32.mrf.mxu0
      %v5666 = vadd.f32 %v5427, %v5665
      %v5667 = vpop.f32.mrf.mxu0
      %v5668 = vadd.f32 %v5427, %v5667
      %5669 = vmatmul.bf16.gmra.mxu0 %v4999
      %v5670 = vpop.f32.mrf.mxu0
      %v5671 = vadd.f32 %v5427, %v5670
      %v5672 = vpop.f32.mrf.mxu0
      %v5673 = vadd.f32 %v5427, %v5672
      %5674 = vmatmul.bf16.gmra.mxu0 %v5002
      %v5675 = vpop.f32.mrf.mxu0
      %v5676 = vadd.f32 %v5427, %v5675
      %v5677 = vpop.f32.mrf.mxu0
      %v5678 = vadd.f32 %v5427, %v5677
      %5679 = vmatmul.bf16.gmra.mxu0 %v5005
      %v5680 = vpop.f32.mrf.mxu0
      %v5681 = vadd.f32 %v5427, %v5680
      %v5682 = vpop.f32.mrf.mxu0
      %v5683 = vadd.f32 %v5427, %v5682
      %5684 = vmatmul.bf16.gmra.mxu0 %v5008
      %v5685 = vpop.f32.mrf.mxu0
      %v5686 = vadd.f32 %v5427, %v5685
      %v5687 = vpop.f32.mrf.mxu0
      %v5688 = vadd.f32 %v5427, %v5687
      %5689 = vmatmul.bf16.gmra.mxu0 %v5011
      %v5690 = vpop.f32.mrf.mxu0
      %v5691 = vadd.f32 %v5427, %v5690
      %v5692 = vpop.f32.mrf.mxu0
      %v5693 = vadd.f32 %v5427, %v5692
      %5694 = vmatmul.bf16.gmra.mxu0 %v5014
      %v5695 = vpop.f32.mrf.mxu0
      %v5696 = vadd.f32 %v5427, %v5695
      %v5697 = vpop.f32.mrf.mxu0
      %v5698 = vadd.f32 %v5427, %v5697
      %5699 = vmatmul.bf16.gmra.mxu0 %v5017
      %v5700 = vpop.f32.mrf.mxu0
      %v5701 = vadd.f32 %v5427, %v5700
      %v5702 = vpop.f32.mrf.mxu0
      %v5703 = vadd.f32 %v5427, %v5702
      %5704 = vmatmul.bf16.gmra.mxu0 %v5020
      %v5705 = vpop.f32.mrf.mxu0
      %v5706 = vadd.f32 %v5427, %v5705
      %v5707 = vpop.f32.mrf.mxu0
      %v5708 = vadd.f32 %v5427, %v5707
      %5709 = vmatmul.bf16.gmra.mxu0 %v5023
      %v5710 = vpop.f32.mrf.mxu0
      %v5711 = vadd.f32 %v5427, %v5710
      %v5712 = vpop.f32.mrf.mxu0
      %v5713 = vadd.f32 %v5427, %v5712
      %5714 = vmatmul.bf16.gmra.mxu0 %v5026
      %v5715 = vpop.f32.mrf.mxu0
      %v5716 = vadd.f32 %v5427, %v5715
      %v5717 = vpop.f32.mrf.mxu0
      %v5718 = vadd.f32 %v5427, %v5717
      %5719 = vmatmul.bf16.gmra.mxu0 %v5029
      %v5720 = vpop.f32.mrf.mxu0
      %v5721 = vadd.f32 %v5427, %v5720
      %v5722 = vpop.f32.mrf.mxu0
      %v5723 = vadd.f32 %v5427, %v5722
      %5724 = vmatmul.bf16.gmra.mxu0 %v5032
      %v5725 = vpop.f32.mrf.mxu0
      %v5726 = vadd.f32 %v5427, %v5725
      %v5727 = vpop.f32.mrf.mxu0
      %v5728 = vadd.f32 %v5427, %v5727
      %5729 = vmatmul.bf16.gmra.mxu0 %v5035
      %v5730 = vpop.f32.mrf.mxu0
      %v5731 = vadd.f32 %v5427, %v5730
      %v5732 = vpop.f32.mrf.mxu0
      %v5733 = vadd.f32 %v5427, %v5732
      %5734 = vmatmul.bf16.gmra.mxu0 %v5038
      %v5735 = vpop.f32.mrf.mxu0
      %v5736 = vadd.f32 %v5427, %v5735
      %v5737 = vpop.f32.mrf.mxu0
      %v5738 = vadd.f32 %v5427, %v5737
      %5739 = vmatmul.bf16.gmra.mxu0 %v5041
      %v5740 = vpop.f32.mrf.mxu0
      %v5741 = vadd.f32 %v5427, %v5740
      %v5742 = vpop.f32.mrf.mxu0
      %v5743 = vadd.f32 %v5427, %v5742
      %5744 = vmatmul.bf16.gmra.mxu0 %v5044
      %v5745 = vpop.f32.mrf.mxu0
      %v5746 = vadd.f32 %v5427, %v5745
      %v5747 = vpop.f32.mrf.mxu0
      %v5748 = vadd.f32 %v5427, %v5747
      %5749 = vmatmul.bf16.gmra.mxu0 %v5047
      %v5750 = vpop.f32.mrf.mxu0
      %v5751 = vadd.f32 %v5427, %v5750
      %v5752 = vpop.f32.mrf.mxu0
      %v5753 = vadd.f32 %v5427, %v5752
      %5754 = vmatmul.bf16.gmra.mxu0 %v5050
      %v5755 = vpop.f32.mrf.mxu0
      %v5756 = vadd.f32 %v5427, %v5755
      %v5757 = vpop.f32.mrf.mxu0
      %v5758 = vadd.f32 %v5427, %v5757
      %5759 = vmatmul.bf16.gmra.mxu0 %v5053
      %v5760 = vpop.f32.mrf.mxu0
      %v5761 = vadd.f32 %v5427, %v5760
      %v5762 = vpop.f32.mrf.mxu0
      %v5763 = vadd.f32 %v5427, %v5762
      %5764 = vmatmul.bf16.gmra.mxu0 %v5056
      %v5765 = vpop.f32.mrf.mxu0
      %v5766 = vadd.f32 %v5427, %v5765
      %v5767 = vpop.f32.mrf.mxu0
      %v5768 = vadd.f32 %v5427, %v5767
      %5769 = vmatmul.bf16.gmra.mxu0 %v5059
      %v5770 = vpop.f32.mrf.mxu0
      %v5771 = vadd.f32 %v5427, %v5770
      %v5772 = vpop.f32.mrf.mxu0
      %v5773 = vadd.f32 %v5427, %v5772
      %5774 = vmatmul.bf16.gmra.mxu0 %v5062
      %v5775 = vpop.f32.mrf.mxu0
      %v5776 = vadd.f32 %v5427, %v5775
      %v5777 = vpop.f32.mrf.mxu0
      %v5778 = vadd.f32 %v5427, %v5777
      %5779 = vmatmul.bf16.gmra.mxu0 %v5065
      %v5780 = vpop.f32.mrf.mxu0
      %v5781 = vadd.f32 %v5427, %v5780
      %v5782 = vpop.f32.mrf.mxu0
      %v5783 = vadd.f32 %v5427, %v5782
      %5784 = vmatmul.bf16.gmra.mxu0 %v5068
      %v5785 = vpop.f32.mrf.mxu0
      %v5786 = vadd.f32 %v5427, %v5785
      %v5787 = vpop.f32.mrf.mxu0
      %v5788 = vadd.f32 %v5427, %v5787
      %5789 = vdwg.mxu0
      %5790 = vmatpush.bf16.msra.mxu0 %v5526
      %5791 = vmatpush.bf16.msra.mxu0 %v5525
      %5792 = vmatpush.bf16.msra.mxu0 %v5524
      %5793 = vmatpush.bf16.msra.mxu0 %v5523
      %5794 = vmatpush.bf16.msra.mxu0 %v5522
      %5795 = vmatpush.bf16.msra.mxu0 %v5521
      %5796 = vmatpush.bf16.msra.mxu0 %v5520
      %5797 = vmatpush.bf16.msra.mxu0 %v5519
      %5798 = vmatmul.bf16.gmra.mxu0 %v5267
      %v5799 = vpop.f32.mrf.mxu0
      %v5800 = vadd.f32 %v5631, %v5799
      %v5801 = vpop.f32.mrf.mxu0
      %v5802 = vadd.f32 %v5633, %v5801
      %5803 = vmatmul.bf16.gmra.mxu0 %v5270
      %v5804 = vpop.f32.mrf.mxu0
      %v5805 = vadd.f32 %v5636, %v5804
      %v5806 = vpop.f32.mrf.mxu0
      %v5807 = vadd.f32 %v5638, %v5806
      %5808 = vmatmul.bf16.gmra.mxu0 %v5273
      %v5809 = vpop.f32.mrf.mxu0
      %v5810 = vadd.f32 %v5641, %v5809
      %v5811 = vpop.f32.mrf.mxu0
      %v5812 = vadd.f32 %v5643, %v5811
      %5813 = vmatmul.bf16.gmra.mxu0 %v5276
      %v5814 = vpop.f32.mrf.mxu0
      %v5815 = vadd.f32 %v5646, %v5814
      %v5816 = vpop.f32.mrf.mxu0
      %v5817 = vadd.f32 %v5648, %v5816
      %5818 = vmatmul.bf16.gmra.mxu0 %v5279
      %v5819 = vpop.f32.mrf.mxu0
      %v5820 = vadd.f32 %v5651, %v5819
      %v5821 = vpop.f32.mrf.mxu0
      %v5822 = vadd.f32 %v5653, %v5821
      %5823 = vmatmul.bf16.gmra.mxu0 %v5282
      %v5824 = vpop.f32.mrf.mxu0
      %v5825 = vadd.f32 %v5656, %v5824
      %v5826 = vpop.f32.mrf.mxu0
      %v5827 = vadd.f32 %v5658, %v5826
      %5828 = vmatmul.bf16.gmra.mxu0 %v5285
      %v5829 = vpop.f32.mrf.mxu0
      %v5830 = vadd.f32 %v5661, %v5829
      %v5831 = vpop.f32.mrf.mxu0
      %v5832 = vadd.f32 %v5663, %v5831
      %5833 = vmatmul.bf16.gmra.mxu0 %v5288
      %v5834 = vpop.f32.mrf.mxu0
      %v5835 = vadd.f32 %v5666, %v5834
      %v5836 = vpop.f32.mrf.mxu0
      %v5837 = vadd.f32 %v5668, %v5836
      %5838 = vmatmul.bf16.gmra.mxu0 %v5291
      %v5839 = vpop.f32.mrf.mxu0
      %v5840 = vadd.f32 %v5671, %v5839
      %v5841 = vpop.f32.mrf.mxu0
      %v5842 = vadd.f32 %v5673, %v5841
      %5843 = vmatmul.bf16.gmra.mxu0 %v5294
      %v5844 = vpop.f32.mrf.mxu0
      %v5845 = vadd.f32 %v5676, %v5844
      %v5846 = vpop.f32.mrf.mxu0
      %v5847 = vadd.f32 %v5678, %v5846
      %5848 = vmatmul.bf16.gmra.mxu0 %v5297
      %v5849 = vpop.f32.mrf.mxu0
      %v5850 = vadd.f32 %v5681, %v5849
      %v5851 = vpop.f32.mrf.mxu0
      %v5852 = vadd.f32 %v5683, %v5851
      %5853 = vmatmul.bf16.gmra.mxu0 %v5300
      %v5854 = vpop.f32.mrf.mxu0
      %v5855 = vadd.f32 %v5686, %v5854
      %v5856 = vpop.f32.mrf.mxu0
      %v5857 = vadd.f32 %v5688, %v5856
      %5858 = vmatmul.bf16.gmra.mxu0 %v5303
      %v5859 = vpop.f32.mrf.mxu0
      %v5860 = vadd.f32 %v5691, %v5859
      %v5861 = vpop.f32.mrf.mxu0
      %v5862 = vadd.f32 %v5693, %v5861
      %5863 = vmatmul.bf16.gmra.mxu0 %v5306
      %v5864 = vpop.f32.mrf.mxu0
      %v5865 = vadd.f32 %v5696, %v5864
      %v5866 = vpop.f32.mrf.mxu0
      %v5867 = vadd.f32 %v5698, %v5866
      %5868 = vmatmul.bf16.gmra.mxu0 %v5309
      %v5869 = vpop.f32.mrf.mxu0
      %v5870 = vadd.f32 %v5701, %v5869
      %v5871 = vpop.f32.mrf.mxu0
      %v5872 = vadd.f32 %v5703, %v5871
      %5873 = vmatmul.bf16.gmra.mxu0 %v5312
      %v5874 = vpop.f32.mrf.mxu0
      %v5875 = vadd.f32 %v5706, %v5874
      %v5876 = vpop.f32.mrf.mxu0
      %v5877 = vadd.f32 %v5708, %v5876
      %5878 = vmatmul.bf16.gmra.mxu0 %v5315
      %v5879 = vpop.f32.mrf.mxu0
      %v5880 = vadd.f32 %v5711, %v5879
      %v5881 = vpop.f32.mrf.mxu0
      %v5882 = vadd.f32 %v5713, %v5881
      %5883 = vmatmul.bf16.gmra.mxu0 %v5318
      %v5884 = vpop.f32.mrf.mxu0
      %v5885 = vadd.f32 %v5716, %v5884
      %v5886 = vpop.f32.mrf.mxu0
      %v5887 = vadd.f32 %v5718, %v5886
      %5888 = vmatmul.bf16.gmra.mxu0 %v5321
      %v5889 = vpop.f32.mrf.mxu0
      %v5890 = vadd.f32 %v5721, %v5889
      %v5891 = vpop.f32.mrf.mxu0
      %v5892 = vadd.f32 %v5723, %v5891
      %5893 = vmatmul.bf16.gmra.mxu0 %v5324
      %v5894 = vpop.f32.mrf.mxu0
      %v5895 = vadd.f32 %v5726, %v5894
      %v5896 = vpop.f32.mrf.mxu0
      %v5897 = vadd.f32 %v5728, %v5896
      %5898 = vmatmul.bf16.gmra.mxu0 %v5327
      %v5899 = vpop.f32.mrf.mxu0
      %v5900 = vadd.f32 %v5731, %v5899
      %v5901 = vpop.f32.mrf.mxu0
      %v5902 = vadd.f32 %v5733, %v5901
      %5903 = vmatmul.bf16.gmra.mxu0 %v5330
      %v5904 = vpop.f32.mrf.mxu0
      %v5905 = vadd.f32 %v5736, %v5904
      %v5906 = vpop.f32.mrf.mxu0
      %v5907 = vadd.f32 %v5738, %v5906
      %5908 = vmatmul.bf16.gmra.mxu0 %v5333
      %v5909 = vpop.f32.mrf.mxu0
      %v5910 = vadd.f32 %v5741, %v5909
      %v5911 = vpop.f32.mrf.mxu0
      %v5912 = vadd.f32 %v5743, %v5911
      %5913 = vmatmul.bf16.gmra.mxu0 %v5336
      %v5914 = vpop.f32.mrf.mxu0
      %v5915 = vadd.f32 %v5746, %v5914
      %v5916 = vpop.f32.mrf.mxu0
      %v5917 = vadd.f32 %v5748, %v5916
      %5918 = vmatmul.bf16.gmra.mxu0 %v5339
      %v5919 = vpop.f32.mrf.mxu0
      %v5920 = vadd.f32 %v5751, %v5919
      %v5921 = vpop.f32.mrf.mxu0
      %v5922 = vadd.f32 %v5753, %v5921
      %5923 = vmatmul.bf16.gmra.mxu0 %v5342
      %v5924 = vpop.f32.mrf.mxu0
      %v5925 = vadd.f32 %v5756, %v5924
      %v5926 = vpop.f32.mrf.mxu0
      %v5927 = vadd.f32 %v5758, %v5926
      %5928 = vmatmul.bf16.gmra.mxu0 %v5345
      %v5929 = vpop.f32.mrf.mxu0
      %v5930 = vadd.f32 %v5761, %v5929
      %v5931 = vpop.f32.mrf.mxu0
      %v5932 = vadd.f32 %v5763, %v5931
      %5933 = vmatmul.bf16.gmra.mxu0 %v5348
      %v5934 = vpop.f32.mrf.mxu0
      %v5935 = vadd.f32 %v5766, %v5934
      %v5936 = vpop.f32.mrf.mxu0
      %v5937 = vadd.f32 %v5768, %v5936
      %5938 = vmatmul.bf16.gmra.mxu0 %v5351
      %v5939 = vpop.f32.mrf.mxu0
      %v5940 = vadd.f32 %v5771, %v5939
      %v5941 = vpop.f32.mrf.mxu0
      %v5942 = vadd.f32 %v5773, %v5941
      %5943 = vmatmul.bf16.gmra.mxu0 %v5354
      %v5944 = vpop.f32.mrf.mxu0
      %v5945 = vadd.f32 %v5776, %v5944
      %v5946 = vpop.f32.mrf.mxu0
      %v5947 = vadd.f32 %v5778, %v5946
      %5948 = vmatmul.bf16.gmra.mxu0 %v5357
      %v5949 = vpop.f32.mrf.mxu0
      %v5950 = vadd.f32 %v5781, %v5949
      %v5951 = vpop.f32.mrf.mxu0
      %v5952 = vadd.f32 %v5783, %v5951
      %5953 = vmatmul.bf16.gmra.mxu0 %v5360
      %v5954 = vpop.f32.mrf.mxu0
      %v5955 = vadd.f32 %v5786, %v5954
      %v5956 = vpop.f32.mrf.mxu0
      %v5957 = vadd.f32 %v5788, %v5956
      %5958 = vdwg.mxu0
      %5959 = vmatpush.bf16.msra.mxu0 0
      %5960 = vmatpush.bf16.msra.mxu0 0
      %5961 = vmatpush.bf16.msra.mxu0 0
      %5962 = vmatpush.bf16.msra.mxu0 %v5619
      %5963 = vmatpush.bf16.msra.mxu0 %v5530
      %5964 = vmatpush.bf16.msra.mxu0 %v5529
      %5965 = vmatpush.bf16.msra.mxu0 %v5528
      %5966 = vmatpush.bf16.msra.mxu0 %v5527
      %5967 = vmatmul.bf16.gmra.mxu0 %v5553
      %v5968 = vpop.f32.mrf.mxu0
      %v5969 = vadd.f32 %v5800, %v5968
      %v5970 = vpop.f32.mrf.mxu0
      %v5971 = vadd.f32 %v5802, %v5970
      %5972 = vmatmul.bf16.gmra.mxu0 %v5555
      %v5973 = vpop.f32.mrf.mxu0
      %v5974 = vadd.f32 %v5805, %v5973
      %v5975 = vpop.f32.mrf.mxu0
      %v5976 = vadd.f32 %v5807, %v5975
      %5977 = vmatmul.bf16.gmra.mxu0 %v5557
      %v5978 = vpop.f32.mrf.mxu0
      %v5979 = vadd.f32 %v5810, %v5978
      %v5980 = vpop.f32.mrf.mxu0
      %v5981 = vadd.f32 %v5812, %v5980
      %5982 = vmatmul.bf16.gmra.mxu0 %v5559
      %v5983 = vpop.f32.mrf.mxu0
      %v5984 = vadd.f32 %v5815, %v5983
      %v5985 = vpop.f32.mrf.mxu0
      %v5986 = vadd.f32 %v5817, %v5985
      %5987 = vmatmul.bf16.gmra.mxu0 %v5561
      %v5988 = vpop.f32.mrf.mxu0
      %v5989 = vadd.f32 %v5820, %v5988
      %v5990 = vpop.f32.mrf.mxu0
      %v5991 = vadd.f32 %v5822, %v5990
      %5992 = vmatmul.bf16.gmra.mxu0 %v5563
      %v5993 = vpop.f32.mrf.mxu0
      %v5994 = vadd.f32 %v5825, %v5993
      %v5995 = vpop.f32.mrf.mxu0
      %v5996 = vadd.f32 %v5827, %v5995
      %5997 = vmatmul.bf16.gmra.mxu0 %v5565
      %v5998 = vpop.f32.mrf.mxu0
      %v5999 = vadd.f32 %v5830, %v5998
      %v6000 = vpop.f32.mrf.mxu0
      %v6001 = vadd.f32 %v5832, %v6000
      %6002 = vmatmul.bf16.gmra.mxu0 %v5567
      %v6003 = vpop.f32.mrf.mxu0
      %v6004 = vadd.f32 %v5835, %v6003
      %v6005 = vpop.f32.mrf.mxu0
      %v6006 = vadd.f32 %v5837, %v6005
      %6007 = vmatmul.bf16.gmra.mxu0 %v5569
      %v6008 = vpop.f32.mrf.mxu0
      %v6009 = vadd.f32 %v5840, %v6008
      %v6010 = vpop.f32.mrf.mxu0
      %v6011 = vadd.f32 %v5842, %v6010
      %6012 = vmatmul.bf16.gmra.mxu0 %v5571
      %v6013 = vpop.f32.mrf.mxu0
      %v6014 = vadd.f32 %v5845, %v6013
      %v6015 = vpop.f32.mrf.mxu0
      %v6016 = vadd.f32 %v5847, %v6015
      %6017 = vmatmul.bf16.gmra.mxu0 %v5573
      %v6018 = vpop.f32.mrf.mxu0
      %v6019 = vadd.f32 %v5850, %v6018
      %v6020 = vpop.f32.mrf.mxu0
      %v6021 = vadd.f32 %v5852, %v6020
      %6022 = vmatmul.bf16.gmra.mxu0 %v5575
      %v6023 = vpop.f32.mrf.mxu0
      %v6024 = vadd.f32 %v5855, %v6023
      %v6025 = vpop.f32.mrf.mxu0
      %v6026 = vadd.f32 %v5857, %v6025
      %6027 = vmatmul.bf16.gmra.mxu0 %v5577
      %v6028 = vpop.f32.mrf.mxu0
      %v6029 = vadd.f32 %v5860, %v6028
      %v6030 = vpop.f32.mrf.mxu0
      %v6031 = vadd.f32 %v5862, %v6030
      %6032 = vmatmul.bf16.gmra.mxu0 %v5579
      %v6033 = vpop.f32.mrf.mxu0
      %v6034 = vadd.f32 %v5865, %v6033
      %v6035 = vpop.f32.mrf.mxu0
      %v6036 = vadd.f32 %v5867, %v6035
      %6037 = vmatmul.bf16.gmra.mxu0 %v5581
      %v6038 = vpop.f32.mrf.mxu0
      %v6039 = vadd.f32 %v5870, %v6038
      %v6040 = vpop.f32.mrf.mxu0
      %v6041 = vadd.f32 %v5872, %v6040
      %6042 = vmatmul.bf16.gmra.mxu0 %v5583
      %v6043 = vpop.f32.mrf.mxu0
      %v6044 = vadd.f32 %v5875, %v6043
      %v6045 = vpop.f32.mrf.mxu0
      %v6046 = vadd.f32 %v5877, %v6045
      %6047 = vmatmul.bf16.gmra.mxu0 %v5585
      %v6048 = vpop.f32.mrf.mxu0
      %v6049 = vadd.f32 %v5880, %v6048
      %v6050 = vpop.f32.mrf.mxu0
      %v6051 = vadd.f32 %v5882, %v6050
      %6052 = vmatmul.bf16.gmra.mxu0 %v5587
      %v6053 = vpop.f32.mrf.mxu0
      %v6054 = vadd.f32 %v5885, %v6053
      %v6055 = vpop.f32.mrf.mxu0
      %v6056 = vadd.f32 %v5887, %v6055
      %6057 = vmatmul.bf16.gmra.mxu0 %v5589
      %v6058 = vpop.f32.mrf.mxu0
      %v6059 = vadd.f32 %v5890, %v6058
      %v6060 = vpop.f32.mrf.mxu0
      %v6061 = vadd.f32 %v5892, %v6060
      %6062 = vmatmul.bf16.gmra.mxu0 %v5591
      %v6063 = vpop.f32.mrf.mxu0
      %v6064 = vadd.f32 %v5895, %v6063
      %v6065 = vpop.f32.mrf.mxu0
      %v6066 = vadd.f32 %v5897, %v6065
      %6067 = vmatmul.bf16.gmra.mxu0 %v5593
      %v6068 = vpop.f32.mrf.mxu0
      %v6069 = vadd.f32 %v5900, %v6068
      %v6070 = vpop.f32.mrf.mxu0
      %v6071 = vadd.f32 %v5902, %v6070
      %6072 = vmatmul.bf16.gmra.mxu0 %v5595
      %v6073 = vpop.f32.mrf.mxu0
      %v6074 = vadd.f32 %v5905, %v6073
      %v6075 = vpop.f32.mrf.mxu0
      %v6076 = vadd.f32 %v5907, %v6075
      %6077 = vmatmul.bf16.gmra.mxu0 %v5597
      %v6078 = vpop.f32.mrf.mxu0
      %v6079 = vadd.f32 %v5910, %v6078
      %v6080 = vpop.f32.mrf.mxu0
      %v6081 = vadd.f32 %v5912, %v6080
      %6082 = vmatmul.bf16.gmra.mxu0 %v5599
      %v6083 = vpop.f32.mrf.mxu0
      %v6084 = vadd.f32 %v5915, %v6083
      %v6085 = vpop.f32.mrf.mxu0
      %v6086 = vadd.f32 %v5917, %v6085
      %6087 = vmatmul.bf16.gmra.mxu0 %v5601
      %v6088 = vpop.f32.mrf.mxu0
      %v6089 = vadd.f32 %v5920, %v6088
      %v6090 = vpop.f32.mrf.mxu0
      %v6091 = vadd.f32 %v5922, %v6090
      %6092 = vmatmul.bf16.gmra.mxu0 %v5603
      %v6093 = vpop.f32.mrf.mxu0
      %v6094 = vadd.f32 %v5925, %v6093
      %v6095 = vpop.f32.mrf.mxu0
      %v6096 = vadd.f32 %v5927, %v6095
      %6097 = vmatmul.bf16.gmra.mxu0 %v5605
      %v6098 = vpop.f32.mrf.mxu0
      %v6099 = vadd.f32 %v5930, %v6098
      %v6100 = vpop.f32.mrf.mxu0
      %v6101 = vadd.f32 %v5932, %v6100
      %6102 = vmatmul.bf16.gmra.mxu0 %v5607
      %v6103 = vpop.f32.mrf.mxu0
      %v6104 = vadd.f32 %v5935, %v6103
      %v6105 = vpop.f32.mrf.mxu0
      %v6106 = vadd.f32 %v5937, %v6105
      %6107 = vmatmul.bf16.gmra.mxu0 %v5609
      %v6108 = vpop.f32.mrf.mxu0
      %v6109 = vadd.f32 %v5940, %v6108
      %v6110 = vpop.f32.mrf.mxu0
      %v6111 = vadd.f32 %v5942, %v6110
      %6112 = vmatmul.bf16.gmra.mxu0 %v5611
      %v6113 = vpop.f32.mrf.mxu0
      %v6114 = vadd.f32 %v5945, %v6113
      %v6115 = vpop.f32.mrf.mxu0
      %v6116 = vadd.f32 %v5947, %v6115
      %6117 = vmatmul.bf16.gmra.mxu0 %v5613
      %v6118 = vpop.f32.mrf.mxu0
      %v6119 = vadd.f32 %v5950, %v6118
      %v6120 = vpop.f32.mrf.mxu0
      %v6121 = vadd.f32 %v5952, %v6120
      %6122 = vmatmul.bf16.gmra.mxu0 %v5615
      %v6123 = vpop.f32.mrf.mxu0
      %v6124 = vadd.f32 %v5955, %v6123
      %v6125 = vpop.f32.mrf.mxu0
      %v6126 = vadd.f32 %v5957, %v6125
      %6127 = vdwg.mxu0
      %v6128 = vmax.f32 %v5969, 0.0
      %v6129 = vmax.f32 %v5971, 0.0
      %v6130 = vmax.f32 %v5974, 0.0
      %v6131 = vmax.f32 %v5976, 0.0
      %v6132 = vmax.f32 %v5979, 0.0
      %v6133 = vmax.f32 %v5981, 0.0
      %v6134 = vmax.f32 %v5984, 0.0
      %v6135 = vmax.f32 %v5986, 0.0
      %v6136 = vmax.f32 %v5989, 0.0
      %v6137 = vmax.f32 %v5991, 0.0
      %v6138 = vmax.f32 %v5994, 0.0
      %v6139 = vmax.f32 %v5996, 0.0
      %v6140 = vmax.f32 %v5999, 0.0
      %v6141 = vmax.f32 %v6001, 0.0
      %v6142 = vmax.f32 %v6004, 0.0
      %v6143 = vmax.f32 %v6006, 0.0
      %v6144 = vmax.f32 %v6009, 0.0
      %v6145 = vmax.f32 %v6011, 0.0
      %v6146 = vmax.f32 %v6014, 0.0
      %v6147 = vmax.f32 %v6016, 0.0
      %v6148 = vmax.f32 %v6019, 0.0
      %v6149 = vmax.f32 %v6021, 0.0
      %v6150 = vmax.f32 %v6024, 0.0
      %v6151 = vmax.f32 %v6026, 0.0
      %v6152 = vmax.f32 %v6029, 0.0
      %v6153 = vmax.f32 %v6031, 0.0
      %v6154 = vmax.f32 %v6034, 0.0
      %v6155 = vmax.f32 %v6036, 0.0
      %v6156 = vmax.f32 %v6039, 0.0
      %v6157 = vmax.f32 %v6041, 0.0
      %v6158 = vmax.f32 %v6044, 0.0
      %v6159 = vmax.f32 %v6046, 0.0
      %v6160 = vmax.f32 %v6049, 0.0
      %v6161 = vmax.f32 %v6051, 0.0
      %v6162 = vmax.f32 %v6054, 0.0
      %v6163 = vmax.f32 %v6056, 0.0
      %v6164 = vmax.f32 %v6059, 0.0
      %v6165 = vmax.f32 %v6061, 0.0
      %v6166 = vmax.f32 %v6064, 0.0
      %v6167 = vmax.f32 %v6066, 0.0
      %v6168 = vmax.f32 %v6069, 0.0
      %v6169 = vmax.f32 %v6071, 0.0
      %v6170 = vmax.f32 %v6074, 0.0
      %v6171 = vmax.f32 %v6076, 0.0
      %v6172 = vmax.f32 %v6079, 0.0
      %v6173 = vmax.f32 %v6081, 0.0
      %v6174 = vmax.f32 %v6084, 0.0
      %v6175 = vmax.f32 %v6086, 0.0
      %v6176 = vmax.f32 %v6089, 0.0
      %v6177 = vmax.f32 %v6091, 0.0
      %v6178 = vmax.f32 %v6094, 0.0
      %v6179 = vmax.f32 %v6096, 0.0
      %v6180 = vmax.f32 %v6099, 0.0
      %v6181 = vmax.f32 %v6101, 0.0
      %v6182 = vmax.f32 %v6104, 0.0
      %v6183 = vmax.f32 %v6106, 0.0
      %v6184 = vmax.f32 %v6109, 0.0
      %v6185 = vmax.f32 %v6111, 0.0
      %v6186 = vmax.f32 %v6114, 0.0
      %v6187 = vmax.f32 %v6116, 0.0
      %v6188 = vmax.f32 %v6119, 0.0
      %v6189 = vmax.f32 %v6121, 0.0
      %v6190 = vmax.f32 %v6124, 0.0
      %v6191 = vmax.f32 %v6126, 0.0
      %6192 = vst.msk [vmem:[%s278] sm:$0xff] %vm2477, %v6128
      %6193 = vst.msk [vmem:[%s278 + $0x8] sm:$0xff] %vm2477, %v6129
      %6194 = vst.msk [vmem:[%s278 + $0x10] sm:$0xff] %vm2477, %v6130
      %6195 = vst.msk [vmem:[%s278 + $0x18] sm:$0xff] %vm2477, %v6131
      %6196 = vst.msk [vmem:[%s278 + $0x20] sm:$0xff] %vm2477, %v6132
      %6197 = vst.msk [vmem:[%s278 + $0x28] sm:$0xff] %vm2477, %v6133
      %6198 = vst.msk [vmem:[%s278 + $0x30] sm:$0xff] %vm2477, %v6134
      %6199 = vst.msk [vmem:[%s278 + $0x38] sm:$0xff] %vm2477, %v6135
      %6200 = vst.msk [vmem:[%s278 + $0x40] sm:$0xff] %vm2477, %v6136
      %6201 = vst.msk [vmem:[%s278 + $0x48] sm:$0xff] %vm2477, %v6137
      %6202 = vst.msk [vmem:[%s278 + $0x50] sm:$0xff] %vm2477, %v6138
      %6203 = vst.msk [vmem:[%s278 + $0x58] sm:$0xff] %vm2477, %v6139
      %6204 = vst.msk [vmem:[%s278 + $0x60] sm:$0xff] %vm2477, %v6140
      %6205 = vst.msk [vmem:[%s278 + $0x68] sm:$0xff] %vm2477, %v6141
      %6206 = vst.msk [vmem:[%s278 + $0x70] sm:$0xff] %vm2477, %v6142
      %6207 = vst.msk [vmem:[%s278 + $0x78] sm:$0xff] %vm2477, %v6143
      %6208 = vst.msk [vmem:[%s278 + $0x80] sm:$0xff] %vm2477, %v6144
      %6209 = vst.msk [vmem:[%s278 + $0x88] sm:$0xff] %vm2477, %v6145
      %6210 = vst.msk [vmem:[%s278 + $0x90] sm:$0xff] %vm2477, %v6146
      %6211 = vst.msk [vmem:[%s278 + $0x98] sm:$0xff] %vm2477, %v6147
      %6212 = vst.msk [vmem:[%s278 + $0xa0] sm:$0xff] %vm2477, %v6148
      %6213 = vst.msk [vmem:[%s278 + $0xa8] sm:$0xff] %vm2477, %v6149
      %6214 = vst.msk [vmem:[%s278 + $0xb0] sm:$0xff] %vm2477, %v6150
      %6215 = vst.msk [vmem:[%s278 + $0xb8] sm:$0xff] %vm2477, %v6151
      %6216 = vst.msk [vmem:[%s278 + $0xc0] sm:$0xff] %vm2477, %v6152
      %6217 = vst.msk [vmem:[%s278 + $0xc8] sm:$0xff] %vm2477, %v6153
      %6218 = vst.msk [vmem:[%s278 + $0xd0] sm:$0xff] %vm2477, %v6154
      %6219 = vst.msk [vmem:[%s278 + $0xd8] sm:$0xff] %vm2477, %v6155
      %6220 = vst.msk [vmem:[%s278 + $0xe0] sm:$0xff] %vm2477, %v6156
      %6221 = vst.msk [vmem:[%s278 + $0xe8] sm:$0xff] %vm2477, %v6157
      %6222 = vst.msk [vmem:[%s278 + $0xf0] sm:$0xff] %vm2477, %v6158
      %6223 = vst.msk [vmem:[%s278 + $0xf8] sm:$0xff] %vm2477, %v6159
      %6224 = vst.msk [vmem:[%s278 + $0x100] sm:$0xff] %vm2477, %v6160
      %6225 = vst.msk [vmem:[%s278 + $0x108] sm:$0xff] %vm2477, %v6161
      %6226 = vst.msk [vmem:[%s278 + $0x110] sm:$0xff] %vm2477, %v6162
      %6227 = vst.msk [vmem:[%s278 + $0x118] sm:$0xff] %vm2477, %v6163
      %6228 = vst.msk [vmem:[%s278 + $0x120] sm:$0xff] %vm2477, %v6164
      %6229 = vst.msk [vmem:[%s278 + $0x128] sm:$0xff] %vm2477, %v6165
      %6230 = vst.msk [vmem:[%s278 + $0x130] sm:$0xff] %vm2477, %v6166
      %6231 = vst.msk [vmem:[%s278 + $0x138] sm:$0xff] %vm2477, %v6167
      %6232 = vst.msk [vmem:[%s278 + $0x140] sm:$0xff] %vm2477, %v6168
      %6233 = vst.msk [vmem:[%s278 + $0x148] sm:$0xff] %vm2477, %v6169
      %6234 = vst.msk [vmem:[%s278 + $0x150] sm:$0xff] %vm2477, %v6170
      %6235 = vst.msk [vmem:[%s278 + $0x158] sm:$0xff] %vm2477, %v6171
      %6236 = vst.msk [vmem:[%s278 + $0x160] sm:$0xff] %vm2477, %v6172
      %6237 = vst.msk [vmem:[%s278 + $0x168] sm:$0xff] %vm2477, %v6173
      %6238 = vst.msk [vmem:[%s278 + $0x170] sm:$0xff] %vm2477, %v6174
      %6239 = vst.msk [vmem:[%s278 + $0x178] sm:$0xff] %vm2477, %v6175
      %6240 = vst.msk [vmem:[%s278 + $0x180] sm:$0xff] %vm2477, %v6176
      %6241 = vst.msk [vmem:[%s278 + $0x188] sm:$0xff] %vm2477, %v6177
      %6242 = vst.msk [vmem:[%s278 + $0x190] sm:$0xff] %vm2477, %v6178
      %6243 = vst.msk [vmem:[%s278 + $0x198] sm:$0xff] %vm2477, %v6179
      %6244 = vst.msk [vmem:[%s278 + $0x1a0] sm:$0xff] %vm2477, %v6180
      %6245 = vst.msk [vmem:[%s278 + $0x1a8] sm:$0xff] %vm2477, %v6181
      %6246 = vst.msk [vmem:[%s278 + $0x1b0] sm:$0xff] %vm2477, %v6182
      %6247 = vst.msk [vmem:[%s278 + $0x1b8] sm:$0xff] %vm2477, %v6183
      %6248 = vst.msk [vmem:[%s278 + $0x1c0] sm:$0xff] %vm2477, %v6184
      %6249 = vst.msk [vmem:[%s278 + $0x1c8] sm:$0xff] %vm2477, %v6185
      %6250 = vst.msk [vmem:[%s278 + $0x1d0] sm:$0xff] %vm2477, %v6186
      %6251 = vst.msk [vmem:[%s278 + $0x1d8] sm:$0xff] %vm2477, %v6187
      %6252 = vst.msk [vmem:[%s278 + $0x1e0] sm:$0xff] %vm2477, %v6188
      %6253 = vst.msk [vmem:[%s278 + $0x1e8] sm:$0xff] %vm2477, %v6189
      %6254 = vst.msk [vmem:[%s278 + $0x1f0] sm:$0xff] %vm2477, %v6190
      %6255 = vst.msk [vmem:[%s278 + $0x1f8] sm:$0xff] %vm2477, %v6191
      %p6256 = scmp.lt.s32.totalorder %s18, 1
      %s6257 = scalar_select %p6256, %s18, 1
      %s6258 = smul.addr %s6257, 64
      %s6259 = smul.addr %s6258, 8
      %s6260 = scalar_lea.vmem %s7, %s6259
      // Predicated region
      $region49: #{gprb_pallas.2} parent=47 // pred_check
        %p6261 = pneg %p188
      $region50: #{gprb_pallas.2} parent=47 // pred_check_branch
        %6263 = sbr.rel (%p6261) target = $region52
      $region51: #{gprb_pallas.2} parent=47 // pred_region
        _
      $region52: #{gprb_pallas.2} parent=47 // pred_fallthru
        _
    $region48: #{gprb_pallas.2} parent=5 // pred_fallthru
      _
    %p6264 = scmp.le.s32.totalorder 2, %s13
    // Predicated region
    $region53: #{gprb_pallas.2} parent=5 // pred_check
      %p6265 = pneg %p6264
    $region54: #{gprb_pallas.2} parent=5 // pred_check_branch
      %6267 = sbr.rel (%p6265) target = $region56
    $region55: #{gprb_pallas.2} parent=5 // pred_region
      %s6268 = ssub.s32 %s13, 2
      // Predicated region
      $region57: #{gprb_pallas.2} parent=55 // pred_check
        %p6269 = pneg %p194
      $region58: #{gprb_pallas.2} parent=55 // pred_check_branch
        %6271 = sbr.rel (%p6269) target = $region60
      $region59: #{gprb_pallas.2} parent=55 // pred_region
        %p6272 = scmp.lt.s32.totalorder %s19, 1
        %s6273 = scalar_select %p6272, %s19, 1
        %s6274 = smul.addr %s6273, 64
        %s6275 = smul.addr %s6274, 8
        %s6276 = scalar_lea.vmem %s7, %s6275
      $region60: #{gprb_pallas.2} parent=55 // pred_fallthru
        _
    $region56: #{gprb_pallas.2} parent=5 // pred_fallthru
      _
  $region6: #{gprb_pallas.2} parent=0 // loop_footer
    %s17 = sadd.s32 1, %s13
  $region7: #{gprb_pallas.2} parent=0 // loop_footer_branch
    %12 = sbr.rel target = $region3
  $region8: #{gprb_pallas.2} parent=0 // loop_exit
    _

</llo_original>
